<compile_context>
chip_gen: v7x
topology: tpu7x:2x2x1
jax: 0.10.0
libtpu: 0.0.40
codegen_flags: <defaults>
</compile_context>

<pallas_src>
import math

import jax
import jax.numpy as jnp
from jax.experimental import pallas as pl
from jax.experimental.pallas import tpu as pltpu


# ----------------------------------------------------------------------------
# Synthetic body mapping (ObsTokenizer's Mapping.get_map()): key -> obs indices
# ----------------------------------------------------------------------------
MAPPING = {
    "base":   list(range(0, 6)),
    "fl_leg": list(range(6, 9)),
    "fr_leg": list(range(9, 12)),
    "rl_leg": list(range(12, 14)),
    "rr_leg": list(range(14, 16)),
    "extra":  [],  # empty group -> zero_token branch in ObsTokenizer
}

OBS_DIM = 16
EMBED_DIM = 32          # tokenizer output_dim == net embedding_dim == net.output_dim
MLP_HIDDEN = 64
N_BODIES = len(MAPPING)

B_TILE = 256            # batch elements per grid step (multiple of 128)


# ----------------------------------------------------------------------------
# Pallas kernel: one batch tile per grid step, everything fused.
# Activation layout: (features, N_BODIES * B_TILE), body n on lanes
# [n*B_TILE, (n+1)*B_TILE). Batch lives on the lane axis throughout, so the
# final per-batch value is naturally a lane-dense (1, B_TILE) row.
# ----------------------------------------------------------------------------
def body_critic_kernel(x_ref, wtok_ref, wqkv_ref, wo_ref, w1_ref, w2_ref,
                       bias_ref, wdet_ref, out_ref):
    E, H, N = EMBED_DIM, MLP_HIDDEN, N_BODIES
    bt = x_ref.shape[1]                               # B_TILE (static)

    x_aug = x_ref[...]                                # (OBS_DIM+1, Bt), last row = ones

    # --- ObsTokenizer: one dense MXU matmul for all bodies (bias folded) ------
    tok_stacked = jnp.dot(wtok_ref[...], x_aug,
                          preferred_element_type=jnp.float32)      # (N*E, Bt)
    # re-slab: body n rows [n*E,(n+1)*E) -> lanes [n*Bt,(n+1)*Bt)
    tokens = jnp.concatenate(
        [tok_stacked[n * E:(n + 1) * E, :] for n in range(N)], axis=1)  # (E, N*Bt)

    biases = bias_ref[...]                            # (5E + H + 1, 1)
    b_qkv = biases[0:3 * E, :]
    b_o = biases[3 * E:4 * E, :]
    b_1 = biases[4 * E:4 * E + H, :]
    b_2 = biases[4 * E + H:5 * E + H, :]
    b_det = biases[5 * E + H:5 * E + H + 1, :]        # (1, 1) mean detok bias

    # --- fused Q/K/V projection (1/sqrt(E) pre-folded into the Q rows) --------
    qkv = jnp.dot(wqkv_ref[...], tokens,
                  preferred_element_type=jnp.float32) + b_qkv       # (3E, N*Bt)
    q = qkv[0:E, :]
    k = qkv[E:2 * E, :]
    v = qkv[2 * E:3 * E, :]

    def slab(a, n):                                   # body n's (rows, Bt) slab
        return a[:, n * bt:(n + 1) * bt]

    # --- single-head attention over the N=6 bodies, vectorized over batch -----
    attn_slabs = []
    for n in range(N):
        qn = slab(q, n)
        s = [jnp.sum(qn * slab(k, m), axis=0, keepdims=True)        # (1, Bt)
             for m in range(N)]
        m_max = s[0]
        for m in range(1, N):
            m_max = jnp.maximum(m_max, s[m])
        p = [jnp.exp(s[m] - m_max) for m in range(N)]
        den = p[0]
        for m in range(1, N):
            den = den + p[m]
        inv = pl.reciprocal(den, approx=True)                       # EUP slot
        acc = (p[0] * inv) * slab(v, 0)
        for m in range(1, N):
            acc = acc + (p[m] * inv) * slab(v, m)
        attn_slabs.append(acc)                                      # (E, Bt)
    attn = jnp.concatenate(attn_slabs, axis=1)                      # (E, N*Bt)

    # --- output projection + residual, MLP + residual -------------------------
    h = tokens + jnp.dot(wo_ref[...], attn,
                         preferred_element_type=jnp.float32) + b_o
    hid = jnp.maximum(
        jnp.dot(w1_ref[...], h, preferred_element_type=jnp.float32) + b_1, 0.0)
    h2 = h + jnp.dot(w2_ref[...], hid,
                     preferred_element_type=jnp.float32) + b_2      # (E, N*Bt)

    # --- ValueDetokenizer: per-body Linear(E,1); 1/N mean folded into weights --
    wdet = wdet_ref[...]                                            # (N*E, 1)
    val = jnp.sum(slab(h2, 0) * wdet[0:E, :], axis=0, keepdims=True)
    for n in range(1, N):
        val = val + jnp.sum(slab(h2, n) * wdet[n * E:(n + 1) * E, :],
                            axis=0, keepdims=True)
    out_ref[...] = val + b_det                                      # (1, Bt) lane-dense


def body_critic_forward(x, packed, b_tile=B_TILE):
    """x: (B, OBS_DIM) float32 -> (B, 1) float32."""
    B = x.shape[0]
    num_tiles = (B + b_tile - 1) // b_tile
    b_pad = num_tiles * b_tile

    # transpose batch onto lanes and append a ones row (folds tokenizer bias)
    xt = jnp.concatenate([x, jnp.ones((B, 1), x.dtype)], axis=1).T  # (OBS_DIM+1, B)
    if b_pad != B:
        xt = jnp.pad(xt, ((0, 0), (0, b_pad - B)))

    d1 = OBS_DIM + 1
    const = lambda shape: pl.BlockSpec(shape, lambda i: (0, 0))
    in_specs = [
        pl.BlockSpec((d1, b_tile), lambda i: (0, i)),     # x tile (batch on lanes)
        const(packed["w_tok_t"].shape),
        const(packed["w_qkv_t"].shape),
        const(packed["w_o_t"].shape),
        const(packed["w1_t"].shape),
        const(packed["w2_t"].shape),
        const(packed["biases"].shape),
        const(packed["w_detok"].shape),
    ]
    out_specs = pl.BlockSpec((1, b_tile), lambda i: (0, i))

    out = pl.pallas_call(
        body_critic_kernel,
        out_shape=jax.ShapeDtypeStruct((1, b_pad), jnp.float32),
        grid=(num_tiles,),
        in_specs=in_specs,
        out_specs=out_specs,
        compiler_params=pltpu.CompilerParams(dimension_semantics=("parallel",)),
    )(xt, packed["w_tok_t"], packed["w_qkv_t"], packed["w_o_t"],
      packed["w1_t"], packed["w2_t"], packed["biases"], packed["w_detok"])

    return out[0, :B].reshape(B, 1)


# ----------------------------------------------------------------------------
# Parameters: raw (for the pure-JAX reference) + packed kernel operands
# ----------------------------------------------------------------------------
def init_params(key):
    def nrm(k, shape, scale=0.1):
        return scale * jax.random.normal(k, shape, jnp.float32)

    keys = jax.random.split(key, 32)
    ki = iter(keys)
    E, H, N = EMBED_DIM, MLP_HIDDEN, N_BODIES

    # Per-body tokenizer Linear(len(idx), E), scattered into (OBS_DIM, E);
    # empty group ("extra") -> zero weight & zero bias == zero_token.
    w_scat, b_tok = [], []
    for _, idx in MAPPING.items():
        w = jnp.zeros((OBS_DIM, E), jnp.float32)
        b = jnp.zeros((E,), jnp.float32)
        if len(idx) > 0:
            w = w.at[jnp.asarray(idx, jnp.int32)].set(nrm(next(ki), (len(idx), E)))
            b = nrm(next(ki), (E,))
        w_scat.append(w)
        b_tok.append(b)

    raw = {
        "w_scat": jnp.stack(w_scat, 0),   # (N, OBS_DIM, E)
        "b_tok": jnp.stack(b_tok, 0),     # (N, E)
        "wq": nrm(next(ki), (E, E)), "bq": nrm(next(ki), (E,)),
        "wk": nrm(next(ki), (E, E)), "bk": nrm(next(ki), (E,)),
        "wv": nrm(next(ki), (E, E)), "bv": nrm(next(ki), (E,)),
        "wo": nrm(next(ki), (E, E)), "bo": nrm(next(ki), (E,)),
        "w1": nrm(next(ki), (E, H)), "b1": nrm(next(ki), (H,)),
        "w2": nrm(next(ki), (H, E)), "b2": nrm(next(ki), (E,)),
        "wd": nrm(next(ki), (N, E)), "bd": nrm(next(ki), (N,)),
    }

    scale = 1.0 / math.sqrt(E)
    # (N*E, OBS_DIM+1): rows n*E.. = [W_scat_n^T | b_tok_n]
    w_tok_t = jnp.concatenate(
        [jnp.concatenate([raw["w_scat"][n].T, raw["b_tok"][n][:, None]], axis=1)
         for n in range(N)], axis=0)
    # fused transposed QKV weight; attention scale folded into the Q rows
    w_qkv_t = jnp.concatenate(
        [raw["wq"].T * scale, raw["wk"].T, raw["wv"].T], axis=0)     # (3E, E)
    # all remaining biases packed into one column operand
    biases = jnp.concatenate(
        [raw["bq"] * scale, raw["bk"], raw["bv"], raw["bo"],
         raw["b1"], raw["b2"], jnp.mean(raw["bd"])[None]], axis=0)[:, None]
    # per-body detokenizer weights with the 1/N mean folded in
    w_detok = (raw["wd"] / N).reshape(N * E, 1)

    packed = {
        "w_tok_t": w_tok_t,
        "w_qkv_t": w_qkv_t,
        "w_o_t": raw["wo"].T,
        "w1_t": raw["w1"].T,
        "w2_t": raw["w2"].T,
        "biases": biases,
        "w_detok": w_detok,
    }
    return raw, packed


def reference_forward(x, p):
    """Pure-JAX reference of the same computation (batched, natural layout)."""
    E = EMBED_DIM
    tokens = jnp.einsum("bo,noe->bne", x, p["w_scat"]) + p["b_tok"][None]
    scale = 1.0 / math.sqrt(E)
    q = jnp.einsum("bne,ef->bnf", tokens, p["wq"]) + p["bq"]
    k = jnp.einsum("bne,ef->bnf", tokens, p["wk"]) + p["bk"]
    v = jnp.einsum("bne,ef->bnf", tokens, p["wv"]) + p["bv"]
    s = jnp.einsum("bnf,bmf->bnm", q, k) * scale
    s = s - jnp.max(s, axis=-1, keepdims=True)
    pr = jnp.exp(s)
    pr = pr / jnp.sum(pr, axis=-1, keepdims=True)
    attn = jnp.einsum("bnm,bmf->bnf", pr, v)
    h = tokens + jnp.einsum("bnf,fe->bne", attn, p["wo"]) + p["bo"]
    hid = jnp.maximum(jnp.einsum("bne,eh->bnh", h, p["w1"]) + p["b1"], 0.0)
    h2 = h + jnp.einsum("bnh,he->bne", hid, p["w2"]) + p["b2"]
    vals = jnp.sum(h2 * p["wd"][None], axis=-1) + p["bd"][None]      # (B, N)
    return jnp.mean(vals, axis=1, keepdims=True)                     # (B, 1)


if __name__ == "__main__":
    key = jax.random.PRNGKey(0)
    k_x, k_p = jax.random.split(key)

    B = 512                                  # 2 grid tiles of B_TILE=256 (v7x megacore)
    x = jax.random.normal(k_x, (B, OBS_DIM), jnp.float32)
    raw, packed = init_params(k_p)

    out = jax.block_until_ready(body_critic_forward(x, packed))
    ref = reference_forward(x, raw)

    assert out.shape == (B, 1), out.shape
    max_err = float(jnp.max(jnp.abs(out - ref)))
    # approx reciprocal in the softmax denominator -> slightly relaxed tolerance
    assert jnp.allclose(out, ref, rtol=2e-2, atol=3e-3), max_err

    print("KERNEL_OK")
</pallas_src>

<mosaic_0001>
module attributes {stable_mosaic.version = 11 : i64} {
  func.func @body_critic_kernel(%arg0: i32, %arg1: memref<17x256xf32, #tpu.memory_space<vmem>>, %arg2: memref<192x17xf32, #tpu.memory_space<vmem>>, %arg3: memref<96x32xf32, #tpu.memory_space<vmem>>, %arg4: memref<32x32xf32, #tpu.memory_space<vmem>>, %arg5: memref<64x32xf32, #tpu.memory_space<vmem>>, %arg6: memref<32x64xf32, #tpu.memory_space<vmem>>, %arg7: memref<225x1xf32, #tpu.memory_space<vmem>>, %arg8: memref<192x1xf32, #tpu.memory_space<vmem>>, %arg9: memref<1x256xf32, #tpu.memory_space<vmem>>) attributes {dimension_semantics = [#tpu.dimension_semantics<parallel>], iteration_bounds = array<i64: 2>, scalar_prefetch = 0 : i64, scratch_operands = 0 : i64, tpu.core_type = #tpu.core_type<tc>, window_params = [{transform_indices = @transform_0, window_bounds = array<i64: 17, 256>}, {pipeline_mode = #tpu.pipeline_mode<synchronous>, transform_indices = @transform_1, window_bounds = array<i64: 192, 17>}, {pipeline_mode = #tpu.pipeline_mode<synchronous>, transform_indices = @transform_2, window_bounds = array<i64: 96, 32>}, {pipeline_mode = #tpu.pipeline_mode<synchronous>, transform_indices = @transform_3, window_bounds = array<i64: 32, 32>}, {pipeline_mode = #tpu.pipeline_mode<synchronous>, transform_indices = @transform_4, window_bounds = array<i64: 64, 32>}, {pipeline_mode = #tpu.pipeline_mode<synchronous>, transform_indices = @transform_5, window_bounds = array<i64: 32, 64>}, {pipeline_mode = #tpu.pipeline_mode<synchronous>, transform_indices = @transform_6, window_bounds = array<i64: 225, 1>}, {pipeline_mode = #tpu.pipeline_mode<synchronous>, transform_indices = @transform_7, window_bounds = array<i64: 192, 1>}, {transform_indices = @transform_8, window_bounds = array<i64: 1, 256>}]} {
    %c0 = arith.constant 0 : index
    %c0_0 = arith.constant 0 : index
    %0 = vector.load %arg1[%c0, %c0_0] : memref<17x256xf32, #tpu.memory_space<vmem>>, vector<17x256xf32>
    %c0_1 = arith.constant 0 : index
    %c0_2 = arith.constant 0 : index
    %1 = vector.load %arg2[%c0_1, %c0_2] : memref<192x17xf32, #tpu.memory_space<vmem>>, vector<192x17xf32>
    %cst = arith.constant dense<0.000000e+00> : vector<192x256xf32>
    %2 = tpu.matmul %1, %0, %cst {dimension_numbers = #tpu.dot_dimension_numbers<[1], [0], [0], [1], [0, 0, 1, 1], [], []>} : vector<192x17xf32>, vector<17x256xf32>, vector<192x256xf32> -> vector<192x256xf32>
    %3 = vector.extract_strided_slice %2 {offsets = [0, 0], sizes = [32, 256], strides = [1, 1]} : vector<192x256xf32> to vector<32x256xf32>
    %4 = vector.extract_strided_slice %2 {offsets = [32, 0], sizes = [32, 256], strides = [1, 1]} : vector<192x256xf32> to vector<32x256xf32>
    %5 = vector.extract_strided_slice %2 {offsets = [64, 0], sizes = [32, 256], strides = [1, 1]} : vector<192x256xf32> to vector<32x256xf32>
    %6 = vector.extract_strided_slice %2 {offsets = [96, 0], sizes = [32, 256], strides = [1, 1]} : vector<192x256xf32> to vector<32x256xf32>
    %7 = vector.extract_strided_slice %2 {offsets = [128, 0], sizes = [32, 256], strides = [1, 1]} : vector<192x256xf32> to vector<32x256xf32>
    %8 = vector.extract_strided_slice %2 {offsets = [160, 0], sizes = [32, 256], strides = [1, 1]} : vector<192x256xf32> to vector<32x256xf32>
    %9 = tpu.concatenate %3, %4, %5, %6, %7, %8 in 1 : vector<32x256xf32>, vector<32x256xf32>, vector<32x256xf32>, vector<32x256xf32>, vector<32x256xf32>, vector<32x256xf32> -> vector<32x1536xf32>
    %c0_3 = arith.constant 0 : index
    %c0_4 = arith.constant 0 : index
    %10 = vector.load %arg7[%c0_3, %c0_4] : memref<225x1xf32, #tpu.memory_space<vmem>>, vector<225x1xf32>
    %11 = vector.extract_strided_slice %10 {offsets = [0, 0], sizes = [96, 1], strides = [1, 1]} : vector<225x1xf32> to vector<96x1xf32>
    %12 = vector.extract_strided_slice %10 {offsets = [96, 0], sizes = [32, 1], strides = [1, 1]} : vector<225x1xf32> to vector<32x1xf32>
    %13 = vector.extract_strided_slice %10 {offsets = [128, 0], sizes = [64, 1], strides = [1, 1]} : vector<225x1xf32> to vector<64x1xf32>
    %14 = vector.extract_strided_slice %10 {offsets = [192, 0], sizes = [32, 1], strides = [1, 1]} : vector<225x1xf32> to vector<32x1xf32>
    %15 = vector.extract_strided_slice %10 {offsets = [224, 0], sizes = [1, 1], strides = [1, 1]} : vector<225x1xf32> to vector<1x1xf32>
    %c0_5 = arith.constant 0 : index
    %c0_6 = arith.constant 0 : index
    %16 = vector.load %arg3[%c0_5, %c0_6] : memref<96x32xf32, #tpu.memory_space<vmem>>, vector<96x32xf32>
    %cst_7 = arith.constant dense<0.000000e+00> : vector<96x1536xf32>
    %17 = tpu.matmul %16, %9, %cst_7 {dimension_numbers = #tpu.dot_dimension_numbers<[1], [0], [0], [1], [0, 0, 1, 1], [], []>} : vector<96x32xf32>, vector<32x1536xf32>, vector<96x1536xf32> -> vector<96x1536xf32>
    %18 = vector.broadcast %11 : vector<96x1xf32> to vector<96x1536xf32>
    %19 = arith.addf %17, %18 : vector<96x1536xf32>
    %20 = vector.extract_strided_slice %19 {offsets = [0, 0], sizes = [32, 1536], strides = [1, 1]} : vector<96x1536xf32> to vector<32x1536xf32>
    %21 = vector.extract_strided_slice %19 {offsets = [32, 0], sizes = [32, 1536], strides = [1, 1]} : vector<96x1536xf32> to vector<32x1536xf32>
    %22 = vector.extract_strided_slice %19 {offsets = [64, 0], sizes = [32, 1536], strides = [1, 1]} : vector<96x1536xf32> to vector<32x1536xf32>
    %23 = vector.extract_strided_slice %20 {offsets = [0, 0], sizes = [32, 256], strides = [1, 1]} : vector<32x1536xf32> to vector<32x256xf32>
    %24 = vector.extract_strided_slice %21 {offsets = [0, 0], sizes = [32, 256], strides = [1, 1]} : vector<32x1536xf32> to vector<32x256xf32>
    %25 = arith.mulf %23, %24 : vector<32x256xf32>
    %cst_8 = arith.constant dense<0.000000e+00> : vector<256xf32>
    %26 = vector.multi_reduction <add>, %25, %cst_8 [0] : vector<32x256xf32> to vector<256xf32>
    %27 = vector.shape_cast %26 : vector<256xf32> to vector<1x256xf32>
    %28 = vector.extract_strided_slice %21 {offsets = [0, 256], sizes = [32, 256], strides = [1, 1]} : vector<32x1536xf32> to vector<32x256xf32>
    %29 = arith.mulf %23, %28 : vector<32x256xf32>
    %cst_9 = arith.constant dense<0.000000e+00> : vector<256xf32>
    %30 = vector.multi_reduction <add>, %29, %cst_9 [0] : vector<32x256xf32> to vector<256xf32>
    %31 = vector.shape_cast %30 : vector<256xf32> to vector<1x256xf32>
    %32 = vector.extract_strided_slice %21 {offsets = [0, 512], sizes = [32, 256], strides = [1, 1]} : vector<32x1536xf32> to vector<32x256xf32>
    %33 = arith.mulf %23, %32 : vector<32x256xf32>
    %cst_10 = arith.constant dense<0.000000e+00> : vector<256xf32>
    %34 = vector.multi_reduction <add>, %33, %cst_10 [0] : vector<32x256xf32> to vector<256xf32>
    %35 = vector.shape_cast %34 : vector<256xf32> to vector<1x256xf32>
    %36 = vector.extract_strided_slice %21 {offsets = [0, 768], sizes = [32, 256], strides = [1, 1]} : vector<32x1536xf32> to vector<32x256xf32>
    %37 = arith.mulf %23, %36 : vector<32x256xf32>
    %cst_11 = arith.constant dense<0.000000e+00> : vector<256xf32>
    %38 = vector.multi_reduction <add>, %37, %cst_11 [0] : vector<32x256xf32> to vector<256xf32>
    %39 = vector.shape_cast %38 : vector<256xf32> to vector<1x256xf32>
    %40 = vector.extract_strided_slice %21 {offsets = [0, 1024], sizes = [32, 256], strides = [1, 1]} : vector<32x1536xf32> to vector<32x256xf32>
    %41 = arith.mulf %23, %40 : vector<32x256xf32>
    %cst_12 = arith.constant dense<0.000000e+00> : vector<256xf32>
    %42 = vector.multi_reduction <add>, %41, %cst_12 [0] : vector<32x256xf32> to vector<256xf32>
    %43 = vector.shape_cast %42 : vector<256xf32> to vector<1x256xf32>
    %44 = vector.extract_strided_slice %21 {offsets = [0, 1280], sizes = [32, 256], strides = [1, 1]} : vector<32x1536xf32> to vector<32x256xf32>
    %45 = arith.mulf %23, %44 : vector<32x256xf32>
    %cst_13 = arith.constant dense<0.000000e+00> : vector<256xf32>
    %46 = vector.multi_reduction <add>, %45, %cst_13 [0] : vector<32x256xf32> to vector<256xf32>
    %47 = vector.shape_cast %46 : vector<256xf32> to vector<1x256xf32>
    %48 = arith.maximumf %27, %31 : vector<1x256xf32>
    %49 = arith.maximumf %48, %35 : vector<1x256xf32>
    %50 = arith.maximumf %49, %39 : vector<1x256xf32>
    %51 = arith.maximumf %50, %43 : vector<1x256xf32>
    %52 = arith.maximumf %51, %47 : vector<1x256xf32>
    %53 = arith.subf %27, %52 : vector<1x256xf32>
    %54 = math.exp %53 : vector<1x256xf32>
    %55 = arith.subf %31, %52 : vector<1x256xf32>
    %56 = math.exp %55 : vector<1x256xf32>
    %57 = arith.subf %35, %52 : vector<1x256xf32>
    %58 = math.exp %57 : vector<1x256xf32>
    %59 = arith.subf %39, %52 : vector<1x256xf32>
    %60 = math.exp %59 : vector<1x256xf32>
    %61 = arith.subf %43, %52 : vector<1x256xf32>
    %62 = math.exp %61 : vector<1x256xf32>
    %63 = arith.subf %47, %52 : vector<1x256xf32>
    %64 = math.exp %63 : vector<1x256xf32>
    %65 = arith.addf %54, %56 : vector<1x256xf32>
    %66 = arith.addf %65, %58 : vector<1x256xf32>
    %67 = arith.addf %66, %60 : vector<1x256xf32>
    %68 = arith.addf %67, %62 : vector<1x256xf32>
    %69 = arith.addf %68, %64 : vector<1x256xf32>
    %70 = tpu.reciprocal %69 {approx = true} : vector<1x256xf32> -> vector<1x256xf32>
    %71 = arith.mulf %54, %70 : vector<1x256xf32>
    %72 = vector.extract_strided_slice %22 {offsets = [0, 0], sizes = [32, 256], strides = [1, 1]} : vector<32x1536xf32> to vector<32x256xf32>
    %73 = vector.broadcast %71 : vector<1x256xf32> to vector<32x256xf32>
    %74 = arith.mulf %73, %72 : vector<32x256xf32>
    %75 = arith.mulf %56, %70 : vector<1x256xf32>
    %76 = vector.extract_strided_slice %22 {offsets = [0, 256], sizes = [32, 256], strides = [1, 1]} : vector<32x1536xf32> to vector<32x256xf32>
    %77 = vector.broadcast %75 : vector<1x256xf32> to vector<32x256xf32>
    %78 = arith.mulf %77, %76 : vector<32x256xf32>
    %79 = arith.addf %74, %78 : vector<32x256xf32>
    %80 = arith.mulf %58, %70 : vector<1x256xf32>
    %81 = vector.extract_strided_slice %22 {offsets = [0, 512], sizes = [32, 256], strides = [1, 1]} : vector<32x1536xf32> to vector<32x256xf32>
    %82 = vector.broadcast %80 : vector<1x256xf32> to vector<32x256xf32>
    %83 = arith.mulf %82, %81 : vector<32x256xf32>
    %84 = arith.addf %79, %83 : vector<32x256xf32>
    %85 = arith.mulf %60, %70 : vector<1x256xf32>
    %86 = vector.extract_strided_slice %22 {offsets = [0, 768], sizes = [32, 256], strides = [1, 1]} : vector<32x1536xf32> to vector<32x256xf32>
    %87 = vector.broadcast %85 : vector<1x256xf32> to vector<32x256xf32>
    %88 = arith.mulf %87, %86 : vector<32x256xf32>
    %89 = arith.addf %84, %88 : vector<32x256xf32>
    %90 = arith.mulf %62, %70 : vector<1x256xf32>
    %91 = vector.extract_strided_slice %22 {offsets = [0, 1024], sizes = [32, 256], strides = [1, 1]} : vector<32x1536xf32> to vector<32x256xf32>
    %92 = vector.broadcast %90 : vector<1x256xf32> to vector<32x256xf32>
    %93 = arith.mulf %92, %91 : vector<32x256xf32>
    %94 = arith.addf %89, %93 : vector<32x256xf32>
    %95 = arith.mulf %64, %70 : vector<1x256xf32>
    %96 = vector.extract_strided_slice %22 {offsets = [0, 1280], sizes = [32, 256], strides = [1, 1]} : vector<32x1536xf32> to vector<32x256xf32>
    %97 = vector.broadcast %95 : vector<1x256xf32> to vector<32x256xf32>
    %98 = arith.mulf %97, %96 : vector<32x256xf32>
    %99 = arith.addf %94, %98 : vector<32x256xf32>
    %100 = vector.extract_strided_slice %20 {offsets = [0, 256], sizes = [32, 256], strides = [1, 1]} : vector<32x1536xf32> to vector<32x256xf32>
    %101 = vector.extract_strided_slice %21 {offsets = [0, 0], sizes = [32, 256], strides = [1, 1]} : vector<32x1536xf32> to vector<32x256xf32>
    %102 = arith.mulf %100, %101 : vector<32x256xf32>
    %cst_14 = arith.constant dense<0.000000e+00> : vector<256xf32>
    %103 = vector.multi_reduction <add>, %102, %cst_14 [0] : vector<32x256xf32> to vector<256xf32>
    %104 = vector.shape_cast %103 : vector<256xf32> to vector<1x256xf32>
    %105 = vector.extract_strided_slice %21 {offsets = [0, 256], sizes = [32, 256], strides = [1, 1]} : vector<32x1536xf32> to vector<32x256xf32>
    %106 = arith.mulf %100, %105 : vector<32x256xf32>
    %cst_15 = arith.constant dense<0.000000e+00> : vector<256xf32>
    %107 = vector.multi_reduction <add>, %106, %cst_15 [0] : vector<32x256xf32> to vector<256xf32>
    %108 = vector.shape_cast %107 : vector<256xf32> to vector<1x256xf32>
    %109 = vector.extract_strided_slice %21 {offsets = [0, 512], sizes = [32, 256], strides = [1, 1]} : vector<32x1536xf32> to vector<32x256xf32>
    %110 = arith.mulf %100, %109 : vector<32x256xf32>
    %cst_16 = arith.constant dense<0.000000e+00> : vector<256xf32>
    %111 = vector.multi_reduction <add>, %110, %cst_16 [0] : vector<32x256xf32> to vector<256xf32>
    %112 = vector.shape_cast %111 : vector<256xf32> to vector<1x256xf32>
    %113 = vector.extract_strided_slice %21 {offsets = [0, 768], sizes = [32, 256], strides = [1, 1]} : vector<32x1536xf32> to vector<32x256xf32>
    %114 = arith.mulf %100, %113 : vector<32x256xf32>
    %cst_17 = arith.constant dense<0.000000e+00> : vector<256xf32>
    %115 = vector.multi_reduction <add>, %114, %cst_17 [0] : vector<32x256xf32> to vector<256xf32>
    %116 = vector.shape_cast %115 : vector<256xf32> to vector<1x256xf32>
    %117 = vector.extract_strided_slice %21 {offsets = [0, 1024], sizes = [32, 256], strides = [1, 1]} : vector<32x1536xf32> to vector<32x256xf32>
    %118 = arith.mulf %100, %117 : vector<32x256xf32>
    %cst_18 = arith.constant dense<0.000000e+00> : vector<256xf32>
    %119 = vector.multi_reduction <add>, %118, %cst_18 [0] : vector<32x256xf32> to vector<256xf32>
    %120 = vector.shape_cast %119 : vector<256xf32> to vector<1x256xf32>
    %121 = vector.extract_strided_slice %21 {offsets = [0, 1280], sizes = [32, 256], strides = [1, 1]} : vector<32x1536xf32> to vector<32x256xf32>
    %122 = arith.mulf %100, %121 : vector<32x256xf32>
    %cst_19 = arith.constant dense<0.000000e+00> : vector<256xf32>
    %123 = vector.multi_reduction <add>, %122, %cst_19 [0] : vector<32x256xf32> to vector<256xf32>
    %124 = vector.shape_cast %123 : vector<256xf32> to vector<1x256xf32>
    %125 = arith.maximumf %104, %108 : vector<1x256xf32>
    %126 = arith.maximumf %125, %112 : vector<1x256xf32>
    %127 = arith.maximumf %126, %116 : vector<1x256xf32>
    %128 = arith.maximumf %127, %120 : vector<1x256xf32>
    %129 = arith.maximumf %128, %124 : vector<1x256xf32>
    %130 = arith.subf %104, %129 : vector<1x256xf32>
    %131 = math.exp %130 : vector<1x256xf32>
    %132 = arith.subf %108, %129 : vector<1x256xf32>
    %133 = math.exp %132 : vector<1x256xf32>
    %134 = arith.subf %112, %129 : vector<1x256xf32>
    %135 = math.exp %134 : vector<1x256xf32>
    %136 = arith.subf %116, %129 : vector<1x256xf32>
    %137 = math.exp %136 : vector<1x256xf32>
    %138 = arith.subf %120, %129 : vector<1x256xf32>
    %139 = math.exp %138 : vector<1x256xf32>
    %140 = arith.subf %124, %129 : vector<1x256xf32>
    %141 = math.exp %140 : vector<1x256xf32>
    %142 = arith.addf %131, %133 : vector<1x256xf32>
    %143 = arith.addf %142, %135 : vector<1x256xf32>
    %144 = arith.addf %143, %137 : vector<1x256xf32>
    %145 = arith.addf %144, %139 : vector<1x256xf32>
    %146 = arith.addf %145, %141 : vector<1x256xf32>
    %147 = tpu.reciprocal %146 {approx = true} : vector<1x256xf32> -> vector<1x256xf32>
    %148 = arith.mulf %131, %147 : vector<1x256xf32>
    %149 = vector.extract_strided_slice %22 {offsets = [0, 0], sizes = [32, 256], strides = [1, 1]} : vector<32x1536xf32> to vector<32x256xf32>
    %150 = vector.broadcast %148 : vector<1x256xf32> to vector<32x256xf32>
    %151 = arith.mulf %150, %149 : vector<32x256xf32>
    %152 = arith.mulf %133, %147 : vector<1x256xf32>
    %153 = vector.extract_strided_slice %22 {offsets = [0, 256], sizes = [32, 256], strides = [1, 1]} : vector<32x1536xf32> to vector<32x256xf32>
    %154 = vector.broadcast %152 : vector<1x256xf32> to vector<32x256xf32>
    %155 = arith.mulf %154, %153 : vector<32x256xf32>
    %156 = arith.addf %151, %155 : vector<32x256xf32>
    %157 = arith.mulf %135, %147 : vector<1x256xf32>
    %158 = vector.extract_strided_slice %22 {offsets = [0, 512], sizes = [32, 256], strides = [1, 1]} : vector<32x1536xf32> to vector<32x256xf32>
    %159 = vector.broadcast %157 : vector<1x256xf32> to vector<32x256xf32>
    %160 = arith.mulf %159, %158 : vector<32x256xf32>
    %161 = arith.addf %156, %160 : vector<32x256xf32>
    %162 = arith.mulf %137, %147 : vector<1x256xf32>
    %163 = vector.extract_strided_slice %22 {offsets = [0, 768], sizes = [32, 256], strides = [1, 1]} : vector<32x1536xf32> to vector<32x256xf32>
    %164 = vector.broadcast %162 : vector<1x256xf32> to vector<32x256xf32>
    %165 = arith.mulf %164, %163 : vector<32x256xf32>
    %166 = arith.addf %161, %165 : vector<32x256xf32>
    %167 = arith.mulf %139, %147 : vector<1x256xf32>
    %168 = vector.extract_strided_slice %22 {offsets = [0, 1024], sizes = [32, 256], strides = [1, 1]} : vector<32x1536xf32> to vector<32x256xf32>
    %169 = vector.broadcast %167 : vector<1x256xf32> to vector<32x256xf32>
    %170 = arith.mulf %169, %168 : vector<32x256xf32>
    %171 = arith.addf %166, %170 : vector<32x256xf32>
    %172 = arith.mulf %141, %147 : vector<1x256xf32>
    %173 = vector.extract_strided_slice %22 {offsets = [0, 1280], sizes = [32, 256], strides = [1, 1]} : vector<32x1536xf32> to vector<32x256xf32>
    %174 = vector.broadcast %172 : vector<1x256xf32> to vector<32x256xf32>
    %175 = arith.mulf %174, %173 : vector<32x256xf32>
    %176 = arith.addf %171, %175 : vector<32x256xf32>
    %177 = vector.extract_strided_slice %20 {offsets = [0, 512], sizes = [32, 256], strides = [1, 1]} : vector<32x1536xf32> to vector<32x256xf32>
    %178 = vector.extract_strided_slice %21 {offsets = [0, 0], sizes = [32, 256], strides = [1, 1]} : vector<32x1536xf32> to vector<32x256xf32>
    %179 = arith.mulf %177, %178 : vector<32x256xf32>
    %cst_20 = arith.constant dense<0.000000e+00> : vector<256xf32>
    %180 = vector.multi_reduction <add>, %179, %cst_20 [0] : vector<32x256xf32> to vector<256xf32>
    %181 = vector.shape_cast %180 : vector<256xf32> to vector<1x256xf32>
    %182 = vector.extract_strided_slice %21 {offsets = [0, 256], sizes = [32, 256], strides = [1, 1]} : vector<32x1536xf32> to vector<32x256xf32>
    %183 = arith.mulf %177, %182 : vector<32x256xf32>
    %cst_21 = arith.constant dense<0.000000e+00> : vector<256xf32>
    %184 = vector.multi_reduction <add>, %183, %cst_21 [0] : vector<32x256xf32> to vector<256xf32>
    %185 = vector.shape_cast %184 : vector<256xf32> to vector<1x256xf32>
    %186 = vector.extract_strided_slice %21 {offsets = [0, 512], sizes = [32, 256], strides = [1, 1]} : vector<32x1536xf32> to vector<32x256xf32>
    %187 = arith.mulf %177, %186 : vector<32x256xf32>
    %cst_22 = arith.constant dense<0.000000e+00> : vector<256xf32>
    %188 = vector.multi_reduction <add>, %187, %cst_22 [0] : vector<32x256xf32> to vector<256xf32>
    %189 = vector.shape_cast %188 : vector<256xf32> to vector<1x256xf32>
    %190 = vector.extract_strided_slice %21 {offsets = [0, 768], sizes = [32, 256], strides = [1, 1]} : vector<32x1536xf32> to vector<32x256xf32>
    %191 = arith.mulf %177, %190 : vector<32x256xf32>
    %cst_23 = arith.constant dense<0.000000e+00> : vector<256xf32>
    %192 = vector.multi_reduction <add>, %191, %cst_23 [0] : vector<32x256xf32> to vector<256xf32>
    %193 = vector.shape_cast %192 : vector<256xf32> to vector<1x256xf32>
    %194 = vector.extract_strided_slice %21 {offsets = [0, 1024], sizes = [32, 256], strides = [1, 1]} : vector<32x1536xf32> to vector<32x256xf32>
    %195 = arith.mulf %177, %194 : vector<32x256xf32>
    %cst_24 = arith.constant dense<0.000000e+00> : vector<256xf32>
    %196 = vector.multi_reduction <add>, %195, %cst_24 [0] : vector<32x256xf32> to vector<256xf32>
    %197 = vector.shape_cast %196 : vector<256xf32> to vector<1x256xf32>
    %198 = vector.extract_strided_slice %21 {offsets = [0, 1280], sizes = [32, 256], strides = [1, 1]} : vector<32x1536xf32> to vector<32x256xf32>
    %199 = arith.mulf %177, %198 : vector<32x256xf32>
    %cst_25 = arith.constant dense<0.000000e+00> : vector<256xf32>
    %200 = vector.multi_reduction <add>, %199, %cst_25 [0] : vector<32x256xf32> to vector<256xf32>
    %201 = vector.shape_cast %200 : vector<256xf32> to vector<1x256xf32>
    %202 = arith.maximumf %181, %185 : vector<1x256xf32>
    %203 = arith.maximumf %202, %189 : vector<1x256xf32>
    %204 = arith.maximumf %203, %193 : vector<1x256xf32>
    %205 = arith.maximumf %204, %197 : vector<1x256xf32>
    %206 = arith.maximumf %205, %201 : vector<1x256xf32>
    %207 = arith.subf %181, %206 : vector<1x256xf32>
    %208 = math.exp %207 : vector<1x256xf32>
    %209 = arith.subf %185, %206 : vector<1x256xf32>
    %210 = math.exp %209 : vector<1x256xf32>
    %211 = arith.subf %189, %206 : vector<1x256xf32>
    %212 = math.exp %211 : vector<1x256xf32>
    %213 = arith.subf %193, %206 : vector<1x256xf32>
    %214 = math.exp %213 : vector<1x256xf32>
    %215 = arith.subf %197, %206 : vector<1x256xf32>
    %216 = math.exp %215 : vector<1x256xf32>
    %217 = arith.subf %201, %206 : vector<1x256xf32>
    %218 = math.exp %217 : vector<1x256xf32>
    %219 = arith.addf %208, %210 : vector<1x256xf32>
    %220 = arith.addf %219, %212 : vector<1x256xf32>
    %221 = arith.addf %220, %214 : vector<1x256xf32>
    %222 = arith.addf %221, %216 : vector<1x256xf32>
    %223 = arith.addf %222, %218 : vector<1x256xf32>
    %224 = tpu.reciprocal %223 {approx = true} : vector<1x256xf32> -> vector<1x256xf32>
    %225 = arith.mulf %208, %224 : vector<1x256xf32>
    %226 = vector.extract_strided_slice %22 {offsets = [0, 0], sizes = [32, 256], strides = [1, 1]} : vector<32x1536xf32> to vector<32x256xf32>
    %227 = vector.broadcast %225 : vector<1x256xf32> to vector<32x256xf32>
    %228 = arith.mulf %227, %226 : vector<32x256xf32>
    %229 = arith.mulf %210, %224 : vector<1x256xf32>
    %230 = vector.extract_strided_slice %22 {offsets = [0, 256], sizes = [32, 256], strides = [1, 1]} : vector<32x1536xf32> to vector<32x256xf32>
    %231 = vector.broadcast %229 : vector<1x256xf32> to vector<32x256xf32>
    %232 = arith.mulf %231, %230 : vector<32x256xf32>
    %233 = arith.addf %228, %232 : vector<32x256xf32>
    %234 = arith.mulf %212, %224 : vector<1x256xf32>
    %235 = vector.extract_strided_slice %22 {offsets = [0, 512], sizes = [32, 256], strides = [1, 1]} : vector<32x1536xf32> to vector<32x256xf32>
    %236 = vector.broadcast %234 : vector<1x256xf32> to vector<32x256xf32>
    %237 = arith.mulf %236, %235 : vector<32x256xf32>
    %238 = arith.addf %233, %237 : vector<32x256xf32>
    %239 = arith.mulf %214, %224 : vector<1x256xf32>
    %240 = vector.extract_strided_slice %22 {offsets = [0, 768], sizes = [32, 256], strides = [1, 1]} : vector<32x1536xf32> to vector<32x256xf32>
    %241 = vector.broadcast %239 : vector<1x256xf32> to vector<32x256xf32>
    %242 = arith.mulf %241, %240 : vector<32x256xf32>
    %243 = arith.addf %238, %242 : vector<32x256xf32>
    %244 = arith.mulf %216, %224 : vector<1x256xf32>
    %245 = vector.extract_strided_slice %22 {offsets = [0, 1024], sizes = [32, 256], strides = [1, 1]} : vector<32x1536xf32> to vector<32x256xf32>
    %246 = vector.broadcast %244 : vector<1x256xf32> to vector<32x256xf32>
    %247 = arith.mulf %246, %245 : vector<32x256xf32>
    %248 = arith.addf %243, %247 : vector<32x256xf32>
    %249 = arith.mulf %218, %224 : vector<1x256xf32>
    %250 = vector.extract_strided_slice %22 {offsets = [0, 1280], sizes = [32, 256], strides = [1, 1]} : vector<32x1536xf32> to vector<32x256xf32>
    %251 = vector.broadcast %249 : vector<1x256xf32> to vector<32x256xf32>
    %252 = arith.mulf %251, %250 : vector<32x256xf32>
    %253 = arith.addf %248, %252 : vector<32x256xf32>
    %254 = vector.extract_strided_slice %20 {offsets = [0, 768], sizes = [32, 256], strides = [1, 1]} : vector<32x1536xf32> to vector<32x256xf32>
    %255 = vector.extract_strided_slice %21 {offsets = [0, 0], sizes = [32, 256], strides = [1, 1]} : vector<32x1536xf32> to vector<32x256xf32>
    %256 = arith.mulf %254, %255 : vector<32x256xf32>
    %cst_26 = arith.constant dense<0.000000e+00> : vector<256xf32>
    %257 = vector.multi_reduction <add>, %256, %cst_26 [0] : vector<32x256xf32> to vector<256xf32>
    %258 = vector.shape_cast %257 : vector<256xf32> to vector<1x256xf32>
    %259 = vector.extract_strided_slice %21 {offsets = [0, 256], sizes = [32, 256], strides = [1, 1]} : vector<32x1536xf32> to vector<32x256xf32>
    %260 = arith.mulf %254, %259 : vector<32x256xf32>
    %cst_27 = arith.constant dense<0.000000e+00> : vector<256xf32>
    %261 = vector.multi_reduction <add>, %260, %cst_27 [0] : vector<32x256xf32> to vector<256xf32>
    %262 = vector.shape_cast %261 : vector<256xf32> to vector<1x256xf32>
    %263 = vector.extract_strided_slice %21 {offsets = [0, 512], sizes = [32, 256], strides = [1, 1]} : vector<32x1536xf32> to vector<32x256xf32>
    %264 = arith.mulf %254, %263 : vector<32x256xf32>
    %cst_28 = arith.constant dense<0.000000e+00> : vector<256xf32>
    %265 = vector.multi_reduction <add>, %264, %cst_28 [0] : vector<32x256xf32> to vector<256xf32>
    %266 = vector.shape_cast %265 : vector<256xf32> to vector<1x256xf32>
    %267 = vector.extract_strided_slice %21 {offsets = [0, 768], sizes = [32, 256], strides = [1, 1]} : vector<32x1536xf32> to vector<32x256xf32>
    %268 = arith.mulf %254, %267 : vector<32x256xf32>
    %cst_29 = arith.constant dense<0.000000e+00> : vector<256xf32>
    %269 = vector.multi_reduction <add>, %268, %cst_29 [0] : vector<32x256xf32> to vector<256xf32>
    %270 = vector.shape_cast %269 : vector<256xf32> to vector<1x256xf32>
    %271 = vector.extract_strided_slice %21 {offsets = [0, 1024], sizes = [32, 256], strides = [1, 1]} : vector<32x1536xf32> to vector<32x256xf32>
    %272 = arith.mulf %254, %271 : vector<32x256xf32>
    %cst_30 = arith.constant dense<0.000000e+00> : vector<256xf32>
    %273 = vector.multi_reduction <add>, %272, %cst_30 [0] : vector<32x256xf32> to vector<256xf32>
    %274 = vector.shape_cast %273 : vector<256xf32> to vector<1x256xf32>
    %275 = vector.extract_strided_slice %21 {offsets = [0, 1280], sizes = [32, 256], strides = [1, 1]} : vector<32x1536xf32> to vector<32x256xf32>
    %276 = arith.mulf %254, %275 : vector<32x256xf32>
    %cst_31 = arith.constant dense<0.000000e+00> : vector<256xf32>
    %277 = vector.multi_reduction <add>, %276, %cst_31 [0] : vector<32x256xf32> to vector<256xf32>
    %278 = vector.shape_cast %277 : vector<256xf32> to vector<1x256xf32>
    %279 = arith.maximumf %258, %262 : vector<1x256xf32>
    %280 = arith.maximumf %279, %266 : vector<1x256xf32>
    %281 = arith.maximumf %280, %270 : vector<1x256xf32>
    %282 = arith.maximumf %281, %274 : vector<1x256xf32>
    %283 = arith.maximumf %282, %278 : vector<1x256xf32>
    %284 = arith.subf %258, %283 : vector<1x256xf32>
    %285 = math.exp %284 : vector<1x256xf32>
    %286 = arith.subf %262, %283 : vector<1x256xf32>
    %287 = math.exp %286 : vector<1x256xf32>
    %288 = arith.subf %266, %283 : vector<1x256xf32>
    %289 = math.exp %288 : vector<1x256xf32>
    %290 = arith.subf %270, %283 : vector<1x256xf32>
    %291 = math.exp %290 : vector<1x256xf32>
    %292 = arith.subf %274, %283 : vector<1x256xf32>
    %293 = math.exp %292 : vector<1x256xf32>
    %294 = arith.subf %278, %283 : vector<1x256xf32>
    %295 = math.exp %294 : vector<1x256xf32>
    %296 = arith.addf %285, %287 : vector<1x256xf32>
    %297 = arith.addf %296, %289 : vector<1x256xf32>
    %298 = arith.addf %297, %291 : vector<1x256xf32>
    %299 = arith.addf %298, %293 : vector<1x256xf32>
    %300 = arith.addf %299, %295 : vector<1x256xf32>
    %301 = tpu.reciprocal %300 {approx = true} : vector<1x256xf32> -> vector<1x256xf32>
    %302 = arith.mulf %285, %301 : vector<1x256xf32>
    %303 = vector.extract_strided_slice %22 {offsets = [0, 0], sizes = [32, 256], strides = [1, 1]} : vector<32x1536xf32> to vector<32x256xf32>
    %304 = vector.broadcast %302 : vector<1x256xf32> to vector<32x256xf32>
    %305 = arith.mulf %304, %303 : vector<32x256xf32>
    %306 = arith.mulf %287, %301 : vector<1x256xf32>
    %307 = vector.extract_strided_slice %22 {offsets = [0, 256], sizes = [32, 256], strides = [1, 1]} : vector<32x1536xf32> to vector<32x256xf32>
    %308 = vector.broadcast %306 : vector<1x256xf32> to vector<32x256xf32>
    %309 = arith.mulf %308, %307 : vector<32x256xf32>
    %310 = arith.addf %305, %309 : vector<32x256xf32>
    %311 = arith.mulf %289, %301 : vector<1x256xf32>
    %312 = vector.extract_strided_slice %22 {offsets = [0, 512], sizes = [32, 256], strides = [1, 1]} : vector<32x1536xf32> to vector<32x256xf32>
    %313 = vector.broadcast %311 : vector<1x256xf32> to vector<32x256xf32>
    %314 = arith.mulf %313, %312 : vector<32x256xf32>
    %315 = arith.addf %310, %314 : vector<32x256xf32>
    %316 = arith.mulf %291, %301 : vector<1x256xf32>
    %317 = vector.extract_strided_slice %22 {offsets = [0, 768], sizes = [32, 256], strides = [1, 1]} : vector<32x1536xf32> to vector<32x256xf32>
    %318 = vector.broadcast %316 : vector<1x256xf32> to vector<32x256xf32>
    %319 = arith.mulf %318, %317 : vector<32x256xf32>
    %320 = arith.addf %315, %319 : vector<32x256xf32>
    %321 = arith.mulf %293, %301 : vector<1x256xf32>
    %322 = vector.extract_strided_slice %22 {offsets = [0, 1024], sizes = [32, 256], strides = [1, 1]} : vector<32x1536xf32> to vector<32x256xf32>
    %323 = vector.broadcast %321 : vector<1x256xf32> to vector<32x256xf32>
    %324 = arith.mulf %323, %322 : vector<32x256xf32>
    %325 = arith.addf %320, %324 : vector<32x256xf32>
    %326 = arith.mulf %295, %301 : vector<1x256xf32>
    %327 = vector.extract_strided_slice %22 {offsets = [0, 1280], sizes = [32, 256], strides = [1, 1]} : vector<32x1536xf32> to vector<32x256xf32>
    %328 = vector.broadcast %326 : vector<1x256xf32> to vector<32x256xf32>
    %329 = arith.mulf %328, %327 : vector<32x256xf32>
    %330 = arith.addf %325, %329 : vector<32x256xf32>
    %331 = vector.extract_strided_slice %20 {offsets = [0, 1024], sizes = [32, 256], strides = [1, 1]} : vector<32x1536xf32> to vector<32x256xf32>
    %332 = vector.extract_strided_slice %21 {offsets = [0, 0], sizes = [32, 256], strides = [1, 1]} : vector<32x1536xf32> to vector<32x256xf32>
    %333 = arith.mulf %331, %332 : vector<32x256xf32>
    %cst_32 = arith.constant dense<0.000000e+00> : vector<256xf32>
    %334 = vector.multi_reduction <add>, %333, %cst_32 [0] : vector<32x256xf32> to vector<256xf32>
    %335 = vector.shape_cast %334 : vector<256xf32> to vector<1x256xf32>
    %336 = vector.extract_strided_slice %21 {offsets = [0, 256], sizes = [32, 256], strides = [1, 1]} : vector<32x1536xf32> to vector<32x256xf32>
    %337 = arith.mulf %331, %336 : vector<32x256xf32>
    %cst_33 = arith.constant dense<0.000000e+00> : vector<256xf32>
    %338 = vector.multi_reduction <add>, %337, %cst_33 [0] : vector<32x256xf32> to vector<256xf32>
    %339 = vector.shape_cast %338 : vector<256xf32> to vector<1x256xf32>
    %340 = vector.extract_strided_slice %21 {offsets = [0, 512], sizes = [32, 256], strides = [1, 1]} : vector<32x1536xf32> to vector<32x256xf32>
    %341 = arith.mulf %331, %340 : vector<32x256xf32>
    %cst_34 = arith.constant dense<0.000000e+00> : vector<256xf32>
    %342 = vector.multi_reduction <add>, %341, %cst_34 [0] : vector<32x256xf32> to vector<256xf32>
    %343 = vector.shape_cast %342 : vector<256xf32> to vector<1x256xf32>
    %344 = vector.extract_strided_slice %21 {offsets = [0, 768], sizes = [32, 256], strides = [1, 1]} : vector<32x1536xf32> to vector<32x256xf32>
    %345 = arith.mulf %331, %344 : vector<32x256xf32>
    %cst_35 = arith.constant dense<0.000000e+00> : vector<256xf32>
    %346 = vector.multi_reduction <add>, %345, %cst_35 [0] : vector<32x256xf32> to vector<256xf32>
    %347 = vector.shape_cast %346 : vector<256xf32> to vector<1x256xf32>
    %348 = vector.extract_strided_slice %21 {offsets = [0, 1024], sizes = [32, 256], strides = [1, 1]} : vector<32x1536xf32> to vector<32x256xf32>
    %349 = arith.mulf %331, %348 : vector<32x256xf32>
    %cst_36 = arith.constant dense<0.000000e+00> : vector<256xf32>
    %350 = vector.multi_reduction <add>, %349, %cst_36 [0] : vector<32x256xf32> to vector<256xf32>
    %351 = vector.shape_cast %350 : vector<256xf32> to vector<1x256xf32>
    %352 = vector.extract_strided_slice %21 {offsets = [0, 1280], sizes = [32, 256], strides = [1, 1]} : vector<32x1536xf32> to vector<32x256xf32>
    %353 = arith.mulf %331, %352 : vector<32x256xf32>
    %cst_37 = arith.constant dense<0.000000e+00> : vector<256xf32>
    %354 = vector.multi_reduction <add>, %353, %cst_37 [0] : vector<32x256xf32> to vector<256xf32>
    %355 = vector.shape_cast %354 : vector<256xf32> to vector<1x256xf32>
    %356 = arith.maximumf %335, %339 : vector<1x256xf32>
    %357 = arith.maximumf %356, %343 : vector<1x256xf32>
    %358 = arith.maximumf %357, %347 : vector<1x256xf32>
    %359 = arith.maximumf %358, %351 : vector<1x256xf32>
    %360 = arith.maximumf %359, %355 : vector<1x256xf32>
    %361 = arith.subf %335, %360 : vector<1x256xf32>
    %362 = math.exp %361 : vector<1x256xf32>
    %363 = arith.subf %339, %360 : vector<1x256xf32>
    %364 = math.exp %363 : vector<1x256xf32>
    %365 = arith.subf %343, %360 : vector<1x256xf32>
    %366 = math.exp %365 : vector<1x256xf32>
    %367 = arith.subf %347, %360 : vector<1x256xf32>
    %368 = math.exp %367 : vector<1x256xf32>
    %369 = arith.subf %351, %360 : vector<1x256xf32>
    %370 = math.exp %369 : vector<1x256xf32>
    %371 = arith.subf %355, %360 : vector<1x256xf32>
    %372 = math.exp %371 : vector<1x256xf32>
    %373 = arith.addf %362, %364 : vector<1x256xf32>
    %374 = arith.addf %373, %366 : vector<1x256xf32>
    %375 = arith.addf %374, %368 : vector<1x256xf32>
    %376 = arith.addf %375, %370 : vector<1x256xf32>
    %377 = arith.addf %376, %372 : vector<1x256xf32>
    %378 = tpu.reciprocal %377 {approx = true} : vector<1x256xf32> -> vector<1x256xf32>
    %379 = arith.mulf %362, %378 : vector<1x256xf32>
    %380 = vector.extract_strided_slice %22 {offsets = [0, 0], sizes = [32, 256], strides = [1, 1]} : vector<32x1536xf32> to vector<32x256xf32>
    %381 = vector.broadcast %379 : vector<1x256xf32> to vector<32x256xf32>
    %382 = arith.mulf %381, %380 : vector<32x256xf32>
    %383 = arith.mulf %364, %378 : vector<1x256xf32>
    %384 = vector.extract_strided_slice %22 {offsets = [0, 256], sizes = [32, 256], strides = [1, 1]} : vector<32x1536xf32> to vector<32x256xf32>
    %385 = vector.broadcast %383 : vector<1x256xf32> to vector<32x256xf32>
    %386 = arith.mulf %385, %384 : vector<32x256xf32>
    %387 = arith.addf %382, %386 : vector<32x256xf32>
    %388 = arith.mulf %366, %378 : vector<1x256xf32>
    %389 = vector.extract_strided_slice %22 {offsets = [0, 512], sizes = [32, 256], strides = [1, 1]} : vector<32x1536xf32> to vector<32x256xf32>
    %390 = vector.broadcast %388 : vector<1x256xf32> to vector<32x256xf32>
    %391 = arith.mulf %390, %389 : vector<32x256xf32>
    %392 = arith.addf %387, %391 : vector<32x256xf32>
    %393 = arith.mulf %368, %378 : vector<1x256xf32>
    %394 = vector.extract_strided_slice %22 {offsets = [0, 768], sizes = [32, 256], strides = [1, 1]} : vector<32x1536xf32> to vector<32x256xf32>
    %395 = vector.broadcast %393 : vector<1x256xf32> to vector<32x256xf32>
    %396 = arith.mulf %395, %394 : vector<32x256xf32>
    %397 = arith.addf %392, %396 : vector<32x256xf32>
    %398 = arith.mulf %370, %378 : vector<1x256xf32>
    %399 = vector.extract_strided_slice %22 {offsets = [0, 1024], sizes = [32, 256], strides = [1, 1]} : vector<32x1536xf32> to vector<32x256xf32>
    %400 = vector.broadcast %398 : vector<1x256xf32> to vector<32x256xf32>
    %401 = arith.mulf %400, %399 : vector<32x256xf32>
    %402 = arith.addf %397, %401 : vector<32x256xf32>
    %403 = arith.mulf %372, %378 : vector<1x256xf32>
    %404 = vector.extract_strided_slice %22 {offsets = [0, 1280], sizes = [32, 256], strides = [1, 1]} : vector<32x1536xf32> to vector<32x256xf32>
    %405 = vector.broadcast %403 : vector<1x256xf32> to vector<32x256xf32>
    %406 = arith.mulf %405, %404 : vector<32x256xf32>
    %407 = arith.addf %402, %406 : vector<32x256xf32>
    %408 = vector.extract_strided_slice %20 {offsets = [0, 1280], sizes = [32, 256], strides = [1, 1]} : vector<32x1536xf32> to vector<32x256xf32>
    %409 = vector.extract_strided_slice %21 {offsets = [0, 0], sizes = [32, 256], strides = [1, 1]} : vector<32x1536xf32> to vector<32x256xf32>
    %410 = arith.mulf %408, %409 : vector<32x256xf32>
    %cst_38 = arith.constant dense<0.000000e+00> : vector<256xf32>
    %411 = vector.multi_reduction <add>, %410, %cst_38 [0] : vector<32x256xf32> to vector<256xf32>
    %412 = vector.shape_cast %411 : vector<256xf32> to vector<1x256xf32>
    %413 = vector.extract_strided_slice %21 {offsets = [0, 256], sizes = [32, 256], strides = [1, 1]} : vector<32x1536xf32> to vector<32x256xf32>
    %414 = arith.mulf %408, %413 : vector<32x256xf32>
    %cst_39 = arith.constant dense<0.000000e+00> : vector<256xf32>
    %415 = vector.multi_reduction <add>, %414, %cst_39 [0] : vector<32x256xf32> to vector<256xf32>
    %416 = vector.shape_cast %415 : vector<256xf32> to vector<1x256xf32>
    %417 = vector.extract_strided_slice %21 {offsets = [0, 512], sizes = [32, 256], strides = [1, 1]} : vector<32x1536xf32> to vector<32x256xf32>
    %418 = arith.mulf %408, %417 : vector<32x256xf32>
    %cst_40 = arith.constant dense<0.000000e+00> : vector<256xf32>
    %419 = vector.multi_reduction <add>, %418, %cst_40 [0] : vector<32x256xf32> to vector<256xf32>
    %420 = vector.shape_cast %419 : vector<256xf32> to vector<1x256xf32>
    %421 = vector.extract_strided_slice %21 {offsets = [0, 768], sizes = [32, 256], strides = [1, 1]} : vector<32x1536xf32> to vector<32x256xf32>
    %422 = arith.mulf %408, %421 : vector<32x256xf32>
    %cst_41 = arith.constant dense<0.000000e+00> : vector<256xf32>
    %423 = vector.multi_reduction <add>, %422, %cst_41 [0] : vector<32x256xf32> to vector<256xf32>
    %424 = vector.shape_cast %423 : vector<256xf32> to vector<1x256xf32>
    %425 = vector.extract_strided_slice %21 {offsets = [0, 1024], sizes = [32, 256], strides = [1, 1]} : vector<32x1536xf32> to vector<32x256xf32>
    %426 = arith.mulf %408, %425 : vector<32x256xf32>
    %cst_42 = arith.constant dense<0.000000e+00> : vector<256xf32>
    %427 = vector.multi_reduction <add>, %426, %cst_42 [0] : vector<32x256xf32> to vector<256xf32>
    %428 = vector.shape_cast %427 : vector<256xf32> to vector<1x256xf32>
    %429 = vector.extract_strided_slice %21 {offsets = [0, 1280], sizes = [32, 256], strides = [1, 1]} : vector<32x1536xf32> to vector<32x256xf32>
    %430 = arith.mulf %408, %429 : vector<32x256xf32>
    %cst_43 = arith.constant dense<0.000000e+00> : vector<256xf32>
    %431 = vector.multi_reduction <add>, %430, %cst_43 [0] : vector<32x256xf32> to vector<256xf32>
    %432 = vector.shape_cast %431 : vector<256xf32> to vector<1x256xf32>
    %433 = arith.maximumf %412, %416 : vector<1x256xf32>
    %434 = arith.maximumf %433, %420 : vector<1x256xf32>
    %435 = arith.maximumf %434, %424 : vector<1x256xf32>
    %436 = arith.maximumf %435, %428 : vector<1x256xf32>
    %437 = arith.maximumf %436, %432 : vector<1x256xf32>
    %438 = arith.subf %412, %437 : vector<1x256xf32>
    %439 = math.exp %438 : vector<1x256xf32>
    %440 = arith.subf %416, %437 : vector<1x256xf32>
    %441 = math.exp %440 : vector<1x256xf32>
    %442 = arith.subf %420, %437 : vector<1x256xf32>
    %443 = math.exp %442 : vector<1x256xf32>
    %444 = arith.subf %424, %437 : vector<1x256xf32>
    %445 = math.exp %444 : vector<1x256xf32>
    %446 = arith.subf %428, %437 : vector<1x256xf32>
    %447 = math.exp %446 : vector<1x256xf32>
    %448 = arith.subf %432, %437 : vector<1x256xf32>
    %449 = math.exp %448 : vector<1x256xf32>
    %450 = arith.addf %439, %441 : vector<1x256xf32>
    %451 = arith.addf %450, %443 : vector<1x256xf32>
    %452 = arith.addf %451, %445 : vector<1x256xf32>
    %453 = arith.addf %452, %447 : vector<1x256xf32>
    %454 = arith.addf %453, %449 : vector<1x256xf32>
    %455 = tpu.reciprocal %454 {approx = true} : vector<1x256xf32> -> vector<1x256xf32>
    %456 = arith.mulf %439, %455 : vector<1x256xf32>
    %457 = vector.extract_strided_slice %22 {offsets = [0, 0], sizes = [32, 256], strides = [1, 1]} : vector<32x1536xf32> to vector<32x256xf32>
    %458 = vector.broadcast %456 : vector<1x256xf32> to vector<32x256xf32>
    %459 = arith.mulf %458, %457 : vector<32x256xf32>
    %460 = arith.mulf %441, %455 : vector<1x256xf32>
    %461 = vector.extract_strided_slice %22 {offsets = [0, 256], sizes = [32, 256], strides = [1, 1]} : vector<32x1536xf32> to vector<32x256xf32>
    %462 = vector.broadcast %460 : vector<1x256xf32> to vector<32x256xf32>
    %463 = arith.mulf %462, %461 : vector<32x256xf32>
    %464 = arith.addf %459, %463 : vector<32x256xf32>
    %465 = arith.mulf %443, %455 : vector<1x256xf32>
    %466 = vector.extract_strided_slice %22 {offsets = [0, 512], sizes = [32, 256], strides = [1, 1]} : vector<32x1536xf32> to vector<32x256xf32>
    %467 = vector.broadcast %465 : vector<1x256xf32> to vector<32x256xf32>
    %468 = arith.mulf %467, %466 : vector<32x256xf32>
    %469 = arith.addf %464, %468 : vector<32x256xf32>
    %470 = arith.mulf %445, %455 : vector<1x256xf32>
    %471 = vector.extract_strided_slice %22 {offsets = [0, 768], sizes = [32, 256], strides = [1, 1]} : vector<32x1536xf32> to vector<32x256xf32>
    %472 = vector.broadcast %470 : vector<1x256xf32> to vector<32x256xf32>
    %473 = arith.mulf %472, %471 : vector<32x256xf32>
    %474 = arith.addf %469, %473 : vector<32x256xf32>
    %475 = arith.mulf %447, %455 : vector<1x256xf32>
    %476 = vector.extract_strided_slice %22 {offsets = [0, 1024], sizes = [32, 256], strides = [1, 1]} : vector<32x1536xf32> to vector<32x256xf32>
    %477 = vector.broadcast %475 : vector<1x256xf32> to vector<32x256xf32>
    %478 = arith.mulf %477, %476 : vector<32x256xf32>
    %479 = arith.addf %474, %478 : vector<32x256xf32>
    %480 = arith.mulf %449, %455 : vector<1x256xf32>
    %481 = vector.extract_strided_slice %22 {offsets = [0, 1280], sizes = [32, 256], strides = [1, 1]} : vector<32x1536xf32> to vector<32x256xf32>
    %482 = vector.broadcast %480 : vector<1x256xf32> to vector<32x256xf32>
    %483 = arith.mulf %482, %481 : vector<32x256xf32>
    %484 = arith.addf %479, %483 : vector<32x256xf32>
    %485 = tpu.concatenate %99, %176, %253, %330, %407, %484 in 1 : vector<32x256xf32>, vector<32x256xf32>, vector<32x256xf32>, vector<32x256xf32>, vector<32x256xf32>, vector<32x256xf32> -> vector<32x1536xf32>
    %c0_44 = arith.constant 0 : index
    %c0_45 = arith.constant 0 : index
    %486 = vector.load %arg4[%c0_44, %c0_45] : memref<32x32xf32, #tpu.memory_space<vmem>>, vector<32x32xf32>
    %cst_46 = arith.constant dense<0.000000e+00> : vector<32x1536xf32>
    %487 = tpu.matmul %486, %485, %cst_46 {dimension_numbers = #tpu.dot_dimension_numbers<[1], [0], [0], [1], [0, 0, 1, 1], [], []>} : vector<32x32xf32>, vector<32x1536xf32>, vector<32x1536xf32> -> vector<32x1536xf32>
    %488 = arith.addf %9, %487 : vector<32x1536xf32>
    %489 = vector.broadcast %12 : vector<32x1xf32> to vector<32x1536xf32>
    %490 = arith.addf %488, %489 : vector<32x1536xf32>
    %c0_47 = arith.constant 0 : index
    %c0_48 = arith.constant 0 : index
    %491 = vector.load %arg5[%c0_47, %c0_48] : memref<64x32xf32, #tpu.memory_space<vmem>>, vector<64x32xf32>
    %cst_49 = arith.constant dense<0.000000e+00> : vector<64x1536xf32>
    %492 = tpu.matmul %491, %490, %cst_49 {dimension_numbers = #tpu.dot_dimension_numbers<[1], [0], [0], [1], [0, 0, 1, 1], [], []>} : vector<64x32xf32>, vector<32x1536xf32>, vector<64x1536xf32> -> vector<64x1536xf32>
    %493 = vector.broadcast %13 : vector<64x1xf32> to vector<64x1536xf32>
    %494 = arith.addf %492, %493 : vector<64x1536xf32>
    %cst_50 = arith.constant 0.000000e+00 : f32
    %495 = vector.broadcast %cst_50 : f32 to vector<64x1536xf32>
    %496 = arith.maximumf %494, %495 : vector<64x1536xf32>
    %c0_51 = arith.constant 0 : index
    %c0_52 = arith.constant 0 : index
    %497 = vector.load %arg6[%c0_51, %c0_52] : memref<32x64xf32, #tpu.memory_space<vmem>>, vector<32x64xf32>
    %cst_53 = arith.constant dense<0.000000e+00> : vector<32x1536xf32>
    %498 = tpu.matmul %497, %496, %cst_53 {dimension_numbers = #tpu.dot_dimension_numbers<[1], [0], [0], [1], [0, 0, 1, 1], [], []>} : vector<32x64xf32>, vector<64x1536xf32>, vector<32x1536xf32> -> vector<32x1536xf32>
    %499 = arith.addf %490, %498 : vector<32x1536xf32>
    %500 = vector.broadcast %14 : vector<32x1xf32> to vector<32x1536xf32>
    %501 = arith.addf %499, %500 : vector<32x1536xf32>
    %c0_54 = arith.constant 0 : index
    %c0_55 = arith.constant 0 : index
    %502 = vector.load %arg8[%c0_54, %c0_55] : memref<192x1xf32, #tpu.memory_space<vmem>>, vector<192x1xf32>
    %503 = vector.extract_strided_slice %501 {offsets = [0, 0], sizes = [32, 256], strides = [1, 1]} : vector<32x1536xf32> to vector<32x256xf32>
    %504 = vector.extract_strided_slice %502 {offsets = [0, 0], sizes = [32, 1], strides = [1, 1]} : vector<192x1xf32> to vector<32x1xf32>
    %505 = vector.broadcast %504 : vector<32x1xf32> to vector<32x256xf32>
    %506 = arith.mulf %503, %505 : vector<32x256xf32>
    %cst_56 = arith.constant dense<0.000000e+00> : vector<256xf32>
    %507 = vector.multi_reduction <add>, %506, %cst_56 [0] : vector<32x256xf32> to vector<256xf32>
    %508 = vector.shape_cast %507 : vector<256xf32> to vector<1x256xf32>
    %509 = vector.extract_strided_slice %501 {offsets = [0, 256], sizes = [32, 256], strides = [1, 1]} : vector<32x1536xf32> to vector<32x256xf32>
    %510 = vector.extract_strided_slice %502 {offsets = [32, 0], sizes = [32, 1], strides = [1, 1]} : vector<192x1xf32> to vector<32x1xf32>
    %511 = vector.broadcast %510 : vector<32x1xf32> to vector<32x256xf32>
    %512 = arith.mulf %509, %511 : vector<32x256xf32>
    %cst_57 = arith.constant dense<0.000000e+00> : vector<256xf32>
    %513 = vector.multi_reduction <add>, %512, %cst_57 [0] : vector<32x256xf32> to vector<256xf32>
    %514 = vector.shape_cast %513 : vector<256xf32> to vector<1x256xf32>
    %515 = arith.addf %508, %514 : vector<1x256xf32>
    %516 = vector.extract_strided_slice %501 {offsets = [0, 512], sizes = [32, 256], strides = [1, 1]} : vector<32x1536xf32> to vector<32x256xf32>
    %517 = vector.extract_strided_slice %502 {offsets = [64, 0], sizes = [32, 1], strides = [1, 1]} : vector<192x1xf32> to vector<32x1xf32>
    %518 = vector.broadcast %517 : vector<32x1xf32> to vector<32x256xf32>
    %519 = arith.mulf %516, %518 : vector<32x256xf32>
    %cst_58 = arith.constant dense<0.000000e+00> : vector<256xf32>
    %520 = vector.multi_reduction <add>, %519, %cst_58 [0] : vector<32x256xf32> to vector<256xf32>
    %521 = vector.shape_cast %520 : vector<256xf32> to vector<1x256xf32>
    %522 = arith.addf %515, %521 : vector<1x256xf32>
    %523 = vector.extract_strided_slice %501 {offsets = [0, 768], sizes = [32, 256], strides = [1, 1]} : vector<32x1536xf32> to vector<32x256xf32>
    %524 = vector.extract_strided_slice %502 {offsets = [96, 0], sizes = [32, 1], strides = [1, 1]} : vector<192x1xf32> to vector<32x1xf32>
    %525 = vector.broadcast %524 : vector<32x1xf32> to vector<32x256xf32>
    %526 = arith.mulf %523, %525 : vector<32x256xf32>
    %cst_59 = arith.constant dense<0.000000e+00> : vector<256xf32>
    %527 = vector.multi_reduction <add>, %526, %cst_59 [0] : vector<32x256xf32> to vector<256xf32>
    %528 = vector.shape_cast %527 : vector<256xf32> to vector<1x256xf32>
    %529 = arith.addf %522, %528 : vector<1x256xf32>
    %530 = vector.extract_strided_slice %501 {offsets = [0, 1024], sizes = [32, 256], strides = [1, 1]} : vector<32x1536xf32> to vector<32x256xf32>
    %531 = vector.extract_strided_slice %502 {offsets = [128, 0], sizes = [32, 1], strides = [1, 1]} : vector<192x1xf32> to vector<32x1xf32>
    %532 = vector.broadcast %531 : vector<32x1xf32> to vector<32x256xf32>
    %533 = arith.mulf %530, %532 : vector<32x256xf32>
    %cst_60 = arith.constant dense<0.000000e+00> : vector<256xf32>
    %534 = vector.multi_reduction <add>, %533, %cst_60 [0] : vector<32x256xf32> to vector<256xf32>
    %535 = vector.shape_cast %534 : vector<256xf32> to vector<1x256xf32>
    %536 = arith.addf %529, %535 : vector<1x256xf32>
    %537 = vector.extract_strided_slice %501 {offsets = [0, 1280], sizes = [32, 256], strides = [1, 1]} : vector<32x1536xf32> to vector<32x256xf32>
    %538 = vector.extract_strided_slice %502 {offsets = [160, 0], sizes = [32, 1], strides = [1, 1]} : vector<192x1xf32> to vector<32x1xf32>
    %539 = vector.broadcast %538 : vector<32x1xf32> to vector<32x256xf32>
    %540 = arith.mulf %537, %539 : vector<32x256xf32>
    %cst_61 = arith.constant dense<0.000000e+00> : vector<256xf32>
    %541 = vector.multi_reduction <add>, %540, %cst_61 [0] : vector<32x256xf32> to vector<256xf32>
    %542 = vector.shape_cast %541 : vector<256xf32> to vector<1x256xf32>
    %543 = arith.addf %536, %542 : vector<1x256xf32>
    %544 = vector.broadcast %15 : vector<1x1xf32> to vector<1x256xf32>
    %545 = arith.addf %543, %544 : vector<1x256xf32>
    %c0_62 = arith.constant 0 : index
    %c0_63 = arith.constant 0 : index
    %546 = vector.load %arg9[%c0_62, %c0_63] : memref<1x256xf32, #tpu.memory_space<vmem>>, vector<1x256xf32>
    tpu.vector_store %arg9[%c0_62, %c0_63], %545 {strides = array<i32>} : memref<1x256xf32, #tpu.memory_space<vmem>>, vector<1x256xf32>,
    return
  }
  func.func @transform_0(%arg0: i32) -> (i32, i32) {
    %c0_i32 = arith.constant 0 : i32
    %c0_i32_0 = arith.constant 0 : i32
    return %c0_i32, %arg0 : i32, i32
  }
  func.func @transform_1(%arg0: i32) -> (i32, i32) {
    %c0_i32 = arith.constant 0 : i32
    %c0_i32_0 = arith.constant 0 : i32
    %c0_i32_1 = arith.constant 0 : i32
    return %c0_i32, %c0_i32_0 : i32, i32
  }
  func.func @transform_2(%arg0: i32) -> (i32, i32) {
    %c0_i32 = arith.constant 0 : i32
    %c0_i32_0 = arith.constant 0 : i32
    %c0_i32_1 = arith.constant 0 : i32
    return %c0_i32, %c0_i32_0 : i32, i32
  }
  func.func @transform_3(%arg0: i32) -> (i32, i32) {
    %c0_i32 = arith.constant 0 : i32
    %c0_i32_0 = arith.constant 0 : i32
    %c0_i32_1 = arith.constant 0 : i32
    return %c0_i32, %c0_i32_0 : i32, i32
  }
  func.func @transform_4(%arg0: i32) -> (i32, i32) {
    %c0_i32 = arith.constant 0 : i32
    %c0_i32_0 = arith.constant 0 : i32
    %c0_i32_1 = arith.constant 0 : i32
    return %c0_i32, %c0_i32_0 : i32, i32
  }
  func.func @transform_5(%arg0: i32) -> (i32, i32) {
    %c0_i32 = arith.constant 0 : i32
    %c0_i32_0 = arith.constant 0 : i32
    %c0_i32_1 = arith.constant 0 : i32
    return %c0_i32, %c0_i32_0 : i32, i32
  }
  func.func @transform_6(%arg0: i32) -> (i32, i32) {
    %c0_i32 = arith.constant 0 : i32
    %c0_i32_0 = arith.constant 0 : i32
    %c0_i32_1 = arith.constant 0 : i32
    return %c0_i32, %c0_i32_0 : i32, i32
  }
  func.func @transform_7(%arg0: i32) -> (i32, i32) {
    %c0_i32 = arith.constant 0 : i32
    %c0_i32_0 = arith.constant 0 : i32
    %c0_i32_1 = arith.constant 0 : i32
    return %c0_i32, %c0_i32_0 : i32, i32
  }
  func.func @transform_8(%arg0: i32) -> (i32, i32) {
    %c0_i32 = arith.constant 0 : i32
    %c0_i32_0 = arith.constant 0 : i32
    return %c0_i32, %arg0 : i32, i32
  }
}

</mosaic_0001>

<llo_original>
// kernel: tpu_custom_call.1
$region0: #{tpu_custom_call.1}
  #allocation0 [shape = 'u32[]', space=smem, size = 0x4, offset = 0x4, fixed_abs, tag = 'smem constant byte address 0x4 - core index']
  #allocation1 [shape = 'u32[144,128]{1,0:T(1,128)}', space=vmem, size = 0x12000, scoped, tag = 'internal scratch']
  %s0 = inlined_call_operand.vmem [shape: f32[17,512], index: 0, kind: input, shape index: {}]
  %s1 = inlined_call_operand.vmem [shape: f32[192,17], index: 1, kind: input, shape index: {}]
  %s2 = inlined_call_operand.vmem [shape: f32[96,32], index: 2, kind: input, shape index: {}]
  %s3 = inlined_call_operand.vmem [shape: f32[32,32], index: 3, kind: input, shape index: {}]
  %s4 = inlined_call_operand.vmem [shape: f32[64,32], index: 4, kind: input, shape index: {}]
  %s5 = inlined_call_operand.vmem [shape: f32[32,64], index: 5, kind: input, shape index: {}]
  %s6 = inlined_call_operand.vmem [shape: f32[225,1], index: 6, kind: input, shape index: {}]
  %s7 = inlined_call_operand.vmem [shape: f32[192,1], index: 7, kind: input, shape index: {}]
  %s8 = inlined_call_operand.hbm [shape: f32[1,512], index: 8, kind: output, shape index: {}]
  %s9 = sld [smem:[#allocation0]]
  $region88: #{tpu_custom_call.1} parent=0
    _
  %s11 = ssub.s32 1, %s9
  %s12 = scalar_select 0, %s11, %s9
  $region1: #{tpu_custom_call.1} parent=0
    #allocation2 [shape = 'u8[49152]{0}', space=vmem, size = 0xc000, scoped, tag = 'input window, operand 0']
    #allocation3 [shape = 'u8[2048]{0}', space=vmem, size = 0x800, scoped, tag = 'output window, operand 0']
    #allocation4 [shape = 's32[2]{0}', space=sflag, size = 0x8, scoped, tag = 'scoped memory for tpu_custom_call.1']
    %13 = vsyncpa [#allocation4], 0
    %s14 = scalar_lea.sflag [#allocation4], 1
    %15 = vsyncpa %s14, 0
    loop: start=0, step=1, limit=4
    $region2: #{tpu_custom_call.1} parent=1 // loop_pre_header
      _
    $region3: #{tpu_custom_call.1} parent=1 // loop_header
      %s17 = sphi 0, %s21
      %p18 = scmp.ge.s32.totalorder %s17, 4
      %s27 = sphi 0, %s29
      %s30 = sphi 0, %s27
      %s31 = sphi 0, %s30
      %s47 = sphi 0, %s31
      %s51 = sphi 0, %s51
      %s53 = sphi 0, %s51
      %s54 = sphi 0, %s53
      %s68 = sphi 0, %s54
      %s72 = sphi 0, %s72
      %s74 = sphi 0, %s72
      %s75 = sphi 0, %s74
      %s89 = sphi 0, %s75
      %s93 = sphi 0, %s93
      %s95 = sphi 0, %s93
      %s96 = sphi 0, %s95
      %s110 = sphi 0, %s96
      %s114 = sphi 0, %s114
      %s116 = sphi 0, %s114
      %s117 = sphi 0, %s116
      %s131 = sphi 0, %s117
      %s135 = sphi 0, %s135
      %s137 = sphi 0, %s135
      %s138 = sphi 0, %s137
      %s152 = sphi 0, %s138
      %s156 = sphi 0, %s156
      %s158 = sphi 0, %s156
      %s159 = sphi 0, %s158
      %s173 = sphi 0, %s159
      %s177 = sphi 0, %s177
      %s179 = sphi 0, %s177
      %s180 = sphi 0, %s179
      %s194 = sphi 0, %s180
      %s200 = sphi 0, %s202
      %s203 = sphi 0, %s200
      %s204 = sphi 0, %s203
      %s220 = sphi 0, %s204
    $region4: #{tpu_custom_call.1} parent=1 // loop_header_branch
      %20 = sbr.rel (%p18) target = $region8
    $region5: #{tpu_custom_call.1} parent=1 // loop_body
      %s22 = ssub.s32 %s17, 1
      %s23 = ssub.s32 %s17, 2
      %s24 = sadd.s32 %s17, 1
      %s25 = ssub.s32 %s17, %s24
      %p26 = scmp.eq.s32.totalorder %s25, 0
      %s28 = sadd.s32 %s27, 1
      %s29 = scalar_select %p26, %s27, %s28
      %p32 = pneg %p26
      %p33 = scmp.eq.s32.totalorder %s17, 1
      %p34 = por %p32, %p33
      %p35 = scmp.ne.s32.totalorder %s27, %s30
      %p36 = scmp.eq.s32.totalorder %s17, 0
      %p37 = por %p35, %p36
      %p38 = scmp.ne.s32.totalorder %s27, %s30
      %p39 = scmp.eq.s32.totalorder %s22, 1
      %p40 = por %p38, %p39
      %p41 = scmp.ne.s32.totalorder %s30, %s31
      %p42 = scmp.eq.s32.totalorder %s22, 0
      %p43 = por %p41, %p42
      %p44 = scmp.ne.s32.totalorder %s30, %s31
      %p45 = scmp.eq.s32.totalorder %s23, 1
      %p46 = por %p44, %p45
      %p48 = scmp.ne.s32.totalorder %s31, %s47
      %p49 = scmp.eq.s32.totalorder %s23, 0
      %p50 = por %p48, %p49
      %s52 = sadd.s32 %s51, 1
      %p55 = scmp.eq.s32.totalorder %s17, 1
      %p56 = scmp.ne.s32.totalorder %s51, %s53
      %p57 = scmp.eq.s32.totalorder %s17, 0
      %p58 = por %p56, %p57
      %p59 = scmp.ne.s32.totalorder %s51, %s53
      %p60 = scmp.eq.s32.totalorder %s22, 1
      %p61 = por %p59, %p60
      %p62 = scmp.ne.s32.totalorder %s53, %s54
      %p63 = scmp.eq.s32.totalorder %s22, 0
      %p64 = por %p62, %p63
      %p65 = scmp.ne.s32.totalorder %s53, %s54
      %p66 = scmp.eq.s32.totalorder %s23, 1
      %p67 = por %p65, %p66
      %p69 = scmp.ne.s32.totalorder %s54, %s68
      %p70 = scmp.eq.s32.totalorder %s23, 0
      %p71 = por %p69, %p70
      %s73 = sadd.s32 %s72, 1
      %p76 = scmp.eq.s32.totalorder %s17, 1
      %p77 = scmp.ne.s32.totalorder %s72, %s74
      %p78 = scmp.eq.s32.totalorder %s17, 0
      %p79 = por %p77, %p78
      %p80 = scmp.ne.s32.totalorder %s72, %s74
      %p81 = scmp.eq.s32.totalorder %s22, 1
      %p82 = por %p80, %p81
      %p83 = scmp.ne.s32.totalorder %s74, %s75
      %p84 = scmp.eq.s32.totalorder %s22, 0
      %p85 = por %p83, %p84
      %p86 = scmp.ne.s32.totalorder %s74, %s75
      %p87 = scmp.eq.s32.totalorder %s23, 1
      %p88 = por %p86, %p87
      %p90 = scmp.ne.s32.totalorder %s75, %s89
      %p91 = scmp.eq.s32.totalorder %s23, 0
      %p92 = por %p90, %p91
      %s94 = sadd.s32 %s93, 1
      %p97 = scmp.eq.s32.totalorder %s17, 1
      %p98 = scmp.ne.s32.totalorder %s93, %s95
      %p99 = scmp.eq.s32.totalorder %s17, 0
      %p100 = por %p98, %p99
      %p101 = scmp.ne.s32.totalorder %s93, %s95
      %p102 = scmp.eq.s32.totalorder %s22, 1
      %p103 = por %p101, %p102
      %p104 = scmp.ne.s32.totalorder %s95, %s96
      %p105 = scmp.eq.s32.totalorder %s22, 0
      %p106 = por %p104, %p105
      %p107 = scmp.ne.s32.totalorder %s95, %s96
      %p108 = scmp.eq.s32.totalorder %s23, 1
      %p109 = por %p107, %p108
      %p111 = scmp.ne.s32.totalorder %s96, %s110
      %p112 = scmp.eq.s32.totalorder %s23, 0
      %p113 = por %p111, %p112
      %s115 = sadd.s32 %s114, 1
      %p118 = scmp.eq.s32.totalorder %s17, 1
      %p119 = scmp.ne.s32.totalorder %s114, %s116
      %p120 = scmp.eq.s32.totalorder %s17, 0
      %p121 = por %p119, %p120
      %p122 = scmp.ne.s32.totalorder %s114, %s116
      %p123 = scmp.eq.s32.totalorder %s22, 1
      %p124 = por %p122, %p123
      %p125 = scmp.ne.s32.totalorder %s116, %s117
      %p126 = scmp.eq.s32.totalorder %s22, 0
      %p127 = por %p125, %p126
      %p128 = scmp.ne.s32.totalorder %s116, %s117
      %p129 = scmp.eq.s32.totalorder %s23, 1
      %p130 = por %p128, %p129
      %p132 = scmp.ne.s32.totalorder %s117, %s131
      %p133 = scmp.eq.s32.totalorder %s23, 0
      %p134 = por %p132, %p133
      %s136 = sadd.s32 %s135, 1
      %p139 = scmp.eq.s32.totalorder %s17, 1
      %p140 = scmp.ne.s32.totalorder %s135, %s137
      %p141 = scmp.eq.s32.totalorder %s17, 0
      %p142 = por %p140, %p141
      %p143 = scmp.ne.s32.totalorder %s135, %s137
      %p144 = scmp.eq.s32.totalorder %s22, 1
      %p145 = por %p143, %p144
      %p146 = scmp.ne.s32.totalorder %s137, %s138
      %p147 = scmp.eq.s32.totalorder %s22, 0
      %p148 = por %p146, %p147
      %p149 = scmp.ne.s32.totalorder %s137, %s138
      %p150 = scmp.eq.s32.totalorder %s23, 1
      %p151 = por %p149, %p150
      %p153 = scmp.ne.s32.totalorder %s138, %s152
      %p154 = scmp.eq.s32.totalorder %s23, 0
      %p155 = por %p153, %p154
      %s157 = sadd.s32 %s156, 1
      %p160 = scmp.eq.s32.totalorder %s17, 1
      %p161 = scmp.ne.s32.totalorder %s156, %s158
      %p162 = scmp.eq.s32.totalorder %s17, 0
      %p163 = por %p161, %p162
      %p164 = scmp.ne.s32.totalorder %s156, %s158
      %p165 = scmp.eq.s32.totalorder %s22, 1
      %p166 = por %p164, %p165
      %p167 = scmp.ne.s32.totalorder %s158, %s159
      %p168 = scmp.eq.s32.totalorder %s22, 0
      %p169 = por %p167, %p168
      %p170 = scmp.ne.s32.totalorder %s158, %s159
      %p171 = scmp.eq.s32.totalorder %s23, 1
      %p172 = por %p170, %p171
      %p174 = scmp.ne.s32.totalorder %s159, %s173
      %p175 = scmp.eq.s32.totalorder %s23, 0
      %p176 = por %p174, %p175
      %s178 = sadd.s32 %s177, 1
      %p181 = scmp.eq.s32.totalorder %s17, 1
      %p182 = scmp.ne.s32.totalorder %s177, %s179
      %p183 = scmp.eq.s32.totalorder %s17, 0
      %p184 = por %p182, %p183
      %p185 = scmp.ne.s32.totalorder %s177, %s179
      %p186 = scmp.eq.s32.totalorder %s22, 1
      %p187 = por %p185, %p186
      %p188 = scmp.ne.s32.totalorder %s179, %s180
      %p189 = scmp.eq.s32.totalorder %s22, 0
      %p190 = por %p188, %p189
      %p191 = scmp.ne.s32.totalorder %s179, %s180
      %p192 = scmp.eq.s32.totalorder %s23, 1
      %p193 = por %p191, %p192
      %p195 = scmp.ne.s32.totalorder %s180, %s194
      %p196 = scmp.eq.s32.totalorder %s23, 0
      %p197 = por %p195, %p196
      %s198 = ssub.s32 %s17, %s24
      %p199 = scmp.eq.s32.totalorder %s198, 0
      %s201 = sadd.s32 %s200, 1
      %s202 = scalar_select %p199, %s200, %s201
      %p205 = pneg %p199
      %p206 = scmp.eq.s32.totalorder %s17, 1
      %p207 = por %p205, %p206
      %p208 = scmp.ne.s32.totalorder %s200, %s203
      %p209 = scmp.eq.s32.totalorder %s17, 0
      %p210 = por %p208, %p209
      %p211 = scmp.ne.s32.totalorder %s200, %s203
      %p212 = scmp.eq.s32.totalorder %s22, 1
      %p213 = por %p211, %p212
      %p214 = scmp.ne.s32.totalorder %s203, %s204
      %p215 = scmp.eq.s32.totalorder %s22, 0
      %p216 = por %p214, %p215
      %p217 = scmp.ne.s32.totalorder %s203, %s204
      %p218 = scmp.eq.s32.totalorder %s23, 1
      %p219 = por %p217, %p218
      %p221 = scmp.ne.s32.totalorder %s204, %s220
      %p222 = scmp.eq.s32.totalorder %s23, 0
      %p223 = por %p221, %p222
      %p224 = scmp.le.s32.totalorder 1, %s17
      %p225 = scmp.lt.s32.totalorder %s17, 3
      %p226 = pnand %p224, %p225
      %p227 = pneg %p226
      // Predicated region
      $region9: #{tpu_custom_call.1} parent=5 // pred_check
        _
      $region10: #{tpu_custom_call.1} parent=5 // pred_check_branch
        %229 = sbr.rel (%p226) target = $region12
      $region11: #{tpu_custom_call.1} parent=5 // pred_region
        %s230 = ssub.s32 %s17, 1
        // Predicated region
        $region13: #{tpu_custom_call.1} parent=11 // pred_check
          %p231 = pneg %p64
        $region14: #{tpu_custom_call.1} parent=11 // pred_check_branch
          %233 = sbr.rel (%p231) target = $region16
        $region15: #{tpu_custom_call.1} parent=11 // pred_region
          _
        $region16: #{tpu_custom_call.1} parent=11 // pred_fallthru
          _
        // Predicated region
        $region17: #{tpu_custom_call.1} parent=11 // pred_check
          %p234 = pneg %p85
        $region18: #{tpu_custom_call.1} parent=11 // pred_check_branch
          %236 = sbr.rel (%p234) target = $region20
        $region19: #{tpu_custom_call.1} parent=11 // pred_region
          _
        $region20: #{tpu_custom_call.1} parent=11 // pred_fallthru
          _
        // Predicated region
        $region21: #{tpu_custom_call.1} parent=11 // pred_check
          %p237 = pneg %p106
        $region22: #{tpu_custom_call.1} parent=11 // pred_check_branch
          %239 = sbr.rel (%p237) target = $region24
        $region23: #{tpu_custom_call.1} parent=11 // pred_region
          _
        $region24: #{tpu_custom_call.1} parent=11 // pred_fallthru
          _
        // Predicated region
        $region25: #{tpu_custom_call.1} parent=11 // pred_check
          %p240 = pneg %p127
        $region26: #{tpu_custom_call.1} parent=11 // pred_check_branch
          %242 = sbr.rel (%p240) target = $region28
        $region27: #{tpu_custom_call.1} parent=11 // pred_region
          _
        $region28: #{tpu_custom_call.1} parent=11 // pred_fallthru
          _
        // Predicated region
        $region29: #{tpu_custom_call.1} parent=11 // pred_check
          %p243 = pneg %p148
        $region30: #{tpu_custom_call.1} parent=11 // pred_check_branch
          %245 = sbr.rel (%p243) target = $region32
        $region31: #{tpu_custom_call.1} parent=11 // pred_region
          _
        $region32: #{tpu_custom_call.1} parent=11 // pred_fallthru
          _
        // Predicated region
        $region33: #{tpu_custom_call.1} parent=11 // pred_check
          %p246 = pneg %p169
        $region34: #{tpu_custom_call.1} parent=11 // pred_check_branch
          %248 = sbr.rel (%p246) target = $region36
        $region35: #{tpu_custom_call.1} parent=11 // pred_region
          _
        $region36: #{tpu_custom_call.1} parent=11 // pred_fallthru
          _
        // Predicated region
        $region37: #{tpu_custom_call.1} parent=11 // pred_check
          %p249 = pneg %p190
        $region38: #{tpu_custom_call.1} parent=11 // pred_check_branch
          %251 = sbr.rel (%p249) target = $region40
        $region39: #{tpu_custom_call.1} parent=11 // pred_region
          _
        $region40: #{tpu_custom_call.1} parent=11 // pred_fallthru
          _
      $region12: #{tpu_custom_call.1} parent=5 // pred_fallthru
        _
      %p252 = scmp.lt.s32.totalorder %s17, 2
      // Predicated region
      $region41: #{tpu_custom_call.1} parent=5 // pred_check
        %p253 = pneg %p252
      $region42: #{tpu_custom_call.1} parent=5 // pred_check_branch
        %255 = sbr.rel (%p253) target = $region44
      $region43: #{tpu_custom_call.1} parent=5 // pred_region
        // Predicated region
        $region45: #{tpu_custom_call.1} parent=43 // pred_check
          %p256 = pneg %p37
        $region46: #{tpu_custom_call.1} parent=43 // pred_check_branch
          %258 = sbr.rel (%p256) target = $region48
        $region47: #{tpu_custom_call.1} parent=43 // pred_region
          %s259 = sand.u32 %s27, 1
          %s260 = sand.u32 %s27, 1
          %s261 = smul.addr %s260, 48
          %s262 = scalar_lea.vmem [#allocation2], %s261
          %s263 = smul.u32 2, %s17
          %s264 = smul.addr %s263, 8
          %s265 = scalar_lea.vmem %s0, %s264
          // Predicated region
          $region49: #{tpu_custom_call.1} parent=47 // pred_check
            _
          $region50: #{tpu_custom_call.1} parent=47 // pred_check_branch
            %267 = sbr.rel (0) target = $region52
          $region51: #{tpu_custom_call.1} parent=47 // pred_region
            // Predicated region
            $region53: #{tpu_custom_call.1} parent=51 // pred_check
              _
            $region54: #{tpu_custom_call.1} parent=51 // pred_check_branch
              %269 = sbr.rel (0) target = $region56
            $region55: #{tpu_custom_call.1} parent=51 // pred_region
              loop: start=0, step=1, limit=1
              $region57: #{tpu_custom_call.1} parent=55 // loop_pre_header
                _
              $region58: #{tpu_custom_call.1} parent=55 // loop_header
                %s271 = sphi 0, %s275
                %p272 = scmp.ge.s32.totalorder %s271, 1
                %s276 = sphi %s265, %s265
                %s277 = sphi %s262, %s262
              $region59: #{tpu_custom_call.1} parent=55 // loop_header_branch
                %274 = sbr.rel (%p272) target = $region63
              $region60: #{tpu_custom_call.1} parent=55 // loop_body
                %v278 = vld [vmem:[%s276] sm:$0xff]
                %279 = vst [vmem:[%s277] sm:$0xff] %v278
                %v280 = vld [vmem:[%s276 + $0x8] sm:$0xff]
                %281 = vst [vmem:[%s277 + $0x8] sm:$0xff] %v280
                %v282 = vld [vmem:[%s276 + $0x20] sm:$0xff]
                %283 = vst [vmem:[%s277 + $0x10] sm:$0xff] %v282
                %v284 = vld [vmem:[%s276 + $0x28] sm:$0xff]
                %285 = vst [vmem:[%s277 + $0x18] sm:$0xff] %v284
                %v286 = vld [vmem:[%s276 + $0x40] sm:$0xff]
                %287 = vst [vmem:[%s277 + $0x20] sm:$0xff] %v286
                %v288 = vld [vmem:[%s276 + $0x48] sm:$0xff]
                %289 = vst [vmem:[%s277 + $0x28] sm:$0xff] %v288
              $region61: #{tpu_custom_call.1} parent=55 // loop_footer
                %s275 = sadd.s32 1, %s271
              $region62: #{tpu_custom_call.1} parent=55 // loop_footer_branch
                %270 = sbr.rel target = $region58
              $region63: #{tpu_custom_call.1} parent=55 // loop_exit
                _
            $region56: #{tpu_custom_call.1} parent=51 // pred_fallthru
              _
            // Predicated region
            $region64: #{tpu_custom_call.1} parent=51 // pred_check
              _
            $region65: #{tpu_custom_call.1} parent=51 // pred_check_branch
              %291 = sbr.rel target = $region67
            $region66: #{tpu_custom_call.1} parent=51 // pred_region
              _
            $region67: #{tpu_custom_call.1} parent=51 // pred_fallthru
              _
          $region52: #{tpu_custom_call.1} parent=47 // pred_fallthru
            _
          %292 = vnop
        $region48: #{tpu_custom_call.1} parent=43 // pred_fallthru
          _
      $region44: #{tpu_custom_call.1} parent=5 // pred_fallthru
        _
      %p293 = scmp.le.s32.totalorder 1, %s17
      %p294 = scmp.lt.s32.totalorder %s17, 3
      %p295 = pnand %p293, %p294
      %p296 = pneg %p295
      // Predicated region
      $region68: #{tpu_custom_call.1} parent=5 // pred_check
        _
      $region69: #{tpu_custom_call.1} parent=5 // pred_check_branch
        %298 = sbr.rel (%p295) target = $region71
      $region70: #{tpu_custom_call.1} parent=5 // pred_region
        %s299 = ssub.s32 %s17, 1
        %s300 = sand.u32 %s30, 1
        %s301 = sand.u32 %s30, 1
        %s302 = smul.addr %s301, 48
        %s303 = scalar_lea.vmem [#allocation2], %s302
        // Predicated region
        $region72: #{tpu_custom_call.1} parent=70 // pred_check
          %p304 = pneg %p43
        $region73: #{tpu_custom_call.1} parent=70 // pred_check_branch
          %306 = sbr.rel (%p304) target = $region75
        $region74: #{tpu_custom_call.1} parent=70 // pred_region
          _
        $region75: #{tpu_custom_call.1} parent=70 // pred_fallthru
          _
        %s307 = sand.u32 %s30, 1
        %s308 = sand.u32 %s30, 1
        %s309 = smul.addr %s308, 48
        %s310 = scalar_lea.vmem [#allocation2], %s309
        %p311 = pneg %p43
        %p312 = pneg %p40
        %p313 = pneg %p64
        %p314 = pneg %p61
        %p315 = pneg %p85
        %p316 = pneg %p82
        %p317 = pneg %p106
        %p318 = pneg %p103
        %p319 = pneg %p127
        %p320 = pneg %p124
        %p321 = pneg %p148
        %p322 = pneg %p145
        %p323 = pneg %p169
        %p324 = pneg %p166
        %p325 = pneg %p190
        %p326 = pneg %p187
        %p327 = pneg %p216
        %p328 = pneg %p213
        %s329 = sand.u32 %s203, 1
        %s330 = scalar_lea.sflag [#allocation4], %s329
        %s331 = sand.u32 %s203, 1
        %s332 = smul.addr %s331, 2
        %s333 = scalar_lea.vmem [#allocation3], %s332
        %s334 = smul.u32 2, %s22
        %s335 = smul.u32 2, %s22
        %v336 = vld [vmem:[%s303] sm:$0xff]
        %v337 = vld [vmem:[%s303 + $0x8] sm:$0xff]
        %v338 = vld [vmem:[%s303 + $0x10] sm:$0xff]
        %v339 = vld [vmem:[%s303 + $0x18] sm:$0xff]
        %v340 = vld [vmem:[%s303 + $0x20] sm:$0x1]
        %v341 = vld [vmem:[%s303 + $0x28] sm:$0x1]
        %v342 = vld [vmem:[%s1] sm:$0xff]
        %v343 = vld [vmem:[%s1 + $0x8] sm:$0xff]
        %v344 = vld [vmem:[%s1 + $0x10] sm:$0xff]
        %v345 = vld [vmem:[%s1 + $0x18] sm:$0xff]
        %v346 = vld [vmem:[%s1 + $0x20] sm:$0xff]
        %v347 = vld [vmem:[%s1 + $0x28] sm:$0xff]
        %v348 = vld [vmem:[%s1 + $0x30] sm:$0xff]
        %v349 = vld [vmem:[%s1 + $0x38] sm:$0xff]
        %v350 = vld [vmem:[%s1 + $0x40] sm:$0xff]
        %v351 = vld [vmem:[%s1 + $0x48] sm:$0xff]
        %v352 = vld [vmem:[%s1 + $0x50] sm:$0xff]
        %v353 = vld [vmem:[%s1 + $0x58] sm:$0xff]
        %v354 = vld [vmem:[%s1 + $0x60] sm:$0xff]
        %v355 = vld [vmem:[%s1 + $0x68] sm:$0xff]
        %v356 = vld [vmem:[%s1 + $0x70] sm:$0xff]
        %v357 = vld [vmem:[%s1 + $0x78] sm:$0xff]
        %v358 = vld [vmem:[%s1 + $0x80] sm:$0xff]
        %v359 = vld [vmem:[%s1 + $0x88] sm:$0xff]
        %v360 = vld [vmem:[%s1 + $0x90] sm:$0xff]
        %v361 = vld [vmem:[%s1 + $0x98] sm:$0xff]
        %v362 = vld [vmem:[%s1 + $0xa0] sm:$0xff]
        %v363 = vld [vmem:[%s1 + $0xa8] sm:$0xff]
        %v364 = vld [vmem:[%s1 + $0xb0] sm:$0xff]
        %v365 = vld [vmem:[%s1 + $0xb8] sm:$0xff]
        %vm366 = vcmask 138240
        %v368 = vsel %vm366, %v342, 0
        %v371 = vsel %vm366, %v343, 0
        %v374 = vsel %vm366, %v344, 0
        %v377 = vsel %vm366, %v345, 0
        %v380 = vsel %vm366, %v346, 0
        %v383 = vsel %vm366, %v347, 0
        %v386 = vsel %vm366, %v348, 0
        %v389 = vsel %vm366, %v349, 0
        %v392 = vsel %vm366, %v350, 0
        %v395 = vsel %vm366, %v351, 0
        %v398 = vsel %vm366, %v352, 0
        %v401 = vsel %vm366, %v353, 0
        %v404 = vsel %vm366, %v354, 0
        %v407 = vsel %vm366, %v355, 0
        %v410 = vsel %vm366, %v356, 0
        %v413 = vsel %vm366, %v357, 0
        %v416 = vsel %vm366, %v358, 0
        %v419 = vsel %vm366, %v359, 0
        %v422 = vsel %vm366, %v360, 0
        %v425 = vsel %vm366, %v361, 0
        %v428 = vsel %vm366, %v362, 0
        %v431 = vsel %vm366, %v363, 0
        %v434 = vsel %vm366, %v364, 0
        %v437 = vsel %vm366, %v365, 0
        %vm439 = vcmask 1040384
        %v441 = vsel %vm439, %v340, 0
        %v444 = vsel %vm439, %v341, 0
        %446 = vmatprep.subr.mxu0 %v337
        %447 = vmatpush1.msra.mxu0 %v336
        %448 = vmatprep.subr.mxu0 %v339
        %449 = vmatpush1.msra.mxu0 %v338
        %450 = vmatprep.subr.mxu0 %v444
        %451 = vmatpush1.msra.mxu0 %v441
        %452 = vmatprep.subr.mxu0 0.0
        %453 = vmatpush1.msra.mxu0 0.0
        %454 = vmatprep.subr.mxu0 0.0
        %455 = vmatpush1.msra.mxu0 0.0
        %456 = vmatprep.subr.mxu0 0.0
        %457 = vmatpush1.msra.mxu0 0.0
        %458 = vmatprep.subr.mxu0 0.0
        %459 = vmatpush1.msra.mxu0 0.0
        %460 = vmatprep.subr.mxu0 0.0
        %461 = vmatpush1.msra.mxu0 0.0
        %462 = vmatprep.subr.mxu0 0.0
        %463 = vmatpush1.msra.mxu0 0.0
        %464 = vmatprep.subr.mxu0 0.0
        %465 = vmatpush1.msra.mxu0 0.0
        %466 = vmatprep.subr.mxu0 0.0
        %467 = vmatpush1.msra.mxu0 0.0
        %468 = vmatprep.subr.mxu0 0.0
        %469 = vmatpush1.msra.mxu0 0.0
        %470 = vmatprep.subr.mxu0 0.0
        %471 = vmatpush1.msra.mxu0 0.0
        %472 = vmatprep.subr.mxu0 0.0
        %473 = vmatpush1.msra.mxu0 0.0
        %474 = vmatprep.subr.mxu0 0.0
        %475 = vmatpush1.msra.mxu0 0.0
        %476 = vmatprep.subr.mxu0 0.0
        %477 = vmatpush1.msra.mxu0 0.0
        %478 = vmatprep.subr.mxu0 0.0
        %479 = vmatpush1.msra.mxu0 0.0
        %480 = vmatprep.subr.mxu0 0.0
        %481 = vmatpush1.msra.mxu0 0.0
        %482 = vmatprep.subr.mxu0 0.0
        %483 = vmatpush1.msra.mxu0 0.0
        %484 = vmatprep.subr.mxu0 0.0
        %485 = vmatpush1.msra.mxu0 0.0
        %486 = vmatprep.subr.mxu0 0.0
        %487 = vmatpush1.msra.mxu0 0.0
        %488 = vmatprep.subr.mxu0 0.0
        %489 = vmatpush1.msra.mxu0 0.0
        %490 = vmatprep.subr.mxu0 0.0
        %491 = vmatpush1.msra.mxu0 0.0
        %492 = vmatprep.subr.mxu0 0.0
        %493 = vmatpush1.msra.mxu0 0.0
        %494 = vmatprep.subr.mxu0 0.0
        %495 = vmatpush1.msra.mxu0 0.0
        %496 = vmatprep.subr.mxu0 0.0
        %497 = vmatpush1.msra.mxu0 0.0
        %498 = vmatprep.subr.mxu0 0.0
        %499 = vmatpush1.msra.mxu0 0.0
        %500 = vmatprep.subr.mxu0 0.0
        %501 = vmatpush1.msra.mxu0 0.0
        %502 = vmatprep.subr.mxu0 0.0
        %503 = vmatpush1.msra.mxu0 0.0
        %504 = vmatprep.subr.mxu0 0.0
        %505 = vmatpush1.msra.mxu0 0.0
        %506 = vmatprep.subr.mxu0 0.0
        %507 = vmatpush1.msra.mxu0 0.0
        %508 = vmatprep.subr.mxu0 0.0
        %509 = vmatpush1.msra.mxu0 0.0
        %510 = vmatprep.mubr.f32.mxu0 0.0
        %511 = vmatmul.mubr.f32.gmra.mrb[0].mxu0 %v368
        %v512 = vpop.f32.mrb[0].mxu0
        %v513 = vadd.f32 0.0, %v512
        %v514 = vpop.f32.mrb[0].mxu0
        %v515 = vadd.f32 0.0, %v514
        %516 = vmatprep.mubr.f32.mxu0 0.0
        %517 = vmatmul.mubr.f32.gmra.mrb[0].mxu0 %v371
        %v518 = vpop.f32.mrb[0].mxu0
        %v519 = vadd.f32 0.0, %v518
        %v520 = vpop.f32.mrb[0].mxu0
        %v521 = vadd.f32 0.0, %v520
        %522 = vmatprep.mubr.f32.mxu0 0.0
        %523 = vmatmul.mubr.f32.gmra.mrb[0].mxu0 %v374
        %v524 = vpop.f32.mrb[0].mxu0
        %v525 = vadd.f32 0.0, %v524
        %v526 = vpop.f32.mrb[0].mxu0
        %v527 = vadd.f32 0.0, %v526
        %528 = vmatprep.mubr.f32.mxu0 0.0
        %529 = vmatmul.mubr.f32.gmra.mrb[0].mxu0 %v377
        %v530 = vpop.f32.mrb[0].mxu0
        %v531 = vadd.f32 0.0, %v530
        %v532 = vpop.f32.mrb[0].mxu0
        %v533 = vadd.f32 0.0, %v532
        %534 = vmatprep.mubr.f32.mxu0 0.0
        %535 = vmatmul.mubr.f32.gmra.mrb[0].mxu0 %v380
        %v536 = vpop.f32.mrb[0].mxu0
        %v537 = vadd.f32 0.0, %v536
        %v538 = vpop.f32.mrb[0].mxu0
        %v539 = vadd.f32 0.0, %v538
        %540 = vmatprep.mubr.f32.mxu0 0.0
        %541 = vmatmul.mubr.f32.gmra.mrb[0].mxu0 %v383
        %v542 = vpop.f32.mrb[0].mxu0
        %v543 = vadd.f32 0.0, %v542
        %v544 = vpop.f32.mrb[0].mxu0
        %v545 = vadd.f32 0.0, %v544
        %546 = vmatprep.mubr.f32.mxu0 0.0
        %547 = vmatmul.mubr.f32.gmra.mrb[0].mxu0 %v386
        %v548 = vpop.f32.mrb[0].mxu0
        %v549 = vadd.f32 0.0, %v548
        %v550 = vpop.f32.mrb[0].mxu0
        %v551 = vadd.f32 0.0, %v550
        %552 = vmatprep.mubr.f32.mxu0 0.0
        %553 = vmatmul.mubr.f32.gmra.mrb[0].mxu0 %v389
        %v554 = vpop.f32.mrb[0].mxu0
        %v555 = vadd.f32 0.0, %v554
        %v556 = vpop.f32.mrb[0].mxu0
        %v557 = vadd.f32 0.0, %v556
        %558 = vmatprep.mubr.f32.mxu0 0.0
        %559 = vmatmul.mubr.f32.gmra.mrb[0].mxu0 %v392
        %v560 = vpop.f32.mrb[0].mxu0
        %v561 = vadd.f32 0.0, %v560
        %v562 = vpop.f32.mrb[0].mxu0
        %v563 = vadd.f32 0.0, %v562
        %564 = vmatprep.mubr.f32.mxu0 0.0
        %565 = vmatmul.mubr.f32.gmra.mrb[0].mxu0 %v395
        %v566 = vpop.f32.mrb[0].mxu0
        %v567 = vadd.f32 0.0, %v566
        %v568 = vpop.f32.mrb[0].mxu0
        %v569 = vadd.f32 0.0, %v568
        %570 = vmatprep.mubr.f32.mxu0 0.0
        %571 = vmatmul.mubr.f32.gmra.mrb[0].mxu0 %v398
        %v572 = vpop.f32.mrb[0].mxu0
        %v573 = vadd.f32 0.0, %v572
        %v574 = vpop.f32.mrb[0].mxu0
        %v575 = vadd.f32 0.0, %v574
        %576 = vmatprep.mubr.f32.mxu0 0.0
        %577 = vmatmul.mubr.f32.gmra.mrb[0].mxu0 %v401
        %v578 = vpop.f32.mrb[0].mxu0
        %v579 = vadd.f32 0.0, %v578
        %v580 = vpop.f32.mrb[0].mxu0
        %v581 = vadd.f32 0.0, %v580
        %582 = vmatprep.mubr.f32.mxu0 0.0
        %583 = vmatmul.mubr.f32.gmra.mrb[0].mxu0 %v404
        %v584 = vpop.f32.mrb[0].mxu0
        %v585 = vadd.f32 0.0, %v584
        %v586 = vpop.f32.mrb[0].mxu0
        %v587 = vadd.f32 0.0, %v586
        %588 = vmatprep.mubr.f32.mxu0 0.0
        %589 = vmatmul.mubr.f32.gmra.mrb[0].mxu0 %v407
        %v590 = vpop.f32.mrb[0].mxu0
        %v591 = vadd.f32 0.0, %v590
        %v592 = vpop.f32.mrb[0].mxu0
        %v593 = vadd.f32 0.0, %v592
        %594 = vmatprep.mubr.f32.mxu0 0.0
        %595 = vmatmul.mubr.f32.gmra.mrb[0].mxu0 %v410
        %v596 = vpop.f32.mrb[0].mxu0
        %v597 = vadd.f32 0.0, %v596
        %v598 = vpop.f32.mrb[0].mxu0
        %v599 = vadd.f32 0.0, %v598
        %600 = vmatprep.mubr.f32.mxu0 0.0
        %601 = vmatmul.mubr.f32.gmra.mrb[0].mxu0 %v413
        %v602 = vpop.f32.mrb[0].mxu0
        %v603 = vadd.f32 0.0, %v602
        %v604 = vpop.f32.mrb[0].mxu0
        %v605 = vadd.f32 0.0, %v604
        %606 = vmatprep.mubr.f32.mxu0 0.0
        %607 = vmatmul.mubr.f32.gmra.mrb[0].mxu0 %v416
        %v608 = vpop.f32.mrb[0].mxu0
        %v609 = vadd.f32 0.0, %v608
        %v610 = vpop.f32.mrb[0].mxu0
        %v611 = vadd.f32 0.0, %v610
        %612 = vmatprep.mubr.f32.mxu0 0.0
        %613 = vmatmul.mubr.f32.gmra.mrb[0].mxu0 %v419
        %v614 = vpop.f32.mrb[0].mxu0
        %v615 = vadd.f32 0.0, %v614
        %v616 = vpop.f32.mrb[0].mxu0
        %v617 = vadd.f32 0.0, %v616
        %618 = vmatprep.mubr.f32.mxu0 0.0
        %619 = vmatmul.mubr.f32.gmra.mrb[0].mxu0 %v422
        %v620 = vpop.f32.mrb[0].mxu0
        %v621 = vadd.f32 0.0, %v620
        %v622 = vpop.f32.mrb[0].mxu0
        %v623 = vadd.f32 0.0, %v622
        %624 = vmatprep.mubr.f32.mxu0 0.0
        %625 = vmatmul.mubr.f32.gmra.mrb[0].mxu0 %v425
        %v626 = vpop.f32.mrb[0].mxu0
        %v627 = vadd.f32 0.0, %v626
        %v628 = vpop.f32.mrb[0].mxu0
        %v629 = vadd.f32 0.0, %v628
        %630 = vmatprep.mubr.f32.mxu0 0.0
        %631 = vmatmul.mubr.f32.gmra.mrb[0].mxu0 %v428
        %v632 = vpop.f32.mrb[0].mxu0
        %v633 = vadd.f32 0.0, %v632
        %v634 = vpop.f32.mrb[0].mxu0
        %v635 = vadd.f32 0.0, %v634
        %636 = vmatprep.mubr.f32.mxu0 0.0
        %637 = vmatmul.mubr.f32.gmra.mrb[0].mxu0 %v431
        %v638 = vpop.f32.mrb[0].mxu0
        %v639 = vadd.f32 0.0, %v638
        %v640 = vpop.f32.mrb[0].mxu0
        %v641 = vadd.f32 0.0, %v640
        %642 = vmatprep.mubr.f32.mxu0 0.0
        %643 = vmatmul.mubr.f32.gmra.mrb[0].mxu0 %v434
        %v644 = vpop.f32.mrb[0].mxu0
        %v645 = vadd.f32 0.0, %v644
        %v646 = vpop.f32.mrb[0].mxu0
        %v647 = vadd.f32 0.0, %v646
        %648 = vmatprep.mubr.f32.mxu0 0.0
        %649 = vmatmul.mubr.f32.gmra.mrb[0].mxu0 %v437
        %v650 = vpop.f32.mrb[0].mxu0
        %v651 = vadd.f32 0.0, %v650
        %v652 = vpop.f32.mrb[0].mxu0
        %v653 = vadd.f32 0.0, %v652
        %654 = vdwg.mxu0
        %v655 = vld [vmem:[%s6] sm:$0xff]
        %v656 = vld [vmem:[%s6 + $0x8] sm:$0xff]
        %v657 = vld [vmem:[%s6 + $0x10] sm:$0xff]
        %v658 = vld [vmem:[%s6 + $0x18] sm:$0xff]
        %v659 = vld [vmem:[%s6 + $0x20] sm:$0xff]
        %v660 = vld [vmem:[%s6 + $0x28] sm:$0xff]
        %v661 = vld [vmem:[%s6 + $0x30] sm:$0xff]
        %v662 = vld [vmem:[%s6 + $0x38] sm:$0xff]
        %v663 = vld [vmem:[%s6 + $0x40] sm:$0xff]
        %v664 = vld [vmem:[%s6 + $0x48] sm:$0xff]
        %v665 = vld [vmem:[%s6 + $0x50] sm:$0xff]
        %v666 = vld [vmem:[%s6 + $0x58] sm:$0xff]
        %v667 = vld [vmem:[%s6 + $0x60] sm:$0xff]
        %v668 = vld [vmem:[%s6 + $0x68] sm:$0xff]
        %v669 = vld [vmem:[%s6 + $0x70] sm:$0xff]
        %v670 = vld [vmem:[%s6 + $0x78] sm:$0xff]
        %v671 = vld [vmem:[%s6 + $0x80] sm:$0xff]
        %v672 = vld [vmem:[%s6 + $0x88] sm:$0xff]
        %v673 = vld [vmem:[%s6 + $0x90] sm:$0xff]
        %v674 = vld [vmem:[%s6 + $0x98] sm:$0xff]
        %v675 = vld [vmem:[%s6 + $0xa0] sm:$0xff]
        %v676 = vld [vmem:[%s6 + $0xa8] sm:$0xff]
        %v677 = vld [vmem:[%s6 + $0xb0] sm:$0xff]
        %v678 = vld [vmem:[%s6 + $0xb8] sm:$0xff]
        %v679 = vld [vmem:[%s6 + $0xc0] sm:$0xff]
        %v680 = vld [vmem:[%s6 + $0xc8] sm:$0xff]
        %v681 = vld [vmem:[%s6 + $0xd0] sm:$0xff]
        %v682 = vld [vmem:[%s6 + $0xd8] sm:$0xff]
        %v683 = vld [vmem:[%s6 + $0xe0] sm:$0x1]
        %v684 = vld [vmem:[%s2] sm:$0xff]
        %v685 = vld [vmem:[%s2 + $0x8] sm:$0xff]
        %v686 = vld [vmem:[%s2 + $0x10] sm:$0xff]
        %v687 = vld [vmem:[%s2 + $0x18] sm:$0xff]
        %v688 = vld [vmem:[%s2 + $0x20] sm:$0xff]
        %v689 = vld [vmem:[%s2 + $0x28] sm:$0xff]
        %v690 = vld [vmem:[%s2 + $0x30] sm:$0xff]
        %v691 = vld [vmem:[%s2 + $0x38] sm:$0xff]
        %v692 = vld [vmem:[%s2 + $0x40] sm:$0xff]
        %v693 = vld [vmem:[%s2 + $0x48] sm:$0xff]
        %v694 = vld [vmem:[%s2 + $0x50] sm:$0xff]
        %v695 = vld [vmem:[%s2 + $0x58] sm:$0xff]
        %697 = vset.pattern.permute.xlu0 0
        %698 = vperm.xlu0 %697, %v655
        %v699 = vpop.permute.xlu0 %698
        %702 = vset.pattern.permute.xlu0 0
        %703 = vperm.xlu0 %702, %v656
        %v704 = vpop.permute.xlu0 %703
        %707 = vset.pattern.permute.xlu0 0
        %708 = vperm.xlu0 %707, %v657
        %v709 = vpop.permute.xlu0 %708
        %712 = vset.pattern.permute.xlu0 0
        %713 = vperm.xlu0 %712, %v658
        %v714 = vpop.permute.xlu0 %713
        %717 = vset.pattern.permute.xlu0 0
        %718 = vperm.xlu0 %717, %v659
        %v719 = vpop.permute.xlu0 %718
        %722 = vset.pattern.permute.xlu0 0
        %723 = vperm.xlu0 %722, %v660
        %v724 = vpop.permute.xlu0 %723
        %727 = vset.pattern.permute.xlu0 0
        %728 = vperm.xlu0 %727, %v661
        %v729 = vpop.permute.xlu0 %728
        %732 = vset.pattern.permute.xlu0 0
        %733 = vperm.xlu0 %732, %v662
        %v734 = vpop.permute.xlu0 %733
        %737 = vset.pattern.permute.xlu0 0
        %738 = vperm.xlu0 %737, %v663
        %v739 = vpop.permute.xlu0 %738
        %742 = vset.pattern.permute.xlu0 0
        %743 = vperm.xlu0 %742, %v664
        %v744 = vpop.permute.xlu0 %743
        %747 = vset.pattern.permute.xlu0 0
        %748 = vperm.xlu0 %747, %v665
        %v749 = vpop.permute.xlu0 %748
        %752 = vset.pattern.permute.xlu0 0
        %753 = vperm.xlu0 %752, %v666
        %v754 = vpop.permute.xlu0 %753
        %vm756 = vcmask 261120
        %v758 = vsel %vm756, %v684, 0
        %v761 = vsel %vm756, %v685, 0
        %v764 = vsel %vm756, %v686, 0
        %v767 = vsel %vm756, %v687, 0
        %v770 = vsel %vm756, %v688, 0
        %v773 = vsel %vm756, %v689, 0
        %v776 = vsel %vm756, %v690, 0
        %v779 = vsel %vm756, %v691, 0
        %v782 = vsel %vm756, %v692, 0
        %v785 = vsel %vm756, %v693, 0
        %v788 = vsel %vm756, %v694, 0
        %v791 = vsel %vm756, %v695, 0
        %793 = vmatprep.subr.mxu0 %v515
        %794 = vmatpush1.msra.mxu0 %v513
        %795 = vmatprep.subr.mxu0 %v521
        %796 = vmatpush1.msra.mxu0 %v519
        %797 = vmatprep.subr.mxu0 %v527
        %798 = vmatpush1.msra.mxu0 %v525
        %799 = vmatprep.subr.mxu0 %v533
        %800 = vmatpush1.msra.mxu0 %v531
        %801 = vmatprep.subr.mxu0 0.0
        %802 = vmatpush1.msra.mxu0 0.0
        %803 = vmatprep.subr.mxu0 0.0
        %804 = vmatpush1.msra.mxu0 0.0
        %805 = vmatprep.subr.mxu0 0.0
        %806 = vmatpush1.msra.mxu0 0.0
        %807 = vmatprep.subr.mxu0 0.0
        %808 = vmatpush1.msra.mxu0 0.0
        %809 = vmatprep.subr.mxu0 0.0
        %810 = vmatpush1.msra.mxu0 0.0
        %811 = vmatprep.subr.mxu0 0.0
        %812 = vmatpush1.msra.mxu0 0.0
        %813 = vmatprep.subr.mxu0 0.0
        %814 = vmatpush1.msra.mxu0 0.0
        %815 = vmatprep.subr.mxu0 0.0
        %816 = vmatpush1.msra.mxu0 0.0
        %817 = vmatprep.subr.mxu0 0.0
        %818 = vmatpush1.msra.mxu0 0.0
        %819 = vmatprep.subr.mxu0 0.0
        %820 = vmatpush1.msra.mxu0 0.0
        %821 = vmatprep.subr.mxu0 0.0
        %822 = vmatpush1.msra.mxu0 0.0
        %823 = vmatprep.subr.mxu0 0.0
        %824 = vmatpush1.msra.mxu0 0.0
        %825 = vmatprep.subr.mxu0 0.0
        %826 = vmatpush1.msra.mxu0 0.0
        %827 = vmatprep.subr.mxu0 0.0
        %828 = vmatpush1.msra.mxu0 0.0
        %829 = vmatprep.subr.mxu0 0.0
        %830 = vmatpush1.msra.mxu0 0.0
        %831 = vmatprep.subr.mxu0 0.0
        %832 = vmatpush1.msra.mxu0 0.0
        %833 = vmatprep.subr.mxu0 0.0
        %834 = vmatpush1.msra.mxu0 0.0
        %835 = vmatprep.subr.mxu0 0.0
        %836 = vmatpush1.msra.mxu0 0.0
        %837 = vmatprep.subr.mxu0 0.0
        %838 = vmatpush1.msra.mxu0 0.0
        %839 = vmatprep.subr.mxu0 0.0
        %840 = vmatpush1.msra.mxu0 0.0
        %841 = vmatprep.subr.mxu0 0.0
        %842 = vmatpush1.msra.mxu0 0.0
        %843 = vmatprep.subr.mxu0 0.0
        %844 = vmatpush1.msra.mxu0 0.0
        %845 = vmatprep.subr.mxu0 0.0
        %846 = vmatpush1.msra.mxu0 0.0
        %847 = vmatprep.subr.mxu0 0.0
        %848 = vmatpush1.msra.mxu0 0.0
        %849 = vmatprep.subr.mxu0 0.0
        %850 = vmatpush1.msra.mxu0 0.0
        %851 = vmatprep.subr.mxu0 0.0
        %852 = vmatpush1.msra.mxu0 0.0
        %853 = vmatprep.subr.mxu0 0.0
        %854 = vmatpush1.msra.mxu0 0.0
        %855 = vmatprep.subr.mxu0 0.0
        %856 = vmatpush1.msra.mxu0 0.0
        %857 = vmatprep.mubr.f32.mxu0 0.0
        %858 = vmatmul.mubr.f32.gmra.mrb[0].mxu0 %v758
        %v859 = vpop.f32.mrb[0].mxu0
        %v860 = vadd.f32 %v699, %v859
        %v861 = vpop.f32.mrb[0].mxu0
        %v862 = vadd.f32 %v699, %v861
        %863 = vmatprep.mubr.f32.mxu0 0.0
        %864 = vmatmul.mubr.f32.gmra.mrb[0].mxu0 %v761
        %v865 = vpop.f32.mrb[0].mxu0
        %v866 = vadd.f32 %v704, %v865
        %v867 = vpop.f32.mrb[0].mxu0
        %v868 = vadd.f32 %v704, %v867
        %869 = vmatprep.mubr.f32.mxu0 0.0
        %870 = vmatmul.mubr.f32.gmra.mrb[0].mxu0 %v764
        %v871 = vpop.f32.mrb[0].mxu0
        %v872 = vadd.f32 %v709, %v871
        %v873 = vpop.f32.mrb[0].mxu0
        %v874 = vadd.f32 %v709, %v873
        %875 = vmatprep.mubr.f32.mxu0 0.0
        %876 = vmatmul.mubr.f32.gmra.mrb[0].mxu0 %v767
        %v877 = vpop.f32.mrb[0].mxu0
        %v878 = vadd.f32 %v714, %v877
        %v879 = vpop.f32.mrb[0].mxu0
        %v880 = vadd.f32 %v714, %v879
        %881 = vmatprep.mubr.f32.mxu0 0.0
        %882 = vmatmul.mubr.f32.gmra.mrb[0].mxu0 %v770
        %v883 = vpop.f32.mrb[0].mxu0
        %v884 = vadd.f32 %v719, %v883
        %v885 = vpop.f32.mrb[0].mxu0
        %v886 = vadd.f32 %v719, %v885
        %887 = vmatprep.mubr.f32.mxu0 0.0
        %888 = vmatmul.mubr.f32.gmra.mrb[0].mxu0 %v773
        %v889 = vpop.f32.mrb[0].mxu0
        %v890 = vadd.f32 %v724, %v889
        %v891 = vpop.f32.mrb[0].mxu0
        %v892 = vadd.f32 %v724, %v891
        %893 = vmatprep.mubr.f32.mxu0 0.0
        %894 = vmatmul.mubr.f32.gmra.mrb[0].mxu0 %v776
        %v895 = vpop.f32.mrb[0].mxu0
        %v896 = vadd.f32 %v729, %v895
        %v897 = vpop.f32.mrb[0].mxu0
        %v898 = vadd.f32 %v729, %v897
        %899 = vmatprep.mubr.f32.mxu0 0.0
        %900 = vmatmul.mubr.f32.gmra.mrb[0].mxu0 %v779
        %v901 = vpop.f32.mrb[0].mxu0
        %v902 = vadd.f32 %v734, %v901
        %v903 = vpop.f32.mrb[0].mxu0
        %v904 = vadd.f32 %v734, %v903
        %905 = vmatprep.mubr.f32.mxu0 0.0
        %906 = vmatmul.mubr.f32.gmra.mrb[0].mxu0 %v782
        %v907 = vpop.f32.mrb[0].mxu0
        %v908 = vadd.f32 %v739, %v907
        %v909 = vpop.f32.mrb[0].mxu0
        %v910 = vadd.f32 %v739, %v909
        %911 = vmatprep.mubr.f32.mxu0 0.0
        %912 = vmatmul.mubr.f32.gmra.mrb[0].mxu0 %v785
        %v913 = vpop.f32.mrb[0].mxu0
        %v914 = vadd.f32 %v744, %v913
        %v915 = vpop.f32.mrb[0].mxu0
        %v916 = vadd.f32 %v744, %v915
        %917 = vmatprep.mubr.f32.mxu0 0.0
        %918 = vmatmul.mubr.f32.gmra.mrb[0].mxu0 %v788
        %v919 = vpop.f32.mrb[0].mxu0
        %v920 = vadd.f32 %v749, %v919
        %v921 = vpop.f32.mrb[0].mxu0
        %v922 = vadd.f32 %v749, %v921
        %923 = vmatprep.mubr.f32.mxu0 0.0
        %924 = vmatmul.mubr.f32.gmra.mrb[0].mxu0 %v791
        %v925 = vpop.f32.mrb[0].mxu0
        %v926 = vadd.f32 %v754, %v925
        %v927 = vpop.f32.mrb[0].mxu0
        %v928 = vadd.f32 %v754, %v927
        %929 = vdwg.mxu0
        %930 = vmatprep.subr.mxu0 %v539
        %931 = vmatpush1.msra.mxu0 %v537
        %932 = vmatprep.subr.mxu0 %v545
        %933 = vmatpush1.msra.mxu0 %v543
        %934 = vmatprep.subr.mxu0 %v551
        %935 = vmatpush1.msra.mxu0 %v549
        %936 = vmatprep.subr.mxu0 %v557
        %937 = vmatpush1.msra.mxu0 %v555
        %938 = vmatprep.subr.mxu0 0.0
        %939 = vmatpush1.msra.mxu0 0.0
        %940 = vmatprep.subr.mxu0 0.0
        %941 = vmatpush1.msra.mxu0 0.0
        %942 = vmatprep.subr.mxu0 0.0
        %943 = vmatpush1.msra.mxu0 0.0
        %944 = vmatprep.subr.mxu0 0.0
        %945 = vmatpush1.msra.mxu0 0.0
        %946 = vmatprep.subr.mxu0 0.0
        %947 = vmatpush1.msra.mxu0 0.0
        %948 = vmatprep.subr.mxu0 0.0
        %949 = vmatpush1.msra.mxu0 0.0
        %950 = vmatprep.subr.mxu0 0.0
        %951 = vmatpush1.msra.mxu0 0.0
        %952 = vmatprep.subr.mxu0 0.0
        %953 = vmatpush1.msra.mxu0 0.0
        %954 = vmatprep.subr.mxu0 0.0
        %955 = vmatpush1.msra.mxu0 0.0
        %956 = vmatprep.subr.mxu0 0.0
        %957 = vmatpush1.msra.mxu0 0.0
        %958 = vmatprep.subr.mxu0 0.0
        %959 = vmatpush1.msra.mxu0 0.0
        %960 = vmatprep.subr.mxu0 0.0
        %961 = vmatpush1.msra.mxu0 0.0
        %962 = vmatprep.subr.mxu0 0.0
        %963 = vmatpush1.msra.mxu0 0.0
        %964 = vmatprep.subr.mxu0 0.0
        %965 = vmatpush1.msra.mxu0 0.0
        %966 = vmatprep.subr.mxu0 0.0
        %967 = vmatpush1.msra.mxu0 0.0
        %968 = vmatprep.subr.mxu0 0.0
        %969 = vmatpush1.msra.mxu0 0.0
        %970 = vmatprep.subr.mxu0 0.0
        %971 = vmatpush1.msra.mxu0 0.0
        %972 = vmatprep.subr.mxu0 0.0
        %973 = vmatpush1.msra.mxu0 0.0
        %974 = vmatprep.subr.mxu0 0.0
        %975 = vmatpush1.msra.mxu0 0.0
        %976 = vmatprep.subr.mxu0 0.0
        %977 = vmatpush1.msra.mxu0 0.0
        %978 = vmatprep.subr.mxu0 0.0
        %979 = vmatpush1.msra.mxu0 0.0
        %980 = vmatprep.subr.mxu0 0.0
        %981 = vmatpush1.msra.mxu0 0.0
        %982 = vmatprep.subr.mxu0 0.0
        %983 = vmatpush1.msra.mxu0 0.0
        %984 = vmatprep.subr.mxu0 0.0
        %985 = vmatpush1.msra.mxu0 0.0
        %986 = vmatprep.subr.mxu0 0.0
        %987 = vmatpush1.msra.mxu0 0.0
        %988 = vmatprep.subr.mxu0 0.0
        %989 = vmatpush1.msra.mxu0 0.0
        %990 = vmatprep.subr.mxu0 0.0
        %991 = vmatpush1.msra.mxu0 0.0
        %992 = vmatprep.subr.mxu0 0.0
        %993 = vmatpush1.msra.mxu0 0.0
        %994 = vmatprep.mubr.f32.mxu0 0.0
        %995 = vmatmul.mubr.f32.gmra.mrb[0].mxu0 %v758
        %v996 = vpop.f32.mrb[0].mxu0
        %v997 = vadd.f32 %v699, %v996
        %v998 = vpop.f32.mrb[0].mxu0
        %v999 = vadd.f32 %v699, %v998
        %1000 = vmatprep.mubr.f32.mxu0 0.0
        %1001 = vmatmul.mubr.f32.gmra.mrb[0].mxu0 %v761
        %v1002 = vpop.f32.mrb[0].mxu0
        %v1003 = vadd.f32 %v704, %v1002
        %v1004 = vpop.f32.mrb[0].mxu0
        %v1005 = vadd.f32 %v704, %v1004
        %1006 = vmatprep.mubr.f32.mxu0 0.0
        %1007 = vmatmul.mubr.f32.gmra.mrb[0].mxu0 %v764
        %v1008 = vpop.f32.mrb[0].mxu0
        %v1009 = vadd.f32 %v709, %v1008
        %v1010 = vpop.f32.mrb[0].mxu0
        %v1011 = vadd.f32 %v709, %v1010
        %1012 = vmatprep.mubr.f32.mxu0 0.0
        %1013 = vmatmul.mubr.f32.gmra.mrb[0].mxu0 %v767
        %v1014 = vpop.f32.mrb[0].mxu0
        %v1015 = vadd.f32 %v714, %v1014
        %v1016 = vpop.f32.mrb[0].mxu0
        %v1017 = vadd.f32 %v714, %v1016
        %1018 = vmatprep.mubr.f32.mxu0 0.0
        %1019 = vmatmul.mubr.f32.gmra.mrb[0].mxu0 %v770
        %v1020 = vpop.f32.mrb[0].mxu0
        %v1021 = vadd.f32 %v719, %v1020
        %v1022 = vpop.f32.mrb[0].mxu0
        %v1023 = vadd.f32 %v719, %v1022
        %1024 = vmatprep.mubr.f32.mxu0 0.0
        %1025 = vmatmul.mubr.f32.gmra.mrb[0].mxu0 %v773
        %v1026 = vpop.f32.mrb[0].mxu0
        %v1027 = vadd.f32 %v724, %v1026
        %v1028 = vpop.f32.mrb[0].mxu0
        %v1029 = vadd.f32 %v724, %v1028
        %1030 = vmatprep.mubr.f32.mxu0 0.0
        %1031 = vmatmul.mubr.f32.gmra.mrb[0].mxu0 %v776
        %v1032 = vpop.f32.mrb[0].mxu0
        %v1033 = vadd.f32 %v729, %v1032
        %v1034 = vpop.f32.mrb[0].mxu0
        %v1035 = vadd.f32 %v729, %v1034
        %1036 = vmatprep.mubr.f32.mxu0 0.0
        %1037 = vmatmul.mubr.f32.gmra.mrb[0].mxu0 %v779
        %v1038 = vpop.f32.mrb[0].mxu0
        %v1039 = vadd.f32 %v734, %v1038
        %v1040 = vpop.f32.mrb[0].mxu0
        %v1041 = vadd.f32 %v734, %v1040
        %1042 = vmatprep.mubr.f32.mxu0 0.0
        %1043 = vmatmul.mubr.f32.gmra.mrb[0].mxu0 %v782
        %v1044 = vpop.f32.mrb[0].mxu0
        %v1045 = vadd.f32 %v739, %v1044
        %v1046 = vpop.f32.mrb[0].mxu0
        %v1047 = vadd.f32 %v739, %v1046
        %1048 = vmatprep.mubr.f32.mxu0 0.0
        %1049 = vmatmul.mubr.f32.gmra.mrb[0].mxu0 %v785
        %v1050 = vpop.f32.mrb[0].mxu0
        %v1051 = vadd.f32 %v744, %v1050
        %v1052 = vpop.f32.mrb[0].mxu0
        %v1053 = vadd.f32 %v744, %v1052
        %1054 = vmatprep.mubr.f32.mxu0 0.0
        %1055 = vmatmul.mubr.f32.gmra.mrb[0].mxu0 %v788
        %v1056 = vpop.f32.mrb[0].mxu0
        %v1057 = vadd.f32 %v749, %v1056
        %v1058 = vpop.f32.mrb[0].mxu0
        %v1059 = vadd.f32 %v749, %v1058
        %1060 = vmatprep.mubr.f32.mxu0 0.0
        %1061 = vmatmul.mubr.f32.gmra.mrb[0].mxu0 %v791
        %v1062 = vpop.f32.mrb[0].mxu0
        %v1063 = vadd.f32 %v754, %v1062
        %v1064 = vpop.f32.mrb[0].mxu0
        %v1065 = vadd.f32 %v754, %v1064
        %1066 = vdwg.mxu0
        %1067 = vmatprep.subr.mxu0 %v563
        %1068 = vmatpush1.msra.mxu0 %v561
        %1069 = vmatprep.subr.mxu0 %v569
        %1070 = vmatpush1.msra.mxu0 %v567
        %1071 = vmatprep.subr.mxu0 %v575
        %1072 = vmatpush1.msra.mxu0 %v573
        %1073 = vmatprep.subr.mxu0 %v581
        %1074 = vmatpush1.msra.mxu0 %v579
        %1075 = vmatprep.subr.mxu0 0.0
        %1076 = vmatpush1.msra.mxu0 0.0
        %1077 = vmatprep.subr.mxu0 0.0
        %1078 = vmatpush1.msra.mxu0 0.0
        %1079 = vmatprep.subr.mxu0 0.0
        %1080 = vmatpush1.msra.mxu0 0.0
        %1081 = vmatprep.subr.mxu0 0.0
        %1082 = vmatpush1.msra.mxu0 0.0
        %1083 = vmatprep.subr.mxu0 0.0
        %1084 = vmatpush1.msra.mxu0 0.0
        %1085 = vmatprep.subr.mxu0 0.0
        %1086 = vmatpush1.msra.mxu0 0.0
        %1087 = vmatprep.subr.mxu0 0.0
        %1088 = vmatpush1.msra.mxu0 0.0
        %1089 = vmatprep.subr.mxu0 0.0
        %1090 = vmatpush1.msra.mxu0 0.0
        %1091 = vmatprep.subr.mxu0 0.0
        %1092 = vmatpush1.msra.mxu0 0.0
        %1093 = vmatprep.subr.mxu0 0.0
        %1094 = vmatpush1.msra.mxu0 0.0
        %1095 = vmatprep.subr.mxu0 0.0
        %1096 = vmatpush1.msra.mxu0 0.0
        %1097 = vmatprep.subr.mxu0 0.0
        %1098 = vmatpush1.msra.mxu0 0.0
        %1099 = vmatprep.subr.mxu0 0.0
        %1100 = vmatpush1.msra.mxu0 0.0
        %1101 = vmatprep.subr.mxu0 0.0
        %1102 = vmatpush1.msra.mxu0 0.0
        %1103 = vmatprep.subr.mxu0 0.0
        %1104 = vmatpush1.msra.mxu0 0.0
        %1105 = vmatprep.subr.mxu0 0.0
        %1106 = vmatpush1.msra.mxu0 0.0
        %1107 = vmatprep.subr.mxu0 0.0
        %1108 = vmatpush1.msra.mxu0 0.0
        %1109 = vmatprep.subr.mxu0 0.0
        %1110 = vmatpush1.msra.mxu0 0.0
        %1111 = vmatprep.subr.mxu0 0.0
        %1112 = vmatpush1.msra.mxu0 0.0
        %1113 = vmatprep.subr.mxu0 0.0
        %1114 = vmatpush1.msra.mxu0 0.0
        %1115 = vmatprep.subr.mxu0 0.0
        %1116 = vmatpush1.msra.mxu0 0.0
        %1117 = vmatprep.subr.mxu0 0.0
        %1118 = vmatpush1.msra.mxu0 0.0
        %1119 = vmatprep.subr.mxu0 0.0
        %1120 = vmatpush1.msra.mxu0 0.0
        %1121 = vmatprep.subr.mxu0 0.0
        %1122 = vmatpush1.msra.mxu0 0.0
        %1123 = vmatprep.subr.mxu0 0.0
        %1124 = vmatpush1.msra.mxu0 0.0
        %1125 = vmatprep.subr.mxu0 0.0
        %1126 = vmatpush1.msra.mxu0 0.0
        %1127 = vmatprep.subr.mxu0 0.0
        %1128 = vmatpush1.msra.mxu0 0.0
        %1129 = vmatprep.subr.mxu0 0.0
        %1130 = vmatpush1.msra.mxu0 0.0
        %1131 = vmatprep.mubr.f32.mxu0 0.0
        %1132 = vmatmul.mubr.f32.gmra.mrb[0].mxu0 %v758
        %v1133 = vpop.f32.mrb[0].mxu0
        %v1134 = vadd.f32 %v699, %v1133
        %v1135 = vpop.f32.mrb[0].mxu0
        %v1136 = vadd.f32 %v699, %v1135
        %1137 = vmatprep.mubr.f32.mxu0 0.0
        %1138 = vmatmul.mubr.f32.gmra.mrb[0].mxu0 %v761
        %v1139 = vpop.f32.mrb[0].mxu0
        %v1140 = vadd.f32 %v704, %v1139
        %v1141 = vpop.f32.mrb[0].mxu0
        %v1142 = vadd.f32 %v704, %v1141
        %1143 = vmatprep.mubr.f32.mxu0 0.0
        %1144 = vmatmul.mubr.f32.gmra.mrb[0].mxu0 %v764
        %v1145 = vpop.f32.mrb[0].mxu0
        %v1146 = vadd.f32 %v709, %v1145
        %v1147 = vpop.f32.mrb[0].mxu0
        %v1148 = vadd.f32 %v709, %v1147
        %1149 = vmatprep.mubr.f32.mxu0 0.0
        %1150 = vmatmul.mubr.f32.gmra.mrb[0].mxu0 %v767
        %v1151 = vpop.f32.mrb[0].mxu0
        %v1152 = vadd.f32 %v714, %v1151
        %v1153 = vpop.f32.mrb[0].mxu0
        %v1154 = vadd.f32 %v714, %v1153
        %1155 = vmatprep.mubr.f32.mxu0 0.0
        %1156 = vmatmul.mubr.f32.gmra.mrb[0].mxu0 %v770
        %v1157 = vpop.f32.mrb[0].mxu0
        %v1158 = vadd.f32 %v719, %v1157
        %v1159 = vpop.f32.mrb[0].mxu0
        %v1160 = vadd.f32 %v719, %v1159
        %1161 = vmatprep.mubr.f32.mxu0 0.0
        %1162 = vmatmul.mubr.f32.gmra.mrb[0].mxu0 %v773
        %v1163 = vpop.f32.mrb[0].mxu0
        %v1164 = vadd.f32 %v724, %v1163
        %v1165 = vpop.f32.mrb[0].mxu0
        %v1166 = vadd.f32 %v724, %v1165
        %1167 = vmatprep.mubr.f32.mxu0 0.0
        %1168 = vmatmul.mubr.f32.gmra.mrb[0].mxu0 %v776
        %v1169 = vpop.f32.mrb[0].mxu0
        %v1170 = vadd.f32 %v729, %v1169
        %v1171 = vpop.f32.mrb[0].mxu0
        %v1172 = vadd.f32 %v729, %v1171
        %1173 = vmatprep.mubr.f32.mxu0 0.0
        %1174 = vmatmul.mubr.f32.gmra.mrb[0].mxu0 %v779
        %v1175 = vpop.f32.mrb[0].mxu0
        %v1176 = vadd.f32 %v734, %v1175
        %v1177 = vpop.f32.mrb[0].mxu0
        %v1178 = vadd.f32 %v734, %v1177
        %1179 = vmatprep.mubr.f32.mxu0 0.0
        %1180 = vmatmul.mubr.f32.gmra.mrb[0].mxu0 %v782
        %v1181 = vpop.f32.mrb[0].mxu0
        %v1182 = vadd.f32 %v739, %v1181
        %v1183 = vpop.f32.mrb[0].mxu0
        %v1184 = vadd.f32 %v739, %v1183
        %1185 = vmatprep.mubr.f32.mxu0 0.0
        %1186 = vmatmul.mubr.f32.gmra.mrb[0].mxu0 %v785
        %v1187 = vpop.f32.mrb[0].mxu0
        %v1188 = vadd.f32 %v744, %v1187
        %v1189 = vpop.f32.mrb[0].mxu0
        %v1190 = vadd.f32 %v744, %v1189
        %1191 = vmatprep.mubr.f32.mxu0 0.0
        %1192 = vmatmul.mubr.f32.gmra.mrb[0].mxu0 %v788
        %v1193 = vpop.f32.mrb[0].mxu0
        %v1194 = vadd.f32 %v749, %v1193
        %v1195 = vpop.f32.mrb[0].mxu0
        %v1196 = vadd.f32 %v749, %v1195
        %1197 = vmatprep.mubr.f32.mxu0 0.0
        %1198 = vmatmul.mubr.f32.gmra.mrb[0].mxu0 %v791
        %v1199 = vpop.f32.mrb[0].mxu0
        %v1200 = vadd.f32 %v754, %v1199
        %v1201 = vpop.f32.mrb[0].mxu0
        %v1202 = vadd.f32 %v754, %v1201
        %1203 = vdwg.mxu0
        %1204 = vmatprep.subr.mxu0 %v587
        %1205 = vmatpush1.msra.mxu0 %v585
        %1206 = vmatprep.subr.mxu0 %v593
        %1207 = vmatpush1.msra.mxu0 %v591
        %1208 = vmatprep.subr.mxu0 %v599
        %1209 = vmatpush1.msra.mxu0 %v597
        %1210 = vmatprep.subr.mxu0 %v605
        %1211 = vmatpush1.msra.mxu0 %v603
        %1212 = vmatprep.subr.mxu0 0.0
        %1213 = vmatpush1.msra.mxu0 0.0
        %1214 = vmatprep.subr.mxu0 0.0
        %1215 = vmatpush1.msra.mxu0 0.0
        %1216 = vmatprep.subr.mxu0 0.0
        %1217 = vmatpush1.msra.mxu0 0.0
        %1218 = vmatprep.subr.mxu0 0.0
        %1219 = vmatpush1.msra.mxu0 0.0
        %1220 = vmatprep.subr.mxu0 0.0
        %1221 = vmatpush1.msra.mxu0 0.0
        %1222 = vmatprep.subr.mxu0 0.0
        %1223 = vmatpush1.msra.mxu0 0.0
        %1224 = vmatprep.subr.mxu0 0.0
        %1225 = vmatpush1.msra.mxu0 0.0
        %1226 = vmatprep.subr.mxu0 0.0
        %1227 = vmatpush1.msra.mxu0 0.0
        %1228 = vmatprep.subr.mxu0 0.0
        %1229 = vmatpush1.msra.mxu0 0.0
        %1230 = vmatprep.subr.mxu0 0.0
        %1231 = vmatpush1.msra.mxu0 0.0
        %1232 = vmatprep.subr.mxu0 0.0
        %1233 = vmatpush1.msra.mxu0 0.0
        %1234 = vmatprep.subr.mxu0 0.0
        %1235 = vmatpush1.msra.mxu0 0.0
        %1236 = vmatprep.subr.mxu0 0.0
        %1237 = vmatpush1.msra.mxu0 0.0
        %1238 = vmatprep.subr.mxu0 0.0
        %1239 = vmatpush1.msra.mxu0 0.0
        %1240 = vmatprep.subr.mxu0 0.0
        %1241 = vmatpush1.msra.mxu0 0.0
        %1242 = vmatprep.subr.mxu0 0.0
        %1243 = vmatpush1.msra.mxu0 0.0
        %1244 = vmatprep.subr.mxu0 0.0
        %1245 = vmatpush1.msra.mxu0 0.0
        %1246 = vmatprep.subr.mxu0 0.0
        %1247 = vmatpush1.msra.mxu0 0.0
        %1248 = vmatprep.subr.mxu0 0.0
        %1249 = vmatpush1.msra.mxu0 0.0
        %1250 = vmatprep.subr.mxu0 0.0
        %1251 = vmatpush1.msra.mxu0 0.0
        %1252 = vmatprep.subr.mxu0 0.0
        %1253 = vmatpush1.msra.mxu0 0.0
        %1254 = vmatprep.subr.mxu0 0.0
        %1255 = vmatpush1.msra.mxu0 0.0
        %1256 = vmatprep.subr.mxu0 0.0
        %1257 = vmatpush1.msra.mxu0 0.0
        %1258 = vmatprep.subr.mxu0 0.0
        %1259 = vmatpush1.msra.mxu0 0.0
        %1260 = vmatprep.subr.mxu0 0.0
        %1261 = vmatpush1.msra.mxu0 0.0
        %1262 = vmatprep.subr.mxu0 0.0
        %1263 = vmatpush1.msra.mxu0 0.0
        %1264 = vmatprep.subr.mxu0 0.0
        %1265 = vmatpush1.msra.mxu0 0.0
        %1266 = vmatprep.subr.mxu0 0.0
        %1267 = vmatpush1.msra.mxu0 0.0
        %1268 = vmatprep.mubr.f32.mxu0 0.0
        %1269 = vmatmul.mubr.f32.gmra.mrb[0].mxu0 %v758
        %v1270 = vpop.f32.mrb[0].mxu0
        %v1271 = vadd.f32 %v699, %v1270
        %v1272 = vpop.f32.mrb[0].mxu0
        %v1273 = vadd.f32 %v699, %v1272
        %1274 = vmatprep.mubr.f32.mxu0 0.0
        %1275 = vmatmul.mubr.f32.gmra.mrb[0].mxu0 %v761
        %v1276 = vpop.f32.mrb[0].mxu0
        %v1277 = vadd.f32 %v704, %v1276
        %v1278 = vpop.f32.mrb[0].mxu0
        %v1279 = vadd.f32 %v704, %v1278
        %1280 = vmatprep.mubr.f32.mxu0 0.0
        %1281 = vmatmul.mubr.f32.gmra.mrb[0].mxu0 %v764
        %v1282 = vpop.f32.mrb[0].mxu0
        %v1283 = vadd.f32 %v709, %v1282
        %v1284 = vpop.f32.mrb[0].mxu0
        %v1285 = vadd.f32 %v709, %v1284
        %1286 = vmatprep.mubr.f32.mxu0 0.0
        %1287 = vmatmul.mubr.f32.gmra.mrb[0].mxu0 %v767
        %v1288 = vpop.f32.mrb[0].mxu0
        %v1289 = vadd.f32 %v714, %v1288
        %v1290 = vpop.f32.mrb[0].mxu0
        %v1291 = vadd.f32 %v714, %v1290
        %1292 = vmatprep.mubr.f32.mxu0 0.0
        %1293 = vmatmul.mubr.f32.gmra.mrb[0].mxu0 %v770
        %v1294 = vpop.f32.mrb[0].mxu0
        %v1295 = vadd.f32 %v719, %v1294
        %v1296 = vpop.f32.mrb[0].mxu0
        %v1297 = vadd.f32 %v719, %v1296
        %1298 = vmatprep.mubr.f32.mxu0 0.0
        %1299 = vmatmul.mubr.f32.gmra.mrb[0].mxu0 %v773
        %v1300 = vpop.f32.mrb[0].mxu0
        %v1301 = vadd.f32 %v724, %v1300
        %v1302 = vpop.f32.mrb[0].mxu0
        %v1303 = vadd.f32 %v724, %v1302
        %1304 = vmatprep.mubr.f32.mxu0 0.0
        %1305 = vmatmul.mubr.f32.gmra.mrb[0].mxu0 %v776
        %v1306 = vpop.f32.mrb[0].mxu0
        %v1307 = vadd.f32 %v729, %v1306
        %v1308 = vpop.f32.mrb[0].mxu0
        %v1309 = vadd.f32 %v729, %v1308
        %1310 = vmatprep.mubr.f32.mxu0 0.0
        %1311 = vmatmul.mubr.f32.gmra.mrb[0].mxu0 %v779
        %v1312 = vpop.f32.mrb[0].mxu0
        %v1313 = vadd.f32 %v734, %v1312
        %v1314 = vpop.f32.mrb[0].mxu0
        %v1315 = vadd.f32 %v734, %v1314
        %1316 = vmatprep.mubr.f32.mxu0 0.0
        %1317 = vmatmul.mubr.f32.gmra.mrb[0].mxu0 %v782
        %v1318 = vpop.f32.mrb[0].mxu0
        %v1319 = vadd.f32 %v739, %v1318
        %v1320 = vpop.f32.mrb[0].mxu0
        %v1321 = vadd.f32 %v739, %v1320
        %1322 = vmatprep.mubr.f32.mxu0 0.0
        %1323 = vmatmul.mubr.f32.gmra.mrb[0].mxu0 %v785
        %v1324 = vpop.f32.mrb[0].mxu0
        %v1325 = vadd.f32 %v744, %v1324
        %v1326 = vpop.f32.mrb[0].mxu0
        %v1327 = vadd.f32 %v744, %v1326
        %1328 = vmatprep.mubr.f32.mxu0 0.0
        %1329 = vmatmul.mubr.f32.gmra.mrb[0].mxu0 %v788
        %v1330 = vpop.f32.mrb[0].mxu0
        %v1331 = vadd.f32 %v749, %v1330
        %v1332 = vpop.f32.mrb[0].mxu0
        %v1333 = vadd.f32 %v749, %v1332
        %1334 = vmatprep.mubr.f32.mxu0 0.0
        %1335 = vmatmul.mubr.f32.gmra.mrb[0].mxu0 %v791
        %v1336 = vpop.f32.mrb[0].mxu0
        %v1337 = vadd.f32 %v754, %v1336
        %v1338 = vpop.f32.mrb[0].mxu0
        %v1339 = vadd.f32 %v754, %v1338
        %1340 = vdwg.mxu0
        %1341 = vmatprep.subr.mxu0 %v611
        %1342 = vmatpush1.msra.mxu0 %v609
        %1343 = vmatprep.subr.mxu0 %v617
        %1344 = vmatpush1.msra.mxu0 %v615
        %1345 = vmatprep.subr.mxu0 %v623
        %1346 = vmatpush1.msra.mxu0 %v621
        %1347 = vmatprep.subr.mxu0 %v629
        %1348 = vmatpush1.msra.mxu0 %v627
        %1349 = vmatprep.subr.mxu0 0.0
        %1350 = vmatpush1.msra.mxu0 0.0
        %1351 = vmatprep.subr.mxu0 0.0
        %1352 = vmatpush1.msra.mxu0 0.0
        %1353 = vmatprep.subr.mxu0 0.0
        %1354 = vmatpush1.msra.mxu0 0.0
        %1355 = vmatprep.subr.mxu0 0.0
        %1356 = vmatpush1.msra.mxu0 0.0
        %1357 = vmatprep.subr.mxu0 0.0
        %1358 = vmatpush1.msra.mxu0 0.0
        %1359 = vmatprep.subr.mxu0 0.0
        %1360 = vmatpush1.msra.mxu0 0.0
        %1361 = vmatprep.subr.mxu0 0.0
        %1362 = vmatpush1.msra.mxu0 0.0
        %1363 = vmatprep.subr.mxu0 0.0
        %1364 = vmatpush1.msra.mxu0 0.0
        %1365 = vmatprep.subr.mxu0 0.0
        %1366 = vmatpush1.msra.mxu0 0.0
        %1367 = vmatprep.subr.mxu0 0.0
        %1368 = vmatpush1.msra.mxu0 0.0
        %1369 = vmatprep.subr.mxu0 0.0
        %1370 = vmatpush1.msra.mxu0 0.0
        %1371 = vmatprep.subr.mxu0 0.0
        %1372 = vmatpush1.msra.mxu0 0.0
        %1373 = vmatprep.subr.mxu0 0.0
        %1374 = vmatpush1.msra.mxu0 0.0
        %1375 = vmatprep.subr.mxu0 0.0
        %1376 = vmatpush1.msra.mxu0 0.0
        %1377 = vmatprep.subr.mxu0 0.0
        %1378 = vmatpush1.msra.mxu0 0.0
        %1379 = vmatprep.subr.mxu0 0.0
        %1380 = vmatpush1.msra.mxu0 0.0
        %1381 = vmatprep.subr.mxu0 0.0
        %1382 = vmatpush1.msra.mxu0 0.0
        %1383 = vmatprep.subr.mxu0 0.0
        %1384 = vmatpush1.msra.mxu0 0.0
        %1385 = vmatprep.subr.mxu0 0.0
        %1386 = vmatpush1.msra.mxu0 0.0
        %1387 = vmatprep.subr.mxu0 0.0
        %1388 = vmatpush1.msra.mxu0 0.0
        %1389 = vmatprep.subr.mxu0 0.0
        %1390 = vmatpush1.msra.mxu0 0.0
        %1391 = vmatprep.subr.mxu0 0.0
        %1392 = vmatpush1.msra.mxu0 0.0
        %1393 = vmatprep.subr.mxu0 0.0
        %1394 = vmatpush1.msra.mxu0 0.0
        %1395 = vmatprep.subr.mxu0 0.0
        %1396 = vmatpush1.msra.mxu0 0.0
        %1397 = vmatprep.subr.mxu0 0.0
        %1398 = vmatpush1.msra.mxu0 0.0
        %1399 = vmatprep.subr.mxu0 0.0
        %1400 = vmatpush1.msra.mxu0 0.0
        %1401 = vmatprep.subr.mxu0 0.0
        %1402 = vmatpush1.msra.mxu0 0.0
        %1403 = vmatprep.subr.mxu0 0.0
        %1404 = vmatpush1.msra.mxu0 0.0
        %1405 = vmatprep.mubr.f32.mxu0 0.0
        %1406 = vmatmul.mubr.f32.gmra.mrb[0].mxu0 %v758
        %v1407 = vpop.f32.mrb[0].mxu0
        %v1408 = vadd.f32 %v699, %v1407
        %v1409 = vpop.f32.mrb[0].mxu0
        %v1410 = vadd.f32 %v699, %v1409
        %1411 = vmatprep.mubr.f32.mxu0 0.0
        %1412 = vmatmul.mubr.f32.gmra.mrb[0].mxu0 %v761
        %v1413 = vpop.f32.mrb[0].mxu0
        %v1414 = vadd.f32 %v704, %v1413
        %v1415 = vpop.f32.mrb[0].mxu0
        %v1416 = vadd.f32 %v704, %v1415
        %1417 = vmatprep.mubr.f32.mxu0 0.0
        %1418 = vmatmul.mubr.f32.gmra.mrb[0].mxu0 %v764
        %v1419 = vpop.f32.mrb[0].mxu0
        %v1420 = vadd.f32 %v709, %v1419
        %v1421 = vpop.f32.mrb[0].mxu0
        %v1422 = vadd.f32 %v709, %v1421
        %1423 = vmatprep.mubr.f32.mxu0 0.0
        %1424 = vmatmul.mubr.f32.gmra.mrb[0].mxu0 %v767
        %v1425 = vpop.f32.mrb[0].mxu0
        %v1426 = vadd.f32 %v714, %v1425
        %v1427 = vpop.f32.mrb[0].mxu0
        %v1428 = vadd.f32 %v714, %v1427
        %1429 = vmatprep.mubr.f32.mxu0 0.0
        %1430 = vmatmul.mubr.f32.gmra.mrb[0].mxu0 %v770
        %v1431 = vpop.f32.mrb[0].mxu0
        %v1432 = vadd.f32 %v719, %v1431
        %v1433 = vpop.f32.mrb[0].mxu0
        %v1434 = vadd.f32 %v719, %v1433
        %1435 = vmatprep.mubr.f32.mxu0 0.0
        %1436 = vmatmul.mubr.f32.gmra.mrb[0].mxu0 %v773
        %v1437 = vpop.f32.mrb[0].mxu0
        %v1438 = vadd.f32 %v724, %v1437
        %v1439 = vpop.f32.mrb[0].mxu0
        %v1440 = vadd.f32 %v724, %v1439
        %1441 = vmatprep.mubr.f32.mxu0 0.0
        %1442 = vmatmul.mubr.f32.gmra.mrb[0].mxu0 %v776
        %v1443 = vpop.f32.mrb[0].mxu0
        %v1444 = vadd.f32 %v729, %v1443
        %v1445 = vpop.f32.mrb[0].mxu0
        %v1446 = vadd.f32 %v729, %v1445
        %1447 = vmatprep.mubr.f32.mxu0 0.0
        %1448 = vmatmul.mubr.f32.gmra.mrb[0].mxu0 %v779
        %v1449 = vpop.f32.mrb[0].mxu0
        %v1450 = vadd.f32 %v734, %v1449
        %v1451 = vpop.f32.mrb[0].mxu0
        %v1452 = vadd.f32 %v734, %v1451
        %1453 = vmatprep.mubr.f32.mxu0 0.0
        %1454 = vmatmul.mubr.f32.gmra.mrb[0].mxu0 %v782
        %v1455 = vpop.f32.mrb[0].mxu0
        %v1456 = vadd.f32 %v739, %v1455
        %v1457 = vpop.f32.mrb[0].mxu0
        %v1458 = vadd.f32 %v739, %v1457
        %1459 = vmatprep.mubr.f32.mxu0 0.0
        %1460 = vmatmul.mubr.f32.gmra.mrb[0].mxu0 %v785
        %v1461 = vpop.f32.mrb[0].mxu0
        %v1462 = vadd.f32 %v744, %v1461
        %v1463 = vpop.f32.mrb[0].mxu0
        %v1464 = vadd.f32 %v744, %v1463
        %1465 = vmatprep.mubr.f32.mxu0 0.0
        %1466 = vmatmul.mubr.f32.gmra.mrb[0].mxu0 %v788
        %v1467 = vpop.f32.mrb[0].mxu0
        %v1468 = vadd.f32 %v749, %v1467
        %v1469 = vpop.f32.mrb[0].mxu0
        %v1470 = vadd.f32 %v749, %v1469
        %1471 = vmatprep.mubr.f32.mxu0 0.0
        %1472 = vmatmul.mubr.f32.gmra.mrb[0].mxu0 %v791
        %v1473 = vpop.f32.mrb[0].mxu0
        %v1474 = vadd.f32 %v754, %v1473
        %v1475 = vpop.f32.mrb[0].mxu0
        %v1476 = vadd.f32 %v754, %v1475
        %1477 = vdwg.mxu0
        %1478 = vmatprep.subr.mxu0 %v635
        %1479 = vmatpush1.msra.mxu0 %v633
        %1480 = vmatprep.subr.mxu0 %v641
        %1481 = vmatpush1.msra.mxu0 %v639
        %1482 = vmatprep.subr.mxu0 %v647
        %1483 = vmatpush1.msra.mxu0 %v645
        %1484 = vmatprep.subr.mxu0 %v653
        %1485 = vmatpush1.msra.mxu0 %v651
        %1486 = vmatprep.subr.mxu0 0.0
        %1487 = vmatpush1.msra.mxu0 0.0
        %1488 = vmatprep.subr.mxu0 0.0
        %1489 = vmatpush1.msra.mxu0 0.0
        %1490 = vmatprep.subr.mxu0 0.0
        %1491 = vmatpush1.msra.mxu0 0.0
        %1492 = vmatprep.subr.mxu0 0.0
        %1493 = vmatpush1.msra.mxu0 0.0
        %1494 = vmatprep.subr.mxu0 0.0
        %1495 = vmatpush1.msra.mxu0 0.0
        %1496 = vmatprep.subr.mxu0 0.0
        %1497 = vmatpush1.msra.mxu0 0.0
        %1498 = vmatprep.subr.mxu0 0.0
        %1499 = vmatpush1.msra.mxu0 0.0
        %1500 = vmatprep.subr.mxu0 0.0
        %1501 = vmatpush1.msra.mxu0 0.0
        %1502 = vmatprep.subr.mxu0 0.0
        %1503 = vmatpush1.msra.mxu0 0.0
        %1504 = vmatprep.subr.mxu0 0.0
        %1505 = vmatpush1.msra.mxu0 0.0
        %1506 = vmatprep.subr.mxu0 0.0
        %1507 = vmatpush1.msra.mxu0 0.0
        %1508 = vmatprep.subr.mxu0 0.0
        %1509 = vmatpush1.msra.mxu0 0.0
        %1510 = vmatprep.subr.mxu0 0.0
        %1511 = vmatpush1.msra.mxu0 0.0
        %1512 = vmatprep.subr.mxu0 0.0
        %1513 = vmatpush1.msra.mxu0 0.0
        %1514 = vmatprep.subr.mxu0 0.0
        %1515 = vmatpush1.msra.mxu0 0.0
        %1516 = vmatprep.subr.mxu0 0.0
        %1517 = vmatpush1.msra.mxu0 0.0
        %1518 = vmatprep.subr.mxu0 0.0
        %1519 = vmatpush1.msra.mxu0 0.0
        %1520 = vmatprep.subr.mxu0 0.0
        %1521 = vmatpush1.msra.mxu0 0.0
        %1522 = vmatprep.subr.mxu0 0.0
        %1523 = vmatpush1.msra.mxu0 0.0
        %1524 = vmatprep.subr.mxu0 0.0
        %1525 = vmatpush1.msra.mxu0 0.0
        %1526 = vmatprep.subr.mxu0 0.0
        %1527 = vmatpush1.msra.mxu0 0.0
        %1528 = vmatprep.subr.mxu0 0.0
        %1529 = vmatpush1.msra.mxu0 0.0
        %1530 = vmatprep.subr.mxu0 0.0
        %1531 = vmatpush1.msra.mxu0 0.0
        %1532 = vmatprep.subr.mxu0 0.0
        %1533 = vmatpush1.msra.mxu0 0.0
        %1534 = vmatprep.subr.mxu0 0.0
        %1535 = vmatpush1.msra.mxu0 0.0
        %1536 = vmatprep.subr.mxu0 0.0
        %1537 = vmatpush1.msra.mxu0 0.0
        %1538 = vmatprep.subr.mxu0 0.0
        %1539 = vmatpush1.msra.mxu0 0.0
        %1540 = vmatprep.subr.mxu0 0.0
        %1541 = vmatpush1.msra.mxu0 0.0
        %1542 = vmatprep.mubr.f32.mxu0 0.0
        %1543 = vmatmul.mubr.f32.gmra.mrb[0].mxu0 %v758
        %v1544 = vpop.f32.mrb[0].mxu0
        %v1545 = vadd.f32 %v699, %v1544
        %v1546 = vpop.f32.mrb[0].mxu0
        %v1547 = vadd.f32 %v699, %v1546
        %1548 = vmatprep.mubr.f32.mxu0 0.0
        %1549 = vmatmul.mubr.f32.gmra.mrb[0].mxu0 %v761
        %v1550 = vpop.f32.mrb[0].mxu0
        %v1551 = vadd.f32 %v704, %v1550
        %v1552 = vpop.f32.mrb[0].mxu0
        %v1553 = vadd.f32 %v704, %v1552
        %1554 = vmatprep.mubr.f32.mxu0 0.0
        %1555 = vmatmul.mubr.f32.gmra.mrb[0].mxu0 %v764
        %v1556 = vpop.f32.mrb[0].mxu0
        %v1557 = vadd.f32 %v709, %v1556
        %v1558 = vpop.f32.mrb[0].mxu0
        %v1559 = vadd.f32 %v709, %v1558
        %1560 = vmatprep.mubr.f32.mxu0 0.0
        %1561 = vmatmul.mubr.f32.gmra.mrb[0].mxu0 %v767
        %v1562 = vpop.f32.mrb[0].mxu0
        %v1563 = vadd.f32 %v714, %v1562
        %v1564 = vpop.f32.mrb[0].mxu0
        %v1565 = vadd.f32 %v714, %v1564
        %1566 = vmatprep.mubr.f32.mxu0 0.0
        %1567 = vmatmul.mubr.f32.gmra.mrb[0].mxu0 %v770
        %v1568 = vpop.f32.mrb[0].mxu0
        %v1569 = vadd.f32 %v719, %v1568
        %v1570 = vpop.f32.mrb[0].mxu0
        %v1571 = vadd.f32 %v719, %v1570
        %1572 = vmatprep.mubr.f32.mxu0 0.0
        %1573 = vmatmul.mubr.f32.gmra.mrb[0].mxu0 %v773
        %v1574 = vpop.f32.mrb[0].mxu0
        %v1575 = vadd.f32 %v724, %v1574
        %v1576 = vpop.f32.mrb[0].mxu0
        %v1577 = vadd.f32 %v724, %v1576
        %1578 = vmatprep.mubr.f32.mxu0 0.0
        %1579 = vmatmul.mubr.f32.gmra.mrb[0].mxu0 %v776
        %v1580 = vpop.f32.mrb[0].mxu0
        %v1581 = vadd.f32 %v729, %v1580
        %v1582 = vpop.f32.mrb[0].mxu0
        %v1583 = vadd.f32 %v729, %v1582
        %1584 = vmatprep.mubr.f32.mxu0 0.0
        %1585 = vmatmul.mubr.f32.gmra.mrb[0].mxu0 %v779
        %v1586 = vpop.f32.mrb[0].mxu0
        %v1587 = vadd.f32 %v734, %v1586
        %v1588 = vpop.f32.mrb[0].mxu0
        %v1589 = vadd.f32 %v734, %v1588
        %1590 = vmatprep.mubr.f32.mxu0 0.0
        %1591 = vmatmul.mubr.f32.gmra.mrb[0].mxu0 %v782
        %v1592 = vpop.f32.mrb[0].mxu0
        %v1593 = vadd.f32 %v739, %v1592
        %v1594 = vpop.f32.mrb[0].mxu0
        %v1595 = vadd.f32 %v739, %v1594
        %1596 = vmatprep.mubr.f32.mxu0 0.0
        %1597 = vmatmul.mubr.f32.gmra.mrb[0].mxu0 %v785
        %v1598 = vpop.f32.mrb[0].mxu0
        %v1599 = vadd.f32 %v744, %v1598
        %v1600 = vpop.f32.mrb[0].mxu0
        %v1601 = vadd.f32 %v744, %v1600
        %1602 = vmatprep.mubr.f32.mxu0 0.0
        %1603 = vmatmul.mubr.f32.gmra.mrb[0].mxu0 %v788
        %v1604 = vpop.f32.mrb[0].mxu0
        %v1605 = vadd.f32 %v749, %v1604
        %v1606 = vpop.f32.mrb[0].mxu0
        %v1607 = vadd.f32 %v749, %v1606
        %1608 = vmatprep.mubr.f32.mxu0 0.0
        %1609 = vmatmul.mubr.f32.gmra.mrb[0].mxu0 %v791
        %v1610 = vpop.f32.mrb[0].mxu0
        %v1611 = vadd.f32 %v754, %v1610
        %v1612 = vpop.f32.mrb[0].mxu0
        %v1613 = vadd.f32 %v754, %v1612
        %1614 = vdwg.mxu0
        %v1615 = vmul.f32 %v860, %v884
        %v1616 = vmul.f32 %v862, %v886
        %v1617 = vmul.f32 %v866, %v890
        %v1618 = vmul.f32 %v868, %v892
        %v1619 = vmul.f32 %v872, %v896
        %v1620 = vmul.f32 %v874, %v898
        %v1621 = vmul.f32 %v878, %v902
        %v1622 = vmul.f32 %v880, %v904
        %v1623 = vadd.f32 %v1615, %v1617
        %v1624 = vadd.f32 %v1623, %v1619
        %v1625 = vadd.f32 %v1624, %v1621
        %v1626 = vrot.slane %v1625, 4
        %v1627 = vadd.f32 %v1625, %v1626
        %v1628 = vrot.slane %v1627, 2
        %v1629 = vadd.f32 %v1627, %v1628
        %v1630 = vrot.slane %v1629, 1
        %v1631 = vadd.f32 %v1629, %v1630
        %v1632 = vadd.f32 %v1616, %v1618
        %v1633 = vadd.f32 %v1632, %v1620
        %v1634 = vadd.f32 %v1633, %v1622
        %v1635 = vrot.slane %v1634, 4
        %v1636 = vadd.f32 %v1634, %v1635
        %v1637 = vrot.slane %v1636, 2
        %v1638 = vadd.f32 %v1636, %v1637
        %v1639 = vrot.slane %v1638, 1
        %v1640 = vadd.f32 %v1638, %v1639
        %v1641 = vmul.f32 %v860, %v1021
        %v1642 = vmul.f32 %v862, %v1023
        %v1643 = vmul.f32 %v866, %v1027
        %v1644 = vmul.f32 %v868, %v1029
        %v1645 = vmul.f32 %v872, %v1033
        %v1646 = vmul.f32 %v874, %v1035
        %v1647 = vmul.f32 %v878, %v1039
        %v1648 = vmul.f32 %v880, %v1041
        %v1649 = vadd.f32 %v1641, %v1643
        %v1650 = vadd.f32 %v1649, %v1645
        %v1651 = vadd.f32 %v1650, %v1647
        %v1652 = vrot.slane %v1651, 4
        %v1653 = vadd.f32 %v1651, %v1652
        %v1654 = vrot.slane %v1653, 2
        %v1655 = vadd.f32 %v1653, %v1654
        %v1656 = vrot.slane %v1655, 1
        %v1657 = vadd.f32 %v1655, %v1656
        %v1658 = vadd.f32 %v1642, %v1644
        %v1659 = vadd.f32 %v1658, %v1646
        %v1660 = vadd.f32 %v1659, %v1648
        %v1661 = vrot.slane %v1660, 4
        %v1662 = vadd.f32 %v1660, %v1661
        %v1663 = vrot.slane %v1662, 2
        %v1664 = vadd.f32 %v1662, %v1663
        %v1665 = vrot.slane %v1664, 1
        %v1666 = vadd.f32 %v1664, %v1665
        %v1667 = vmul.f32 %v860, %v1158
        %v1668 = vmul.f32 %v862, %v1160
        %v1669 = vmul.f32 %v866, %v1164
        %v1670 = vmul.f32 %v868, %v1166
        %v1671 = vmul.f32 %v872, %v1170
        %v1672 = vmul.f32 %v874, %v1172
        %v1673 = vmul.f32 %v878, %v1176
        %v1674 = vmul.f32 %v880, %v1178
        %v1675 = vadd.f32 %v1667, %v1669
        %v1676 = vadd.f32 %v1675, %v1671
        %v1677 = vadd.f32 %v1676, %v1673
        %v1678 = vrot.slane %v1677, 4
        %v1679 = vadd.f32 %v1677, %v1678
        %v1680 = vrot.slane %v1679, 2
        %v1681 = vadd.f32 %v1679, %v1680
        %v1682 = vrot.slane %v1681, 1
        %v1683 = vadd.f32 %v1681, %v1682
        %v1684 = vadd.f32 %v1668, %v1670
        %v1685 = vadd.f32 %v1684, %v1672
        %v1686 = vadd.f32 %v1685, %v1674
        %v1687 = vrot.slane %v1686, 4
        %v1688 = vadd.f32 %v1686, %v1687
        %v1689 = vrot.slane %v1688, 2
        %v1690 = vadd.f32 %v1688, %v1689
        %v1691 = vrot.slane %v1690, 1
        %v1692 = vadd.f32 %v1690, %v1691
        %v1693 = vmul.f32 %v860, %v1295
        %v1694 = vmul.f32 %v862, %v1297
        %v1695 = vmul.f32 %v866, %v1301
        %v1696 = vmul.f32 %v868, %v1303
        %v1697 = vmul.f32 %v872, %v1307
        %v1698 = vmul.f32 %v874, %v1309
        %v1699 = vmul.f32 %v878, %v1313
        %v1700 = vmul.f32 %v880, %v1315
        %v1701 = vadd.f32 %v1693, %v1695
        %v1702 = vadd.f32 %v1701, %v1697
        %v1703 = vadd.f32 %v1702, %v1699
        %v1704 = vrot.slane %v1703, 4
        %v1705 = vadd.f32 %v1703, %v1704
        %v1706 = vrot.slane %v1705, 2
        %v1707 = vadd.f32 %v1705, %v1706
        %v1708 = vrot.slane %v1707, 1
        %v1709 = vadd.f32 %v1707, %v1708
        %v1710 = vadd.f32 %v1694, %v1696
        %v1711 = vadd.f32 %v1710, %v1698
        %v1712 = vadd.f32 %v1711, %v1700
        %v1713 = vrot.slane %v1712, 4
        %v1714 = vadd.f32 %v1712, %v1713
        %v1715 = vrot.slane %v1714, 2
        %v1716 = vadd.f32 %v1714, %v1715
        %v1717 = vrot.slane %v1716, 1
        %v1718 = vadd.f32 %v1716, %v1717
        %v1719 = vmul.f32 %v860, %v1432
        %v1720 = vmul.f32 %v862, %v1434
        %v1721 = vmul.f32 %v866, %v1438
        %v1722 = vmul.f32 %v868, %v1440
        %v1723 = vmul.f32 %v872, %v1444
        %v1724 = vmul.f32 %v874, %v1446
        %v1725 = vmul.f32 %v878, %v1450
        %v1726 = vmul.f32 %v880, %v1452
        %v1727 = vadd.f32 %v1719, %v1721
        %v1728 = vadd.f32 %v1727, %v1723
        %v1729 = vadd.f32 %v1728, %v1725
        %v1730 = vrot.slane %v1729, 4
        %v1731 = vadd.f32 %v1729, %v1730
        %v1732 = vrot.slane %v1731, 2
        %v1733 = vadd.f32 %v1731, %v1732
        %v1734 = vrot.slane %v1733, 1
        %v1735 = vadd.f32 %v1733, %v1734
        %v1736 = vadd.f32 %v1720, %v1722
        %v1737 = vadd.f32 %v1736, %v1724
        %v1738 = vadd.f32 %v1737, %v1726
        %v1739 = vrot.slane %v1738, 4
        %v1740 = vadd.f32 %v1738, %v1739
        %v1741 = vrot.slane %v1740, 2
        %v1742 = vadd.f32 %v1740, %v1741
        %v1743 = vrot.slane %v1742, 1
        %v1744 = vadd.f32 %v1742, %v1743
        %v1745 = vmul.f32 %v860, %v1569
        %v1746 = vmul.f32 %v862, %v1571
        %v1747 = vmul.f32 %v866, %v1575
        %v1748 = vmul.f32 %v868, %v1577
        %v1749 = vmul.f32 %v872, %v1581
        %v1750 = vmul.f32 %v874, %v1583
        %v1751 = vmul.f32 %v878, %v1587
        %v1752 = vmul.f32 %v880, %v1589
        %v1753 = vadd.f32 %v1745, %v1747
        %v1754 = vadd.f32 %v1753, %v1749
        %v1755 = vadd.f32 %v1754, %v1751
        %v1756 = vrot.slane %v1755, 4
        %v1757 = vadd.f32 %v1755, %v1756
        %v1758 = vrot.slane %v1757, 2
        %v1759 = vadd.f32 %v1757, %v1758
        %v1760 = vrot.slane %v1759, 1
        %v1761 = vadd.f32 %v1759, %v1760
        %v1762 = vadd.f32 %v1746, %v1748
        %v1763 = vadd.f32 %v1762, %v1750
        %v1764 = vadd.f32 %v1763, %v1752
        %v1765 = vrot.slane %v1764, 4
        %v1766 = vadd.f32 %v1764, %v1765
        %v1767 = vrot.slane %v1766, 2
        %v1768 = vadd.f32 %v1766, %v1767
        %v1769 = vrot.slane %v1768, 1
        %v1770 = vadd.f32 %v1768, %v1769
        %v1771 = vmax.f32 %v1631, %v1657
        %v1772 = vmax.f32 %v1640, %v1666
        %v1773 = vmax.f32 %v1771, %v1683
        %v1774 = vmax.f32 %v1772, %v1692
        %v1775 = vmax.f32 %v1773, %v1709
        %v1776 = vmax.f32 %v1774, %v1718
        %v1777 = vmax.f32 %v1775, %v1735
        %v1778 = vmax.f32 %v1776, %v1744
        %v1779 = vmax.f32 %v1777, %v1761
        %v1780 = vmax.f32 %v1778, %v1770
        %v1781 = vsub.f32 %v1631, %v1779
        %v1782 = vsub.f32 %v1640, %v1780
        %v1783 = vmul.f32 %v1781, 1.442695
        %v1784 = vpow.pop %v1783
        %v1785 = vmul.f32 %v1782, 1.442695
        %v1786 = vpow.pop %v1785
        %v1787 = vsub.f32 %v1657, %v1779
        %v1788 = vsub.f32 %v1666, %v1780
        %v1789 = vmul.f32 %v1787, 1.442695
        %v1790 = vpow.pop %v1789
        %v1791 = vmul.f32 %v1788, 1.442695
        %v1792 = vpow.pop %v1791
        %v1793 = vsub.f32 %v1683, %v1779
        %v1794 = vsub.f32 %v1692, %v1780
        %v1795 = vmul.f32 %v1793, 1.442695
        %v1796 = vpow.pop %v1795
        %v1797 = vmul.f32 %v1794, 1.442695
        %v1798 = vpow.pop %v1797
        %v1799 = vsub.f32 %v1709, %v1779
        %v1800 = vsub.f32 %v1718, %v1780
        %v1801 = vmul.f32 %v1799, 1.442695
        %v1802 = vpow.pop %v1801
        %v1803 = vmul.f32 %v1800, 1.442695
        %v1804 = vpow.pop %v1803
        %v1805 = vsub.f32 %v1735, %v1779
        %v1806 = vsub.f32 %v1744, %v1780
        %v1807 = vmul.f32 %v1805, 1.442695
        %v1808 = vpow.pop %v1807
        %v1809 = vmul.f32 %v1806, 1.442695
        %v1810 = vpow.pop %v1809
        %v1811 = vsub.f32 %v1761, %v1779
        %v1812 = vsub.f32 %v1770, %v1780
        %v1813 = vmul.f32 %v1811, 1.442695
        %v1814 = vpow.pop %v1813
        %v1815 = vmul.f32 %v1812, 1.442695
        %v1816 = vpow.pop %v1815
        %v1817 = vadd.f32 %v1784, %v1790
        %v1818 = vadd.f32 %v1786, %v1792
        %v1819 = vadd.f32 %v1817, %v1796
        %v1820 = vadd.f32 %v1818, %v1798
        %v1821 = vadd.f32 %v1819, %v1802
        %v1822 = vadd.f32 %v1820, %v1804
        %v1823 = vadd.f32 %v1821, %v1808
        %v1824 = vadd.f32 %v1822, %v1810
        %v1825 = vadd.f32 %v1823, %v1814
        %v1826 = vadd.f32 %v1824, %v1816
        %v1827 = vrcp.pop %v1825
        %v1828 = vrcp.pop %v1826
        %v1829 = vmul.f32 %v1784, %v1827
        %v1830 = vmul.f32 %v1786, %v1828
        %v1831 = vmul.f32 %v1829, %v908
        %v1832 = vmul.f32 %v1830, %v910
        %v1833 = vmul.f32 %v1829, %v914
        %v1834 = vmul.f32 %v1830, %v916
        %v1835 = vmul.f32 %v1829, %v920
        %v1836 = vmul.f32 %v1830, %v922
        %v1837 = vmul.f32 %v1829, %v926
        %v1838 = vmul.f32 %v1830, %v928
        %v1839 = vmul.f32 %v1790, %v1827
        %v1840 = vmul.f32 %v1792, %v1828
        %v1841 = vmul.f32 %v1839, %v1045
        %v1842 = vmul.f32 %v1840, %v1047
        %v1843 = vmul.f32 %v1839, %v1051
        %v1844 = vmul.f32 %v1840, %v1053
        %v1845 = vmul.f32 %v1839, %v1057
        %v1846 = vmul.f32 %v1840, %v1059
        %v1847 = vmul.f32 %v1839, %v1063
        %v1848 = vmul.f32 %v1840, %v1065
        %v1849 = vadd.f32 %v1831, %v1841
        %v1850 = vadd.f32 %v1832, %v1842
        %v1851 = vadd.f32 %v1833, %v1843
        %v1852 = vadd.f32 %v1834, %v1844
        %v1853 = vadd.f32 %v1835, %v1845
        %v1854 = vadd.f32 %v1836, %v1846
        %v1855 = vadd.f32 %v1837, %v1847
        %v1856 = vadd.f32 %v1838, %v1848
        %v1857 = vmul.f32 %v1796, %v1827
        %v1858 = vmul.f32 %v1798, %v1828
        %v1859 = vmul.f32 %v1857, %v1182
        %v1860 = vmul.f32 %v1858, %v1184
        %v1861 = vmul.f32 %v1857, %v1188
        %v1862 = vmul.f32 %v1858, %v1190
        %v1863 = vmul.f32 %v1857, %v1194
        %v1864 = vmul.f32 %v1858, %v1196
        %v1865 = vmul.f32 %v1857, %v1200
        %v1866 = vmul.f32 %v1858, %v1202
        %v1867 = vadd.f32 %v1849, %v1859
        %v1868 = vadd.f32 %v1850, %v1860
        %v1869 = vadd.f32 %v1851, %v1861
        %v1870 = vadd.f32 %v1852, %v1862
        %v1871 = vadd.f32 %v1853, %v1863
        %v1872 = vadd.f32 %v1854, %v1864
        %v1873 = vadd.f32 %v1855, %v1865
        %v1874 = vadd.f32 %v1856, %v1866
        %v1875 = vmul.f32 %v1802, %v1827
        %v1876 = vmul.f32 %v1804, %v1828
        %v1877 = vmul.f32 %v1875, %v1319
        %v1878 = vmul.f32 %v1876, %v1321
        %v1879 = vmul.f32 %v1875, %v1325
        %v1880 = vmul.f32 %v1876, %v1327
        %v1881 = vmul.f32 %v1875, %v1331
        %v1882 = vmul.f32 %v1876, %v1333
        %v1883 = vmul.f32 %v1875, %v1337
        %v1884 = vmul.f32 %v1876, %v1339
        %v1885 = vadd.f32 %v1867, %v1877
        %v1886 = vadd.f32 %v1868, %v1878
        %v1887 = vadd.f32 %v1869, %v1879
        %v1888 = vadd.f32 %v1870, %v1880
        %v1889 = vadd.f32 %v1871, %v1881
        %v1890 = vadd.f32 %v1872, %v1882
        %v1891 = vadd.f32 %v1873, %v1883
        %v1892 = vadd.f32 %v1874, %v1884
        %v1893 = vmul.f32 %v1808, %v1827
        %v1894 = vmul.f32 %v1810, %v1828
        %v1895 = vmul.f32 %v1893, %v1456
        %v1896 = vmul.f32 %v1894, %v1458
        %v1897 = vmul.f32 %v1893, %v1462
        %v1898 = vmul.f32 %v1894, %v1464
        %v1899 = vmul.f32 %v1893, %v1468
        %v1900 = vmul.f32 %v1894, %v1470
        %v1901 = vmul.f32 %v1893, %v1474
        %v1902 = vmul.f32 %v1894, %v1476
        %v1903 = vadd.f32 %v1885, %v1895
        %v1904 = vadd.f32 %v1886, %v1896
        %v1905 = vadd.f32 %v1887, %v1897
        %v1906 = vadd.f32 %v1888, %v1898
        %v1907 = vadd.f32 %v1889, %v1899
        %v1908 = vadd.f32 %v1890, %v1900
        %v1909 = vadd.f32 %v1891, %v1901
        %v1910 = vadd.f32 %v1892, %v1902
        %v1911 = vmul.f32 %v1814, %v1827
        %v1912 = vmul.f32 %v1816, %v1828
        %v1913 = vmul.f32 %v1911, %v1593
        %v1914 = vmul.f32 %v1912, %v1595
        %v1915 = vmul.f32 %v1911, %v1599
        %v1916 = vmul.f32 %v1912, %v1601
        %v1917 = vmul.f32 %v1911, %v1605
        %v1918 = vmul.f32 %v1912, %v1607
        %v1919 = vmul.f32 %v1911, %v1611
        %v1920 = vmul.f32 %v1912, %v1613
        %v1921 = vadd.f32 %v1903, %v1913
        %v1922 = vadd.f32 %v1904, %v1914
        %v1923 = vadd.f32 %v1905, %v1915
        %v1924 = vadd.f32 %v1906, %v1916
        %v1925 = vadd.f32 %v1907, %v1917
        %v1926 = vadd.f32 %v1908, %v1918
        %v1927 = vadd.f32 %v1909, %v1919
        %v1928 = vadd.f32 %v1910, %v1920
        %v1929 = vmul.f32 %v997, %v884
        %v1930 = vmul.f32 %v999, %v886
        %v1931 = vmul.f32 %v1003, %v890
        %v1932 = vmul.f32 %v1005, %v892
        %v1933 = vmul.f32 %v1009, %v896
        %v1934 = vmul.f32 %v1011, %v898
        %v1935 = vmul.f32 %v1015, %v902
        %v1936 = vmul.f32 %v1017, %v904
        %v1937 = vadd.f32 %v1929, %v1931
        %v1938 = vadd.f32 %v1937, %v1933
        %v1939 = vadd.f32 %v1938, %v1935
        %v1940 = vrot.slane %v1939, 4
        %v1941 = vadd.f32 %v1939, %v1940
        %v1942 = vrot.slane %v1941, 2
        %v1943 = vadd.f32 %v1941, %v1942
        %v1944 = vrot.slane %v1943, 1
        %v1945 = vadd.f32 %v1943, %v1944
        %v1946 = vadd.f32 %v1930, %v1932
        %v1947 = vadd.f32 %v1946, %v1934
        %v1948 = vadd.f32 %v1947, %v1936
        %v1949 = vrot.slane %v1948, 4
        %v1950 = vadd.f32 %v1948, %v1949
        %v1951 = vrot.slane %v1950, 2
        %v1952 = vadd.f32 %v1950, %v1951
        %v1953 = vrot.slane %v1952, 1
        %v1954 = vadd.f32 %v1952, %v1953
        %v1955 = vmul.f32 %v997, %v1021
        %v1956 = vmul.f32 %v999, %v1023
        %v1957 = vmul.f32 %v1003, %v1027
        %v1958 = vmul.f32 %v1005, %v1029
        %v1959 = vmul.f32 %v1009, %v1033
        %v1960 = vmul.f32 %v1011, %v1035
        %v1961 = vmul.f32 %v1015, %v1039
        %v1962 = vmul.f32 %v1017, %v1041
        %v1963 = vadd.f32 %v1955, %v1957
        %v1964 = vadd.f32 %v1963, %v1959
        %v1965 = vadd.f32 %v1964, %v1961
        %v1966 = vrot.slane %v1965, 4
        %v1967 = vadd.f32 %v1965, %v1966
        %v1968 = vrot.slane %v1967, 2
        %v1969 = vadd.f32 %v1967, %v1968
        %v1970 = vrot.slane %v1969, 1
        %v1971 = vadd.f32 %v1969, %v1970
        %v1972 = vadd.f32 %v1956, %v1958
        %v1973 = vadd.f32 %v1972, %v1960
        %v1974 = vadd.f32 %v1973, %v1962
        %v1975 = vrot.slane %v1974, 4
        %v1976 = vadd.f32 %v1974, %v1975
        %v1977 = vrot.slane %v1976, 2
        %v1978 = vadd.f32 %v1976, %v1977
        %v1979 = vrot.slane %v1978, 1
        %v1980 = vadd.f32 %v1978, %v1979
        %v1981 = vmul.f32 %v997, %v1158
        %v1982 = vmul.f32 %v999, %v1160
        %v1983 = vmul.f32 %v1003, %v1164
        %v1984 = vmul.f32 %v1005, %v1166
        %v1985 = vmul.f32 %v1009, %v1170
        %v1986 = vmul.f32 %v1011, %v1172
        %v1987 = vmul.f32 %v1015, %v1176
        %v1988 = vmul.f32 %v1017, %v1178
        %v1989 = vadd.f32 %v1981, %v1983
        %v1990 = vadd.f32 %v1989, %v1985
        %v1991 = vadd.f32 %v1990, %v1987
        %v1992 = vrot.slane %v1991, 4
        %v1993 = vadd.f32 %v1991, %v1992
        %v1994 = vrot.slane %v1993, 2
        %v1995 = vadd.f32 %v1993, %v1994
        %v1996 = vrot.slane %v1995, 1
        %v1997 = vadd.f32 %v1995, %v1996
        %v1998 = vadd.f32 %v1982, %v1984
        %v1999 = vadd.f32 %v1998, %v1986
        %v2000 = vadd.f32 %v1999, %v1988
        %v2001 = vrot.slane %v2000, 4
        %v2002 = vadd.f32 %v2000, %v2001
        %v2003 = vrot.slane %v2002, 2
        %v2004 = vadd.f32 %v2002, %v2003
        %v2005 = vrot.slane %v2004, 1
        %v2006 = vadd.f32 %v2004, %v2005
        %v2007 = vmul.f32 %v997, %v1295
        %v2008 = vmul.f32 %v999, %v1297
        %v2009 = vmul.f32 %v1003, %v1301
        %v2010 = vmul.f32 %v1005, %v1303
        %v2011 = vmul.f32 %v1009, %v1307
        %v2012 = vmul.f32 %v1011, %v1309
        %v2013 = vmul.f32 %v1015, %v1313
        %v2014 = vmul.f32 %v1017, %v1315
        %v2015 = vadd.f32 %v2007, %v2009
        %v2016 = vadd.f32 %v2015, %v2011
        %v2017 = vadd.f32 %v2016, %v2013
        %v2018 = vrot.slane %v2017, 4
        %v2019 = vadd.f32 %v2017, %v2018
        %v2020 = vrot.slane %v2019, 2
        %v2021 = vadd.f32 %v2019, %v2020
        %v2022 = vrot.slane %v2021, 1
        %v2023 = vadd.f32 %v2021, %v2022
        %v2024 = vadd.f32 %v2008, %v2010
        %v2025 = vadd.f32 %v2024, %v2012
        %v2026 = vadd.f32 %v2025, %v2014
        %v2027 = vrot.slane %v2026, 4
        %v2028 = vadd.f32 %v2026, %v2027
        %v2029 = vrot.slane %v2028, 2
        %v2030 = vadd.f32 %v2028, %v2029
        %v2031 = vrot.slane %v2030, 1
        %v2032 = vadd.f32 %v2030, %v2031
        %v2033 = vmul.f32 %v997, %v1432
        %v2034 = vmul.f32 %v999, %v1434
        %v2035 = vmul.f32 %v1003, %v1438
        %v2036 = vmul.f32 %v1005, %v1440
        %v2037 = vmul.f32 %v1009, %v1444
        %v2038 = vmul.f32 %v1011, %v1446
        %v2039 = vmul.f32 %v1015, %v1450
        %v2040 = vmul.f32 %v1017, %v1452
        %v2041 = vadd.f32 %v2033, %v2035
        %v2042 = vadd.f32 %v2041, %v2037
        %v2043 = vadd.f32 %v2042, %v2039
        %v2044 = vrot.slane %v2043, 4
        %v2045 = vadd.f32 %v2043, %v2044
        %v2046 = vrot.slane %v2045, 2
        %v2047 = vadd.f32 %v2045, %v2046
        %v2048 = vrot.slane %v2047, 1
        %v2049 = vadd.f32 %v2047, %v2048
        %v2050 = vadd.f32 %v2034, %v2036
        %v2051 = vadd.f32 %v2050, %v2038
        %v2052 = vadd.f32 %v2051, %v2040
        %v2053 = vrot.slane %v2052, 4
        %v2054 = vadd.f32 %v2052, %v2053
        %v2055 = vrot.slane %v2054, 2
        %v2056 = vadd.f32 %v2054, %v2055
        %v2057 = vrot.slane %v2056, 1
        %v2058 = vadd.f32 %v2056, %v2057
        %v2059 = vmul.f32 %v997, %v1569
        %v2060 = vmul.f32 %v999, %v1571
        %v2061 = vmul.f32 %v1003, %v1575
        %v2062 = vmul.f32 %v1005, %v1577
        %v2063 = vmul.f32 %v1009, %v1581
        %v2064 = vmul.f32 %v1011, %v1583
        %v2065 = vmul.f32 %v1015, %v1587
        %v2066 = vmul.f32 %v1017, %v1589
        %v2067 = vadd.f32 %v2059, %v2061
        %v2068 = vadd.f32 %v2067, %v2063
        %v2069 = vadd.f32 %v2068, %v2065
        %v2070 = vrot.slane %v2069, 4
        %v2071 = vadd.f32 %v2069, %v2070
        %v2072 = vrot.slane %v2071, 2
        %v2073 = vadd.f32 %v2071, %v2072
        %v2074 = vrot.slane %v2073, 1
        %v2075 = vadd.f32 %v2073, %v2074
        %v2076 = vadd.f32 %v2060, %v2062
        %v2077 = vadd.f32 %v2076, %v2064
        %v2078 = vadd.f32 %v2077, %v2066
        %v2079 = vrot.slane %v2078, 4
        %v2080 = vadd.f32 %v2078, %v2079
        %v2081 = vrot.slane %v2080, 2
        %v2082 = vadd.f32 %v2080, %v2081
        %v2083 = vrot.slane %v2082, 1
        %v2084 = vadd.f32 %v2082, %v2083
        %v2085 = vmax.f32 %v1945, %v1971
        %v2086 = vmax.f32 %v1954, %v1980
        %v2087 = vmax.f32 %v2085, %v1997
        %v2088 = vmax.f32 %v2086, %v2006
        %v2089 = vmax.f32 %v2087, %v2023
        %v2090 = vmax.f32 %v2088, %v2032
        %v2091 = vmax.f32 %v2089, %v2049
        %v2092 = vmax.f32 %v2090, %v2058
        %v2093 = vmax.f32 %v2091, %v2075
        %v2094 = vmax.f32 %v2092, %v2084
        %v2095 = vsub.f32 %v1945, %v2093
        %v2096 = vsub.f32 %v1954, %v2094
        %v2097 = vmul.f32 %v2095, 1.442695
        %v2098 = vpow.pop %v2097
        %v2099 = vmul.f32 %v2096, 1.442695
        %v2100 = vpow.pop %v2099
        %v2101 = vsub.f32 %v1971, %v2093
        %v2102 = vsub.f32 %v1980, %v2094
        %v2103 = vmul.f32 %v2101, 1.442695
        %v2104 = vpow.pop %v2103
        %v2105 = vmul.f32 %v2102, 1.442695
        %v2106 = vpow.pop %v2105
        %v2107 = vsub.f32 %v1997, %v2093
        %v2108 = vsub.f32 %v2006, %v2094
        %v2109 = vmul.f32 %v2107, 1.442695
        %v2110 = vpow.pop %v2109
        %v2111 = vmul.f32 %v2108, 1.442695
        %v2112 = vpow.pop %v2111
        %v2113 = vsub.f32 %v2023, %v2093
        %v2114 = vsub.f32 %v2032, %v2094
        %v2115 = vmul.f32 %v2113, 1.442695
        %v2116 = vpow.pop %v2115
        %v2117 = vmul.f32 %v2114, 1.442695
        %v2118 = vpow.pop %v2117
        %v2119 = vsub.f32 %v2049, %v2093
        %v2120 = vsub.f32 %v2058, %v2094
        %v2121 = vmul.f32 %v2119, 1.442695
        %v2122 = vpow.pop %v2121
        %v2123 = vmul.f32 %v2120, 1.442695
        %v2124 = vpow.pop %v2123
        %v2125 = vsub.f32 %v2075, %v2093
        %v2126 = vsub.f32 %v2084, %v2094
        %v2127 = vmul.f32 %v2125, 1.442695
        %v2128 = vpow.pop %v2127
        %v2129 = vmul.f32 %v2126, 1.442695
        %v2130 = vpow.pop %v2129
        %v2131 = vadd.f32 %v2098, %v2104
        %v2132 = vadd.f32 %v2100, %v2106
        %v2133 = vadd.f32 %v2131, %v2110
        %v2134 = vadd.f32 %v2132, %v2112
        %v2135 = vadd.f32 %v2133, %v2116
        %v2136 = vadd.f32 %v2134, %v2118
        %v2137 = vadd.f32 %v2135, %v2122
        %v2138 = vadd.f32 %v2136, %v2124
        %v2139 = vadd.f32 %v2137, %v2128
        %v2140 = vadd.f32 %v2138, %v2130
        %v2141 = vrcp.pop %v2139
        %v2142 = vrcp.pop %v2140
        %v2143 = vmul.f32 %v2098, %v2141
        %v2144 = vmul.f32 %v2100, %v2142
        %v2145 = vmul.f32 %v2143, %v908
        %v2146 = vmul.f32 %v2144, %v910
        %v2147 = vmul.f32 %v2143, %v914
        %v2148 = vmul.f32 %v2144, %v916
        %v2149 = vmul.f32 %v2143, %v920
        %v2150 = vmul.f32 %v2144, %v922
        %v2151 = vmul.f32 %v2143, %v926
        %v2152 = vmul.f32 %v2144, %v928
        %v2153 = vmul.f32 %v2104, %v2141
        %v2154 = vmul.f32 %v2106, %v2142
        %v2155 = vmul.f32 %v2153, %v1045
        %v2156 = vmul.f32 %v2154, %v1047
        %v2157 = vmul.f32 %v2153, %v1051
        %v2158 = vmul.f32 %v2154, %v1053
        %v2159 = vmul.f32 %v2153, %v1057
        %v2160 = vmul.f32 %v2154, %v1059
        %v2161 = vmul.f32 %v2153, %v1063
        %v2162 = vmul.f32 %v2154, %v1065
        %v2163 = vadd.f32 %v2145, %v2155
        %v2164 = vadd.f32 %v2146, %v2156
        %v2165 = vadd.f32 %v2147, %v2157
        %v2166 = vadd.f32 %v2148, %v2158
        %v2167 = vadd.f32 %v2149, %v2159
        %v2168 = vadd.f32 %v2150, %v2160
        %v2169 = vadd.f32 %v2151, %v2161
        %v2170 = vadd.f32 %v2152, %v2162
        %v2171 = vmul.f32 %v2110, %v2141
        %v2172 = vmul.f32 %v2112, %v2142
        %v2173 = vmul.f32 %v2171, %v1182
        %v2174 = vmul.f32 %v2172, %v1184
        %v2175 = vmul.f32 %v2171, %v1188
        %v2176 = vmul.f32 %v2172, %v1190
        %v2177 = vmul.f32 %v2171, %v1194
        %v2178 = vmul.f32 %v2172, %v1196
        %v2179 = vmul.f32 %v2171, %v1200
        %v2180 = vmul.f32 %v2172, %v1202
        %v2181 = vadd.f32 %v2163, %v2173
        %v2182 = vadd.f32 %v2164, %v2174
        %v2183 = vadd.f32 %v2165, %v2175
        %v2184 = vadd.f32 %v2166, %v2176
        %v2185 = vadd.f32 %v2167, %v2177
        %v2186 = vadd.f32 %v2168, %v2178
        %v2187 = vadd.f32 %v2169, %v2179
        %v2188 = vadd.f32 %v2170, %v2180
        %v2189 = vmul.f32 %v2116, %v2141
        %v2190 = vmul.f32 %v2118, %v2142
        %v2191 = vmul.f32 %v2189, %v1319
        %v2192 = vmul.f32 %v2190, %v1321
        %v2193 = vmul.f32 %v2189, %v1325
        %v2194 = vmul.f32 %v2190, %v1327
        %v2195 = vmul.f32 %v2189, %v1331
        %v2196 = vmul.f32 %v2190, %v1333
        %v2197 = vmul.f32 %v2189, %v1337
        %v2198 = vmul.f32 %v2190, %v1339
        %v2199 = vadd.f32 %v2181, %v2191
        %v2200 = vadd.f32 %v2182, %v2192
        %v2201 = vadd.f32 %v2183, %v2193
        %v2202 = vadd.f32 %v2184, %v2194
        %v2203 = vadd.f32 %v2185, %v2195
        %v2204 = vadd.f32 %v2186, %v2196
        %v2205 = vadd.f32 %v2187, %v2197
        %v2206 = vadd.f32 %v2188, %v2198
        %v2207 = vmul.f32 %v2122, %v2141
        %v2208 = vmul.f32 %v2124, %v2142
        %v2209 = vmul.f32 %v2207, %v1456
        %v2210 = vmul.f32 %v2208, %v1458
        %v2211 = vmul.f32 %v2207, %v1462
        %v2212 = vmul.f32 %v2208, %v1464
        %v2213 = vmul.f32 %v2207, %v1468
        %v2214 = vmul.f32 %v2208, %v1470
        %v2215 = vmul.f32 %v2207, %v1474
        %v2216 = vmul.f32 %v2208, %v1476
        %v2217 = vadd.f32 %v2199, %v2209
        %v2218 = vadd.f32 %v2200, %v2210
        %v2219 = vadd.f32 %v2201, %v2211
        %v2220 = vadd.f32 %v2202, %v2212
        %v2221 = vadd.f32 %v2203, %v2213
        %v2222 = vadd.f32 %v2204, %v2214
        %v2223 = vadd.f32 %v2205, %v2215
        %v2224 = vadd.f32 %v2206, %v2216
        %v2225 = vmul.f32 %v2128, %v2141
        %v2226 = vmul.f32 %v2130, %v2142
        %v2227 = vmul.f32 %v2225, %v1593
        %v2228 = vmul.f32 %v2226, %v1595
        %v2229 = vmul.f32 %v2225, %v1599
        %v2230 = vmul.f32 %v2226, %v1601
        %v2231 = vmul.f32 %v2225, %v1605
        %v2232 = vmul.f32 %v2226, %v1607
        %v2233 = vmul.f32 %v2225, %v1611
        %v2234 = vmul.f32 %v2226, %v1613
        %v2235 = vadd.f32 %v2217, %v2227
        %v2236 = vadd.f32 %v2218, %v2228
        %v2237 = vadd.f32 %v2219, %v2229
        %v2238 = vadd.f32 %v2220, %v2230
        %v2239 = vadd.f32 %v2221, %v2231
        %v2240 = vadd.f32 %v2222, %v2232
        %v2241 = vadd.f32 %v2223, %v2233
        %v2242 = vadd.f32 %v2224, %v2234
        %v2243 = vmul.f32 %v1134, %v884
        %v2244 = vmul.f32 %v1136, %v886
        %v2245 = vmul.f32 %v1140, %v890
        %v2246 = vmul.f32 %v1142, %v892
        %v2247 = vmul.f32 %v1146, %v896
        %v2248 = vmul.f32 %v1148, %v898
        %v2249 = vmul.f32 %v1152, %v902
        %v2250 = vmul.f32 %v1154, %v904
        %v2251 = vadd.f32 %v2243, %v2245
        %v2252 = vadd.f32 %v2251, %v2247
        %v2253 = vadd.f32 %v2252, %v2249
        %v2254 = vrot.slane %v2253, 4
        %v2255 = vadd.f32 %v2253, %v2254
        %v2256 = vrot.slane %v2255, 2
        %v2257 = vadd.f32 %v2255, %v2256
        %v2258 = vrot.slane %v2257, 1
        %v2259 = vadd.f32 %v2257, %v2258
        %v2260 = vadd.f32 %v2244, %v2246
        %v2261 = vadd.f32 %v2260, %v2248
        %v2262 = vadd.f32 %v2261, %v2250
        %v2263 = vrot.slane %v2262, 4
        %v2264 = vadd.f32 %v2262, %v2263
        %v2265 = vrot.slane %v2264, 2
        %v2266 = vadd.f32 %v2264, %v2265
        %v2267 = vrot.slane %v2266, 1
        %v2268 = vadd.f32 %v2266, %v2267
        %v2269 = vmul.f32 %v1134, %v1021
        %v2270 = vmul.f32 %v1136, %v1023
        %v2271 = vmul.f32 %v1140, %v1027
        %v2272 = vmul.f32 %v1142, %v1029
        %v2273 = vmul.f32 %v1146, %v1033
        %v2274 = vmul.f32 %v1148, %v1035
        %v2275 = vmul.f32 %v1152, %v1039
        %v2276 = vmul.f32 %v1154, %v1041
        %v2277 = vadd.f32 %v2269, %v2271
        %v2278 = vadd.f32 %v2277, %v2273
        %v2279 = vadd.f32 %v2278, %v2275
        %v2280 = vrot.slane %v2279, 4
        %v2281 = vadd.f32 %v2279, %v2280
        %v2282 = vrot.slane %v2281, 2
        %v2283 = vadd.f32 %v2281, %v2282
        %v2284 = vrot.slane %v2283, 1
        %v2285 = vadd.f32 %v2283, %v2284
        %v2286 = vadd.f32 %v2270, %v2272
        %v2287 = vadd.f32 %v2286, %v2274
        %v2288 = vadd.f32 %v2287, %v2276
        %v2289 = vrot.slane %v2288, 4
        %v2290 = vadd.f32 %v2288, %v2289
        %v2291 = vrot.slane %v2290, 2
        %v2292 = vadd.f32 %v2290, %v2291
        %v2293 = vrot.slane %v2292, 1
        %v2294 = vadd.f32 %v2292, %v2293
        %v2295 = vmul.f32 %v1134, %v1158
        %v2296 = vmul.f32 %v1136, %v1160
        %v2297 = vmul.f32 %v1140, %v1164
        %v2298 = vmul.f32 %v1142, %v1166
        %v2299 = vmul.f32 %v1146, %v1170
        %v2300 = vmul.f32 %v1148, %v1172
        %v2301 = vmul.f32 %v1152, %v1176
        %v2302 = vmul.f32 %v1154, %v1178
        %v2303 = vadd.f32 %v2295, %v2297
        %v2304 = vadd.f32 %v2303, %v2299
        %v2305 = vadd.f32 %v2304, %v2301
        %v2306 = vrot.slane %v2305, 4
        %v2307 = vadd.f32 %v2305, %v2306
        %v2308 = vrot.slane %v2307, 2
        %v2309 = vadd.f32 %v2307, %v2308
        %v2310 = vrot.slane %v2309, 1
        %v2311 = vadd.f32 %v2309, %v2310
        %v2312 = vadd.f32 %v2296, %v2298
        %v2313 = vadd.f32 %v2312, %v2300
        %v2314 = vadd.f32 %v2313, %v2302
        %v2315 = vrot.slane %v2314, 4
        %v2316 = vadd.f32 %v2314, %v2315
        %v2317 = vrot.slane %v2316, 2
        %v2318 = vadd.f32 %v2316, %v2317
        %v2319 = vrot.slane %v2318, 1
        %v2320 = vadd.f32 %v2318, %v2319
        %v2321 = vmul.f32 %v1134, %v1295
        %v2322 = vmul.f32 %v1136, %v1297
        %v2323 = vmul.f32 %v1140, %v1301
        %v2324 = vmul.f32 %v1142, %v1303
        %v2325 = vmul.f32 %v1146, %v1307
        %v2326 = vmul.f32 %v1148, %v1309
        %v2327 = vmul.f32 %v1152, %v1313
        %v2328 = vmul.f32 %v1154, %v1315
        %v2329 = vadd.f32 %v2321, %v2323
        %v2330 = vadd.f32 %v2329, %v2325
        %v2331 = vadd.f32 %v2330, %v2327
        %v2332 = vrot.slane %v2331, 4
        %v2333 = vadd.f32 %v2331, %v2332
        %v2334 = vrot.slane %v2333, 2
        %v2335 = vadd.f32 %v2333, %v2334
        %v2336 = vrot.slane %v2335, 1
        %v2337 = vadd.f32 %v2335, %v2336
        %v2338 = vadd.f32 %v2322, %v2324
        %v2339 = vadd.f32 %v2338, %v2326
        %v2340 = vadd.f32 %v2339, %v2328
        %v2341 = vrot.slane %v2340, 4
        %v2342 = vadd.f32 %v2340, %v2341
        %v2343 = vrot.slane %v2342, 2
        %v2344 = vadd.f32 %v2342, %v2343
        %v2345 = vrot.slane %v2344, 1
        %v2346 = vadd.f32 %v2344, %v2345
        %v2347 = vmul.f32 %v1134, %v1432
        %v2348 = vmul.f32 %v1136, %v1434
        %v2349 = vmul.f32 %v1140, %v1438
        %v2350 = vmul.f32 %v1142, %v1440
        %v2351 = vmul.f32 %v1146, %v1444
        %v2352 = vmul.f32 %v1148, %v1446
        %v2353 = vmul.f32 %v1152, %v1450
        %v2354 = vmul.f32 %v1154, %v1452
        %v2355 = vadd.f32 %v2347, %v2349
        %v2356 = vadd.f32 %v2355, %v2351
        %v2357 = vadd.f32 %v2356, %v2353
        %v2358 = vrot.slane %v2357, 4
        %v2359 = vadd.f32 %v2357, %v2358
        %v2360 = vrot.slane %v2359, 2
        %v2361 = vadd.f32 %v2359, %v2360
        %v2362 = vrot.slane %v2361, 1
        %v2363 = vadd.f32 %v2361, %v2362
        %v2364 = vadd.f32 %v2348, %v2350
        %v2365 = vadd.f32 %v2364, %v2352
        %v2366 = vadd.f32 %v2365, %v2354
        %v2367 = vrot.slane %v2366, 4
        %v2368 = vadd.f32 %v2366, %v2367
        %v2369 = vrot.slane %v2368, 2
        %v2370 = vadd.f32 %v2368, %v2369
        %v2371 = vrot.slane %v2370, 1
        %v2372 = vadd.f32 %v2370, %v2371
        %v2373 = vmul.f32 %v1134, %v1569
        %v2374 = vmul.f32 %v1136, %v1571
        %v2375 = vmul.f32 %v1140, %v1575
        %v2376 = vmul.f32 %v1142, %v1577
        %v2377 = vmul.f32 %v1146, %v1581
        %v2378 = vmul.f32 %v1148, %v1583
        %v2379 = vmul.f32 %v1152, %v1587
        %v2380 = vmul.f32 %v1154, %v1589
        %v2381 = vadd.f32 %v2373, %v2375
        %v2382 = vadd.f32 %v2381, %v2377
        %v2383 = vadd.f32 %v2382, %v2379
        %v2384 = vrot.slane %v2383, 4
        %v2385 = vadd.f32 %v2383, %v2384
        %v2386 = vrot.slane %v2385, 2
        %v2387 = vadd.f32 %v2385, %v2386
        %v2388 = vrot.slane %v2387, 1
        %v2389 = vadd.f32 %v2387, %v2388
        %v2390 = vadd.f32 %v2374, %v2376
        %v2391 = vadd.f32 %v2390, %v2378
        %v2392 = vadd.f32 %v2391, %v2380
        %v2393 = vrot.slane %v2392, 4
        %v2394 = vadd.f32 %v2392, %v2393
        %v2395 = vrot.slane %v2394, 2
        %v2396 = vadd.f32 %v2394, %v2395
        %v2397 = vrot.slane %v2396, 1
        %v2398 = vadd.f32 %v2396, %v2397
        %v2399 = vmax.f32 %v2259, %v2285
        %v2400 = vmax.f32 %v2268, %v2294
        %v2401 = vmax.f32 %v2399, %v2311
        %v2402 = vmax.f32 %v2400, %v2320
        %v2403 = vmax.f32 %v2401, %v2337
        %v2404 = vmax.f32 %v2402, %v2346
        %v2405 = vmax.f32 %v2403, %v2363
        %v2406 = vmax.f32 %v2404, %v2372
        %v2407 = vmax.f32 %v2405, %v2389
        %v2408 = vmax.f32 %v2406, %v2398
        %v2409 = vsub.f32 %v2259, %v2407
        %v2410 = vsub.f32 %v2268, %v2408
        %v2411 = vmul.f32 %v2409, 1.442695
        %v2412 = vpow.pop %v2411
        %v2413 = vmul.f32 %v2410, 1.442695
        %v2414 = vpow.pop %v2413
        %v2415 = vsub.f32 %v2285, %v2407
        %v2416 = vsub.f32 %v2294, %v2408
        %v2417 = vmul.f32 %v2415, 1.442695
        %v2418 = vpow.pop %v2417
        %v2419 = vmul.f32 %v2416, 1.442695
        %v2420 = vpow.pop %v2419
        %v2421 = vsub.f32 %v2311, %v2407
        %v2422 = vsub.f32 %v2320, %v2408
        %v2423 = vmul.f32 %v2421, 1.442695
        %v2424 = vpow.pop %v2423
        %v2425 = vmul.f32 %v2422, 1.442695
        %v2426 = vpow.pop %v2425
        %v2427 = vsub.f32 %v2337, %v2407
        %v2428 = vsub.f32 %v2346, %v2408
        %v2429 = vmul.f32 %v2427, 1.442695
        %v2430 = vpow.pop %v2429
        %v2431 = vmul.f32 %v2428, 1.442695
        %v2432 = vpow.pop %v2431
        %v2433 = vsub.f32 %v2363, %v2407
        %v2434 = vsub.f32 %v2372, %v2408
        %v2435 = vmul.f32 %v2433, 1.442695
        %v2436 = vpow.pop %v2435
        %v2437 = vmul.f32 %v2434, 1.442695
        %v2438 = vpow.pop %v2437
        %v2439 = vsub.f32 %v2389, %v2407
        %v2440 = vsub.f32 %v2398, %v2408
        %v2441 = vmul.f32 %v2439, 1.442695
        %v2442 = vpow.pop %v2441
        %v2443 = vmul.f32 %v2440, 1.442695
        %v2444 = vpow.pop %v2443
        %v2445 = vadd.f32 %v2412, %v2418
        %v2446 = vadd.f32 %v2414, %v2420
        %v2447 = vadd.f32 %v2445, %v2424
        %v2448 = vadd.f32 %v2446, %v2426
        %v2449 = vadd.f32 %v2447, %v2430
        %v2450 = vadd.f32 %v2448, %v2432
        %v2451 = vadd.f32 %v2449, %v2436
        %v2452 = vadd.f32 %v2450, %v2438
        %v2453 = vadd.f32 %v2451, %v2442
        %v2454 = vadd.f32 %v2452, %v2444
        %v2455 = vrcp.pop %v2453
        %v2456 = vrcp.pop %v2454
        %v2457 = vmul.f32 %v2412, %v2455
        %v2458 = vmul.f32 %v2414, %v2456
        %v2459 = vmul.f32 %v2457, %v908
        %v2460 = vmul.f32 %v2458, %v910
        %v2461 = vmul.f32 %v2457, %v914
        %v2462 = vmul.f32 %v2458, %v916
        %v2463 = vmul.f32 %v2457, %v920
        %v2464 = vmul.f32 %v2458, %v922
        %v2465 = vmul.f32 %v2457, %v926
        %v2466 = vmul.f32 %v2458, %v928
        %v2467 = vmul.f32 %v2418, %v2455
        %v2468 = vmul.f32 %v2420, %v2456
        %v2469 = vmul.f32 %v2467, %v1045
        %v2470 = vmul.f32 %v2468, %v1047
        %v2471 = vmul.f32 %v2467, %v1051
        %v2472 = vmul.f32 %v2468, %v1053
        %v2473 = vmul.f32 %v2467, %v1057
        %v2474 = vmul.f32 %v2468, %v1059
        %v2475 = vmul.f32 %v2467, %v1063
        %v2476 = vmul.f32 %v2468, %v1065
        %v2477 = vadd.f32 %v2459, %v2469
        %v2478 = vadd.f32 %v2460, %v2470
        %v2479 = vadd.f32 %v2461, %v2471
        %v2480 = vadd.f32 %v2462, %v2472
        %v2481 = vadd.f32 %v2463, %v2473
        %v2482 = vadd.f32 %v2464, %v2474
        %v2483 = vadd.f32 %v2465, %v2475
        %v2484 = vadd.f32 %v2466, %v2476
        %v2485 = vmul.f32 %v2424, %v2455
        %v2486 = vmul.f32 %v2426, %v2456
        %v2487 = vmul.f32 %v2485, %v1182
        %v2488 = vmul.f32 %v2486, %v1184
        %v2489 = vmul.f32 %v2485, %v1188
        %v2490 = vmul.f32 %v2486, %v1190
        %v2491 = vmul.f32 %v2485, %v1194
        %v2492 = vmul.f32 %v2486, %v1196
        %v2493 = vmul.f32 %v2485, %v1200
        %v2494 = vmul.f32 %v2486, %v1202
        %v2495 = vadd.f32 %v2477, %v2487
        %v2496 = vadd.f32 %v2478, %v2488
        %v2497 = vadd.f32 %v2479, %v2489
        %v2498 = vadd.f32 %v2480, %v2490
        %v2499 = vadd.f32 %v2481, %v2491
        %v2500 = vadd.f32 %v2482, %v2492
        %v2501 = vadd.f32 %v2483, %v2493
        %v2502 = vadd.f32 %v2484, %v2494
        %v2503 = vmul.f32 %v2430, %v2455
        %v2504 = vmul.f32 %v2432, %v2456
        %v2505 = vmul.f32 %v2503, %v1319
        %v2506 = vmul.f32 %v2504, %v1321
        %v2507 = vmul.f32 %v2503, %v1325
        %v2508 = vmul.f32 %v2504, %v1327
        %v2509 = vmul.f32 %v2503, %v1331
        %v2510 = vmul.f32 %v2504, %v1333
        %v2511 = vmul.f32 %v2503, %v1337
        %v2512 = vmul.f32 %v2504, %v1339
        %v2513 = vadd.f32 %v2495, %v2505
        %v2514 = vadd.f32 %v2496, %v2506
        %v2515 = vadd.f32 %v2497, %v2507
        %v2516 = vadd.f32 %v2498, %v2508
        %v2517 = vadd.f32 %v2499, %v2509
        %v2518 = vadd.f32 %v2500, %v2510
        %v2519 = vadd.f32 %v2501, %v2511
        %v2520 = vadd.f32 %v2502, %v2512
        %v2521 = vmul.f32 %v2436, %v2455
        %v2522 = vmul.f32 %v2438, %v2456
        %v2523 = vmul.f32 %v2521, %v1456
        %v2524 = vmul.f32 %v2522, %v1458
        %v2525 = vmul.f32 %v2521, %v1462
        %v2526 = vmul.f32 %v2522, %v1464
        %v2527 = vmul.f32 %v2521, %v1468
        %v2528 = vmul.f32 %v2522, %v1470
        %v2529 = vmul.f32 %v2521, %v1474
        %v2530 = vmul.f32 %v2522, %v1476
        %v2531 = vadd.f32 %v2513, %v2523
        %v2532 = vadd.f32 %v2514, %v2524
        %v2533 = vadd.f32 %v2515, %v2525
        %v2534 = vadd.f32 %v2516, %v2526
        %v2535 = vadd.f32 %v2517, %v2527
        %v2536 = vadd.f32 %v2518, %v2528
        %v2537 = vadd.f32 %v2519, %v2529
        %v2538 = vadd.f32 %v2520, %v2530
        %v2539 = vmul.f32 %v2442, %v2455
        %v2540 = vmul.f32 %v2444, %v2456
        %v2541 = vmul.f32 %v2539, %v1593
        %v2542 = vmul.f32 %v2540, %v1595
        %v2543 = vmul.f32 %v2539, %v1599
        %v2544 = vmul.f32 %v2540, %v1601
        %v2545 = vmul.f32 %v2539, %v1605
        %v2546 = vmul.f32 %v2540, %v1607
        %v2547 = vmul.f32 %v2539, %v1611
        %v2548 = vmul.f32 %v2540, %v1613
        %v2549 = vadd.f32 %v2531, %v2541
        %v2550 = vadd.f32 %v2532, %v2542
        %v2551 = vadd.f32 %v2533, %v2543
        %v2552 = vadd.f32 %v2534, %v2544
        %v2553 = vadd.f32 %v2535, %v2545
        %v2554 = vadd.f32 %v2536, %v2546
        %v2555 = vadd.f32 %v2537, %v2547
        %v2556 = vadd.f32 %v2538, %v2548
        %v2557 = vmul.f32 %v1271, %v884
        %v2558 = vmul.f32 %v1273, %v886
        %v2559 = vmul.f32 %v1277, %v890
        %v2560 = vmul.f32 %v1279, %v892
        %v2561 = vmul.f32 %v1283, %v896
        %v2562 = vmul.f32 %v1285, %v898
        %v2563 = vmul.f32 %v1289, %v902
        %v2564 = vmul.f32 %v1291, %v904
        %v2565 = vadd.f32 %v2557, %v2559
        %v2566 = vadd.f32 %v2565, %v2561
        %v2567 = vadd.f32 %v2566, %v2563
        %v2568 = vrot.slane %v2567, 4
        %v2569 = vadd.f32 %v2567, %v2568
        %v2570 = vrot.slane %v2569, 2
        %v2571 = vadd.f32 %v2569, %v2570
        %v2572 = vrot.slane %v2571, 1
        %v2573 = vadd.f32 %v2571, %v2572
        %v2574 = vadd.f32 %v2558, %v2560
        %v2575 = vadd.f32 %v2574, %v2562
        %v2576 = vadd.f32 %v2575, %v2564
        %v2577 = vrot.slane %v2576, 4
        %v2578 = vadd.f32 %v2576, %v2577
        %v2579 = vrot.slane %v2578, 2
        %v2580 = vadd.f32 %v2578, %v2579
        %v2581 = vrot.slane %v2580, 1
        %v2582 = vadd.f32 %v2580, %v2581
        %v2583 = vmul.f32 %v1271, %v1021
        %v2584 = vmul.f32 %v1273, %v1023
        %v2585 = vmul.f32 %v1277, %v1027
        %v2586 = vmul.f32 %v1279, %v1029
        %v2587 = vmul.f32 %v1283, %v1033
        %v2588 = vmul.f32 %v1285, %v1035
        %v2589 = vmul.f32 %v1289, %v1039
        %v2590 = vmul.f32 %v1291, %v1041
        %v2591 = vadd.f32 %v2583, %v2585
        %v2592 = vadd.f32 %v2591, %v2587
        %v2593 = vadd.f32 %v2592, %v2589
        %v2594 = vrot.slane %v2593, 4
        %v2595 = vadd.f32 %v2593, %v2594
        %v2596 = vrot.slane %v2595, 2
        %v2597 = vadd.f32 %v2595, %v2596
        %v2598 = vrot.slane %v2597, 1
        %v2599 = vadd.f32 %v2597, %v2598
        %v2600 = vadd.f32 %v2584, %v2586
        %v2601 = vadd.f32 %v2600, %v2588
        %v2602 = vadd.f32 %v2601, %v2590
        %v2603 = vrot.slane %v2602, 4
        %v2604 = vadd.f32 %v2602, %v2603
        %v2605 = vrot.slane %v2604, 2
        %v2606 = vadd.f32 %v2604, %v2605
        %v2607 = vrot.slane %v2606, 1
        %v2608 = vadd.f32 %v2606, %v2607
        %v2609 = vmul.f32 %v1271, %v1158
        %v2610 = vmul.f32 %v1273, %v1160
        %v2611 = vmul.f32 %v1277, %v1164
        %v2612 = vmul.f32 %v1279, %v1166
        %v2613 = vmul.f32 %v1283, %v1170
        %v2614 = vmul.f32 %v1285, %v1172
        %v2615 = vmul.f32 %v1289, %v1176
        %v2616 = vmul.f32 %v1291, %v1178
        %v2617 = vadd.f32 %v2609, %v2611
        %v2618 = vadd.f32 %v2617, %v2613
        %v2619 = vadd.f32 %v2618, %v2615
        %v2620 = vrot.slane %v2619, 4
        %v2621 = vadd.f32 %v2619, %v2620
        %v2622 = vrot.slane %v2621, 2
        %v2623 = vadd.f32 %v2621, %v2622
        %v2624 = vrot.slane %v2623, 1
        %v2625 = vadd.f32 %v2623, %v2624
        %v2626 = vadd.f32 %v2610, %v2612
        %v2627 = vadd.f32 %v2626, %v2614
        %v2628 = vadd.f32 %v2627, %v2616
        %v2629 = vrot.slane %v2628, 4
        %v2630 = vadd.f32 %v2628, %v2629
        %v2631 = vrot.slane %v2630, 2
        %v2632 = vadd.f32 %v2630, %v2631
        %v2633 = vrot.slane %v2632, 1
        %v2634 = vadd.f32 %v2632, %v2633
        %v2635 = vmul.f32 %v1271, %v1295
        %v2636 = vmul.f32 %v1273, %v1297
        %v2637 = vmul.f32 %v1277, %v1301
        %v2638 = vmul.f32 %v1279, %v1303
        %v2639 = vmul.f32 %v1283, %v1307
        %v2640 = vmul.f32 %v1285, %v1309
        %v2641 = vmul.f32 %v1289, %v1313
        %v2642 = vmul.f32 %v1291, %v1315
        %v2643 = vadd.f32 %v2635, %v2637
        %v2644 = vadd.f32 %v2643, %v2639
        %v2645 = vadd.f32 %v2644, %v2641
        %v2646 = vrot.slane %v2645, 4
        %v2647 = vadd.f32 %v2645, %v2646
        %v2648 = vrot.slane %v2647, 2
        %v2649 = vadd.f32 %v2647, %v2648
        %v2650 = vrot.slane %v2649, 1
        %v2651 = vadd.f32 %v2649, %v2650
        %v2652 = vadd.f32 %v2636, %v2638
        %v2653 = vadd.f32 %v2652, %v2640
        %v2654 = vadd.f32 %v2653, %v2642
        %v2655 = vrot.slane %v2654, 4
        %v2656 = vadd.f32 %v2654, %v2655
        %v2657 = vrot.slane %v2656, 2
        %v2658 = vadd.f32 %v2656, %v2657
        %v2659 = vrot.slane %v2658, 1
        %v2660 = vadd.f32 %v2658, %v2659
        %v2661 = vmul.f32 %v1271, %v1432
        %v2662 = vmul.f32 %v1273, %v1434
        %v2663 = vmul.f32 %v1277, %v1438
        %v2664 = vmul.f32 %v1279, %v1440
        %v2665 = vmul.f32 %v1283, %v1444
        %v2666 = vmul.f32 %v1285, %v1446
        %v2667 = vmul.f32 %v1289, %v1450
        %v2668 = vmul.f32 %v1291, %v1452
        %v2669 = vadd.f32 %v2661, %v2663
        %v2670 = vadd.f32 %v2669, %v2665
        %v2671 = vadd.f32 %v2670, %v2667
        %v2672 = vrot.slane %v2671, 4
        %v2673 = vadd.f32 %v2671, %v2672
        %v2674 = vrot.slane %v2673, 2
        %v2675 = vadd.f32 %v2673, %v2674
        %v2676 = vrot.slane %v2675, 1
        %v2677 = vadd.f32 %v2675, %v2676
        %v2678 = vadd.f32 %v2662, %v2664
        %v2679 = vadd.f32 %v2678, %v2666
        %v2680 = vadd.f32 %v2679, %v2668
        %v2681 = vrot.slane %v2680, 4
        %v2682 = vadd.f32 %v2680, %v2681
        %v2683 = vrot.slane %v2682, 2
        %v2684 = vadd.f32 %v2682, %v2683
        %v2685 = vrot.slane %v2684, 1
        %v2686 = vadd.f32 %v2684, %v2685
        %v2687 = vmul.f32 %v1271, %v1569
        %v2688 = vmul.f32 %v1273, %v1571
        %v2689 = vmul.f32 %v1277, %v1575
        %v2690 = vmul.f32 %v1279, %v1577
        %v2691 = vmul.f32 %v1283, %v1581
        %v2692 = vmul.f32 %v1285, %v1583
        %v2693 = vmul.f32 %v1289, %v1587
        %v2694 = vmul.f32 %v1291, %v1589
        %v2695 = vadd.f32 %v2687, %v2689
        %v2696 = vadd.f32 %v2695, %v2691
        %v2697 = vadd.f32 %v2696, %v2693
        %v2698 = vrot.slane %v2697, 4
        %v2699 = vadd.f32 %v2697, %v2698
        %v2700 = vrot.slane %v2699, 2
        %v2701 = vadd.f32 %v2699, %v2700
        %v2702 = vrot.slane %v2701, 1
        %v2703 = vadd.f32 %v2701, %v2702
        %v2704 = vadd.f32 %v2688, %v2690
        %v2705 = vadd.f32 %v2704, %v2692
        %v2706 = vadd.f32 %v2705, %v2694
        %v2707 = vrot.slane %v2706, 4
        %v2708 = vadd.f32 %v2706, %v2707
        %v2709 = vrot.slane %v2708, 2
        %v2710 = vadd.f32 %v2708, %v2709
        %v2711 = vrot.slane %v2710, 1
        %v2712 = vadd.f32 %v2710, %v2711
        %v2713 = vmax.f32 %v2573, %v2599
        %v2714 = vmax.f32 %v2582, %v2608
        %v2715 = vmax.f32 %v2713, %v2625
        %v2716 = vmax.f32 %v2714, %v2634
        %v2717 = vmax.f32 %v2715, %v2651
        %v2718 = vmax.f32 %v2716, %v2660
        %v2719 = vmax.f32 %v2717, %v2677
        %v2720 = vmax.f32 %v2718, %v2686
        %v2721 = vmax.f32 %v2719, %v2703
        %v2722 = vmax.f32 %v2720, %v2712
        %v2723 = vsub.f32 %v2573, %v2721
        %v2724 = vsub.f32 %v2582, %v2722
        %v2725 = vmul.f32 %v2723, 1.442695
        %v2726 = vpow.pop %v2725
        %v2727 = vmul.f32 %v2724, 1.442695
        %v2728 = vpow.pop %v2727
        %v2729 = vsub.f32 %v2599, %v2721
        %v2730 = vsub.f32 %v2608, %v2722
        %v2731 = vmul.f32 %v2729, 1.442695
        %v2732 = vpow.pop %v2731
        %v2733 = vmul.f32 %v2730, 1.442695
        %v2734 = vpow.pop %v2733
        %v2735 = vsub.f32 %v2625, %v2721
        %v2736 = vsub.f32 %v2634, %v2722
        %v2737 = vmul.f32 %v2735, 1.442695
        %v2738 = vpow.pop %v2737
        %v2739 = vmul.f32 %v2736, 1.442695
        %v2740 = vpow.pop %v2739
        %v2741 = vsub.f32 %v2651, %v2721
        %v2742 = vsub.f32 %v2660, %v2722
        %v2743 = vmul.f32 %v2741, 1.442695
        %v2744 = vpow.pop %v2743
        %v2745 = vmul.f32 %v2742, 1.442695
        %v2746 = vpow.pop %v2745
        %v2747 = vsub.f32 %v2677, %v2721
        %v2748 = vsub.f32 %v2686, %v2722
        %v2749 = vmul.f32 %v2747, 1.442695
        %v2750 = vpow.pop %v2749
        %v2751 = vmul.f32 %v2748, 1.442695
        %v2752 = vpow.pop %v2751
        %v2753 = vsub.f32 %v2703, %v2721
        %v2754 = vsub.f32 %v2712, %v2722
        %v2755 = vmul.f32 %v2753, 1.442695
        %v2756 = vpow.pop %v2755
        %v2757 = vmul.f32 %v2754, 1.442695
        %v2758 = vpow.pop %v2757
        %v2759 = vadd.f32 %v2726, %v2732
        %v2760 = vadd.f32 %v2728, %v2734
        %v2761 = vadd.f32 %v2759, %v2738
        %v2762 = vadd.f32 %v2760, %v2740
        %v2763 = vadd.f32 %v2761, %v2744
        %v2764 = vadd.f32 %v2762, %v2746
        %v2765 = vadd.f32 %v2763, %v2750
        %v2766 = vadd.f32 %v2764, %v2752
        %v2767 = vadd.f32 %v2765, %v2756
        %v2768 = vadd.f32 %v2766, %v2758
        %v2769 = vrcp.pop %v2767
        %v2770 = vrcp.pop %v2768
        %v2771 = vmul.f32 %v2726, %v2769
        %v2772 = vmul.f32 %v2728, %v2770
        %v2773 = vmul.f32 %v2771, %v908
        %v2774 = vmul.f32 %v2772, %v910
        %v2775 = vmul.f32 %v2771, %v914
        %v2776 = vmul.f32 %v2772, %v916
        %v2777 = vmul.f32 %v2771, %v920
        %v2778 = vmul.f32 %v2772, %v922
        %v2779 = vmul.f32 %v2771, %v926
        %v2780 = vmul.f32 %v2772, %v928
        %v2781 = vmul.f32 %v2732, %v2769
        %v2782 = vmul.f32 %v2734, %v2770
        %v2783 = vmul.f32 %v2781, %v1045
        %v2784 = vmul.f32 %v2782, %v1047
        %v2785 = vmul.f32 %v2781, %v1051
        %v2786 = vmul.f32 %v2782, %v1053
        %v2787 = vmul.f32 %v2781, %v1057
        %v2788 = vmul.f32 %v2782, %v1059
        %v2789 = vmul.f32 %v2781, %v1063
        %v2790 = vmul.f32 %v2782, %v1065
        %v2791 = vadd.f32 %v2773, %v2783
        %v2792 = vadd.f32 %v2774, %v2784
        %v2793 = vadd.f32 %v2775, %v2785
        %v2794 = vadd.f32 %v2776, %v2786
        %v2795 = vadd.f32 %v2777, %v2787
        %v2796 = vadd.f32 %v2778, %v2788
        %v2797 = vadd.f32 %v2779, %v2789
        %v2798 = vadd.f32 %v2780, %v2790
        %v2799 = vmul.f32 %v2738, %v2769
        %v2800 = vmul.f32 %v2740, %v2770
        %v2801 = vmul.f32 %v2799, %v1182
        %v2802 = vmul.f32 %v2800, %v1184
        %v2803 = vmul.f32 %v2799, %v1188
        %v2804 = vmul.f32 %v2800, %v1190
        %v2805 = vmul.f32 %v2799, %v1194
        %v2806 = vmul.f32 %v2800, %v1196
        %v2807 = vmul.f32 %v2799, %v1200
        %v2808 = vmul.f32 %v2800, %v1202
        %v2809 = vadd.f32 %v2791, %v2801
        %v2810 = vadd.f32 %v2792, %v2802
        %v2811 = vadd.f32 %v2793, %v2803
        %v2812 = vadd.f32 %v2794, %v2804
        %v2813 = vadd.f32 %v2795, %v2805
        %v2814 = vadd.f32 %v2796, %v2806
        %v2815 = vadd.f32 %v2797, %v2807
        %v2816 = vadd.f32 %v2798, %v2808
        %v2817 = vmul.f32 %v2744, %v2769
        %v2818 = vmul.f32 %v2746, %v2770
        %v2819 = vmul.f32 %v2817, %v1319
        %v2820 = vmul.f32 %v2818, %v1321
        %v2821 = vmul.f32 %v2817, %v1325
        %v2822 = vmul.f32 %v2818, %v1327
        %v2823 = vmul.f32 %v2817, %v1331
        %v2824 = vmul.f32 %v2818, %v1333
        %v2825 = vmul.f32 %v2817, %v1337
        %v2826 = vmul.f32 %v2818, %v1339
        %v2827 = vadd.f32 %v2809, %v2819
        %v2828 = vadd.f32 %v2810, %v2820
        %v2829 = vadd.f32 %v2811, %v2821
        %v2830 = vadd.f32 %v2812, %v2822
        %v2831 = vadd.f32 %v2813, %v2823
        %v2832 = vadd.f32 %v2814, %v2824
        %v2833 = vadd.f32 %v2815, %v2825
        %v2834 = vadd.f32 %v2816, %v2826
        %v2835 = vmul.f32 %v2750, %v2769
        %v2836 = vmul.f32 %v2752, %v2770
        %v2837 = vmul.f32 %v2835, %v1456
        %v2838 = vmul.f32 %v2836, %v1458
        %v2839 = vmul.f32 %v2835, %v1462
        %v2840 = vmul.f32 %v2836, %v1464
        %v2841 = vmul.f32 %v2835, %v1468
        %v2842 = vmul.f32 %v2836, %v1470
        %v2843 = vmul.f32 %v2835, %v1474
        %v2844 = vmul.f32 %v2836, %v1476
        %v2845 = vadd.f32 %v2827, %v2837
        %v2846 = vadd.f32 %v2828, %v2838
        %v2847 = vadd.f32 %v2829, %v2839
        %v2848 = vadd.f32 %v2830, %v2840
        %v2849 = vadd.f32 %v2831, %v2841
        %v2850 = vadd.f32 %v2832, %v2842
        %v2851 = vadd.f32 %v2833, %v2843
        %v2852 = vadd.f32 %v2834, %v2844
        %v2853 = vmul.f32 %v2756, %v2769
        %v2854 = vmul.f32 %v2758, %v2770
        %v2855 = vmul.f32 %v2853, %v1593
        %v2856 = vmul.f32 %v2854, %v1595
        %v2857 = vmul.f32 %v2853, %v1599
        %v2858 = vmul.f32 %v2854, %v1601
        %v2859 = vmul.f32 %v2853, %v1605
        %v2860 = vmul.f32 %v2854, %v1607
        %v2861 = vmul.f32 %v2853, %v1611
        %v2862 = vmul.f32 %v2854, %v1613
        %v2863 = vadd.f32 %v2845, %v2855
        %v2864 = vadd.f32 %v2846, %v2856
        %v2865 = vadd.f32 %v2847, %v2857
        %v2866 = vadd.f32 %v2848, %v2858
        %v2867 = vadd.f32 %v2849, %v2859
        %v2868 = vadd.f32 %v2850, %v2860
        %v2869 = vadd.f32 %v2851, %v2861
        %v2870 = vadd.f32 %v2852, %v2862
        %v2871 = vmul.f32 %v1408, %v884
        %v2872 = vmul.f32 %v1410, %v886
        %v2873 = vmul.f32 %v1414, %v890
        %v2874 = vmul.f32 %v1416, %v892
        %v2875 = vmul.f32 %v1420, %v896
        %v2876 = vmul.f32 %v1422, %v898
        %v2877 = vmul.f32 %v1426, %v902
        %v2878 = vmul.f32 %v1428, %v904
        %v2879 = vadd.f32 %v2871, %v2873
        %v2880 = vadd.f32 %v2879, %v2875
        %v2881 = vadd.f32 %v2880, %v2877
        %v2882 = vrot.slane %v2881, 4
        %v2883 = vadd.f32 %v2881, %v2882
        %v2884 = vrot.slane %v2883, 2
        %v2885 = vadd.f32 %v2883, %v2884
        %v2886 = vrot.slane %v2885, 1
        %v2887 = vadd.f32 %v2885, %v2886
        %v2888 = vadd.f32 %v2872, %v2874
        %v2889 = vadd.f32 %v2888, %v2876
        %v2890 = vadd.f32 %v2889, %v2878
        %v2891 = vrot.slane %v2890, 4
        %v2892 = vadd.f32 %v2890, %v2891
        %v2893 = vrot.slane %v2892, 2
        %v2894 = vadd.f32 %v2892, %v2893
        %v2895 = vrot.slane %v2894, 1
        %v2896 = vadd.f32 %v2894, %v2895
        %v2897 = vmul.f32 %v1408, %v1021
        %v2898 = vmul.f32 %v1410, %v1023
        %v2899 = vmul.f32 %v1414, %v1027
        %v2900 = vmul.f32 %v1416, %v1029
        %v2901 = vmul.f32 %v1420, %v1033
        %v2902 = vmul.f32 %v1422, %v1035
        %v2903 = vmul.f32 %v1426, %v1039
        %v2904 = vmul.f32 %v1428, %v1041
        %v2905 = vadd.f32 %v2897, %v2899
        %v2906 = vadd.f32 %v2905, %v2901
        %v2907 = vadd.f32 %v2906, %v2903
        %v2908 = vrot.slane %v2907, 4
        %v2909 = vadd.f32 %v2907, %v2908
        %v2910 = vrot.slane %v2909, 2
        %v2911 = vadd.f32 %v2909, %v2910
        %v2912 = vrot.slane %v2911, 1
        %v2913 = vadd.f32 %v2911, %v2912
        %v2914 = vadd.f32 %v2898, %v2900
        %v2915 = vadd.f32 %v2914, %v2902
        %v2916 = vadd.f32 %v2915, %v2904
        %v2917 = vrot.slane %v2916, 4
        %v2918 = vadd.f32 %v2916, %v2917
        %v2919 = vrot.slane %v2918, 2
        %v2920 = vadd.f32 %v2918, %v2919
        %v2921 = vrot.slane %v2920, 1
        %v2922 = vadd.f32 %v2920, %v2921
        %v2923 = vmul.f32 %v1408, %v1158
        %v2924 = vmul.f32 %v1410, %v1160
        %v2925 = vmul.f32 %v1414, %v1164
        %v2926 = vmul.f32 %v1416, %v1166
        %v2927 = vmul.f32 %v1420, %v1170
        %v2928 = vmul.f32 %v1422, %v1172
        %v2929 = vmul.f32 %v1426, %v1176
        %v2930 = vmul.f32 %v1428, %v1178
        %v2931 = vadd.f32 %v2923, %v2925
        %v2932 = vadd.f32 %v2931, %v2927
        %v2933 = vadd.f32 %v2932, %v2929
        %v2934 = vrot.slane %v2933, 4
        %v2935 = vadd.f32 %v2933, %v2934
        %v2936 = vrot.slane %v2935, 2
        %v2937 = vadd.f32 %v2935, %v2936
        %v2938 = vrot.slane %v2937, 1
        %v2939 = vadd.f32 %v2937, %v2938
        %v2940 = vadd.f32 %v2924, %v2926
        %v2941 = vadd.f32 %v2940, %v2928
        %v2942 = vadd.f32 %v2941, %v2930
        %v2943 = vrot.slane %v2942, 4
        %v2944 = vadd.f32 %v2942, %v2943
        %v2945 = vrot.slane %v2944, 2
        %v2946 = vadd.f32 %v2944, %v2945
        %v2947 = vrot.slane %v2946, 1
        %v2948 = vadd.f32 %v2946, %v2947
        %v2949 = vmul.f32 %v1408, %v1295
        %v2950 = vmul.f32 %v1410, %v1297
        %v2951 = vmul.f32 %v1414, %v1301
        %v2952 = vmul.f32 %v1416, %v1303
        %v2953 = vmul.f32 %v1420, %v1307
        %v2954 = vmul.f32 %v1422, %v1309
        %v2955 = vmul.f32 %v1426, %v1313
        %v2956 = vmul.f32 %v1428, %v1315
        %v2957 = vadd.f32 %v2949, %v2951
        %v2958 = vadd.f32 %v2957, %v2953
        %v2959 = vadd.f32 %v2958, %v2955
        %v2960 = vrot.slane %v2959, 4
        %v2961 = vadd.f32 %v2959, %v2960
        %v2962 = vrot.slane %v2961, 2
        %v2963 = vadd.f32 %v2961, %v2962
        %v2964 = vrot.slane %v2963, 1
        %v2965 = vadd.f32 %v2963, %v2964
        %v2966 = vadd.f32 %v2950, %v2952
        %v2967 = vadd.f32 %v2966, %v2954
        %v2968 = vadd.f32 %v2967, %v2956
        %v2969 = vrot.slane %v2968, 4
        %v2970 = vadd.f32 %v2968, %v2969
        %v2971 = vrot.slane %v2970, 2
        %v2972 = vadd.f32 %v2970, %v2971
        %v2973 = vrot.slane %v2972, 1
        %v2974 = vadd.f32 %v2972, %v2973
        %v2975 = vmul.f32 %v1408, %v1432
        %v2976 = vmul.f32 %v1410, %v1434
        %v2977 = vmul.f32 %v1414, %v1438
        %v2978 = vmul.f32 %v1416, %v1440
        %v2979 = vmul.f32 %v1420, %v1444
        %v2980 = vmul.f32 %v1422, %v1446
        %v2981 = vmul.f32 %v1426, %v1450
        %v2982 = vmul.f32 %v1428, %v1452
        %v2983 = vadd.f32 %v2975, %v2977
        %v2984 = vadd.f32 %v2983, %v2979
        %v2985 = vadd.f32 %v2984, %v2981
        %v2986 = vrot.slane %v2985, 4
        %v2987 = vadd.f32 %v2985, %v2986
        %v2988 = vrot.slane %v2987, 2
        %v2989 = vadd.f32 %v2987, %v2988
        %v2990 = vrot.slane %v2989, 1
        %v2991 = vadd.f32 %v2989, %v2990
        %v2992 = vadd.f32 %v2976, %v2978
        %v2993 = vadd.f32 %v2992, %v2980
        %v2994 = vadd.f32 %v2993, %v2982
        %v2995 = vrot.slane %v2994, 4
        %v2996 = vadd.f32 %v2994, %v2995
        %v2997 = vrot.slane %v2996, 2
        %v2998 = vadd.f32 %v2996, %v2997
        %v2999 = vrot.slane %v2998, 1
        %v3000 = vadd.f32 %v2998, %v2999
        %v3001 = vmul.f32 %v1408, %v1569
        %v3002 = vmul.f32 %v1410, %v1571
        %v3003 = vmul.f32 %v1414, %v1575
        %v3004 = vmul.f32 %v1416, %v1577
        %v3005 = vmul.f32 %v1420, %v1581
        %v3006 = vmul.f32 %v1422, %v1583
        %v3007 = vmul.f32 %v1426, %v1587
        %v3008 = vmul.f32 %v1428, %v1589
        %v3009 = vadd.f32 %v3001, %v3003
        %v3010 = vadd.f32 %v3009, %v3005
        %v3011 = vadd.f32 %v3010, %v3007
        %v3012 = vrot.slane %v3011, 4
        %v3013 = vadd.f32 %v3011, %v3012
        %v3014 = vrot.slane %v3013, 2
        %v3015 = vadd.f32 %v3013, %v3014
        %v3016 = vrot.slane %v3015, 1
        %v3017 = vadd.f32 %v3015, %v3016
        %v3018 = vadd.f32 %v3002, %v3004
        %v3019 = vadd.f32 %v3018, %v3006
        %v3020 = vadd.f32 %v3019, %v3008
        %v3021 = vrot.slane %v3020, 4
        %v3022 = vadd.f32 %v3020, %v3021
        %v3023 = vrot.slane %v3022, 2
        %v3024 = vadd.f32 %v3022, %v3023
        %v3025 = vrot.slane %v3024, 1
        %v3026 = vadd.f32 %v3024, %v3025
        %v3027 = vmax.f32 %v2887, %v2913
        %v3028 = vmax.f32 %v2896, %v2922
        %v3029 = vmax.f32 %v3027, %v2939
        %v3030 = vmax.f32 %v3028, %v2948
        %v3031 = vmax.f32 %v3029, %v2965
        %v3032 = vmax.f32 %v3030, %v2974
        %v3033 = vmax.f32 %v3031, %v2991
        %v3034 = vmax.f32 %v3032, %v3000
        %v3035 = vmax.f32 %v3033, %v3017
        %v3036 = vmax.f32 %v3034, %v3026
        %v3037 = vsub.f32 %v2887, %v3035
        %v3038 = vsub.f32 %v2896, %v3036
        %v3039 = vmul.f32 %v3037, 1.442695
        %v3040 = vpow.pop %v3039
        %v3041 = vmul.f32 %v3038, 1.442695
        %v3042 = vpow.pop %v3041
        %v3043 = vsub.f32 %v2913, %v3035
        %v3044 = vsub.f32 %v2922, %v3036
        %v3045 = vmul.f32 %v3043, 1.442695
        %v3046 = vpow.pop %v3045
        %v3047 = vmul.f32 %v3044, 1.442695
        %v3048 = vpow.pop %v3047
        %v3049 = vsub.f32 %v2939, %v3035
        %v3050 = vsub.f32 %v2948, %v3036
        %v3051 = vmul.f32 %v3049, 1.442695
        %v3052 = vpow.pop %v3051
        %v3053 = vmul.f32 %v3050, 1.442695
        %v3054 = vpow.pop %v3053
        %v3055 = vsub.f32 %v2965, %v3035
        %v3056 = vsub.f32 %v2974, %v3036
        %v3057 = vmul.f32 %v3055, 1.442695
        %v3058 = vpow.pop %v3057
        %v3059 = vmul.f32 %v3056, 1.442695
        %v3060 = vpow.pop %v3059
        %v3061 = vsub.f32 %v2991, %v3035
        %v3062 = vsub.f32 %v3000, %v3036
        %v3063 = vmul.f32 %v3061, 1.442695
        %v3064 = vpow.pop %v3063
        %v3065 = vmul.f32 %v3062, 1.442695
        %v3066 = vpow.pop %v3065
        %v3067 = vsub.f32 %v3017, %v3035
        %v3068 = vsub.f32 %v3026, %v3036
        %v3069 = vmul.f32 %v3067, 1.442695
        %v3070 = vpow.pop %v3069
        %v3071 = vmul.f32 %v3068, 1.442695
        %v3072 = vpow.pop %v3071
        %v3073 = vadd.f32 %v3040, %v3046
        %v3074 = vadd.f32 %v3042, %v3048
        %v3075 = vadd.f32 %v3073, %v3052
        %v3076 = vadd.f32 %v3074, %v3054
        %v3077 = vadd.f32 %v3075, %v3058
        %v3078 = vadd.f32 %v3076, %v3060
        %v3079 = vadd.f32 %v3077, %v3064
        %v3080 = vadd.f32 %v3078, %v3066
        %v3081 = vadd.f32 %v3079, %v3070
        %v3082 = vadd.f32 %v3080, %v3072
        %v3083 = vrcp.pop %v3081
        %v3084 = vrcp.pop %v3082
        %v3085 = vmul.f32 %v3040, %v3083
        %v3086 = vmul.f32 %v3042, %v3084
        %v3087 = vmul.f32 %v3085, %v908
        %v3088 = vmul.f32 %v3086, %v910
        %v3089 = vmul.f32 %v3085, %v914
        %v3090 = vmul.f32 %v3086, %v916
        %v3091 = vmul.f32 %v3085, %v920
        %v3092 = vmul.f32 %v3086, %v922
        %v3093 = vmul.f32 %v3085, %v926
        %v3094 = vmul.f32 %v3086, %v928
        %v3095 = vmul.f32 %v3046, %v3083
        %v3096 = vmul.f32 %v3048, %v3084
        %v3097 = vmul.f32 %v3095, %v1045
        %v3098 = vmul.f32 %v3096, %v1047
        %v3099 = vmul.f32 %v3095, %v1051
        %v3100 = vmul.f32 %v3096, %v1053
        %v3101 = vmul.f32 %v3095, %v1057
        %v3102 = vmul.f32 %v3096, %v1059
        %v3103 = vmul.f32 %v3095, %v1063
        %v3104 = vmul.f32 %v3096, %v1065
        %v3105 = vadd.f32 %v3087, %v3097
        %v3106 = vadd.f32 %v3088, %v3098
        %v3107 = vadd.f32 %v3089, %v3099
        %v3108 = vadd.f32 %v3090, %v3100
        %v3109 = vadd.f32 %v3091, %v3101
        %v3110 = vadd.f32 %v3092, %v3102
        %v3111 = vadd.f32 %v3093, %v3103
        %v3112 = vadd.f32 %v3094, %v3104
        %v3113 = vmul.f32 %v3052, %v3083
        %v3114 = vmul.f32 %v3054, %v3084
        %v3115 = vmul.f32 %v3113, %v1182
        %v3116 = vmul.f32 %v3114, %v1184
        %v3117 = vmul.f32 %v3113, %v1188
        %v3118 = vmul.f32 %v3114, %v1190
        %v3119 = vmul.f32 %v3113, %v1194
        %v3120 = vmul.f32 %v3114, %v1196
        %v3121 = vmul.f32 %v3113, %v1200
        %v3122 = vmul.f32 %v3114, %v1202
        %v3123 = vadd.f32 %v3105, %v3115
        %v3124 = vadd.f32 %v3106, %v3116
        %v3125 = vadd.f32 %v3107, %v3117
        %v3126 = vadd.f32 %v3108, %v3118
        %v3127 = vadd.f32 %v3109, %v3119
        %v3128 = vadd.f32 %v3110, %v3120
        %v3129 = vadd.f32 %v3111, %v3121
        %v3130 = vadd.f32 %v3112, %v3122
        %v3131 = vmul.f32 %v3058, %v3083
        %v3132 = vmul.f32 %v3060, %v3084
        %v3133 = vmul.f32 %v3131, %v1319
        %v3134 = vmul.f32 %v3132, %v1321
        %v3135 = vmul.f32 %v3131, %v1325
        %v3136 = vmul.f32 %v3132, %v1327
        %v3137 = vmul.f32 %v3131, %v1331
        %v3138 = vmul.f32 %v3132, %v1333
        %v3139 = vmul.f32 %v3131, %v1337
        %v3140 = vmul.f32 %v3132, %v1339
        %v3141 = vadd.f32 %v3123, %v3133
        %v3142 = vadd.f32 %v3124, %v3134
        %v3143 = vadd.f32 %v3125, %v3135
        %v3144 = vadd.f32 %v3126, %v3136
        %v3145 = vadd.f32 %v3127, %v3137
        %v3146 = vadd.f32 %v3128, %v3138
        %v3147 = vadd.f32 %v3129, %v3139
        %v3148 = vadd.f32 %v3130, %v3140
        %v3149 = vmul.f32 %v3064, %v3083
        %v3150 = vmul.f32 %v3066, %v3084
        %v3151 = vmul.f32 %v3149, %v1456
        %v3152 = vmul.f32 %v3150, %v1458
        %v3153 = vmul.f32 %v3149, %v1462
        %v3154 = vmul.f32 %v3150, %v1464
        %v3155 = vmul.f32 %v3149, %v1468
        %v3156 = vmul.f32 %v3150, %v1470
        %v3157 = vmul.f32 %v3149, %v1474
        %v3158 = vmul.f32 %v3150, %v1476
        %v3159 = vadd.f32 %v3141, %v3151
        %v3160 = vadd.f32 %v3142, %v3152
        %v3161 = vadd.f32 %v3143, %v3153
        %v3162 = vadd.f32 %v3144, %v3154
        %v3163 = vadd.f32 %v3145, %v3155
        %v3164 = vadd.f32 %v3146, %v3156
        %v3165 = vadd.f32 %v3147, %v3157
        %v3166 = vadd.f32 %v3148, %v3158
        %v3167 = vmul.f32 %v3070, %v3083
        %v3168 = vmul.f32 %v3072, %v3084
        %v3169 = vmul.f32 %v3167, %v1593
        %v3170 = vmul.f32 %v3168, %v1595
        %v3171 = vmul.f32 %v3167, %v1599
        %v3172 = vmul.f32 %v3168, %v1601
        %v3173 = vmul.f32 %v3167, %v1605
        %v3174 = vmul.f32 %v3168, %v1607
        %v3175 = vmul.f32 %v3167, %v1611
        %v3176 = vmul.f32 %v3168, %v1613
        %v3177 = vadd.f32 %v3159, %v3169
        %v3178 = vadd.f32 %v3160, %v3170
        %v3179 = vadd.f32 %v3161, %v3171
        %v3180 = vadd.f32 %v3162, %v3172
        %v3181 = vadd.f32 %v3163, %v3173
        %v3182 = vadd.f32 %v3164, %v3174
        %v3183 = vadd.f32 %v3165, %v3175
        %v3184 = vadd.f32 %v3166, %v3176
        %v3185 = vmul.f32 %v1545, %v884
        %v3186 = vmul.f32 %v1547, %v886
        %v3187 = vmul.f32 %v1551, %v890
        %v3188 = vmul.f32 %v1553, %v892
        %v3189 = vmul.f32 %v1557, %v896
        %v3190 = vmul.f32 %v1559, %v898
        %v3191 = vmul.f32 %v1563, %v902
        %v3192 = vmul.f32 %v1565, %v904
        %v3193 = vadd.f32 %v3185, %v3187
        %v3194 = vadd.f32 %v3193, %v3189
        %v3195 = vadd.f32 %v3194, %v3191
        %v3196 = vrot.slane %v3195, 4
        %v3197 = vadd.f32 %v3195, %v3196
        %v3198 = vrot.slane %v3197, 2
        %v3199 = vadd.f32 %v3197, %v3198
        %v3200 = vrot.slane %v3199, 1
        %v3201 = vadd.f32 %v3199, %v3200
        %v3202 = vadd.f32 %v3186, %v3188
        %v3203 = vadd.f32 %v3202, %v3190
        %v3204 = vadd.f32 %v3203, %v3192
        %v3205 = vrot.slane %v3204, 4
        %v3206 = vadd.f32 %v3204, %v3205
        %v3207 = vrot.slane %v3206, 2
        %v3208 = vadd.f32 %v3206, %v3207
        %v3209 = vrot.slane %v3208, 1
        %v3210 = vadd.f32 %v3208, %v3209
        %v3211 = vmul.f32 %v1545, %v1021
        %v3212 = vmul.f32 %v1547, %v1023
        %v3213 = vmul.f32 %v1551, %v1027
        %v3214 = vmul.f32 %v1553, %v1029
        %v3215 = vmul.f32 %v1557, %v1033
        %v3216 = vmul.f32 %v1559, %v1035
        %v3217 = vmul.f32 %v1563, %v1039
        %v3218 = vmul.f32 %v1565, %v1041
        %v3219 = vadd.f32 %v3211, %v3213
        %v3220 = vadd.f32 %v3219, %v3215
        %v3221 = vadd.f32 %v3220, %v3217
        %v3222 = vrot.slane %v3221, 4
        %v3223 = vadd.f32 %v3221, %v3222
        %v3224 = vrot.slane %v3223, 2
        %v3225 = vadd.f32 %v3223, %v3224
        %v3226 = vrot.slane %v3225, 1
        %v3227 = vadd.f32 %v3225, %v3226
        %v3228 = vadd.f32 %v3212, %v3214
        %v3229 = vadd.f32 %v3228, %v3216
        %v3230 = vadd.f32 %v3229, %v3218
        %v3231 = vrot.slane %v3230, 4
        %v3232 = vadd.f32 %v3230, %v3231
        %v3233 = vrot.slane %v3232, 2
        %v3234 = vadd.f32 %v3232, %v3233
        %v3235 = vrot.slane %v3234, 1
        %v3236 = vadd.f32 %v3234, %v3235
        %v3237 = vmul.f32 %v1545, %v1158
        %v3238 = vmul.f32 %v1547, %v1160
        %v3239 = vmul.f32 %v1551, %v1164
        %v3240 = vmul.f32 %v1553, %v1166
        %v3241 = vmul.f32 %v1557, %v1170
        %v3242 = vmul.f32 %v1559, %v1172
        %v3243 = vmul.f32 %v1563, %v1176
        %v3244 = vmul.f32 %v1565, %v1178
        %v3245 = vadd.f32 %v3237, %v3239
        %v3246 = vadd.f32 %v3245, %v3241
        %v3247 = vadd.f32 %v3246, %v3243
        %v3248 = vrot.slane %v3247, 4
        %v3249 = vadd.f32 %v3247, %v3248
        %v3250 = vrot.slane %v3249, 2
        %v3251 = vadd.f32 %v3249, %v3250
        %v3252 = vrot.slane %v3251, 1
        %v3253 = vadd.f32 %v3251, %v3252
        %v3254 = vadd.f32 %v3238, %v3240
        %v3255 = vadd.f32 %v3254, %v3242
        %v3256 = vadd.f32 %v3255, %v3244
        %v3257 = vrot.slane %v3256, 4
        %v3258 = vadd.f32 %v3256, %v3257
        %v3259 = vrot.slane %v3258, 2
        %v3260 = vadd.f32 %v3258, %v3259
        %v3261 = vrot.slane %v3260, 1
        %v3262 = vadd.f32 %v3260, %v3261
        %v3263 = vmul.f32 %v1545, %v1295
        %v3264 = vmul.f32 %v1547, %v1297
        %v3265 = vmul.f32 %v1551, %v1301
        %v3266 = vmul.f32 %v1553, %v1303
        %v3267 = vmul.f32 %v1557, %v1307
        %v3268 = vmul.f32 %v1559, %v1309
        %v3269 = vmul.f32 %v1563, %v1313
        %v3270 = vmul.f32 %v1565, %v1315
        %v3271 = vadd.f32 %v3263, %v3265
        %v3272 = vadd.f32 %v3271, %v3267
        %v3273 = vadd.f32 %v3272, %v3269
        %v3274 = vrot.slane %v3273, 4
        %v3275 = vadd.f32 %v3273, %v3274
        %v3276 = vrot.slane %v3275, 2
        %v3277 = vadd.f32 %v3275, %v3276
        %v3278 = vrot.slane %v3277, 1
        %v3279 = vadd.f32 %v3277, %v3278
        %v3280 = vadd.f32 %v3264, %v3266
        %v3281 = vadd.f32 %v3280, %v3268
        %v3282 = vadd.f32 %v3281, %v3270
        %v3283 = vrot.slane %v3282, 4
        %v3284 = vadd.f32 %v3282, %v3283
        %v3285 = vrot.slane %v3284, 2
        %v3286 = vadd.f32 %v3284, %v3285
        %v3287 = vrot.slane %v3286, 1
        %v3288 = vadd.f32 %v3286, %v3287
        %v3289 = vmul.f32 %v1545, %v1432
        %v3290 = vmul.f32 %v1547, %v1434
        %v3291 = vmul.f32 %v1551, %v1438
        %v3292 = vmul.f32 %v1553, %v1440
        %v3293 = vmul.f32 %v1557, %v1444
        %v3294 = vmul.f32 %v1559, %v1446
        %v3295 = vmul.f32 %v1563, %v1450
        %v3296 = vmul.f32 %v1565, %v1452
        %v3297 = vadd.f32 %v3289, %v3291
        %v3298 = vadd.f32 %v3297, %v3293
        %v3299 = vadd.f32 %v3298, %v3295
        %v3300 = vrot.slane %v3299, 4
        %v3301 = vadd.f32 %v3299, %v3300
        %v3302 = vrot.slane %v3301, 2
        %v3303 = vadd.f32 %v3301, %v3302
        %v3304 = vrot.slane %v3303, 1
        %v3305 = vadd.f32 %v3303, %v3304
        %v3306 = vadd.f32 %v3290, %v3292
        %v3307 = vadd.f32 %v3306, %v3294
        %v3308 = vadd.f32 %v3307, %v3296
        %v3309 = vrot.slane %v3308, 4
        %v3310 = vadd.f32 %v3308, %v3309
        %v3311 = vrot.slane %v3310, 2
        %v3312 = vadd.f32 %v3310, %v3311
        %v3313 = vrot.slane %v3312, 1
        %v3314 = vadd.f32 %v3312, %v3313
        %v3315 = vmul.f32 %v1545, %v1569
        %v3316 = vmul.f32 %v1547, %v1571
        %v3317 = vmul.f32 %v1551, %v1575
        %v3318 = vmul.f32 %v1553, %v1577
        %v3319 = vmul.f32 %v1557, %v1581
        %v3320 = vmul.f32 %v1559, %v1583
        %v3321 = vmul.f32 %v1563, %v1587
        %v3322 = vmul.f32 %v1565, %v1589
        %v3323 = vadd.f32 %v3315, %v3317
        %v3324 = vadd.f32 %v3323, %v3319
        %v3325 = vadd.f32 %v3324, %v3321
        %v3326 = vrot.slane %v3325, 4
        %v3327 = vadd.f32 %v3325, %v3326
        %v3328 = vrot.slane %v3327, 2
        %v3329 = vadd.f32 %v3327, %v3328
        %v3330 = vrot.slane %v3329, 1
        %v3331 = vadd.f32 %v3329, %v3330
        %v3332 = vadd.f32 %v3316, %v3318
        %v3333 = vadd.f32 %v3332, %v3320
        %v3334 = vadd.f32 %v3333, %v3322
        %v3335 = vrot.slane %v3334, 4
        %v3336 = vadd.f32 %v3334, %v3335
        %v3337 = vrot.slane %v3336, 2
        %v3338 = vadd.f32 %v3336, %v3337
        %v3339 = vrot.slane %v3338, 1
        %v3340 = vadd.f32 %v3338, %v3339
        %v3341 = vmax.f32 %v3201, %v3227
        %v3342 = vmax.f32 %v3210, %v3236
        %v3343 = vmax.f32 %v3341, %v3253
        %v3344 = vmax.f32 %v3342, %v3262
        %v3345 = vmax.f32 %v3343, %v3279
        %v3346 = vmax.f32 %v3344, %v3288
        %v3347 = vmax.f32 %v3345, %v3305
        %v3348 = vmax.f32 %v3346, %v3314
        %v3349 = vmax.f32 %v3347, %v3331
        %v3350 = vmax.f32 %v3348, %v3340
        %v3351 = vsub.f32 %v3201, %v3349
        %v3352 = vsub.f32 %v3210, %v3350
        %v3353 = vmul.f32 %v3351, 1.442695
        %v3354 = vpow.pop %v3353
        %v3355 = vmul.f32 %v3352, 1.442695
        %v3356 = vpow.pop %v3355
        %v3357 = vsub.f32 %v3227, %v3349
        %v3358 = vsub.f32 %v3236, %v3350
        %v3359 = vmul.f32 %v3357, 1.442695
        %v3360 = vpow.pop %v3359
        %v3361 = vmul.f32 %v3358, 1.442695
        %v3362 = vpow.pop %v3361
        %v3363 = vsub.f32 %v3253, %v3349
        %v3364 = vsub.f32 %v3262, %v3350
        %v3365 = vmul.f32 %v3363, 1.442695
        %v3366 = vpow.pop %v3365
        %v3367 = vmul.f32 %v3364, 1.442695
        %v3368 = vpow.pop %v3367
        %v3369 = vsub.f32 %v3279, %v3349
        %v3370 = vsub.f32 %v3288, %v3350
        %v3371 = vmul.f32 %v3369, 1.442695
        %v3372 = vpow.pop %v3371
        %v3373 = vmul.f32 %v3370, 1.442695
        %v3374 = vpow.pop %v3373
        %v3375 = vsub.f32 %v3305, %v3349
        %v3376 = vsub.f32 %v3314, %v3350
        %v3377 = vmul.f32 %v3375, 1.442695
        %v3378 = vpow.pop %v3377
        %v3379 = vmul.f32 %v3376, 1.442695
        %v3380 = vpow.pop %v3379
        %v3381 = vsub.f32 %v3331, %v3349
        %v3382 = vsub.f32 %v3340, %v3350
        %v3383 = vmul.f32 %v3381, 1.442695
        %v3384 = vpow.pop %v3383
        %v3385 = vmul.f32 %v3382, 1.442695
        %v3386 = vpow.pop %v3385
        %v3387 = vadd.f32 %v3354, %v3360
        %v3388 = vadd.f32 %v3356, %v3362
        %v3389 = vadd.f32 %v3387, %v3366
        %v3390 = vadd.f32 %v3388, %v3368
        %v3391 = vadd.f32 %v3389, %v3372
        %v3392 = vadd.f32 %v3390, %v3374
        %v3393 = vadd.f32 %v3391, %v3378
        %v3394 = vadd.f32 %v3392, %v3380
        %v3395 = vadd.f32 %v3393, %v3384
        %v3396 = vadd.f32 %v3394, %v3386
        %v3397 = vrcp.pop %v3395
        %v3398 = vrcp.pop %v3396
        %v3399 = vmul.f32 %v3354, %v3397
        %v3400 = vmul.f32 %v3356, %v3398
        %v3401 = vmul.f32 %v3399, %v908
        %v3402 = vmul.f32 %v3400, %v910
        %v3403 = vmul.f32 %v3399, %v914
        %v3404 = vmul.f32 %v3400, %v916
        %v3405 = vmul.f32 %v3399, %v920
        %v3406 = vmul.f32 %v3400, %v922
        %v3407 = vmul.f32 %v3399, %v926
        %v3408 = vmul.f32 %v3400, %v928
        %v3409 = vmul.f32 %v3360, %v3397
        %v3410 = vmul.f32 %v3362, %v3398
        %v3411 = vmul.f32 %v3409, %v1045
        %v3412 = vmul.f32 %v3410, %v1047
        %v3413 = vmul.f32 %v3409, %v1051
        %v3414 = vmul.f32 %v3410, %v1053
        %v3415 = vmul.f32 %v3409, %v1057
        %v3416 = vmul.f32 %v3410, %v1059
        %v3417 = vmul.f32 %v3409, %v1063
        %v3418 = vmul.f32 %v3410, %v1065
        %v3419 = vadd.f32 %v3401, %v3411
        %v3420 = vadd.f32 %v3402, %v3412
        %v3421 = vadd.f32 %v3403, %v3413
        %v3422 = vadd.f32 %v3404, %v3414
        %v3423 = vadd.f32 %v3405, %v3415
        %v3424 = vadd.f32 %v3406, %v3416
        %v3425 = vadd.f32 %v3407, %v3417
        %v3426 = vadd.f32 %v3408, %v3418
        %v3427 = vmul.f32 %v3366, %v3397
        %v3428 = vmul.f32 %v3368, %v3398
        %v3429 = vmul.f32 %v3427, %v1182
        %v3430 = vmul.f32 %v3428, %v1184
        %v3431 = vmul.f32 %v3427, %v1188
        %v3432 = vmul.f32 %v3428, %v1190
        %v3433 = vmul.f32 %v3427, %v1194
        %v3434 = vmul.f32 %v3428, %v1196
        %v3435 = vmul.f32 %v3427, %v1200
        %v3436 = vmul.f32 %v3428, %v1202
        %v3437 = vadd.f32 %v3419, %v3429
        %v3438 = vadd.f32 %v3420, %v3430
        %v3439 = vadd.f32 %v3421, %v3431
        %v3440 = vadd.f32 %v3422, %v3432
        %v3441 = vadd.f32 %v3423, %v3433
        %v3442 = vadd.f32 %v3424, %v3434
        %v3443 = vadd.f32 %v3425, %v3435
        %v3444 = vadd.f32 %v3426, %v3436
        %v3445 = vmul.f32 %v3372, %v3397
        %v3446 = vmul.f32 %v3374, %v3398
        %v3447 = vmul.f32 %v3445, %v1319
        %v3448 = vmul.f32 %v3446, %v1321
        %v3449 = vmul.f32 %v3445, %v1325
        %v3450 = vmul.f32 %v3446, %v1327
        %v3451 = vmul.f32 %v3445, %v1331
        %v3452 = vmul.f32 %v3446, %v1333
        %v3453 = vmul.f32 %v3445, %v1337
        %v3454 = vmul.f32 %v3446, %v1339
        %v3455 = vadd.f32 %v3437, %v3447
        %v3456 = vadd.f32 %v3438, %v3448
        %v3457 = vadd.f32 %v3439, %v3449
        %v3458 = vadd.f32 %v3440, %v3450
        %v3459 = vadd.f32 %v3441, %v3451
        %v3460 = vadd.f32 %v3442, %v3452
        %v3461 = vadd.f32 %v3443, %v3453
        %v3462 = vadd.f32 %v3444, %v3454
        %v3463 = vmul.f32 %v3378, %v3397
        %v3464 = vmul.f32 %v3380, %v3398
        %v3465 = vmul.f32 %v3463, %v1456
        %v3466 = vmul.f32 %v3464, %v1458
        %v3467 = vmul.f32 %v3463, %v1462
        %v3468 = vmul.f32 %v3464, %v1464
        %v3469 = vmul.f32 %v3463, %v1468
        %v3470 = vmul.f32 %v3464, %v1470
        %v3471 = vmul.f32 %v3463, %v1474
        %v3472 = vmul.f32 %v3464, %v1476
        %v3473 = vadd.f32 %v3455, %v3465
        %v3474 = vadd.f32 %v3456, %v3466
        %v3475 = vadd.f32 %v3457, %v3467
        %v3476 = vadd.f32 %v3458, %v3468
        %v3477 = vadd.f32 %v3459, %v3469
        %v3478 = vadd.f32 %v3460, %v3470
        %v3479 = vadd.f32 %v3461, %v3471
        %v3480 = vadd.f32 %v3462, %v3472
        %v3481 = vmul.f32 %v3384, %v3397
        %v3482 = vmul.f32 %v3386, %v3398
        %v3483 = vmul.f32 %v3481, %v1593
        %v3484 = vmul.f32 %v3482, %v1595
        %v3485 = vmul.f32 %v3481, %v1599
        %v3486 = vmul.f32 %v3482, %v1601
        %v3487 = vmul.f32 %v3481, %v1605
        %v3488 = vmul.f32 %v3482, %v1607
        %v3489 = vmul.f32 %v3481, %v1611
        %v3490 = vmul.f32 %v3482, %v1613
        %v3491 = vadd.f32 %v3473, %v3483
        %v3492 = vadd.f32 %v3474, %v3484
        %v3493 = vadd.f32 %v3475, %v3485
        %v3494 = vadd.f32 %v3476, %v3486
        %v3495 = vadd.f32 %v3477, %v3487
        %v3496 = vadd.f32 %v3478, %v3488
        %v3497 = vadd.f32 %v3479, %v3489
        %v3498 = vadd.f32 %v3480, %v3490
        %v3499 = vld [vmem:[%s3] sm:$0xff]
        %v3500 = vld [vmem:[%s3 + $0x8] sm:$0xff]
        %v3501 = vld [vmem:[%s3 + $0x10] sm:$0xff]
        %v3502 = vld [vmem:[%s3 + $0x18] sm:$0xff]
        %v3504 = vsel %vm756, %v3499, 0
        %v3507 = vsel %vm756, %v3500, 0
        %v3510 = vsel %vm756, %v3501, 0
        %v3513 = vsel %vm756, %v3502, 0
        %3515 = vmatprep.subr.mxu0 %v1922
        %3516 = vmatpush1.msra.mxu0 %v1921
        %3517 = vmatprep.subr.mxu0 %v1924
        %3518 = vmatpush1.msra.mxu0 %v1923
        %3519 = vmatprep.subr.mxu0 %v1926
        %3520 = vmatpush1.msra.mxu0 %v1925
        %3521 = vmatprep.subr.mxu0 %v1928
        %3522 = vmatpush1.msra.mxu0 %v1927
        %3523 = vmatprep.subr.mxu0 0.0
        %3524 = vmatpush1.msra.mxu0 0.0
        %3525 = vmatprep.subr.mxu0 0.0
        %3526 = vmatpush1.msra.mxu0 0.0
        %3527 = vmatprep.subr.mxu0 0.0
        %3528 = vmatpush1.msra.mxu0 0.0
        %3529 = vmatprep.subr.mxu0 0.0
        %3530 = vmatpush1.msra.mxu0 0.0
        %3531 = vmatprep.subr.mxu0 0.0
        %3532 = vmatpush1.msra.mxu0 0.0
        %3533 = vmatprep.subr.mxu0 0.0
        %3534 = vmatpush1.msra.mxu0 0.0
        %3535 = vmatprep.subr.mxu0 0.0
        %3536 = vmatpush1.msra.mxu0 0.0
        %3537 = vmatprep.subr.mxu0 0.0
        %3538 = vmatpush1.msra.mxu0 0.0
        %3539 = vmatprep.subr.mxu0 0.0
        %3540 = vmatpush1.msra.mxu0 0.0
        %3541 = vmatprep.subr.mxu0 0.0
        %3542 = vmatpush1.msra.mxu0 0.0
        %3543 = vmatprep.subr.mxu0 0.0
        %3544 = vmatpush1.msra.mxu0 0.0
        %3545 = vmatprep.subr.mxu0 0.0
        %3546 = vmatpush1.msra.mxu0 0.0
        %3547 = vmatprep.subr.mxu0 0.0
        %3548 = vmatpush1.msra.mxu0 0.0
        %3549 = vmatprep.subr.mxu0 0.0
        %3550 = vmatpush1.msra.mxu0 0.0
        %3551 = vmatprep.subr.mxu0 0.0
        %3552 = vmatpush1.msra.mxu0 0.0
        %3553 = vmatprep.subr.mxu0 0.0
        %3554 = vmatpush1.msra.mxu0 0.0
        %3555 = vmatprep.subr.mxu0 0.0
        %3556 = vmatpush1.msra.mxu0 0.0
        %3557 = vmatprep.subr.mxu0 0.0
        %3558 = vmatpush1.msra.mxu0 0.0
        %3559 = vmatprep.subr.mxu0 0.0
        %3560 = vmatpush1.msra.mxu0 0.0
        %3561 = vmatprep.subr.mxu0 0.0
        %3562 = vmatpush1.msra.mxu0 0.0
        %3563 = vmatprep.subr.mxu0 0.0
        %3564 = vmatpush1.msra.mxu0 0.0
        %3565 = vmatprep.subr.mxu0 0.0
        %3566 = vmatpush1.msra.mxu0 0.0
        %3567 = vmatprep.subr.mxu0 0.0
        %3568 = vmatpush1.msra.mxu0 0.0
        %3569 = vmatprep.subr.mxu0 0.0
        %3570 = vmatpush1.msra.mxu0 0.0
        %3571 = vmatprep.subr.mxu0 0.0
        %3572 = vmatpush1.msra.mxu0 0.0
        %3573 = vmatprep.subr.mxu0 0.0
        %3574 = vmatpush1.msra.mxu0 0.0
        %3575 = vmatprep.subr.mxu0 0.0
        %3576 = vmatpush1.msra.mxu0 0.0
        %3577 = vmatprep.subr.mxu0 0.0
        %3578 = vmatpush1.msra.mxu0 0.0
        %3579 = vmatprep.mubr.f32.mxu0 0.0
        %3580 = vmatmul.mubr.f32.gmra.mrb[0].mxu0 %v3504
        %v3581 = vpop.f32.mrb[0].mxu0
        %v3582 = vadd.f32 0.0, %v3581
        %v3583 = vpop.f32.mrb[0].mxu0
        %v3584 = vadd.f32 0.0, %v3583
        %3585 = vmatprep.mubr.f32.mxu0 0.0
        %3586 = vmatmul.mubr.f32.gmra.mrb[0].mxu0 %v3507
        %v3587 = vpop.f32.mrb[0].mxu0
        %v3588 = vadd.f32 0.0, %v3587
        %v3589 = vpop.f32.mrb[0].mxu0
        %v3590 = vadd.f32 0.0, %v3589
        %3591 = vmatprep.mubr.f32.mxu0 0.0
        %3592 = vmatmul.mubr.f32.gmra.mrb[0].mxu0 %v3510
        %v3593 = vpop.f32.mrb[0].mxu0
        %v3594 = vadd.f32 0.0, %v3593
        %v3595 = vpop.f32.mrb[0].mxu0
        %v3596 = vadd.f32 0.0, %v3595
        %3597 = vmatprep.mubr.f32.mxu0 0.0
        %3598 = vmatmul.mubr.f32.gmra.mrb[0].mxu0 %v3513
        %v3599 = vpop.f32.mrb[0].mxu0
        %v3600 = vadd.f32 0.0, %v3599
        %v3601 = vpop.f32.mrb[0].mxu0
        %v3602 = vadd.f32 0.0, %v3601
        %3603 = vdwg.mxu0
        %3604 = vmatprep.subr.mxu0 %v2236
        %3605 = vmatpush1.msra.mxu0 %v2235
        %3606 = vmatprep.subr.mxu0 %v2238
        %3607 = vmatpush1.msra.mxu0 %v2237
        %3608 = vmatprep.subr.mxu0 %v2240
        %3609 = vmatpush1.msra.mxu0 %v2239
        %3610 = vmatprep.subr.mxu0 %v2242
        %3611 = vmatpush1.msra.mxu0 %v2241
        %3612 = vmatprep.subr.mxu0 0.0
        %3613 = vmatpush1.msra.mxu0 0.0
        %3614 = vmatprep.subr.mxu0 0.0
        %3615 = vmatpush1.msra.mxu0 0.0
        %3616 = vmatprep.subr.mxu0 0.0
        %3617 = vmatpush1.msra.mxu0 0.0
        %3618 = vmatprep.subr.mxu0 0.0
        %3619 = vmatpush1.msra.mxu0 0.0
        %3620 = vmatprep.subr.mxu0 0.0
        %3621 = vmatpush1.msra.mxu0 0.0
        %3622 = vmatprep.subr.mxu0 0.0
        %3623 = vmatpush1.msra.mxu0 0.0
        %3624 = vmatprep.subr.mxu0 0.0
        %3625 = vmatpush1.msra.mxu0 0.0
        %3626 = vmatprep.subr.mxu0 0.0
        %3627 = vmatpush1.msra.mxu0 0.0
        %3628 = vmatprep.subr.mxu0 0.0
        %3629 = vmatpush1.msra.mxu0 0.0
        %3630 = vmatprep.subr.mxu0 0.0
        %3631 = vmatpush1.msra.mxu0 0.0
        %3632 = vmatprep.subr.mxu0 0.0
        %3633 = vmatpush1.msra.mxu0 0.0
        %3634 = vmatprep.subr.mxu0 0.0
        %3635 = vmatpush1.msra.mxu0 0.0
        %3636 = vmatprep.subr.mxu0 0.0
        %3637 = vmatpush1.msra.mxu0 0.0
        %3638 = vmatprep.subr.mxu0 0.0
        %3639 = vmatpush1.msra.mxu0 0.0
        %3640 = vmatprep.subr.mxu0 0.0
        %3641 = vmatpush1.msra.mxu0 0.0
        %3642 = vmatprep.subr.mxu0 0.0
        %3643 = vmatpush1.msra.mxu0 0.0
        %3644 = vmatprep.subr.mxu0 0.0
        %3645 = vmatpush1.msra.mxu0 0.0
        %3646 = vmatprep.subr.mxu0 0.0
        %3647 = vmatpush1.msra.mxu0 0.0
        %3648 = vmatprep.subr.mxu0 0.0
        %3649 = vmatpush1.msra.mxu0 0.0
        %3650 = vmatprep.subr.mxu0 0.0
        %3651 = vmatpush1.msra.mxu0 0.0
        %3652 = vmatprep.subr.mxu0 0.0
        %3653 = vmatpush1.msra.mxu0 0.0
        %3654 = vmatprep.subr.mxu0 0.0
        %3655 = vmatpush1.msra.mxu0 0.0
        %3656 = vmatprep.subr.mxu0 0.0
        %3657 = vmatpush1.msra.mxu0 0.0
        %3658 = vmatprep.subr.mxu0 0.0
        %3659 = vmatpush1.msra.mxu0 0.0
        %3660 = vmatprep.subr.mxu0 0.0
        %3661 = vmatpush1.msra.mxu0 0.0
        %3662 = vmatprep.subr.mxu0 0.0
        %3663 = vmatpush1.msra.mxu0 0.0
        %3664 = vmatprep.subr.mxu0 0.0
        %3665 = vmatpush1.msra.mxu0 0.0
        %3666 = vmatprep.subr.mxu0 0.0
        %3667 = vmatpush1.msra.mxu0 0.0
        %3668 = vmatprep.mubr.f32.mxu0 0.0
        %3669 = vmatmul.mubr.f32.gmra.mrb[0].mxu0 %v3504
        %v3670 = vpop.f32.mrb[0].mxu0
        %v3671 = vadd.f32 0.0, %v3670
        %v3672 = vpop.f32.mrb[0].mxu0
        %v3673 = vadd.f32 0.0, %v3672
        %3674 = vmatprep.mubr.f32.mxu0 0.0
        %3675 = vmatmul.mubr.f32.gmra.mrb[0].mxu0 %v3507
        %v3676 = vpop.f32.mrb[0].mxu0
        %v3677 = vadd.f32 0.0, %v3676
        %v3678 = vpop.f32.mrb[0].mxu0
        %v3679 = vadd.f32 0.0, %v3678
        %3680 = vmatprep.mubr.f32.mxu0 0.0
        %3681 = vmatmul.mubr.f32.gmra.mrb[0].mxu0 %v3510
        %v3682 = vpop.f32.mrb[0].mxu0
        %v3683 = vadd.f32 0.0, %v3682
        %v3684 = vpop.f32.mrb[0].mxu0
        %v3685 = vadd.f32 0.0, %v3684
        %3686 = vmatprep.mubr.f32.mxu0 0.0
        %3687 = vmatmul.mubr.f32.gmra.mrb[0].mxu0 %v3513
        %v3688 = vpop.f32.mrb[0].mxu0
        %v3689 = vadd.f32 0.0, %v3688
        %v3690 = vpop.f32.mrb[0].mxu0
        %v3691 = vadd.f32 0.0, %v3690
        %3692 = vdwg.mxu0
        %3693 = vmatprep.subr.mxu0 %v2550
        %3694 = vmatpush1.msra.mxu0 %v2549
        %3695 = vmatprep.subr.mxu0 %v2552
        %3696 = vmatpush1.msra.mxu0 %v2551
        %3697 = vmatprep.subr.mxu0 %v2554
        %3698 = vmatpush1.msra.mxu0 %v2553
        %3699 = vmatprep.subr.mxu0 %v2556
        %3700 = vmatpush1.msra.mxu0 %v2555
        %3701 = vmatprep.subr.mxu0 0.0
        %3702 = vmatpush1.msra.mxu0 0.0
        %3703 = vmatprep.subr.mxu0 0.0
        %3704 = vmatpush1.msra.mxu0 0.0
        %3705 = vmatprep.subr.mxu0 0.0
        %3706 = vmatpush1.msra.mxu0 0.0
        %3707 = vmatprep.subr.mxu0 0.0
        %3708 = vmatpush1.msra.mxu0 0.0
        %3709 = vmatprep.subr.mxu0 0.0
        %3710 = vmatpush1.msra.mxu0 0.0
        %3711 = vmatprep.subr.mxu0 0.0
        %3712 = vmatpush1.msra.mxu0 0.0
        %3713 = vmatprep.subr.mxu0 0.0
        %3714 = vmatpush1.msra.mxu0 0.0
        %3715 = vmatprep.subr.mxu0 0.0
        %3716 = vmatpush1.msra.mxu0 0.0
        %3717 = vmatprep.subr.mxu0 0.0
        %3718 = vmatpush1.msra.mxu0 0.0
        %3719 = vmatprep.subr.mxu0 0.0
        %3720 = vmatpush1.msra.mxu0 0.0
        %3721 = vmatprep.subr.mxu0 0.0
        %3722 = vmatpush1.msra.mxu0 0.0
        %3723 = vmatprep.subr.mxu0 0.0
        %3724 = vmatpush1.msra.mxu0 0.0
        %3725 = vmatprep.subr.mxu0 0.0
        %3726 = vmatpush1.msra.mxu0 0.0
        %3727 = vmatprep.subr.mxu0 0.0
        %3728 = vmatpush1.msra.mxu0 0.0
        %3729 = vmatprep.subr.mxu0 0.0
        %3730 = vmatpush1.msra.mxu0 0.0
        %3731 = vmatprep.subr.mxu0 0.0
        %3732 = vmatpush1.msra.mxu0 0.0
        %3733 = vmatprep.subr.mxu0 0.0
        %3734 = vmatpush1.msra.mxu0 0.0
        %3735 = vmatprep.subr.mxu0 0.0
        %3736 = vmatpush1.msra.mxu0 0.0
        %3737 = vmatprep.subr.mxu0 0.0
        %3738 = vmatpush1.msra.mxu0 0.0
        %3739 = vmatprep.subr.mxu0 0.0
        %3740 = vmatpush1.msra.mxu0 0.0
        %3741 = vmatprep.subr.mxu0 0.0
        %3742 = vmatpush1.msra.mxu0 0.0
        %3743 = vmatprep.subr.mxu0 0.0
        %3744 = vmatpush1.msra.mxu0 0.0
        %3745 = vmatprep.subr.mxu0 0.0
        %3746 = vmatpush1.msra.mxu0 0.0
        %3747 = vmatprep.subr.mxu0 0.0
        %3748 = vmatpush1.msra.mxu0 0.0
        %3749 = vmatprep.subr.mxu0 0.0
        %3750 = vmatpush1.msra.mxu0 0.0
        %3751 = vmatprep.subr.mxu0 0.0
        %3752 = vmatpush1.msra.mxu0 0.0
        %3753 = vmatprep.subr.mxu0 0.0
        %3754 = vmatpush1.msra.mxu0 0.0
        %3755 = vmatprep.subr.mxu0 0.0
        %3756 = vmatpush1.msra.mxu0 0.0
        %3757 = vmatprep.mubr.f32.mxu0 0.0
        %3758 = vmatmul.mubr.f32.gmra.mrb[0].mxu0 %v3504
        %v3759 = vpop.f32.mrb[0].mxu0
        %v3760 = vadd.f32 0.0, %v3759
        %v3761 = vpop.f32.mrb[0].mxu0
        %v3762 = vadd.f32 0.0, %v3761
        %3763 = vmatprep.mubr.f32.mxu0 0.0
        %3764 = vmatmul.mubr.f32.gmra.mrb[0].mxu0 %v3507
        %v3765 = vpop.f32.mrb[0].mxu0
        %v3766 = vadd.f32 0.0, %v3765
        %v3767 = vpop.f32.mrb[0].mxu0
        %v3768 = vadd.f32 0.0, %v3767
        %3769 = vmatprep.mubr.f32.mxu0 0.0
        %3770 = vmatmul.mubr.f32.gmra.mrb[0].mxu0 %v3510
        %v3771 = vpop.f32.mrb[0].mxu0
        %v3772 = vadd.f32 0.0, %v3771
        %v3773 = vpop.f32.mrb[0].mxu0
        %v3774 = vadd.f32 0.0, %v3773
        %3775 = vmatprep.mubr.f32.mxu0 0.0
        %3776 = vmatmul.mubr.f32.gmra.mrb[0].mxu0 %v3513
        %v3777 = vpop.f32.mrb[0].mxu0
        %v3778 = vadd.f32 0.0, %v3777
        %v3779 = vpop.f32.mrb[0].mxu0
        %v3780 = vadd.f32 0.0, %v3779
        %3781 = vdwg.mxu0
        %3782 = vmatprep.subr.mxu0 %v2864
        %3783 = vmatpush1.msra.mxu0 %v2863
        %3784 = vmatprep.subr.mxu0 %v2866
        %3785 = vmatpush1.msra.mxu0 %v2865
        %3786 = vmatprep.subr.mxu0 %v2868
        %3787 = vmatpush1.msra.mxu0 %v2867
        %3788 = vmatprep.subr.mxu0 %v2870
        %3789 = vmatpush1.msra.mxu0 %v2869
        %3790 = vmatprep.subr.mxu0 0.0
        %3791 = vmatpush1.msra.mxu0 0.0
        %3792 = vmatprep.subr.mxu0 0.0
        %3793 = vmatpush1.msra.mxu0 0.0
        %3794 = vmatprep.subr.mxu0 0.0
        %3795 = vmatpush1.msra.mxu0 0.0
        %3796 = vmatprep.subr.mxu0 0.0
        %3797 = vmatpush1.msra.mxu0 0.0
        %3798 = vmatprep.subr.mxu0 0.0
        %3799 = vmatpush1.msra.mxu0 0.0
        %3800 = vmatprep.subr.mxu0 0.0
        %3801 = vmatpush1.msra.mxu0 0.0
        %3802 = vmatprep.subr.mxu0 0.0
        %3803 = vmatpush1.msra.mxu0 0.0
        %3804 = vmatprep.subr.mxu0 0.0
        %3805 = vmatpush1.msra.mxu0 0.0
        %3806 = vmatprep.subr.mxu0 0.0
        %3807 = vmatpush1.msra.mxu0 0.0
        %3808 = vmatprep.subr.mxu0 0.0
        %3809 = vmatpush1.msra.mxu0 0.0
        %3810 = vmatprep.subr.mxu0 0.0
        %3811 = vmatpush1.msra.mxu0 0.0
        %3812 = vmatprep.subr.mxu0 0.0
        %3813 = vmatpush1.msra.mxu0 0.0
        %3814 = vmatprep.subr.mxu0 0.0
        %3815 = vmatpush1.msra.mxu0 0.0
        %3816 = vmatprep.subr.mxu0 0.0
        %3817 = vmatpush1.msra.mxu0 0.0
        %3818 = vmatprep.subr.mxu0 0.0
        %3819 = vmatpush1.msra.mxu0 0.0
        %3820 = vmatprep.subr.mxu0 0.0
        %3821 = vmatpush1.msra.mxu0 0.0
        %3822 = vmatprep.subr.mxu0 0.0
        %3823 = vmatpush1.msra.mxu0 0.0
        %3824 = vmatprep.subr.mxu0 0.0
        %3825 = vmatpush1.msra.mxu0 0.0
        %3826 = vmatprep.subr.mxu0 0.0
        %3827 = vmatpush1.msra.mxu0 0.0
        %3828 = vmatprep.subr.mxu0 0.0
        %3829 = vmatpush1.msra.mxu0 0.0
        %3830 = vmatprep.subr.mxu0 0.0
        %3831 = vmatpush1.msra.mxu0 0.0
        %3832 = vmatprep.subr.mxu0 0.0
        %3833 = vmatpush1.msra.mxu0 0.0
        %3834 = vmatprep.subr.mxu0 0.0
        %3835 = vmatpush1.msra.mxu0 0.0
        %3836 = vmatprep.subr.mxu0 0.0
        %3837 = vmatpush1.msra.mxu0 0.0
        %3838 = vmatprep.subr.mxu0 0.0
        %3839 = vmatpush1.msra.mxu0 0.0
        %3840 = vmatprep.subr.mxu0 0.0
        %3841 = vmatpush1.msra.mxu0 0.0
        %3842 = vmatprep.subr.mxu0 0.0
        %3843 = vmatpush1.msra.mxu0 0.0
        %3844 = vmatprep.subr.mxu0 0.0
        %3845 = vmatpush1.msra.mxu0 0.0
        %3846 = vmatprep.mubr.f32.mxu0 0.0
        %3847 = vmatmul.mubr.f32.gmra.mrb[0].mxu0 %v3504
        %v3848 = vpop.f32.mrb[0].mxu0
        %v3849 = vadd.f32 0.0, %v3848
        %v3850 = vpop.f32.mrb[0].mxu0
        %v3851 = vadd.f32 0.0, %v3850
        %3852 = vmatprep.mubr.f32.mxu0 0.0
        %3853 = vmatmul.mubr.f32.gmra.mrb[0].mxu0 %v3507
        %v3854 = vpop.f32.mrb[0].mxu0
        %v3855 = vadd.f32 0.0, %v3854
        %v3856 = vpop.f32.mrb[0].mxu0
        %v3857 = vadd.f32 0.0, %v3856
        %3858 = vmatprep.mubr.f32.mxu0 0.0
        %3859 = vmatmul.mubr.f32.gmra.mrb[0].mxu0 %v3510
        %v3860 = vpop.f32.mrb[0].mxu0
        %v3861 = vadd.f32 0.0, %v3860
        %v3862 = vpop.f32.mrb[0].mxu0
        %v3863 = vadd.f32 0.0, %v3862
        %3864 = vmatprep.mubr.f32.mxu0 0.0
        %3865 = vmatmul.mubr.f32.gmra.mrb[0].mxu0 %v3513
        %v3866 = vpop.f32.mrb[0].mxu0
        %v3867 = vadd.f32 0.0, %v3866
        %v3868 = vpop.f32.mrb[0].mxu0
        %v3869 = vadd.f32 0.0, %v3868
        %3870 = vdwg.mxu0
        %3871 = vmatprep.subr.mxu0 %v3178
        %3872 = vmatpush1.msra.mxu0 %v3177
        %3873 = vmatprep.subr.mxu0 %v3180
        %3874 = vmatpush1.msra.mxu0 %v3179
        %3875 = vmatprep.subr.mxu0 %v3182
        %3876 = vmatpush1.msra.mxu0 %v3181
        %3877 = vmatprep.subr.mxu0 %v3184
        %3878 = vmatpush1.msra.mxu0 %v3183
        %3879 = vmatprep.subr.mxu0 0.0
        %3880 = vmatpush1.msra.mxu0 0.0
        %3881 = vmatprep.subr.mxu0 0.0
        %3882 = vmatpush1.msra.mxu0 0.0
        %3883 = vmatprep.subr.mxu0 0.0
        %3884 = vmatpush1.msra.mxu0 0.0
        %3885 = vmatprep.subr.mxu0 0.0
        %3886 = vmatpush1.msra.mxu0 0.0
        %3887 = vmatprep.subr.mxu0 0.0
        %3888 = vmatpush1.msra.mxu0 0.0
        %3889 = vmatprep.subr.mxu0 0.0
        %3890 = vmatpush1.msra.mxu0 0.0
        %3891 = vmatprep.subr.mxu0 0.0
        %3892 = vmatpush1.msra.mxu0 0.0
        %3893 = vmatprep.subr.mxu0 0.0
        %3894 = vmatpush1.msra.mxu0 0.0
        %3895 = vmatprep.subr.mxu0 0.0
        %3896 = vmatpush1.msra.mxu0 0.0
        %3897 = vmatprep.subr.mxu0 0.0
        %3898 = vmatpush1.msra.mxu0 0.0
        %3899 = vmatprep.subr.mxu0 0.0
        %3900 = vmatpush1.msra.mxu0 0.0
        %3901 = vmatprep.subr.mxu0 0.0
        %3902 = vmatpush1.msra.mxu0 0.0
        %3903 = vmatprep.subr.mxu0 0.0
        %3904 = vmatpush1.msra.mxu0 0.0
        %3905 = vmatprep.subr.mxu0 0.0
        %3906 = vmatpush1.msra.mxu0 0.0
        %3907 = vmatprep.subr.mxu0 0.0
        %3908 = vmatpush1.msra.mxu0 0.0
        %3909 = vmatprep.subr.mxu0 0.0
        %3910 = vmatpush1.msra.mxu0 0.0
        %3911 = vmatprep.subr.mxu0 0.0
        %3912 = vmatpush1.msra.mxu0 0.0
        %3913 = vmatprep.subr.mxu0 0.0
        %3914 = vmatpush1.msra.mxu0 0.0
        %3915 = vmatprep.subr.mxu0 0.0
        %3916 = vmatpush1.msra.mxu0 0.0
        %3917 = vmatprep.subr.mxu0 0.0
        %3918 = vmatpush1.msra.mxu0 0.0
        %3919 = vmatprep.subr.mxu0 0.0
        %3920 = vmatpush1.msra.mxu0 0.0
        %3921 = vmatprep.subr.mxu0 0.0
        %3922 = vmatpush1.msra.mxu0 0.0
        %3923 = vmatprep.subr.mxu0 0.0
        %3924 = vmatpush1.msra.mxu0 0.0
        %3925 = vmatprep.subr.mxu0 0.0
        %3926 = vmatpush1.msra.mxu0 0.0
        %3927 = vmatprep.subr.mxu0 0.0
        %3928 = vmatpush1.msra.mxu0 0.0
        %3929 = vmatprep.subr.mxu0 0.0
        %3930 = vmatpush1.msra.mxu0 0.0
        %3931 = vmatprep.subr.mxu0 0.0
        %3932 = vmatpush1.msra.mxu0 0.0
        %3933 = vmatprep.subr.mxu0 0.0
        %3934 = vmatpush1.msra.mxu0 0.0
        %3935 = vmatprep.mubr.f32.mxu0 0.0
        %3936 = vmatmul.mubr.f32.gmra.mrb[0].mxu0 %v3504
        %v3937 = vpop.f32.mrb[0].mxu0
        %v3938 = vadd.f32 0.0, %v3937
        %v3939 = vpop.f32.mrb[0].mxu0
        %v3940 = vadd.f32 0.0, %v3939
        %3941 = vmatprep.mubr.f32.mxu0 0.0
        %3942 = vmatmul.mubr.f32.gmra.mrb[0].mxu0 %v3507
        %v3943 = vpop.f32.mrb[0].mxu0
        %v3944 = vadd.f32 0.0, %v3943
        %v3945 = vpop.f32.mrb[0].mxu0
        %v3946 = vadd.f32 0.0, %v3945
        %3947 = vmatprep.mubr.f32.mxu0 0.0
        %3948 = vmatmul.mubr.f32.gmra.mrb[0].mxu0 %v3510
        %v3949 = vpop.f32.mrb[0].mxu0
        %v3950 = vadd.f32 0.0, %v3949
        %v3951 = vpop.f32.mrb[0].mxu0
        %v3952 = vadd.f32 0.0, %v3951
        %3953 = vmatprep.mubr.f32.mxu0 0.0
        %3954 = vmatmul.mubr.f32.gmra.mrb[0].mxu0 %v3513
        %v3955 = vpop.f32.mrb[0].mxu0
        %v3956 = vadd.f32 0.0, %v3955
        %v3957 = vpop.f32.mrb[0].mxu0
        %v3958 = vadd.f32 0.0, %v3957
        %3959 = vdwg.mxu0
        %3960 = vmatprep.subr.mxu0 %v3492
        %3961 = vmatpush1.msra.mxu0 %v3491
        %3962 = vmatprep.subr.mxu0 %v3494
        %3963 = vmatpush1.msra.mxu0 %v3493
        %3964 = vmatprep.subr.mxu0 %v3496
        %3965 = vmatpush1.msra.mxu0 %v3495
        %3966 = vmatprep.subr.mxu0 %v3498
        %3967 = vmatpush1.msra.mxu0 %v3497
        %3968 = vmatprep.subr.mxu0 0.0
        %3969 = vmatpush1.msra.mxu0 0.0
        %3970 = vmatprep.subr.mxu0 0.0
        %3971 = vmatpush1.msra.mxu0 0.0
        %3972 = vmatprep.subr.mxu0 0.0
        %3973 = vmatpush1.msra.mxu0 0.0
        %3974 = vmatprep.subr.mxu0 0.0
        %3975 = vmatpush1.msra.mxu0 0.0
        %3976 = vmatprep.subr.mxu0 0.0
        %3977 = vmatpush1.msra.mxu0 0.0
        %3978 = vmatprep.subr.mxu0 0.0
        %3979 = vmatpush1.msra.mxu0 0.0
        %3980 = vmatprep.subr.mxu0 0.0
        %3981 = vmatpush1.msra.mxu0 0.0
        %3982 = vmatprep.subr.mxu0 0.0
        %3983 = vmatpush1.msra.mxu0 0.0
        %3984 = vmatprep.subr.mxu0 0.0
        %3985 = vmatpush1.msra.mxu0 0.0
        %3986 = vmatprep.subr.mxu0 0.0
        %3987 = vmatpush1.msra.mxu0 0.0
        %3988 = vmatprep.subr.mxu0 0.0
        %3989 = vmatpush1.msra.mxu0 0.0
        %3990 = vmatprep.subr.mxu0 0.0
        %3991 = vmatpush1.msra.mxu0 0.0
        %3992 = vmatprep.subr.mxu0 0.0
        %3993 = vmatpush1.msra.mxu0 0.0
        %3994 = vmatprep.subr.mxu0 0.0
        %3995 = vmatpush1.msra.mxu0 0.0
        %3996 = vmatprep.subr.mxu0 0.0
        %3997 = vmatpush1.msra.mxu0 0.0
        %3998 = vmatprep.subr.mxu0 0.0
        %3999 = vmatpush1.msra.mxu0 0.0
        %4000 = vmatprep.subr.mxu0 0.0
        %4001 = vmatpush1.msra.mxu0 0.0
        %4002 = vmatprep.subr.mxu0 0.0
        %4003 = vmatpush1.msra.mxu0 0.0
        %4004 = vmatprep.subr.mxu0 0.0
        %4005 = vmatpush1.msra.mxu0 0.0
        %4006 = vmatprep.subr.mxu0 0.0
        %4007 = vmatpush1.msra.mxu0 0.0
        %4008 = vmatprep.subr.mxu0 0.0
        %4009 = vmatpush1.msra.mxu0 0.0
        %4010 = vmatprep.subr.mxu0 0.0
        %4011 = vmatpush1.msra.mxu0 0.0
        %4012 = vmatprep.subr.mxu0 0.0
        %4013 = vmatpush1.msra.mxu0 0.0
        %4014 = vmatprep.subr.mxu0 0.0
        %4015 = vmatpush1.msra.mxu0 0.0
        %4016 = vmatprep.subr.mxu0 0.0
        %4017 = vmatpush1.msra.mxu0 0.0
        %4018 = vmatprep.subr.mxu0 0.0
        %4019 = vmatpush1.msra.mxu0 0.0
        %4020 = vmatprep.subr.mxu0 0.0
        %4021 = vmatpush1.msra.mxu0 0.0
        %4022 = vmatprep.subr.mxu0 0.0
        %4023 = vmatpush1.msra.mxu0 0.0
        %4024 = vmatprep.mubr.f32.mxu0 0.0
        %4025 = vmatmul.mubr.f32.gmra.mrb[0].mxu0 %v3504
        %v4026 = vpop.f32.mrb[0].mxu0
        %v4027 = vadd.f32 0.0, %v4026
        %v4028 = vpop.f32.mrb[0].mxu0
        %v4029 = vadd.f32 0.0, %v4028
        %4030 = vmatprep.mubr.f32.mxu0 0.0
        %4031 = vmatmul.mubr.f32.gmra.mrb[0].mxu0 %v3507
        %v4032 = vpop.f32.mrb[0].mxu0
        %v4033 = vadd.f32 0.0, %v4032
        %v4034 = vpop.f32.mrb[0].mxu0
        %v4035 = vadd.f32 0.0, %v4034
        %4036 = vmatprep.mubr.f32.mxu0 0.0
        %4037 = vmatmul.mubr.f32.gmra.mrb[0].mxu0 %v3510
        %v4038 = vpop.f32.mrb[0].mxu0
        %v4039 = vadd.f32 0.0, %v4038
        %v4040 = vpop.f32.mrb[0].mxu0
        %v4041 = vadd.f32 0.0, %v4040
        %4042 = vmatprep.mubr.f32.mxu0 0.0
        %4043 = vmatmul.mubr.f32.gmra.mrb[0].mxu0 %v3513
        %v4044 = vpop.f32.mrb[0].mxu0
        %v4045 = vadd.f32 0.0, %v4044
        %v4046 = vpop.f32.mrb[0].mxu0
        %v4047 = vadd.f32 0.0, %v4046
        %4048 = vdwg.mxu0
        %v4049 = vadd.f32 %v513, %v3582
        %v4050 = vadd.f32 %v515, %v3584
        %v4051 = vadd.f32 %v537, %v3671
        %v4052 = vadd.f32 %v539, %v3673
        %v4053 = vadd.f32 %v561, %v3760
        %v4054 = vadd.f32 %v563, %v3762
        %v4055 = vadd.f32 %v585, %v3849
        %v4056 = vadd.f32 %v587, %v3851
        %v4057 = vadd.f32 %v609, %v3938
        %v4058 = vadd.f32 %v611, %v3940
        %v4059 = vadd.f32 %v633, %v4027
        %v4060 = vadd.f32 %v635, %v4029
        %v4061 = vadd.f32 %v519, %v3588
        %v4062 = vadd.f32 %v521, %v3590
        %v4063 = vadd.f32 %v543, %v3677
        %v4064 = vadd.f32 %v545, %v3679
        %v4065 = vadd.f32 %v567, %v3766
        %v4066 = vadd.f32 %v569, %v3768
        %v4067 = vadd.f32 %v591, %v3855
        %v4068 = vadd.f32 %v593, %v3857
        %v4069 = vadd.f32 %v615, %v3944
        %v4070 = vadd.f32 %v617, %v3946
        %v4071 = vadd.f32 %v639, %v4033
        %v4072 = vadd.f32 %v641, %v4035
        %v4073 = vadd.f32 %v525, %v3594
        %v4074 = vadd.f32 %v527, %v3596
        %v4075 = vadd.f32 %v549, %v3683
        %v4076 = vadd.f32 %v551, %v3685
        %v4077 = vadd.f32 %v573, %v3772
        %v4078 = vadd.f32 %v575, %v3774
        %v4079 = vadd.f32 %v597, %v3861
        %v4080 = vadd.f32 %v599, %v3863
        %v4081 = vadd.f32 %v621, %v3950
        %v4082 = vadd.f32 %v623, %v3952
        %v4083 = vadd.f32 %v645, %v4039
        %v4084 = vadd.f32 %v647, %v4041
        %v4085 = vadd.f32 %v531, %v3600
        %v4086 = vadd.f32 %v533, %v3602
        %v4087 = vadd.f32 %v555, %v3689
        %v4088 = vadd.f32 %v557, %v3691
        %v4089 = vadd.f32 %v579, %v3778
        %v4090 = vadd.f32 %v581, %v3780
        %v4091 = vadd.f32 %v603, %v3867
        %v4092 = vadd.f32 %v605, %v3869
        %v4093 = vadd.f32 %v627, %v3956
        %v4094 = vadd.f32 %v629, %v3958
        %v4095 = vadd.f32 %v651, %v4045
        %v4096 = vadd.f32 %v653, %v4047
        %4098 = vset.pattern.permute.xlu0 0
        %4099 = vperm.xlu0 %4098, %v667
        %v4100 = vpop.permute.xlu0 %4099
        %4103 = vset.pattern.permute.xlu0 0
        %4104 = vperm.xlu0 %4103, %v668
        %v4105 = vpop.permute.xlu0 %4104
        %4108 = vset.pattern.permute.xlu0 0
        %4109 = vperm.xlu0 %4108, %v669
        %v4110 = vpop.permute.xlu0 %4109
        %4113 = vset.pattern.permute.xlu0 0
        %4114 = vperm.xlu0 %4113, %v670
        %v4115 = vpop.permute.xlu0 %4114
        %v4117 = vadd.f32 %v4049, %v4100
        %v4118 = vadd.f32 %v4050, %v4100
        %v4119 = vadd.f32 %v4051, %v4100
        %v4120 = vadd.f32 %v4052, %v4100
        %v4121 = vadd.f32 %v4053, %v4100
        %v4122 = vadd.f32 %v4054, %v4100
        %v4123 = vadd.f32 %v4055, %v4100
        %v4124 = vadd.f32 %v4056, %v4100
        %v4125 = vadd.f32 %v4057, %v4100
        %v4126 = vadd.f32 %v4058, %v4100
        %v4127 = vadd.f32 %v4059, %v4100
        %v4128 = vadd.f32 %v4060, %v4100
        %v4129 = vadd.f32 %v4061, %v4105
        %v4130 = vadd.f32 %v4062, %v4105
        %v4131 = vadd.f32 %v4063, %v4105
        %v4132 = vadd.f32 %v4064, %v4105
        %v4133 = vadd.f32 %v4065, %v4105
        %v4134 = vadd.f32 %v4066, %v4105
        %v4135 = vadd.f32 %v4067, %v4105
        %v4136 = vadd.f32 %v4068, %v4105
        %v4137 = vadd.f32 %v4069, %v4105
        %v4138 = vadd.f32 %v4070, %v4105
        %v4139 = vadd.f32 %v4071, %v4105
        %v4140 = vadd.f32 %v4072, %v4105
        %v4141 = vadd.f32 %v4073, %v4110
        %v4142 = vadd.f32 %v4074, %v4110
        %v4143 = vadd.f32 %v4075, %v4110
        %v4144 = vadd.f32 %v4076, %v4110
        %v4145 = vadd.f32 %v4077, %v4110
        %v4146 = vadd.f32 %v4078, %v4110
        %v4147 = vadd.f32 %v4079, %v4110
        %v4148 = vadd.f32 %v4080, %v4110
        %v4149 = vadd.f32 %v4081, %v4110
        %v4150 = vadd.f32 %v4082, %v4110
        %v4151 = vadd.f32 %v4083, %v4110
        %v4152 = vadd.f32 %v4084, %v4110
        %v4153 = vadd.f32 %v4085, %v4115
        %v4154 = vadd.f32 %v4086, %v4115
        %v4155 = vadd.f32 %v4087, %v4115
        %v4156 = vadd.f32 %v4088, %v4115
        %v4157 = vadd.f32 %v4089, %v4115
        %v4158 = vadd.f32 %v4090, %v4115
        %v4159 = vadd.f32 %v4091, %v4115
        %v4160 = vadd.f32 %v4092, %v4115
        %v4161 = vadd.f32 %v4093, %v4115
        %v4162 = vadd.f32 %v4094, %v4115
        %v4163 = vadd.f32 %v4095, %v4115
        %v4164 = vadd.f32 %v4096, %v4115
        %v4165 = vld [vmem:[%s4] sm:$0xff]
        %v4166 = vld [vmem:[%s4 + $0x8] sm:$0xff]
        %v4167 = vld [vmem:[%s4 + $0x10] sm:$0xff]
        %v4168 = vld [vmem:[%s4 + $0x18] sm:$0xff]
        %v4169 = vld [vmem:[%s4 + $0x20] sm:$0xff]
        %v4170 = vld [vmem:[%s4 + $0x28] sm:$0xff]
        %v4171 = vld [vmem:[%s4 + $0x30] sm:$0xff]
        %v4172 = vld [vmem:[%s4 + $0x38] sm:$0xff]
        %4174 = vset.pattern.permute.xlu0 0
        %4175 = vperm.xlu0 %4174, %v671
        %v4176 = vpop.permute.xlu0 %4175
        %4179 = vset.pattern.permute.xlu0 0
        %4180 = vperm.xlu0 %4179, %v672
        %v4181 = vpop.permute.xlu0 %4180
        %4184 = vset.pattern.permute.xlu0 0
        %4185 = vperm.xlu0 %4184, %v673
        %v4186 = vpop.permute.xlu0 %4185
        %4189 = vset.pattern.permute.xlu0 0
        %4190 = vperm.xlu0 %4189, %v674
        %v4191 = vpop.permute.xlu0 %4190
        %4194 = vset.pattern.permute.xlu0 0
        %4195 = vperm.xlu0 %4194, %v675
        %v4196 = vpop.permute.xlu0 %4195
        %4199 = vset.pattern.permute.xlu0 0
        %4200 = vperm.xlu0 %4199, %v676
        %v4201 = vpop.permute.xlu0 %4200
        %4204 = vset.pattern.permute.xlu0 0
        %4205 = vperm.xlu0 %4204, %v677
        %v4206 = vpop.permute.xlu0 %4205
        %4209 = vset.pattern.permute.xlu0 0
        %4210 = vperm.xlu0 %4209, %v678
        %v4211 = vpop.permute.xlu0 %4210
        %v4214 = vsel %vm756, %v4165, 0
        %v4217 = vsel %vm756, %v4166, 0
        %v4220 = vsel %vm756, %v4167, 0
        %v4223 = vsel %vm756, %v4168, 0
        %v4226 = vsel %vm756, %v4169, 0
        %v4229 = vsel %vm756, %v4170, 0
        %v4232 = vsel %vm756, %v4171, 0
        %v4235 = vsel %vm756, %v4172, 0
        %4237 = vmatprep.subr.mxu0 %v4118
        %4238 = vmatpush1.msra.mxu0 %v4117
        %4239 = vmatprep.subr.mxu0 %v4130
        %4240 = vmatpush1.msra.mxu0 %v4129
        %4241 = vmatprep.subr.mxu0 %v4142
        %4242 = vmatpush1.msra.mxu0 %v4141
        %4243 = vmatprep.subr.mxu0 %v4154
        %4244 = vmatpush1.msra.mxu0 %v4153
        %4245 = vmatprep.subr.mxu0 0.0
        %4246 = vmatpush1.msra.mxu0 0.0
        %4247 = vmatprep.subr.mxu0 0.0
        %4248 = vmatpush1.msra.mxu0 0.0
        %4249 = vmatprep.subr.mxu0 0.0
        %4250 = vmatpush1.msra.mxu0 0.0
        %4251 = vmatprep.subr.mxu0 0.0
        %4252 = vmatpush1.msra.mxu0 0.0
        %4253 = vmatprep.subr.mxu0 0.0
        %4254 = vmatpush1.msra.mxu0 0.0
        %4255 = vmatprep.subr.mxu0 0.0
        %4256 = vmatpush1.msra.mxu0 0.0
        %4257 = vmatprep.subr.mxu0 0.0
        %4258 = vmatpush1.msra.mxu0 0.0
        %4259 = vmatprep.subr.mxu0 0.0
        %4260 = vmatpush1.msra.mxu0 0.0
        %4261 = vmatprep.subr.mxu0 0.0
        %4262 = vmatpush1.msra.mxu0 0.0
        %4263 = vmatprep.subr.mxu0 0.0
        %4264 = vmatpush1.msra.mxu0 0.0
        %4265 = vmatprep.subr.mxu0 0.0
        %4266 = vmatpush1.msra.mxu0 0.0
        %4267 = vmatprep.subr.mxu0 0.0
        %4268 = vmatpush1.msra.mxu0 0.0
        %4269 = vmatprep.subr.mxu0 0.0
        %4270 = vmatpush1.msra.mxu0 0.0
        %4271 = vmatprep.subr.mxu0 0.0
        %4272 = vmatpush1.msra.mxu0 0.0
        %4273 = vmatprep.subr.mxu0 0.0
        %4274 = vmatpush1.msra.mxu0 0.0
        %4275 = vmatprep.subr.mxu0 0.0
        %4276 = vmatpush1.msra.mxu0 0.0
        %4277 = vmatprep.subr.mxu0 0.0
        %4278 = vmatpush1.msra.mxu0 0.0
        %4279 = vmatprep.subr.mxu0 0.0
        %4280 = vmatpush1.msra.mxu0 0.0
        %4281 = vmatprep.subr.mxu0 0.0
        %4282 = vmatpush1.msra.mxu0 0.0
        %4283 = vmatprep.subr.mxu0 0.0
        %4284 = vmatpush1.msra.mxu0 0.0
        %4285 = vmatprep.subr.mxu0 0.0
        %4286 = vmatpush1.msra.mxu0 0.0
        %4287 = vmatprep.subr.mxu0 0.0
        %4288 = vmatpush1.msra.mxu0 0.0
        %4289 = vmatprep.subr.mxu0 0.0
        %4290 = vmatpush1.msra.mxu0 0.0
        %4291 = vmatprep.subr.mxu0 0.0
        %4292 = vmatpush1.msra.mxu0 0.0
        %4293 = vmatprep.subr.mxu0 0.0
        %4294 = vmatpush1.msra.mxu0 0.0
        %4295 = vmatprep.subr.mxu0 0.0
        %4296 = vmatpush1.msra.mxu0 0.0
        %4297 = vmatprep.subr.mxu0 0.0
        %4298 = vmatpush1.msra.mxu0 0.0
        %4299 = vmatprep.subr.mxu0 0.0
        %4300 = vmatpush1.msra.mxu0 0.0
        %4301 = vmatprep.mubr.f32.mxu0 0.0
        %4302 = vmatmul.mubr.f32.gmra.mrb[0].mxu0 %v4214
        %v4303 = vpop.f32.mrb[0].mxu0
        %v4304 = vadd.f32 %v4176, %v4303
        %v4305 = vpop.f32.mrb[0].mxu0
        %v4306 = vadd.f32 %v4176, %v4305
        %4307 = vmatprep.mubr.f32.mxu0 0.0
        %4308 = vmatmul.mubr.f32.gmra.mrb[0].mxu0 %v4217
        %v4309 = vpop.f32.mrb[0].mxu0
        %v4310 = vadd.f32 %v4181, %v4309
        %v4311 = vpop.f32.mrb[0].mxu0
        %v4312 = vadd.f32 %v4181, %v4311
        %4313 = vmatprep.mubr.f32.mxu0 0.0
        %4314 = vmatmul.mubr.f32.gmra.mrb[0].mxu0 %v4220
        %v4315 = vpop.f32.mrb[0].mxu0
        %v4316 = vadd.f32 %v4186, %v4315
        %v4317 = vpop.f32.mrb[0].mxu0
        %v4318 = vadd.f32 %v4186, %v4317
        %4319 = vmatprep.mubr.f32.mxu0 0.0
        %4320 = vmatmul.mubr.f32.gmra.mrb[0].mxu0 %v4223
        %v4321 = vpop.f32.mrb[0].mxu0
        %v4322 = vadd.f32 %v4191, %v4321
        %v4323 = vpop.f32.mrb[0].mxu0
        %v4324 = vadd.f32 %v4191, %v4323
        %4325 = vmatprep.mubr.f32.mxu0 0.0
        %4326 = vmatmul.mubr.f32.gmra.mrb[0].mxu0 %v4226
        %v4327 = vpop.f32.mrb[0].mxu0
        %v4328 = vadd.f32 %v4196, %v4327
        %v4329 = vpop.f32.mrb[0].mxu0
        %v4330 = vadd.f32 %v4196, %v4329
        %4331 = vmatprep.mubr.f32.mxu0 0.0
        %4332 = vmatmul.mubr.f32.gmra.mrb[0].mxu0 %v4229
        %v4333 = vpop.f32.mrb[0].mxu0
        %v4334 = vadd.f32 %v4201, %v4333
        %v4335 = vpop.f32.mrb[0].mxu0
        %v4336 = vadd.f32 %v4201, %v4335
        %4337 = vmatprep.mubr.f32.mxu0 0.0
        %4338 = vmatmul.mubr.f32.gmra.mrb[0].mxu0 %v4232
        %v4339 = vpop.f32.mrb[0].mxu0
        %v4340 = vadd.f32 %v4206, %v4339
        %v4341 = vpop.f32.mrb[0].mxu0
        %v4342 = vadd.f32 %v4206, %v4341
        %4343 = vmatprep.mubr.f32.mxu0 0.0
        %4344 = vmatmul.mubr.f32.gmra.mrb[0].mxu0 %v4235
        %v4345 = vpop.f32.mrb[0].mxu0
        %v4346 = vadd.f32 %v4211, %v4345
        %v4347 = vpop.f32.mrb[0].mxu0
        %v4348 = vadd.f32 %v4211, %v4347
        %4349 = vdwg.mxu0
        %4350 = vmatprep.subr.mxu0 %v4120
        %4351 = vmatpush1.msra.mxu0 %v4119
        %4352 = vmatprep.subr.mxu0 %v4132
        %4353 = vmatpush1.msra.mxu0 %v4131
        %4354 = vmatprep.subr.mxu0 %v4144
        %4355 = vmatpush1.msra.mxu0 %v4143
        %4356 = vmatprep.subr.mxu0 %v4156
        %4357 = vmatpush1.msra.mxu0 %v4155
        %4358 = vmatprep.subr.mxu0 0.0
        %4359 = vmatpush1.msra.mxu0 0.0
        %4360 = vmatprep.subr.mxu0 0.0
        %4361 = vmatpush1.msra.mxu0 0.0
        %4362 = vmatprep.subr.mxu0 0.0
        %4363 = vmatpush1.msra.mxu0 0.0
        %4364 = vmatprep.subr.mxu0 0.0
        %4365 = vmatpush1.msra.mxu0 0.0
        %4366 = vmatprep.subr.mxu0 0.0
        %4367 = vmatpush1.msra.mxu0 0.0
        %4368 = vmatprep.subr.mxu0 0.0
        %4369 = vmatpush1.msra.mxu0 0.0
        %4370 = vmatprep.subr.mxu0 0.0
        %4371 = vmatpush1.msra.mxu0 0.0
        %4372 = vmatprep.subr.mxu0 0.0
        %4373 = vmatpush1.msra.mxu0 0.0
        %4374 = vmatprep.subr.mxu0 0.0
        %4375 = vmatpush1.msra.mxu0 0.0
        %4376 = vmatprep.subr.mxu0 0.0
        %4377 = vmatpush1.msra.mxu0 0.0
        %4378 = vmatprep.subr.mxu0 0.0
        %4379 = vmatpush1.msra.mxu0 0.0
        %4380 = vmatprep.subr.mxu0 0.0
        %4381 = vmatpush1.msra.mxu0 0.0
        %4382 = vmatprep.subr.mxu0 0.0
        %4383 = vmatpush1.msra.mxu0 0.0
        %4384 = vmatprep.subr.mxu0 0.0
        %4385 = vmatpush1.msra.mxu0 0.0
        %4386 = vmatprep.subr.mxu0 0.0
        %4387 = vmatpush1.msra.mxu0 0.0
        %4388 = vmatprep.subr.mxu0 0.0
        %4389 = vmatpush1.msra.mxu0 0.0
        %4390 = vmatprep.subr.mxu0 0.0
        %4391 = vmatpush1.msra.mxu0 0.0
        %4392 = vmatprep.subr.mxu0 0.0
        %4393 = vmatpush1.msra.mxu0 0.0
        %4394 = vmatprep.subr.mxu0 0.0
        %4395 = vmatpush1.msra.mxu0 0.0
        %4396 = vmatprep.subr.mxu0 0.0
        %4397 = vmatpush1.msra.mxu0 0.0
        %4398 = vmatprep.subr.mxu0 0.0
        %4399 = vmatpush1.msra.mxu0 0.0
        %4400 = vmatprep.subr.mxu0 0.0
        %4401 = vmatpush1.msra.mxu0 0.0
        %4402 = vmatprep.subr.mxu0 0.0
        %4403 = vmatpush1.msra.mxu0 0.0
        %4404 = vmatprep.subr.mxu0 0.0
        %4405 = vmatpush1.msra.mxu0 0.0
        %4406 = vmatprep.subr.mxu0 0.0
        %4407 = vmatpush1.msra.mxu0 0.0
        %4408 = vmatprep.subr.mxu0 0.0
        %4409 = vmatpush1.msra.mxu0 0.0
        %4410 = vmatprep.subr.mxu0 0.0
        %4411 = vmatpush1.msra.mxu0 0.0
        %4412 = vmatprep.subr.mxu0 0.0
        %4413 = vmatpush1.msra.mxu0 0.0
        %4414 = vmatprep.mubr.f32.mxu0 0.0
        %4415 = vmatmul.mubr.f32.gmra.mrb[0].mxu0 %v4214
        %v4416 = vpop.f32.mrb[0].mxu0
        %v4417 = vadd.f32 %v4176, %v4416
        %v4418 = vpop.f32.mrb[0].mxu0
        %v4419 = vadd.f32 %v4176, %v4418
        %4420 = vmatprep.mubr.f32.mxu0 0.0
        %4421 = vmatmul.mubr.f32.gmra.mrb[0].mxu0 %v4217
        %v4422 = vpop.f32.mrb[0].mxu0
        %v4423 = vadd.f32 %v4181, %v4422
        %v4424 = vpop.f32.mrb[0].mxu0
        %v4425 = vadd.f32 %v4181, %v4424
        %4426 = vmatprep.mubr.f32.mxu0 0.0
        %4427 = vmatmul.mubr.f32.gmra.mrb[0].mxu0 %v4220
        %v4428 = vpop.f32.mrb[0].mxu0
        %v4429 = vadd.f32 %v4186, %v4428
        %v4430 = vpop.f32.mrb[0].mxu0
        %v4431 = vadd.f32 %v4186, %v4430
        %4432 = vmatprep.mubr.f32.mxu0 0.0
        %4433 = vmatmul.mubr.f32.gmra.mrb[0].mxu0 %v4223
        %v4434 = vpop.f32.mrb[0].mxu0
        %v4435 = vadd.f32 %v4191, %v4434
        %v4436 = vpop.f32.mrb[0].mxu0
        %v4437 = vadd.f32 %v4191, %v4436
        %4438 = vmatprep.mubr.f32.mxu0 0.0
        %4439 = vmatmul.mubr.f32.gmra.mrb[0].mxu0 %v4226
        %v4440 = vpop.f32.mrb[0].mxu0
        %v4441 = vadd.f32 %v4196, %v4440
        %v4442 = vpop.f32.mrb[0].mxu0
        %v4443 = vadd.f32 %v4196, %v4442
        %4444 = vmatprep.mubr.f32.mxu0 0.0
        %4445 = vmatmul.mubr.f32.gmra.mrb[0].mxu0 %v4229
        %v4446 = vpop.f32.mrb[0].mxu0
        %v4447 = vadd.f32 %v4201, %v4446
        %v4448 = vpop.f32.mrb[0].mxu0
        %v4449 = vadd.f32 %v4201, %v4448
        %4450 = vmatprep.mubr.f32.mxu0 0.0
        %4451 = vmatmul.mubr.f32.gmra.mrb[0].mxu0 %v4232
        %v4452 = vpop.f32.mrb[0].mxu0
        %v4453 = vadd.f32 %v4206, %v4452
        %v4454 = vpop.f32.mrb[0].mxu0
        %v4455 = vadd.f32 %v4206, %v4454
        %4456 = vmatprep.mubr.f32.mxu0 0.0
        %4457 = vmatmul.mubr.f32.gmra.mrb[0].mxu0 %v4235
        %v4458 = vpop.f32.mrb[0].mxu0
        %v4459 = vadd.f32 %v4211, %v4458
        %v4460 = vpop.f32.mrb[0].mxu0
        %v4461 = vadd.f32 %v4211, %v4460
        %4462 = vdwg.mxu0
        %4463 = vmatprep.subr.mxu0 %v4122
        %4464 = vmatpush1.msra.mxu0 %v4121
        %4465 = vmatprep.subr.mxu0 %v4134
        %4466 = vmatpush1.msra.mxu0 %v4133
        %4467 = vmatprep.subr.mxu0 %v4146
        %4468 = vmatpush1.msra.mxu0 %v4145
        %4469 = vmatprep.subr.mxu0 %v4158
        %4470 = vmatpush1.msra.mxu0 %v4157
        %4471 = vmatprep.subr.mxu0 0.0
        %4472 = vmatpush1.msra.mxu0 0.0
        %4473 = vmatprep.subr.mxu0 0.0
        %4474 = vmatpush1.msra.mxu0 0.0
        %4475 = vmatprep.subr.mxu0 0.0
        %4476 = vmatpush1.msra.mxu0 0.0
        %4477 = vmatprep.subr.mxu0 0.0
        %4478 = vmatpush1.msra.mxu0 0.0
        %4479 = vmatprep.subr.mxu0 0.0
        %4480 = vmatpush1.msra.mxu0 0.0
        %4481 = vmatprep.subr.mxu0 0.0
        %4482 = vmatpush1.msra.mxu0 0.0
        %4483 = vmatprep.subr.mxu0 0.0
        %4484 = vmatpush1.msra.mxu0 0.0
        %4485 = vmatprep.subr.mxu0 0.0
        %4486 = vmatpush1.msra.mxu0 0.0
        %4487 = vmatprep.subr.mxu0 0.0
        %4488 = vmatpush1.msra.mxu0 0.0
        %4489 = vmatprep.subr.mxu0 0.0
        %4490 = vmatpush1.msra.mxu0 0.0
        %4491 = vmatprep.subr.mxu0 0.0
        %4492 = vmatpush1.msra.mxu0 0.0
        %4493 = vmatprep.subr.mxu0 0.0
        %4494 = vmatpush1.msra.mxu0 0.0
        %4495 = vmatprep.subr.mxu0 0.0
        %4496 = vmatpush1.msra.mxu0 0.0
        %4497 = vmatprep.subr.mxu0 0.0
        %4498 = vmatpush1.msra.mxu0 0.0
        %4499 = vmatprep.subr.mxu0 0.0
        %4500 = vmatpush1.msra.mxu0 0.0
        %4501 = vmatprep.subr.mxu0 0.0
        %4502 = vmatpush1.msra.mxu0 0.0
        %4503 = vmatprep.subr.mxu0 0.0
        %4504 = vmatpush1.msra.mxu0 0.0
        %4505 = vmatprep.subr.mxu0 0.0
        %4506 = vmatpush1.msra.mxu0 0.0
        %4507 = vmatprep.subr.mxu0 0.0
        %4508 = vmatpush1.msra.mxu0 0.0
        %4509 = vmatprep.subr.mxu0 0.0
        %4510 = vmatpush1.msra.mxu0 0.0
        %4511 = vmatprep.subr.mxu0 0.0
        %4512 = vmatpush1.msra.mxu0 0.0
        %4513 = vmatprep.subr.mxu0 0.0
        %4514 = vmatpush1.msra.mxu0 0.0
        %4515 = vmatprep.subr.mxu0 0.0
        %4516 = vmatpush1.msra.mxu0 0.0
        %4517 = vmatprep.subr.mxu0 0.0
        %4518 = vmatpush1.msra.mxu0 0.0
        %4519 = vmatprep.subr.mxu0 0.0
        %4520 = vmatpush1.msra.mxu0 0.0
        %4521 = vmatprep.subr.mxu0 0.0
        %4522 = vmatpush1.msra.mxu0 0.0
        %4523 = vmatprep.subr.mxu0 0.0
        %4524 = vmatpush1.msra.mxu0 0.0
        %4525 = vmatprep.subr.mxu0 0.0
        %4526 = vmatpush1.msra.mxu0 0.0
        %4527 = vmatprep.mubr.f32.mxu0 0.0
        %4528 = vmatmul.mubr.f32.gmra.mrb[0].mxu0 %v4214
        %v4529 = vpop.f32.mrb[0].mxu0
        %v4530 = vadd.f32 %v4176, %v4529
        %v4531 = vpop.f32.mrb[0].mxu0
        %v4532 = vadd.f32 %v4176, %v4531
        %4533 = vmatprep.mubr.f32.mxu0 0.0
        %4534 = vmatmul.mubr.f32.gmra.mrb[0].mxu0 %v4217
        %v4535 = vpop.f32.mrb[0].mxu0
        %v4536 = vadd.f32 %v4181, %v4535
        %v4537 = vpop.f32.mrb[0].mxu0
        %v4538 = vadd.f32 %v4181, %v4537
        %4539 = vmatprep.mubr.f32.mxu0 0.0
        %4540 = vmatmul.mubr.f32.gmra.mrb[0].mxu0 %v4220
        %v4541 = vpop.f32.mrb[0].mxu0
        %v4542 = vadd.f32 %v4186, %v4541
        %v4543 = vpop.f32.mrb[0].mxu0
        %v4544 = vadd.f32 %v4186, %v4543
        %4545 = vmatprep.mubr.f32.mxu0 0.0
        %4546 = vmatmul.mubr.f32.gmra.mrb[0].mxu0 %v4223
        %v4547 = vpop.f32.mrb[0].mxu0
        %v4548 = vadd.f32 %v4191, %v4547
        %v4549 = vpop.f32.mrb[0].mxu0
        %v4550 = vadd.f32 %v4191, %v4549
        %4551 = vmatprep.mubr.f32.mxu0 0.0
        %4552 = vmatmul.mubr.f32.gmra.mrb[0].mxu0 %v4226
        %v4553 = vpop.f32.mrb[0].mxu0
        %v4554 = vadd.f32 %v4196, %v4553
        %v4555 = vpop.f32.mrb[0].mxu0
        %v4556 = vadd.f32 %v4196, %v4555
        %4557 = vmatprep.mubr.f32.mxu0 0.0
        %4558 = vmatmul.mubr.f32.gmra.mrb[0].mxu0 %v4229
        %v4559 = vpop.f32.mrb[0].mxu0
        %v4560 = vadd.f32 %v4201, %v4559
        %v4561 = vpop.f32.mrb[0].mxu0
        %v4562 = vadd.f32 %v4201, %v4561
        %4563 = vmatprep.mubr.f32.mxu0 0.0
        %4564 = vmatmul.mubr.f32.gmra.mrb[0].mxu0 %v4232
        %v4565 = vpop.f32.mrb[0].mxu0
        %v4566 = vadd.f32 %v4206, %v4565
        %v4567 = vpop.f32.mrb[0].mxu0
        %v4568 = vadd.f32 %v4206, %v4567
        %4569 = vmatprep.mubr.f32.mxu0 0.0
        %4570 = vmatmul.mubr.f32.gmra.mrb[0].mxu0 %v4235
        %v4571 = vpop.f32.mrb[0].mxu0
        %v4572 = vadd.f32 %v4211, %v4571
        %v4573 = vpop.f32.mrb[0].mxu0
        %v4574 = vadd.f32 %v4211, %v4573
        %4575 = vdwg.mxu0
        %4576 = vmatprep.subr.mxu0 %v4124
        %4577 = vmatpush1.msra.mxu0 %v4123
        %4578 = vmatprep.subr.mxu0 %v4136
        %4579 = vmatpush1.msra.mxu0 %v4135
        %4580 = vmatprep.subr.mxu0 %v4148
        %4581 = vmatpush1.msra.mxu0 %v4147
        %4582 = vmatprep.subr.mxu0 %v4160
        %4583 = vmatpush1.msra.mxu0 %v4159
        %4584 = vmatprep.subr.mxu0 0.0
        %4585 = vmatpush1.msra.mxu0 0.0
        %4586 = vmatprep.subr.mxu0 0.0
        %4587 = vmatpush1.msra.mxu0 0.0
        %4588 = vmatprep.subr.mxu0 0.0
        %4589 = vmatpush1.msra.mxu0 0.0
        %4590 = vmatprep.subr.mxu0 0.0
        %4591 = vmatpush1.msra.mxu0 0.0
        %4592 = vmatprep.subr.mxu0 0.0
        %4593 = vmatpush1.msra.mxu0 0.0
        %4594 = vmatprep.subr.mxu0 0.0
        %4595 = vmatpush1.msra.mxu0 0.0
        %4596 = vmatprep.subr.mxu0 0.0
        %4597 = vmatpush1.msra.mxu0 0.0
        %4598 = vmatprep.subr.mxu0 0.0
        %4599 = vmatpush1.msra.mxu0 0.0
        %4600 = vmatprep.subr.mxu0 0.0
        %4601 = vmatpush1.msra.mxu0 0.0
        %4602 = vmatprep.subr.mxu0 0.0
        %4603 = vmatpush1.msra.mxu0 0.0
        %4604 = vmatprep.subr.mxu0 0.0
        %4605 = vmatpush1.msra.mxu0 0.0
        %4606 = vmatprep.subr.mxu0 0.0
        %4607 = vmatpush1.msra.mxu0 0.0
        %4608 = vmatprep.subr.mxu0 0.0
        %4609 = vmatpush1.msra.mxu0 0.0
        %4610 = vmatprep.subr.mxu0 0.0
        %4611 = vmatpush1.msra.mxu0 0.0
        %4612 = vmatprep.subr.mxu0 0.0
        %4613 = vmatpush1.msra.mxu0 0.0
        %4614 = vmatprep.subr.mxu0 0.0
        %4615 = vmatpush1.msra.mxu0 0.0
        %4616 = vmatprep.subr.mxu0 0.0
        %4617 = vmatpush1.msra.mxu0 0.0
        %4618 = vmatprep.subr.mxu0 0.0
        %4619 = vmatpush1.msra.mxu0 0.0
        %4620 = vmatprep.subr.mxu0 0.0
        %4621 = vmatpush1.msra.mxu0 0.0
        %4622 = vmatprep.subr.mxu0 0.0
        %4623 = vmatpush1.msra.mxu0 0.0
        %4624 = vmatprep.subr.mxu0 0.0
        %4625 = vmatpush1.msra.mxu0 0.0
        %4626 = vmatprep.subr.mxu0 0.0
        %4627 = vmatpush1.msra.mxu0 0.0
        %4628 = vmatprep.subr.mxu0 0.0
        %4629 = vmatpush1.msra.mxu0 0.0
        %4630 = vmatprep.subr.mxu0 0.0
        %4631 = vmatpush1.msra.mxu0 0.0
        %4632 = vmatprep.subr.mxu0 0.0
        %4633 = vmatpush1.msra.mxu0 0.0
        %4634 = vmatprep.subr.mxu0 0.0
        %4635 = vmatpush1.msra.mxu0 0.0
        %4636 = vmatprep.subr.mxu0 0.0
        %4637 = vmatpush1.msra.mxu0 0.0
        %4638 = vmatprep.subr.mxu0 0.0
        %4639 = vmatpush1.msra.mxu0 0.0
        %4640 = vmatprep.mubr.f32.mxu0 0.0
        %4641 = vmatmul.mubr.f32.gmra.mrb[0].mxu0 %v4214
        %v4642 = vpop.f32.mrb[0].mxu0
        %v4643 = vadd.f32 %v4176, %v4642
        %v4644 = vpop.f32.mrb[0].mxu0
        %v4645 = vadd.f32 %v4176, %v4644
        %4646 = vmatprep.mubr.f32.mxu0 0.0
        %4647 = vmatmul.mubr.f32.gmra.mrb[0].mxu0 %v4217
        %v4648 = vpop.f32.mrb[0].mxu0
        %v4649 = vadd.f32 %v4181, %v4648
        %v4650 = vpop.f32.mrb[0].mxu0
        %v4651 = vadd.f32 %v4181, %v4650
        %4652 = vmatprep.mubr.f32.mxu0 0.0
        %4653 = vmatmul.mubr.f32.gmra.mrb[0].mxu0 %v4220
        %v4654 = vpop.f32.mrb[0].mxu0
        %v4655 = vadd.f32 %v4186, %v4654
        %v4656 = vpop.f32.mrb[0].mxu0
        %v4657 = vadd.f32 %v4186, %v4656
        %4658 = vmatprep.mubr.f32.mxu0 0.0
        %4659 = vmatmul.mubr.f32.gmra.mrb[0].mxu0 %v4223
        %v4660 = vpop.f32.mrb[0].mxu0
        %v4661 = vadd.f32 %v4191, %v4660
        %v4662 = vpop.f32.mrb[0].mxu0
        %v4663 = vadd.f32 %v4191, %v4662
        %4664 = vmatprep.mubr.f32.mxu0 0.0
        %4665 = vmatmul.mubr.f32.gmra.mrb[0].mxu0 %v4226
        %v4666 = vpop.f32.mrb[0].mxu0
        %v4667 = vadd.f32 %v4196, %v4666
        %v4668 = vpop.f32.mrb[0].mxu0
        %v4669 = vadd.f32 %v4196, %v4668
        %4670 = vmatprep.mubr.f32.mxu0 0.0
        %4671 = vmatmul.mubr.f32.gmra.mrb[0].mxu0 %v4229
        %v4672 = vpop.f32.mrb[0].mxu0
        %v4673 = vadd.f32 %v4201, %v4672
        %v4674 = vpop.f32.mrb[0].mxu0
        %v4675 = vadd.f32 %v4201, %v4674
        %4676 = vmatprep.mubr.f32.mxu0 0.0
        %4677 = vmatmul.mubr.f32.gmra.mrb[0].mxu0 %v4232
        %v4678 = vpop.f32.mrb[0].mxu0
        %v4679 = vadd.f32 %v4206, %v4678
        %v4680 = vpop.f32.mrb[0].mxu0
        %v4681 = vadd.f32 %v4206, %v4680
        %4682 = vmatprep.mubr.f32.mxu0 0.0
        %4683 = vmatmul.mubr.f32.gmra.mrb[0].mxu0 %v4235
        %v4684 = vpop.f32.mrb[0].mxu0
        %v4685 = vadd.f32 %v4211, %v4684
        %v4686 = vpop.f32.mrb[0].mxu0
        %v4687 = vadd.f32 %v4211, %v4686
        %4688 = vdwg.mxu0
        %4689 = vmatprep.subr.mxu0 %v4126
        %4690 = vmatpush1.msra.mxu0 %v4125
        %4691 = vmatprep.subr.mxu0 %v4138
        %4692 = vmatpush1.msra.mxu0 %v4137
        %4693 = vmatprep.subr.mxu0 %v4150
        %4694 = vmatpush1.msra.mxu0 %v4149
        %4695 = vmatprep.subr.mxu0 %v4162
        %4696 = vmatpush1.msra.mxu0 %v4161
        %4697 = vmatprep.subr.mxu0 0.0
        %4698 = vmatpush1.msra.mxu0 0.0
        %4699 = vmatprep.subr.mxu0 0.0
        %4700 = vmatpush1.msra.mxu0 0.0
        %4701 = vmatprep.subr.mxu0 0.0
        %4702 = vmatpush1.msra.mxu0 0.0
        %4703 = vmatprep.subr.mxu0 0.0
        %4704 = vmatpush1.msra.mxu0 0.0
        %4705 = vmatprep.subr.mxu0 0.0
        %4706 = vmatpush1.msra.mxu0 0.0
        %4707 = vmatprep.subr.mxu0 0.0
        %4708 = vmatpush1.msra.mxu0 0.0
        %4709 = vmatprep.subr.mxu0 0.0
        %4710 = vmatpush1.msra.mxu0 0.0
        %4711 = vmatprep.subr.mxu0 0.0
        %4712 = vmatpush1.msra.mxu0 0.0
        %4713 = vmatprep.subr.mxu0 0.0
        %4714 = vmatpush1.msra.mxu0 0.0
        %4715 = vmatprep.subr.mxu0 0.0
        %4716 = vmatpush1.msra.mxu0 0.0
        %4717 = vmatprep.subr.mxu0 0.0
        %4718 = vmatpush1.msra.mxu0 0.0
        %4719 = vmatprep.subr.mxu0 0.0
        %4720 = vmatpush1.msra.mxu0 0.0
        %4721 = vmatprep.subr.mxu0 0.0
        %4722 = vmatpush1.msra.mxu0 0.0
        %4723 = vmatprep.subr.mxu0 0.0
        %4724 = vmatpush1.msra.mxu0 0.0
        %4725 = vmatprep.subr.mxu0 0.0
        %4726 = vmatpush1.msra.mxu0 0.0
        %4727 = vmatprep.subr.mxu0 0.0
        %4728 = vmatpush1.msra.mxu0 0.0
        %4729 = vmatprep.subr.mxu0 0.0
        %4730 = vmatpush1.msra.mxu0 0.0
        %4731 = vmatprep.subr.mxu0 0.0
        %4732 = vmatpush1.msra.mxu0 0.0
        %4733 = vmatprep.subr.mxu0 0.0
        %4734 = vmatpush1.msra.mxu0 0.0
        %4735 = vmatprep.subr.mxu0 0.0
        %4736 = vmatpush1.msra.mxu0 0.0
        %4737 = vmatprep.subr.mxu0 0.0
        %4738 = vmatpush1.msra.mxu0 0.0
        %4739 = vmatprep.subr.mxu0 0.0
        %4740 = vmatpush1.msra.mxu0 0.0
        %4741 = vmatprep.subr.mxu0 0.0
        %4742 = vmatpush1.msra.mxu0 0.0
        %4743 = vmatprep.subr.mxu0 0.0
        %4744 = vmatpush1.msra.mxu0 0.0
        %4745 = vmatprep.subr.mxu0 0.0
        %4746 = vmatpush1.msra.mxu0 0.0
        %4747 = vmatprep.subr.mxu0 0.0
        %4748 = vmatpush1.msra.mxu0 0.0
        %4749 = vmatprep.subr.mxu0 0.0
        %4750 = vmatpush1.msra.mxu0 0.0
        %4751 = vmatprep.subr.mxu0 0.0
        %4752 = vmatpush1.msra.mxu0 0.0
        %4753 = vmatprep.mubr.f32.mxu0 0.0
        %4754 = vmatmul.mubr.f32.gmra.mrb[0].mxu0 %v4214
        %v4755 = vpop.f32.mrb[0].mxu0
        %v4756 = vadd.f32 %v4176, %v4755
        %v4757 = vpop.f32.mrb[0].mxu0
        %v4758 = vadd.f32 %v4176, %v4757
        %4759 = vmatprep.mubr.f32.mxu0 0.0
        %4760 = vmatmul.mubr.f32.gmra.mrb[0].mxu0 %v4217
        %v4761 = vpop.f32.mrb[0].mxu0
        %v4762 = vadd.f32 %v4181, %v4761
        %v4763 = vpop.f32.mrb[0].mxu0
        %v4764 = vadd.f32 %v4181, %v4763
        %4765 = vmatprep.mubr.f32.mxu0 0.0
        %4766 = vmatmul.mubr.f32.gmra.mrb[0].mxu0 %v4220
        %v4767 = vpop.f32.mrb[0].mxu0
        %v4768 = vadd.f32 %v4186, %v4767
        %v4769 = vpop.f32.mrb[0].mxu0
        %v4770 = vadd.f32 %v4186, %v4769
        %4771 = vmatprep.mubr.f32.mxu0 0.0
        %4772 = vmatmul.mubr.f32.gmra.mrb[0].mxu0 %v4223
        %v4773 = vpop.f32.mrb[0].mxu0
        %v4774 = vadd.f32 %v4191, %v4773
        %v4775 = vpop.f32.mrb[0].mxu0
        %v4776 = vadd.f32 %v4191, %v4775
        %4777 = vmatprep.mubr.f32.mxu0 0.0
        %4778 = vmatmul.mubr.f32.gmra.mrb[0].mxu0 %v4226
        %v4779 = vpop.f32.mrb[0].mxu0
        %v4780 = vadd.f32 %v4196, %v4779
        %v4781 = vpop.f32.mrb[0].mxu0
        %v4782 = vadd.f32 %v4196, %v4781
        %4783 = vmatprep.mubr.f32.mxu0 0.0
        %4784 = vmatmul.mubr.f32.gmra.mrb[0].mxu0 %v4229
        %v4785 = vpop.f32.mrb[0].mxu0
        %v4786 = vadd.f32 %v4201, %v4785
        %v4787 = vpop.f32.mrb[0].mxu0
        %v4788 = vadd.f32 %v4201, %v4787
        %4789 = vmatprep.mubr.f32.mxu0 0.0
        %4790 = vmatmul.mubr.f32.gmra.mrb[0].mxu0 %v4232
        %v4791 = vpop.f32.mrb[0].mxu0
        %v4792 = vadd.f32 %v4206, %v4791
        %v4793 = vpop.f32.mrb[0].mxu0
        %v4794 = vadd.f32 %v4206, %v4793
        %4795 = vmatprep.mubr.f32.mxu0 0.0
        %4796 = vmatmul.mubr.f32.gmra.mrb[0].mxu0 %v4235
        %v4797 = vpop.f32.mrb[0].mxu0
        %v4798 = vadd.f32 %v4211, %v4797
        %v4799 = vpop.f32.mrb[0].mxu0
        %v4800 = vadd.f32 %v4211, %v4799
        %4801 = vdwg.mxu0
        %4802 = vmatprep.subr.mxu0 %v4128
        %4803 = vmatpush1.msra.mxu0 %v4127
        %4804 = vmatprep.subr.mxu0 %v4140
        %4805 = vmatpush1.msra.mxu0 %v4139
        %4806 = vmatprep.subr.mxu0 %v4152
        %4807 = vmatpush1.msra.mxu0 %v4151
        %4808 = vmatprep.subr.mxu0 %v4164
        %4809 = vmatpush1.msra.mxu0 %v4163
        %4810 = vmatprep.subr.mxu0 0.0
        %4811 = vmatpush1.msra.mxu0 0.0
        %4812 = vmatprep.subr.mxu0 0.0
        %4813 = vmatpush1.msra.mxu0 0.0
        %4814 = vmatprep.subr.mxu0 0.0
        %4815 = vmatpush1.msra.mxu0 0.0
        %4816 = vmatprep.subr.mxu0 0.0
        %4817 = vmatpush1.msra.mxu0 0.0
        %4818 = vmatprep.subr.mxu0 0.0
        %4819 = vmatpush1.msra.mxu0 0.0
        %4820 = vmatprep.subr.mxu0 0.0
        %4821 = vmatpush1.msra.mxu0 0.0
        %4822 = vmatprep.subr.mxu0 0.0
        %4823 = vmatpush1.msra.mxu0 0.0
        %4824 = vmatprep.subr.mxu0 0.0
        %4825 = vmatpush1.msra.mxu0 0.0
        %4826 = vmatprep.subr.mxu0 0.0
        %4827 = vmatpush1.msra.mxu0 0.0
        %4828 = vmatprep.subr.mxu0 0.0
        %4829 = vmatpush1.msra.mxu0 0.0
        %4830 = vmatprep.subr.mxu0 0.0
        %4831 = vmatpush1.msra.mxu0 0.0
        %4832 = vmatprep.subr.mxu0 0.0
        %4833 = vmatpush1.msra.mxu0 0.0
        %4834 = vmatprep.subr.mxu0 0.0
        %4835 = vmatpush1.msra.mxu0 0.0
        %4836 = vmatprep.subr.mxu0 0.0
        %4837 = vmatpush1.msra.mxu0 0.0
        %4838 = vmatprep.subr.mxu0 0.0
        %4839 = vmatpush1.msra.mxu0 0.0
        %4840 = vmatprep.subr.mxu0 0.0
        %4841 = vmatpush1.msra.mxu0 0.0
        %4842 = vmatprep.subr.mxu0 0.0
        %4843 = vmatpush1.msra.mxu0 0.0
        %4844 = vmatprep.subr.mxu0 0.0
        %4845 = vmatpush1.msra.mxu0 0.0
        %4846 = vmatprep.subr.mxu0 0.0
        %4847 = vmatpush1.msra.mxu0 0.0
        %4848 = vmatprep.subr.mxu0 0.0
        %4849 = vmatpush1.msra.mxu0 0.0
        %4850 = vmatprep.subr.mxu0 0.0
        %4851 = vmatpush1.msra.mxu0 0.0
        %4852 = vmatprep.subr.mxu0 0.0
        %4853 = vmatpush1.msra.mxu0 0.0
        %4854 = vmatprep.subr.mxu0 0.0
        %4855 = vmatpush1.msra.mxu0 0.0
        %4856 = vmatprep.subr.mxu0 0.0
        %4857 = vmatpush1.msra.mxu0 0.0
        %4858 = vmatprep.subr.mxu0 0.0
        %4859 = vmatpush1.msra.mxu0 0.0
        %4860 = vmatprep.subr.mxu0 0.0
        %4861 = vmatpush1.msra.mxu0 0.0
        %4862 = vmatprep.subr.mxu0 0.0
        %4863 = vmatpush1.msra.mxu0 0.0
        %4864 = vmatprep.subr.mxu0 0.0
        %4865 = vmatpush1.msra.mxu0 0.0
        %4866 = vmatprep.mubr.f32.mxu0 0.0
        %4867 = vmatmul.mubr.f32.gmra.mrb[0].mxu0 %v4214
        %v4868 = vpop.f32.mrb[0].mxu0
        %v4869 = vadd.f32 %v4176, %v4868
        %v4870 = vpop.f32.mrb[0].mxu0
        %v4871 = vadd.f32 %v4176, %v4870
        %4872 = vmatprep.mubr.f32.mxu0 0.0
        %4873 = vmatmul.mubr.f32.gmra.mrb[0].mxu0 %v4217
        %v4874 = vpop.f32.mrb[0].mxu0
        %v4875 = vadd.f32 %v4181, %v4874
        %v4876 = vpop.f32.mrb[0].mxu0
        %v4877 = vadd.f32 %v4181, %v4876
        %4878 = vmatprep.mubr.f32.mxu0 0.0
        %4879 = vmatmul.mubr.f32.gmra.mrb[0].mxu0 %v4220
        %v4880 = vpop.f32.mrb[0].mxu0
        %v4881 = vadd.f32 %v4186, %v4880
        %v4882 = vpop.f32.mrb[0].mxu0
        %v4883 = vadd.f32 %v4186, %v4882
        %4884 = vmatprep.mubr.f32.mxu0 0.0
        %4885 = vmatmul.mubr.f32.gmra.mrb[0].mxu0 %v4223
        %v4886 = vpop.f32.mrb[0].mxu0
        %v4887 = vadd.f32 %v4191, %v4886
        %v4888 = vpop.f32.mrb[0].mxu0
        %v4889 = vadd.f32 %v4191, %v4888
        %4890 = vmatprep.mubr.f32.mxu0 0.0
        %4891 = vmatmul.mubr.f32.gmra.mrb[0].mxu0 %v4226
        %v4892 = vpop.f32.mrb[0].mxu0
        %v4893 = vadd.f32 %v4196, %v4892
        %v4894 = vpop.f32.mrb[0].mxu0
        %v4895 = vadd.f32 %v4196, %v4894
        %4896 = vmatprep.mubr.f32.mxu0 0.0
        %4897 = vmatmul.mubr.f32.gmra.mrb[0].mxu0 %v4229
        %v4898 = vpop.f32.mrb[0].mxu0
        %v4899 = vadd.f32 %v4201, %v4898
        %v4900 = vpop.f32.mrb[0].mxu0
        %v4901 = vadd.f32 %v4201, %v4900
        %4902 = vmatprep.mubr.f32.mxu0 0.0
        %4903 = vmatmul.mubr.f32.gmra.mrb[0].mxu0 %v4232
        %v4904 = vpop.f32.mrb[0].mxu0
        %v4905 = vadd.f32 %v4206, %v4904
        %v4906 = vpop.f32.mrb[0].mxu0
        %v4907 = vadd.f32 %v4206, %v4906
        %4908 = vmatprep.mubr.f32.mxu0 0.0
        %4909 = vmatmul.mubr.f32.gmra.mrb[0].mxu0 %v4235
        %v4910 = vpop.f32.mrb[0].mxu0
        %v4911 = vadd.f32 %v4211, %v4910
        %v4912 = vpop.f32.mrb[0].mxu0
        %v4913 = vadd.f32 %v4211, %v4912
        %4914 = vdwg.mxu0
        %v4915 = vmax.f32 %v4304, 0.0
        %v4916 = vmax.f32 %v4306, 0.0
        %v4917 = vmax.f32 %v4417, 0.0
        %v4918 = vmax.f32 %v4419, 0.0
        %v4919 = vmax.f32 %v4530, 0.0
        %v4920 = vmax.f32 %v4532, 0.0
        %v4921 = vmax.f32 %v4643, 0.0
        %v4922 = vmax.f32 %v4645, 0.0
        %v4923 = vmax.f32 %v4756, 0.0
        %v4924 = vmax.f32 %v4758, 0.0
        %v4925 = vmax.f32 %v4869, 0.0
        %v4926 = vmax.f32 %v4871, 0.0
        %v4927 = vmax.f32 %v4310, 0.0
        %v4928 = vmax.f32 %v4312, 0.0
        %v4929 = vmax.f32 %v4423, 0.0
        %v4930 = vmax.f32 %v4425, 0.0
        %v4931 = vmax.f32 %v4536, 0.0
        %v4932 = vmax.f32 %v4538, 0.0
        %v4933 = vmax.f32 %v4649, 0.0
        %v4934 = vmax.f32 %v4651, 0.0
        %v4935 = vmax.f32 %v4762, 0.0
        %v4936 = vmax.f32 %v4764, 0.0
        %v4937 = vmax.f32 %v4875, 0.0
        %v4938 = vmax.f32 %v4877, 0.0
        %v4939 = vmax.f32 %v4316, 0.0
        %v4940 = vmax.f32 %v4318, 0.0
        %v4941 = vmax.f32 %v4429, 0.0
        %v4942 = vmax.f32 %v4431, 0.0
        %v4943 = vmax.f32 %v4542, 0.0
        %v4944 = vmax.f32 %v4544, 0.0
        %v4945 = vmax.f32 %v4655, 0.0
        %v4946 = vmax.f32 %v4657, 0.0
        %v4947 = vmax.f32 %v4768, 0.0
        %v4948 = vmax.f32 %v4770, 0.0
        %v4949 = vmax.f32 %v4881, 0.0
        %v4950 = vmax.f32 %v4883, 0.0
        %v4951 = vmax.f32 %v4322, 0.0
        %v4952 = vmax.f32 %v4324, 0.0
        %v4953 = vmax.f32 %v4435, 0.0
        %v4954 = vmax.f32 %v4437, 0.0
        %v4955 = vmax.f32 %v4548, 0.0
        %v4956 = vmax.f32 %v4550, 0.0
        %v4957 = vmax.f32 %v4661, 0.0
        %v4958 = vmax.f32 %v4663, 0.0
        %v4959 = vmax.f32 %v4774, 0.0
        %v4960 = vmax.f32 %v4776, 0.0
        %v4961 = vmax.f32 %v4887, 0.0
        %v4962 = vmax.f32 %v4889, 0.0
        %v4963 = vmax.f32 %v4328, 0.0
        %v4964 = vmax.f32 %v4330, 0.0
        %v4965 = vmax.f32 %v4441, 0.0
        %v4966 = vmax.f32 %v4443, 0.0
        %v4967 = vmax.f32 %v4554, 0.0
        %v4968 = vmax.f32 %v4556, 0.0
        %v4969 = vmax.f32 %v4667, 0.0
        %v4970 = vmax.f32 %v4669, 0.0
        %v4971 = vmax.f32 %v4780, 0.0
        %v4972 = vmax.f32 %v4782, 0.0
        %v4973 = vmax.f32 %v4893, 0.0
        %v4974 = vmax.f32 %v4895, 0.0
        %v4975 = vmax.f32 %v4334, 0.0
        %v4976 = vmax.f32 %v4336, 0.0
        %v4977 = vmax.f32 %v4447, 0.0
        %v4978 = vmax.f32 %v4449, 0.0
        %v4979 = vmax.f32 %v4560, 0.0
        %v4980 = vmax.f32 %v4562, 0.0
        %v4981 = vmax.f32 %v4673, 0.0
        %v4982 = vmax.f32 %v4675, 0.0
        %v4983 = vmax.f32 %v4786, 0.0
        %v4984 = vmax.f32 %v4788, 0.0
        %v4985 = vmax.f32 %v4899, 0.0
        %v4986 = vmax.f32 %v4901, 0.0
        %v4987 = vmax.f32 %v4340, 0.0
        %v4988 = vmax.f32 %v4342, 0.0
        %v4989 = vmax.f32 %v4453, 0.0
        %v4990 = vmax.f32 %v4455, 0.0
        %v4991 = vmax.f32 %v4566, 0.0
        %v4992 = vmax.f32 %v4568, 0.0
        %v4993 = vmax.f32 %v4679, 0.0
        %v4994 = vmax.f32 %v4681, 0.0
        %v4995 = vmax.f32 %v4792, 0.0
        %v4996 = vmax.f32 %v4794, 0.0
        %v4997 = vmax.f32 %v4905, 0.0
        %v4998 = vmax.f32 %v4907, 0.0
        %v4999 = vmax.f32 %v4346, 0.0
        %v5000 = vmax.f32 %v4348, 0.0
        %v5001 = vmax.f32 %v4459, 0.0
        %v5002 = vmax.f32 %v4461, 0.0
        %v5003 = vmax.f32 %v4572, 0.0
        %v5004 = vmax.f32 %v4574, 0.0
        %v5005 = vmax.f32 %v4685, 0.0
        %v5006 = vmax.f32 %v4687, 0.0
        %v5007 = vmax.f32 %v4798, 0.0
        %v5008 = vmax.f32 %v4800, 0.0
        %v5009 = vmax.f32 %v4911, 0.0
        %v5010 = vmax.f32 %v4913, 0.0
        %v5011 = vld [vmem:[%s5] sm:$0xff]
        %v5012 = vld [vmem:[%s5 + $0x8] sm:$0xff]
        %v5013 = vld [vmem:[%s5 + $0x10] sm:$0xff]
        %v5014 = vld [vmem:[%s5 + $0x18] sm:$0xff]
        %vm5015 = vcmask 523264
        %v5017 = vsel %vm5015, %v5011, 0
        %v5020 = vsel %vm5015, %v5012, 0
        %v5023 = vsel %vm5015, %v5013, 0
        %v5026 = vsel %vm5015, %v5014, 0
        %5028 = vmatprep.subr.mxu0 %v4916
        %5029 = vmatpush1.msra.mxu0 %v4915
        %5030 = vmatprep.subr.mxu0 %v4928
        %5031 = vmatpush1.msra.mxu0 %v4927
        %5032 = vmatprep.subr.mxu0 %v4940
        %5033 = vmatpush1.msra.mxu0 %v4939
        %5034 = vmatprep.subr.mxu0 %v4952
        %5035 = vmatpush1.msra.mxu0 %v4951
        %5036 = vmatprep.subr.mxu0 %v4964
        %5037 = vmatpush1.msra.mxu0 %v4963
        %5038 = vmatprep.subr.mxu0 %v4976
        %5039 = vmatpush1.msra.mxu0 %v4975
        %5040 = vmatprep.subr.mxu0 %v4988
        %5041 = vmatpush1.msra.mxu0 %v4987
        %5042 = vmatprep.subr.mxu0 %v5000
        %5043 = vmatpush1.msra.mxu0 %v4999
        %5044 = vmatprep.subr.mxu0 0.0
        %5045 = vmatpush1.msra.mxu0 0.0
        %5046 = vmatprep.subr.mxu0 0.0
        %5047 = vmatpush1.msra.mxu0 0.0
        %5048 = vmatprep.subr.mxu0 0.0
        %5049 = vmatpush1.msra.mxu0 0.0
        %5050 = vmatprep.subr.mxu0 0.0
        %5051 = vmatpush1.msra.mxu0 0.0
        %5052 = vmatprep.subr.mxu0 0.0
        %5053 = vmatpush1.msra.mxu0 0.0
        %5054 = vmatprep.subr.mxu0 0.0
        %5055 = vmatpush1.msra.mxu0 0.0
        %5056 = vmatprep.subr.mxu0 0.0
        %5057 = vmatpush1.msra.mxu0 0.0
        %5058 = vmatprep.subr.mxu0 0.0
        %5059 = vmatpush1.msra.mxu0 0.0
        %5060 = vmatprep.subr.mxu0 0.0
        %5061 = vmatpush1.msra.mxu0 0.0
        %5062 = vmatprep.subr.mxu0 0.0
        %5063 = vmatpush1.msra.mxu0 0.0
        %5064 = vmatprep.subr.mxu0 0.0
        %5065 = vmatpush1.msra.mxu0 0.0
        %5066 = vmatprep.subr.mxu0 0.0
        %5067 = vmatpush1.msra.mxu0 0.0
        %5068 = vmatprep.subr.mxu0 0.0
        %5069 = vmatpush1.msra.mxu0 0.0
        %5070 = vmatprep.subr.mxu0 0.0
        %5071 = vmatpush1.msra.mxu0 0.0
        %5072 = vmatprep.subr.mxu0 0.0
        %5073 = vmatpush1.msra.mxu0 0.0
        %5074 = vmatprep.subr.mxu0 0.0
        %5075 = vmatpush1.msra.mxu0 0.0
        %5076 = vmatprep.subr.mxu0 0.0
        %5077 = vmatpush1.msra.mxu0 0.0
        %5078 = vmatprep.subr.mxu0 0.0
        %5079 = vmatpush1.msra.mxu0 0.0
        %5080 = vmatprep.subr.mxu0 0.0
        %5081 = vmatpush1.msra.mxu0 0.0
        %5082 = vmatprep.subr.mxu0 0.0
        %5083 = vmatpush1.msra.mxu0 0.0
        %5084 = vmatprep.subr.mxu0 0.0
        %5085 = vmatpush1.msra.mxu0 0.0
        %5086 = vmatprep.subr.mxu0 0.0
        %5087 = vmatpush1.msra.mxu0 0.0
        %5088 = vmatprep.subr.mxu0 0.0
        %5089 = vmatpush1.msra.mxu0 0.0
        %5090 = vmatprep.subr.mxu0 0.0
        %5091 = vmatpush1.msra.mxu0 0.0
        %5092 = vmatprep.mubr.f32.mxu0 0.0
        %5093 = vmatmul.mubr.f32.gmra.mrb[0].mxu0 %v5017
        %v5094 = vpop.f32.mrb[0].mxu0
        %v5095 = vadd.f32 0.0, %v5094
        %v5096 = vpop.f32.mrb[0].mxu0
        %v5097 = vadd.f32 0.0, %v5096
        %5098 = vmatprep.mubr.f32.mxu0 0.0
        %5099 = vmatmul.mubr.f32.gmra.mrb[0].mxu0 %v5020
        %v5100 = vpop.f32.mrb[0].mxu0
        %v5101 = vadd.f32 0.0, %v5100
        %v5102 = vpop.f32.mrb[0].mxu0
        %v5103 = vadd.f32 0.0, %v5102
        %5104 = vmatprep.mubr.f32.mxu0 0.0
        %5105 = vmatmul.mubr.f32.gmra.mrb[0].mxu0 %v5023
        %v5106 = vpop.f32.mrb[0].mxu0
        %v5107 = vadd.f32 0.0, %v5106
        %v5108 = vpop.f32.mrb[0].mxu0
        %v5109 = vadd.f32 0.0, %v5108
        %5110 = vmatprep.mubr.f32.mxu0 0.0
        %5111 = vmatmul.mubr.f32.gmra.mrb[0].mxu0 %v5026
        %v5112 = vpop.f32.mrb[0].mxu0
        %v5113 = vadd.f32 0.0, %v5112
        %v5114 = vpop.f32.mrb[0].mxu0
        %v5115 = vadd.f32 0.0, %v5114
        %5116 = vdwg.mxu0
        %5117 = vmatprep.subr.mxu0 %v4918
        %5118 = vmatpush1.msra.mxu0 %v4917
        %5119 = vmatprep.subr.mxu0 %v4930
        %5120 = vmatpush1.msra.mxu0 %v4929
        %5121 = vmatprep.subr.mxu0 %v4942
        %5122 = vmatpush1.msra.mxu0 %v4941
        %5123 = vmatprep.subr.mxu0 %v4954
        %5124 = vmatpush1.msra.mxu0 %v4953
        %5125 = vmatprep.subr.mxu0 %v4966
        %5126 = vmatpush1.msra.mxu0 %v4965
        %5127 = vmatprep.subr.mxu0 %v4978
        %5128 = vmatpush1.msra.mxu0 %v4977
        %5129 = vmatprep.subr.mxu0 %v4990
        %5130 = vmatpush1.msra.mxu0 %v4989
        %5131 = vmatprep.subr.mxu0 %v5002
        %5132 = vmatpush1.msra.mxu0 %v5001
        %5133 = vmatprep.subr.mxu0 0.0
        %5134 = vmatpush1.msra.mxu0 0.0
        %5135 = vmatprep.subr.mxu0 0.0
        %5136 = vmatpush1.msra.mxu0 0.0
        %5137 = vmatprep.subr.mxu0 0.0
        %5138 = vmatpush1.msra.mxu0 0.0
        %5139 = vmatprep.subr.mxu0 0.0
        %5140 = vmatpush1.msra.mxu0 0.0
        %5141 = vmatprep.subr.mxu0 0.0
        %5142 = vmatpush1.msra.mxu0 0.0
        %5143 = vmatprep.subr.mxu0 0.0
        %5144 = vmatpush1.msra.mxu0 0.0
        %5145 = vmatprep.subr.mxu0 0.0
        %5146 = vmatpush1.msra.mxu0 0.0
        %5147 = vmatprep.subr.mxu0 0.0
        %5148 = vmatpush1.msra.mxu0 0.0
        %5149 = vmatprep.subr.mxu0 0.0
        %5150 = vmatpush1.msra.mxu0 0.0
        %5151 = vmatprep.subr.mxu0 0.0
        %5152 = vmatpush1.msra.mxu0 0.0
        %5153 = vmatprep.subr.mxu0 0.0
        %5154 = vmatpush1.msra.mxu0 0.0
        %5155 = vmatprep.subr.mxu0 0.0
        %5156 = vmatpush1.msra.mxu0 0.0
        %5157 = vmatprep.subr.mxu0 0.0
        %5158 = vmatpush1.msra.mxu0 0.0
        %5159 = vmatprep.subr.mxu0 0.0
        %5160 = vmatpush1.msra.mxu0 0.0
        %5161 = vmatprep.subr.mxu0 0.0
        %5162 = vmatpush1.msra.mxu0 0.0
        %5163 = vmatprep.subr.mxu0 0.0
        %5164 = vmatpush1.msra.mxu0 0.0
        %5165 = vmatprep.subr.mxu0 0.0
        %5166 = vmatpush1.msra.mxu0 0.0
        %5167 = vmatprep.subr.mxu0 0.0
        %5168 = vmatpush1.msra.mxu0 0.0
        %5169 = vmatprep.subr.mxu0 0.0
        %5170 = vmatpush1.msra.mxu0 0.0
        %5171 = vmatprep.subr.mxu0 0.0
        %5172 = vmatpush1.msra.mxu0 0.0
        %5173 = vmatprep.subr.mxu0 0.0
        %5174 = vmatpush1.msra.mxu0 0.0
        %5175 = vmatprep.subr.mxu0 0.0
        %5176 = vmatpush1.msra.mxu0 0.0
        %5177 = vmatprep.subr.mxu0 0.0
        %5178 = vmatpush1.msra.mxu0 0.0
        %5179 = vmatprep.subr.mxu0 0.0
        %5180 = vmatpush1.msra.mxu0 0.0
        %5181 = vmatprep.mubr.f32.mxu0 0.0
        %5182 = vmatmul.mubr.f32.gmra.mrb[0].mxu0 %v5017
        %v5183 = vpop.f32.mrb[0].mxu0
        %v5184 = vadd.f32 0.0, %v5183
        %v5185 = vpop.f32.mrb[0].mxu0
        %v5186 = vadd.f32 0.0, %v5185
        %5187 = vmatprep.mubr.f32.mxu0 0.0
        %5188 = vmatmul.mubr.f32.gmra.mrb[0].mxu0 %v5020
        %v5189 = vpop.f32.mrb[0].mxu0
        %v5190 = vadd.f32 0.0, %v5189
        %v5191 = vpop.f32.mrb[0].mxu0
        %v5192 = vadd.f32 0.0, %v5191
        %5193 = vmatprep.mubr.f32.mxu0 0.0
        %5194 = vmatmul.mubr.f32.gmra.mrb[0].mxu0 %v5023
        %v5195 = vpop.f32.mrb[0].mxu0
        %v5196 = vadd.f32 0.0, %v5195
        %v5197 = vpop.f32.mrb[0].mxu0
        %v5198 = vadd.f32 0.0, %v5197
        %5199 = vmatprep.mubr.f32.mxu0 0.0
        %5200 = vmatmul.mubr.f32.gmra.mrb[0].mxu0 %v5026
        %v5201 = vpop.f32.mrb[0].mxu0
        %v5202 = vadd.f32 0.0, %v5201
        %v5203 = vpop.f32.mrb[0].mxu0
        %v5204 = vadd.f32 0.0, %v5203
        %5205 = vdwg.mxu0
        %5206 = vmatprep.subr.mxu0 %v4920
        %5207 = vmatpush1.msra.mxu0 %v4919
        %5208 = vmatprep.subr.mxu0 %v4932
        %5209 = vmatpush1.msra.mxu0 %v4931
        %5210 = vmatprep.subr.mxu0 %v4944
        %5211 = vmatpush1.msra.mxu0 %v4943
        %5212 = vmatprep.subr.mxu0 %v4956
        %5213 = vmatpush1.msra.mxu0 %v4955
        %5214 = vmatprep.subr.mxu0 %v4968
        %5215 = vmatpush1.msra.mxu0 %v4967
        %5216 = vmatprep.subr.mxu0 %v4980
        %5217 = vmatpush1.msra.mxu0 %v4979
        %5218 = vmatprep.subr.mxu0 %v4992
        %5219 = vmatpush1.msra.mxu0 %v4991
        %5220 = vmatprep.subr.mxu0 %v5004
        %5221 = vmatpush1.msra.mxu0 %v5003
        %5222 = vmatprep.subr.mxu0 0.0
        %5223 = vmatpush1.msra.mxu0 0.0
        %5224 = vmatprep.subr.mxu0 0.0
        %5225 = vmatpush1.msra.mxu0 0.0
        %5226 = vmatprep.subr.mxu0 0.0
        %5227 = vmatpush1.msra.mxu0 0.0
        %5228 = vmatprep.subr.mxu0 0.0
        %5229 = vmatpush1.msra.mxu0 0.0
        %5230 = vmatprep.subr.mxu0 0.0
        %5231 = vmatpush1.msra.mxu0 0.0
        %5232 = vmatprep.subr.mxu0 0.0
        %5233 = vmatpush1.msra.mxu0 0.0
        %5234 = vmatprep.subr.mxu0 0.0
        %5235 = vmatpush1.msra.mxu0 0.0
        %5236 = vmatprep.subr.mxu0 0.0
        %5237 = vmatpush1.msra.mxu0 0.0
        %5238 = vmatprep.subr.mxu0 0.0
        %5239 = vmatpush1.msra.mxu0 0.0
        %5240 = vmatprep.subr.mxu0 0.0
        %5241 = vmatpush1.msra.mxu0 0.0
        %5242 = vmatprep.subr.mxu0 0.0
        %5243 = vmatpush1.msra.mxu0 0.0
        %5244 = vmatprep.subr.mxu0 0.0
        %5245 = vmatpush1.msra.mxu0 0.0
        %5246 = vmatprep.subr.mxu0 0.0
        %5247 = vmatpush1.msra.mxu0 0.0
        %5248 = vmatprep.subr.mxu0 0.0
        %5249 = vmatpush1.msra.mxu0 0.0
        %5250 = vmatprep.subr.mxu0 0.0
        %5251 = vmatpush1.msra.mxu0 0.0
        %5252 = vmatprep.subr.mxu0 0.0
        %5253 = vmatpush1.msra.mxu0 0.0
        %5254 = vmatprep.subr.mxu0 0.0
        %5255 = vmatpush1.msra.mxu0 0.0
        %5256 = vmatprep.subr.mxu0 0.0
        %5257 = vmatpush1.msra.mxu0 0.0
        %5258 = vmatprep.subr.mxu0 0.0
        %5259 = vmatpush1.msra.mxu0 0.0
        %5260 = vmatprep.subr.mxu0 0.0
        %5261 = vmatpush1.msra.mxu0 0.0
        %5262 = vmatprep.subr.mxu0 0.0
        %5263 = vmatpush1.msra.mxu0 0.0
        %5264 = vmatprep.subr.mxu0 0.0
        %5265 = vmatpush1.msra.mxu0 0.0
        %5266 = vmatprep.subr.mxu0 0.0
        %5267 = vmatpush1.msra.mxu0 0.0
        %5268 = vmatprep.subr.mxu0 0.0
        %5269 = vmatpush1.msra.mxu0 0.0
        %5270 = vmatprep.mubr.f32.mxu0 0.0
        %5271 = vmatmul.mubr.f32.gmra.mrb[0].mxu0 %v5017
        %v5272 = vpop.f32.mrb[0].mxu0
        %v5273 = vadd.f32 0.0, %v5272
        %v5274 = vpop.f32.mrb[0].mxu0
        %v5275 = vadd.f32 0.0, %v5274
        %5276 = vmatprep.mubr.f32.mxu0 0.0
        %5277 = vmatmul.mubr.f32.gmra.mrb[0].mxu0 %v5020
        %v5278 = vpop.f32.mrb[0].mxu0
        %v5279 = vadd.f32 0.0, %v5278
        %v5280 = vpop.f32.mrb[0].mxu0
        %v5281 = vadd.f32 0.0, %v5280
        %5282 = vmatprep.mubr.f32.mxu0 0.0
        %5283 = vmatmul.mubr.f32.gmra.mrb[0].mxu0 %v5023
        %v5284 = vpop.f32.mrb[0].mxu0
        %v5285 = vadd.f32 0.0, %v5284
        %v5286 = vpop.f32.mrb[0].mxu0
        %v5287 = vadd.f32 0.0, %v5286
        %5288 = vmatprep.mubr.f32.mxu0 0.0
        %5289 = vmatmul.mubr.f32.gmra.mrb[0].mxu0 %v5026
        %v5290 = vpop.f32.mrb[0].mxu0
        %v5291 = vadd.f32 0.0, %v5290
        %v5292 = vpop.f32.mrb[0].mxu0
        %v5293 = vadd.f32 0.0, %v5292
        %5294 = vdwg.mxu0
        %5295 = vmatprep.subr.mxu0 %v4922
        %5296 = vmatpush1.msra.mxu0 %v4921
        %5297 = vmatprep.subr.mxu0 %v4934
        %5298 = vmatpush1.msra.mxu0 %v4933
        %5299 = vmatprep.subr.mxu0 %v4946
        %5300 = vmatpush1.msra.mxu0 %v4945
        %5301 = vmatprep.subr.mxu0 %v4958
        %5302 = vmatpush1.msra.mxu0 %v4957
        %5303 = vmatprep.subr.mxu0 %v4970
        %5304 = vmatpush1.msra.mxu0 %v4969
        %5305 = vmatprep.subr.mxu0 %v4982
        %5306 = vmatpush1.msra.mxu0 %v4981
        %5307 = vmatprep.subr.mxu0 %v4994
        %5308 = vmatpush1.msra.mxu0 %v4993
        %5309 = vmatprep.subr.mxu0 %v5006
        %5310 = vmatpush1.msra.mxu0 %v5005
        %5311 = vmatprep.subr.mxu0 0.0
        %5312 = vmatpush1.msra.mxu0 0.0
        %5313 = vmatprep.subr.mxu0 0.0
        %5314 = vmatpush1.msra.mxu0 0.0
        %5315 = vmatprep.subr.mxu0 0.0
        %5316 = vmatpush1.msra.mxu0 0.0
        %5317 = vmatprep.subr.mxu0 0.0
        %5318 = vmatpush1.msra.mxu0 0.0
        %5319 = vmatprep.subr.mxu0 0.0
        %5320 = vmatpush1.msra.mxu0 0.0
        %5321 = vmatprep.subr.mxu0 0.0
        %5322 = vmatpush1.msra.mxu0 0.0
        %5323 = vmatprep.subr.mxu0 0.0
        %5324 = vmatpush1.msra.mxu0 0.0
        %5325 = vmatprep.subr.mxu0 0.0
        %5326 = vmatpush1.msra.mxu0 0.0
        %5327 = vmatprep.subr.mxu0 0.0
        %5328 = vmatpush1.msra.mxu0 0.0
        %5329 = vmatprep.subr.mxu0 0.0
        %5330 = vmatpush1.msra.mxu0 0.0
        %5331 = vmatprep.subr.mxu0 0.0
        %5332 = vmatpush1.msra.mxu0 0.0
        %5333 = vmatprep.subr.mxu0 0.0
        %5334 = vmatpush1.msra.mxu0 0.0
        %5335 = vmatprep.subr.mxu0 0.0
        %5336 = vmatpush1.msra.mxu0 0.0
        %5337 = vmatprep.subr.mxu0 0.0
        %5338 = vmatpush1.msra.mxu0 0.0
        %5339 = vmatprep.subr.mxu0 0.0
        %5340 = vmatpush1.msra.mxu0 0.0
        %5341 = vmatprep.subr.mxu0 0.0
        %5342 = vmatpush1.msra.mxu0 0.0
        %5343 = vmatprep.subr.mxu0 0.0
        %5344 = vmatpush1.msra.mxu0 0.0
        %5345 = vmatprep.subr.mxu0 0.0
        %5346 = vmatpush1.msra.mxu0 0.0
        %5347 = vmatprep.subr.mxu0 0.0
        %5348 = vmatpush1.msra.mxu0 0.0
        %5349 = vmatprep.subr.mxu0 0.0
        %5350 = vmatpush1.msra.mxu0 0.0
        %5351 = vmatprep.subr.mxu0 0.0
        %5352 = vmatpush1.msra.mxu0 0.0
        %5353 = vmatprep.subr.mxu0 0.0
        %5354 = vmatpush1.msra.mxu0 0.0
        %5355 = vmatprep.subr.mxu0 0.0
        %5356 = vmatpush1.msra.mxu0 0.0
        %5357 = vmatprep.subr.mxu0 0.0
        %5358 = vmatpush1.msra.mxu0 0.0
        %5359 = vmatprep.mubr.f32.mxu0 0.0
        %5360 = vmatmul.mubr.f32.gmra.mrb[0].mxu0 %v5017
        %v5361 = vpop.f32.mrb[0].mxu0
        %v5362 = vadd.f32 0.0, %v5361
        %v5363 = vpop.f32.mrb[0].mxu0
        %v5364 = vadd.f32 0.0, %v5363
        %5365 = vmatprep.mubr.f32.mxu0 0.0
        %5366 = vmatmul.mubr.f32.gmra.mrb[0].mxu0 %v5020
        %v5367 = vpop.f32.mrb[0].mxu0
        %v5368 = vadd.f32 0.0, %v5367
        %v5369 = vpop.f32.mrb[0].mxu0
        %v5370 = vadd.f32 0.0, %v5369
        %5371 = vmatprep.mubr.f32.mxu0 0.0
        %5372 = vmatmul.mubr.f32.gmra.mrb[0].mxu0 %v5023
        %v5373 = vpop.f32.mrb[0].mxu0
        %v5374 = vadd.f32 0.0, %v5373
        %v5375 = vpop.f32.mrb[0].mxu0
        %v5376 = vadd.f32 0.0, %v5375
        %5377 = vmatprep.mubr.f32.mxu0 0.0
        %5378 = vmatmul.mubr.f32.gmra.mrb[0].mxu0 %v5026
        %v5379 = vpop.f32.mrb[0].mxu0
        %v5380 = vadd.f32 0.0, %v5379
        %v5381 = vpop.f32.mrb[0].mxu0
        %v5382 = vadd.f32 0.0, %v5381
        %5383 = vdwg.mxu0
        %5384 = vmatprep.subr.mxu0 %v4924
        %5385 = vmatpush1.msra.mxu0 %v4923
        %5386 = vmatprep.subr.mxu0 %v4936
        %5387 = vmatpush1.msra.mxu0 %v4935
        %5388 = vmatprep.subr.mxu0 %v4948
        %5389 = vmatpush1.msra.mxu0 %v4947
        %5390 = vmatprep.subr.mxu0 %v4960
        %5391 = vmatpush1.msra.mxu0 %v4959
        %5392 = vmatprep.subr.mxu0 %v4972
        %5393 = vmatpush1.msra.mxu0 %v4971
        %5394 = vmatprep.subr.mxu0 %v4984
        %5395 = vmatpush1.msra.mxu0 %v4983
        %5396 = vmatprep.subr.mxu0 %v4996
        %5397 = vmatpush1.msra.mxu0 %v4995
        %5398 = vmatprep.subr.mxu0 %v5008
        %5399 = vmatpush1.msra.mxu0 %v5007
        %5400 = vmatprep.subr.mxu0 0.0
        %5401 = vmatpush1.msra.mxu0 0.0
        %5402 = vmatprep.subr.mxu0 0.0
        %5403 = vmatpush1.msra.mxu0 0.0
        %5404 = vmatprep.subr.mxu0 0.0
        %5405 = vmatpush1.msra.mxu0 0.0
        %5406 = vmatprep.subr.mxu0 0.0
        %5407 = vmatpush1.msra.mxu0 0.0
        %5408 = vmatprep.subr.mxu0 0.0
        %5409 = vmatpush1.msra.mxu0 0.0
        %5410 = vmatprep.subr.mxu0 0.0
        %5411 = vmatpush1.msra.mxu0 0.0
        %5412 = vmatprep.subr.mxu0 0.0
        %5413 = vmatpush1.msra.mxu0 0.0
        %5414 = vmatprep.subr.mxu0 0.0
        %5415 = vmatpush1.msra.mxu0 0.0
        %5416 = vmatprep.subr.mxu0 0.0
        %5417 = vmatpush1.msra.mxu0 0.0
        %5418 = vmatprep.subr.mxu0 0.0
        %5419 = vmatpush1.msra.mxu0 0.0
        %5420 = vmatprep.subr.mxu0 0.0
        %5421 = vmatpush1.msra.mxu0 0.0
        %5422 = vmatprep.subr.mxu0 0.0
        %5423 = vmatpush1.msra.mxu0 0.0
        %5424 = vmatprep.subr.mxu0 0.0
        %5425 = vmatpush1.msra.mxu0 0.0
        %5426 = vmatprep.subr.mxu0 0.0
        %5427 = vmatpush1.msra.mxu0 0.0
        %5428 = vmatprep.subr.mxu0 0.0
        %5429 = vmatpush1.msra.mxu0 0.0
        %5430 = vmatprep.subr.mxu0 0.0
        %5431 = vmatpush1.msra.mxu0 0.0
        %5432 = vmatprep.subr.mxu0 0.0
        %5433 = vmatpush1.msra.mxu0 0.0
        %5434 = vmatprep.subr.mxu0 0.0
        %5435 = vmatpush1.msra.mxu0 0.0
        %5436 = vmatprep.subr.mxu0 0.0
        %5437 = vmatpush1.msra.mxu0 0.0
        %5438 = vmatprep.subr.mxu0 0.0
        %5439 = vmatpush1.msra.mxu0 0.0
        %5440 = vmatprep.subr.mxu0 0.0
        %5441 = vmatpush1.msra.mxu0 0.0
        %5442 = vmatprep.subr.mxu0 0.0
        %5443 = vmatpush1.msra.mxu0 0.0
        %5444 = vmatprep.subr.mxu0 0.0
        %5445 = vmatpush1.msra.mxu0 0.0
        %5446 = vmatprep.subr.mxu0 0.0
        %5447 = vmatpush1.msra.mxu0 0.0
        %5448 = vmatprep.mubr.f32.mxu0 0.0
        %5449 = vmatmul.mubr.f32.gmra.mrb[0].mxu0 %v5017
        %v5450 = vpop.f32.mrb[0].mxu0
        %v5451 = vadd.f32 0.0, %v5450
        %v5452 = vpop.f32.mrb[0].mxu0
        %v5453 = vadd.f32 0.0, %v5452
        %5454 = vmatprep.mubr.f32.mxu0 0.0
        %5455 = vmatmul.mubr.f32.gmra.mrb[0].mxu0 %v5020
        %v5456 = vpop.f32.mrb[0].mxu0
        %v5457 = vadd.f32 0.0, %v5456
        %v5458 = vpop.f32.mrb[0].mxu0
        %v5459 = vadd.f32 0.0, %v5458
        %5460 = vmatprep.mubr.f32.mxu0 0.0
        %5461 = vmatmul.mubr.f32.gmra.mrb[0].mxu0 %v5023
        %v5462 = vpop.f32.mrb[0].mxu0
        %v5463 = vadd.f32 0.0, %v5462
        %v5464 = vpop.f32.mrb[0].mxu0
        %v5465 = vadd.f32 0.0, %v5464
        %5466 = vmatprep.mubr.f32.mxu0 0.0
        %5467 = vmatmul.mubr.f32.gmra.mrb[0].mxu0 %v5026
        %v5468 = vpop.f32.mrb[0].mxu0
        %v5469 = vadd.f32 0.0, %v5468
        %v5470 = vpop.f32.mrb[0].mxu0
        %v5471 = vadd.f32 0.0, %v5470
        %5472 = vdwg.mxu0
        %5473 = vmatprep.subr.mxu0 %v4926
        %5474 = vmatpush1.msra.mxu0 %v4925
        %5475 = vmatprep.subr.mxu0 %v4938
        %5476 = vmatpush1.msra.mxu0 %v4937
        %5477 = vmatprep.subr.mxu0 %v4950
        %5478 = vmatpush1.msra.mxu0 %v4949
        %5479 = vmatprep.subr.mxu0 %v4962
        %5480 = vmatpush1.msra.mxu0 %v4961
        %5481 = vmatprep.subr.mxu0 %v4974
        %5482 = vmatpush1.msra.mxu0 %v4973
        %5483 = vmatprep.subr.mxu0 %v4986
        %5484 = vmatpush1.msra.mxu0 %v4985
        %5485 = vmatprep.subr.mxu0 %v4998
        %5486 = vmatpush1.msra.mxu0 %v4997
        %5487 = vmatprep.subr.mxu0 %v5010
        %5488 = vmatpush1.msra.mxu0 %v5009
        %5489 = vmatprep.subr.mxu0 0.0
        %5490 = vmatpush1.msra.mxu0 0.0
        %5491 = vmatprep.subr.mxu0 0.0
        %5492 = vmatpush1.msra.mxu0 0.0
        %5493 = vmatprep.subr.mxu0 0.0
        %5494 = vmatpush1.msra.mxu0 0.0
        %5495 = vmatprep.subr.mxu0 0.0
        %5496 = vmatpush1.msra.mxu0 0.0
        %5497 = vmatprep.subr.mxu0 0.0
        %5498 = vmatpush1.msra.mxu0 0.0
        %5499 = vmatprep.subr.mxu0 0.0
        %5500 = vmatpush1.msra.mxu0 0.0
        %5501 = vmatprep.subr.mxu0 0.0
        %5502 = vmatpush1.msra.mxu0 0.0
        %5503 = vmatprep.subr.mxu0 0.0
        %5504 = vmatpush1.msra.mxu0 0.0
        %5505 = vmatprep.subr.mxu0 0.0
        %5506 = vmatpush1.msra.mxu0 0.0
        %5507 = vmatprep.subr.mxu0 0.0
        %5508 = vmatpush1.msra.mxu0 0.0
        %5509 = vmatprep.subr.mxu0 0.0
        %5510 = vmatpush1.msra.mxu0 0.0
        %5511 = vmatprep.subr.mxu0 0.0
        %5512 = vmatpush1.msra.mxu0 0.0
        %5513 = vmatprep.subr.mxu0 0.0
        %5514 = vmatpush1.msra.mxu0 0.0
        %5515 = vmatprep.subr.mxu0 0.0
        %5516 = vmatpush1.msra.mxu0 0.0
        %5517 = vmatprep.subr.mxu0 0.0
        %5518 = vmatpush1.msra.mxu0 0.0
        %5519 = vmatprep.subr.mxu0 0.0
        %5520 = vmatpush1.msra.mxu0 0.0
        %5521 = vmatprep.subr.mxu0 0.0
        %5522 = vmatpush1.msra.mxu0 0.0
        %5523 = vmatprep.subr.mxu0 0.0
        %5524 = vmatpush1.msra.mxu0 0.0
        %5525 = vmatprep.subr.mxu0 0.0
        %5526 = vmatpush1.msra.mxu0 0.0
        %5527 = vmatprep.subr.mxu0 0.0
        %5528 = vmatpush1.msra.mxu0 0.0
        %5529 = vmatprep.subr.mxu0 0.0
        %5530 = vmatpush1.msra.mxu0 0.0
        %5531 = vmatprep.subr.mxu0 0.0
        %5532 = vmatpush1.msra.mxu0 0.0
        %5533 = vmatprep.subr.mxu0 0.0
        %5534 = vmatpush1.msra.mxu0 0.0
        %5535 = vmatprep.subr.mxu0 0.0
        %5536 = vmatpush1.msra.mxu0 0.0
        %5537 = vmatprep.mubr.f32.mxu0 0.0
        %5538 = vmatmul.mubr.f32.gmra.mrb[0].mxu0 %v5017
        %v5539 = vpop.f32.mrb[0].mxu0
        %v5540 = vadd.f32 0.0, %v5539
        %v5541 = vpop.f32.mrb[0].mxu0
        %v5542 = vadd.f32 0.0, %v5541
        %5543 = vmatprep.mubr.f32.mxu0 0.0
        %5544 = vmatmul.mubr.f32.gmra.mrb[0].mxu0 %v5020
        %v5545 = vpop.f32.mrb[0].mxu0
        %v5546 = vadd.f32 0.0, %v5545
        %v5547 = vpop.f32.mrb[0].mxu0
        %v5548 = vadd.f32 0.0, %v5547
        %5549 = vmatprep.mubr.f32.mxu0 0.0
        %5550 = vmatmul.mubr.f32.gmra.mrb[0].mxu0 %v5023
        %v5551 = vpop.f32.mrb[0].mxu0
        %v5552 = vadd.f32 0.0, %v5551
        %v5553 = vpop.f32.mrb[0].mxu0
        %v5554 = vadd.f32 0.0, %v5553
        %5555 = vmatprep.mubr.f32.mxu0 0.0
        %5556 = vmatmul.mubr.f32.gmra.mrb[0].mxu0 %v5026
        %v5557 = vpop.f32.mrb[0].mxu0
        %v5558 = vadd.f32 0.0, %v5557
        %v5559 = vpop.f32.mrb[0].mxu0
        %v5560 = vadd.f32 0.0, %v5559
        %5561 = vdwg.mxu0
        %v5562 = vadd.f32 %v4117, %v5095
        %v5563 = vadd.f32 %v4118, %v5097
        %v5564 = vadd.f32 %v4119, %v5184
        %v5565 = vadd.f32 %v4120, %v5186
        %v5566 = vadd.f32 %v4121, %v5273
        %v5567 = vadd.f32 %v4122, %v5275
        %v5568 = vadd.f32 %v4123, %v5362
        %v5569 = vadd.f32 %v4124, %v5364
        %v5570 = vadd.f32 %v4125, %v5451
        %v5571 = vadd.f32 %v4126, %v5453
        %v5572 = vadd.f32 %v4127, %v5540
        %v5573 = vadd.f32 %v4128, %v5542
        %v5574 = vadd.f32 %v4129, %v5101
        %v5575 = vadd.f32 %v4130, %v5103
        %v5576 = vadd.f32 %v4131, %v5190
        %v5577 = vadd.f32 %v4132, %v5192
        %v5578 = vadd.f32 %v4133, %v5279
        %v5579 = vadd.f32 %v4134, %v5281
        %v5580 = vadd.f32 %v4135, %v5368
        %v5581 = vadd.f32 %v4136, %v5370
        %v5582 = vadd.f32 %v4137, %v5457
        %v5583 = vadd.f32 %v4138, %v5459
        %v5584 = vadd.f32 %v4139, %v5546
        %v5585 = vadd.f32 %v4140, %v5548
        %v5586 = vadd.f32 %v4141, %v5107
        %v5587 = vadd.f32 %v4142, %v5109
        %v5588 = vadd.f32 %v4143, %v5196
        %v5589 = vadd.f32 %v4144, %v5198
        %v5590 = vadd.f32 %v4145, %v5285
        %v5591 = vadd.f32 %v4146, %v5287
        %v5592 = vadd.f32 %v4147, %v5374
        %v5593 = vadd.f32 %v4148, %v5376
        %v5594 = vadd.f32 %v4149, %v5463
        %v5595 = vadd.f32 %v4150, %v5465
        %v5596 = vadd.f32 %v4151, %v5552
        %v5597 = vadd.f32 %v4152, %v5554
        %v5598 = vadd.f32 %v4153, %v5113
        %v5599 = vadd.f32 %v4154, %v5115
        %v5600 = vadd.f32 %v4155, %v5202
        %v5601 = vadd.f32 %v4156, %v5204
        %v5602 = vadd.f32 %v4157, %v5291
        %v5603 = vadd.f32 %v4158, %v5293
        %v5604 = vadd.f32 %v4159, %v5380
        %v5605 = vadd.f32 %v4160, %v5382
        %v5606 = vadd.f32 %v4161, %v5469
        %v5607 = vadd.f32 %v4162, %v5471
        %v5608 = vadd.f32 %v4163, %v5558
        %v5609 = vadd.f32 %v4164, %v5560
        %5611 = vset.pattern.permute.xlu0 0
        %5612 = vperm.xlu0 %5611, %v679
        %v5613 = vpop.permute.xlu0 %5612
        %5616 = vset.pattern.permute.xlu0 0
        %5617 = vperm.xlu0 %5616, %v680
        %v5618 = vpop.permute.xlu0 %5617
        %5621 = vset.pattern.permute.xlu0 0
        %5622 = vperm.xlu0 %5621, %v681
        %v5623 = vpop.permute.xlu0 %5622
        %5626 = vset.pattern.permute.xlu0 0
        %5627 = vperm.xlu0 %5626, %v682
        %v5628 = vpop.permute.xlu0 %5627
        %v5630 = vadd.f32 %v5562, %v5613
        %v5631 = vadd.f32 %v5563, %v5613
        %v5632 = vadd.f32 %v5564, %v5613
        %v5633 = vadd.f32 %v5565, %v5613
        %v5634 = vadd.f32 %v5566, %v5613
        %v5635 = vadd.f32 %v5567, %v5613
        %v5636 = vadd.f32 %v5568, %v5613
        %v5637 = vadd.f32 %v5569, %v5613
        %v5638 = vadd.f32 %v5570, %v5613
        %v5639 = vadd.f32 %v5571, %v5613
        %v5640 = vadd.f32 %v5572, %v5613
        %v5641 = vadd.f32 %v5573, %v5613
        %v5642 = vadd.f32 %v5574, %v5618
        %v5643 = vadd.f32 %v5575, %v5618
        %v5644 = vadd.f32 %v5576, %v5618
        %v5645 = vadd.f32 %v5577, %v5618
        %v5646 = vadd.f32 %v5578, %v5618
        %v5647 = vadd.f32 %v5579, %v5618
        %v5648 = vadd.f32 %v5580, %v5618
        %v5649 = vadd.f32 %v5581, %v5618
        %v5650 = vadd.f32 %v5582, %v5618
        %v5651 = vadd.f32 %v5583, %v5618
        %v5652 = vadd.f32 %v5584, %v5618
        %v5653 = vadd.f32 %v5585, %v5618
        %v5654 = vadd.f32 %v5586, %v5623
        %v5655 = vadd.f32 %v5587, %v5623
        %v5656 = vadd.f32 %v5588, %v5623
        %v5657 = vadd.f32 %v5589, %v5623
        %v5658 = vadd.f32 %v5590, %v5623
        %v5659 = vadd.f32 %v5591, %v5623
        %v5660 = vadd.f32 %v5592, %v5623
        %v5661 = vadd.f32 %v5593, %v5623
        %v5662 = vadd.f32 %v5594, %v5623
        %v5663 = vadd.f32 %v5595, %v5623
        %v5664 = vadd.f32 %v5596, %v5623
        %v5665 = vadd.f32 %v5597, %v5623
        %v5666 = vadd.f32 %v5598, %v5628
        %v5667 = vadd.f32 %v5599, %v5628
        %v5668 = vadd.f32 %v5600, %v5628
        %v5669 = vadd.f32 %v5601, %v5628
        %v5670 = vadd.f32 %v5602, %v5628
        %v5671 = vadd.f32 %v5603, %v5628
        %v5672 = vadd.f32 %v5604, %v5628
        %v5673 = vadd.f32 %v5605, %v5628
        %v5674 = vadd.f32 %v5606, %v5628
        %v5675 = vadd.f32 %v5607, %v5628
        %v5676 = vadd.f32 %v5608, %v5628
        %v5677 = vadd.f32 %v5609, %v5628
        %v5678 = vld [vmem:[%s7] sm:$0xff]
        %v5679 = vld [vmem:[%s7 + $0x8] sm:$0xff]
        %v5680 = vld [vmem:[%s7 + $0x10] sm:$0xff]
        %v5681 = vld [vmem:[%s7 + $0x18] sm:$0xff]
        %v5682 = vld [vmem:[%s7 + $0x20] sm:$0xff]
        %v5683 = vld [vmem:[%s7 + $0x28] sm:$0xff]
        %v5684 = vld [vmem:[%s7 + $0x30] sm:$0xff]
        %v5685 = vld [vmem:[%s7 + $0x38] sm:$0xff]
        %v5686 = vld [vmem:[%s7 + $0x40] sm:$0xff]
        %v5687 = vld [vmem:[%s7 + $0x48] sm:$0xff]
        %v5688 = vld [vmem:[%s7 + $0x50] sm:$0xff]
        %v5689 = vld [vmem:[%s7 + $0x58] sm:$0xff]
        %v5690 = vld [vmem:[%s7 + $0x60] sm:$0xff]
        %v5691 = vld [vmem:[%s7 + $0x68] sm:$0xff]
        %v5692 = vld [vmem:[%s7 + $0x70] sm:$0xff]
        %v5693 = vld [vmem:[%s7 + $0x78] sm:$0xff]
        %v5694 = vld [vmem:[%s7 + $0x80] sm:$0xff]
        %v5695 = vld [vmem:[%s7 + $0x88] sm:$0xff]
        %v5696 = vld [vmem:[%s7 + $0x90] sm:$0xff]
        %v5697 = vld [vmem:[%s7 + $0x98] sm:$0xff]
        %v5698 = vld [vmem:[%s7 + $0xa0] sm:$0xff]
        %v5699 = vld [vmem:[%s7 + $0xa8] sm:$0xff]
        %v5700 = vld [vmem:[%s7 + $0xb0] sm:$0xff]
        %v5701 = vld [vmem:[%s7 + $0xb8] sm:$0xff]
        %5703 = vset.pattern.permute.xlu0 0
        %5704 = vperm.xlu0 %5703, %v5678
        %v5705 = vpop.permute.xlu0 %5704
        %5708 = vset.pattern.permute.xlu0 0
        %5709 = vperm.xlu0 %5708, %v5679
        %v5710 = vpop.permute.xlu0 %5709
        %5713 = vset.pattern.permute.xlu0 0
        %5714 = vperm.xlu0 %5713, %v5680
        %v5715 = vpop.permute.xlu0 %5714
        %5718 = vset.pattern.permute.xlu0 0
        %5719 = vperm.xlu0 %5718, %v5681
        %v5720 = vpop.permute.xlu0 %5719
        %v5722 = vmul.f32 %v5630, %v5705
        %v5723 = vmul.f32 %v5631, %v5705
        %v5724 = vmul.f32 %v5642, %v5710
        %v5725 = vmul.f32 %v5643, %v5710
        %v5726 = vmul.f32 %v5654, %v5715
        %v5727 = vmul.f32 %v5655, %v5715
        %v5728 = vmul.f32 %v5666, %v5720
        %v5729 = vmul.f32 %v5667, %v5720
        %v5730 = vadd.f32 %v5722, %v5724
        %v5731 = vadd.f32 %v5730, %v5726
        %v5732 = vadd.f32 %v5731, %v5728
        %v5733 = vrot.slane %v5732, 4
        %v5734 = vadd.f32 %v5732, %v5733
        %v5735 = vrot.slane %v5734, 2
        %v5736 = vadd.f32 %v5734, %v5735
        %v5737 = vrot.slane %v5736, 1
        %v5738 = vadd.f32 %v5736, %v5737
        %v5739 = vadd.f32 %v5723, %v5725
        %v5740 = vadd.f32 %v5739, %v5727
        %v5741 = vadd.f32 %v5740, %v5729
        %v5742 = vrot.slane %v5741, 4
        %v5743 = vadd.f32 %v5741, %v5742
        %v5744 = vrot.slane %v5743, 2
        %v5745 = vadd.f32 %v5743, %v5744
        %v5746 = vrot.slane %v5745, 1
        %v5747 = vadd.f32 %v5745, %v5746
        %5749 = vset.pattern.permute.xlu0 0
        %5750 = vperm.xlu0 %5749, %v5682
        %v5751 = vpop.permute.xlu0 %5750
        %5754 = vset.pattern.permute.xlu0 0
        %5755 = vperm.xlu0 %5754, %v5683
        %v5756 = vpop.permute.xlu0 %5755
        %5759 = vset.pattern.permute.xlu0 0
        %5760 = vperm.xlu0 %5759, %v5684
        %v5761 = vpop.permute.xlu0 %5760
        %5764 = vset.pattern.permute.xlu0 0
        %5765 = vperm.xlu0 %5764, %v5685
        %v5766 = vpop.permute.xlu0 %5765
        %v5768 = vmul.f32 %v5632, %v5751
        %v5769 = vmul.f32 %v5633, %v5751
        %v5770 = vmul.f32 %v5644, %v5756
        %v5771 = vmul.f32 %v5645, %v5756
        %v5772 = vmul.f32 %v5656, %v5761
        %v5773 = vmul.f32 %v5657, %v5761
        %v5774 = vmul.f32 %v5668, %v5766
        %v5775 = vmul.f32 %v5669, %v5766
        %v5776 = vadd.f32 %v5768, %v5770
        %v5777 = vadd.f32 %v5776, %v5772
        %v5778 = vadd.f32 %v5777, %v5774
        %v5779 = vrot.slane %v5778, 4
        %v5780 = vadd.f32 %v5778, %v5779
        %v5781 = vrot.slane %v5780, 2
        %v5782 = vadd.f32 %v5780, %v5781
        %v5783 = vrot.slane %v5782, 1
        %v5784 = vadd.f32 %v5782, %v5783
        %v5785 = vadd.f32 %v5769, %v5771
        %v5786 = vadd.f32 %v5785, %v5773
        %v5787 = vadd.f32 %v5786, %v5775
        %v5788 = vrot.slane %v5787, 4
        %v5789 = vadd.f32 %v5787, %v5788
        %v5790 = vrot.slane %v5789, 2
        %v5791 = vadd.f32 %v5789, %v5790
        %v5792 = vrot.slane %v5791, 1
        %v5793 = vadd.f32 %v5791, %v5792
        %v5794 = vadd.f32 %v5738, %v5784
        %v5795 = vadd.f32 %v5747, %v5793
        %5797 = vset.pattern.permute.xlu0 0
        %5798 = vperm.xlu0 %5797, %v5686
        %v5799 = vpop.permute.xlu0 %5798
        %5802 = vset.pattern.permute.xlu0 0
        %5803 = vperm.xlu0 %5802, %v5687
        %v5804 = vpop.permute.xlu0 %5803
        %5807 = vset.pattern.permute.xlu0 0
        %5808 = vperm.xlu0 %5807, %v5688
        %v5809 = vpop.permute.xlu0 %5808
        %5812 = vset.pattern.permute.xlu0 0
        %5813 = vperm.xlu0 %5812, %v5689
        %v5814 = vpop.permute.xlu0 %5813
        %v5816 = vmul.f32 %v5634, %v5799
        %v5817 = vmul.f32 %v5635, %v5799
        %v5818 = vmul.f32 %v5646, %v5804
        %v5819 = vmul.f32 %v5647, %v5804
        %v5820 = vmul.f32 %v5658, %v5809
        %v5821 = vmul.f32 %v5659, %v5809
        %v5822 = vmul.f32 %v5670, %v5814
        %v5823 = vmul.f32 %v5671, %v5814
        %v5824 = vadd.f32 %v5816, %v5818
        %v5825 = vadd.f32 %v5824, %v5820
        %v5826 = vadd.f32 %v5825, %v5822
        %v5827 = vrot.slane %v5826, 4
        %v5828 = vadd.f32 %v5826, %v5827
        %v5829 = vrot.slane %v5828, 2
        %v5830 = vadd.f32 %v5828, %v5829
        %v5831 = vrot.slane %v5830, 1
        %v5832 = vadd.f32 %v5830, %v5831
        %v5833 = vadd.f32 %v5817, %v5819
        %v5834 = vadd.f32 %v5833, %v5821
        %v5835 = vadd.f32 %v5834, %v5823
        %v5836 = vrot.slane %v5835, 4
        %v5837 = vadd.f32 %v5835, %v5836
        %v5838 = vrot.slane %v5837, 2
        %v5839 = vadd.f32 %v5837, %v5838
        %v5840 = vrot.slane %v5839, 1
        %v5841 = vadd.f32 %v5839, %v5840
        %v5842 = vadd.f32 %v5794, %v5832
        %v5843 = vadd.f32 %v5795, %v5841
        %5845 = vset.pattern.permute.xlu0 0
        %5846 = vperm.xlu0 %5845, %v5690
        %v5847 = vpop.permute.xlu0 %5846
        %5850 = vset.pattern.permute.xlu0 0
        %5851 = vperm.xlu0 %5850, %v5691
        %v5852 = vpop.permute.xlu0 %5851
        %5855 = vset.pattern.permute.xlu0 0
        %5856 = vperm.xlu0 %5855, %v5692
        %v5857 = vpop.permute.xlu0 %5856
        %5860 = vset.pattern.permute.xlu0 0
        %5861 = vperm.xlu0 %5860, %v5693
        %v5862 = vpop.permute.xlu0 %5861
        %v5864 = vmul.f32 %v5636, %v5847
        %v5865 = vmul.f32 %v5637, %v5847
        %v5866 = vmul.f32 %v5648, %v5852
        %v5867 = vmul.f32 %v5649, %v5852
        %v5868 = vmul.f32 %v5660, %v5857
        %v5869 = vmul.f32 %v5661, %v5857
        %v5870 = vmul.f32 %v5672, %v5862
        %v5871 = vmul.f32 %v5673, %v5862
        %v5872 = vadd.f32 %v5864, %v5866
        %v5873 = vadd.f32 %v5872, %v5868
        %v5874 = vadd.f32 %v5873, %v5870
        %v5875 = vrot.slane %v5874, 4
        %v5876 = vadd.f32 %v5874, %v5875
        %v5877 = vrot.slane %v5876, 2
        %v5878 = vadd.f32 %v5876, %v5877
        %v5879 = vrot.slane %v5878, 1
        %v5880 = vadd.f32 %v5878, %v5879
        %v5881 = vadd.f32 %v5865, %v5867
        %v5882 = vadd.f32 %v5881, %v5869
        %v5883 = vadd.f32 %v5882, %v5871
        %v5884 = vrot.slane %v5883, 4
        %v5885 = vadd.f32 %v5883, %v5884
        %v5886 = vrot.slane %v5885, 2
        %v5887 = vadd.f32 %v5885, %v5886
        %v5888 = vrot.slane %v5887, 1
        %v5889 = vadd.f32 %v5887, %v5888
        %v5890 = vadd.f32 %v5842, %v5880
        %v5891 = vadd.f32 %v5843, %v5889
        %5893 = vset.pattern.permute.xlu0 0
        %5894 = vperm.xlu0 %5893, %v5694
        %v5895 = vpop.permute.xlu0 %5894
        %5898 = vset.pattern.permute.xlu0 0
        %5899 = vperm.xlu0 %5898, %v5695
        %v5900 = vpop.permute.xlu0 %5899
        %5903 = vset.pattern.permute.xlu0 0
        %5904 = vperm.xlu0 %5903, %v5696
        %v5905 = vpop.permute.xlu0 %5904
        %5908 = vset.pattern.permute.xlu0 0
        %5909 = vperm.xlu0 %5908, %v5697
        %v5910 = vpop.permute.xlu0 %5909
        %v5912 = vmul.f32 %v5638, %v5895
        %v5913 = vmul.f32 %v5639, %v5895
        %v5914 = vmul.f32 %v5650, %v5900
        %v5915 = vmul.f32 %v5651, %v5900
        %v5916 = vmul.f32 %v5662, %v5905
        %v5917 = vmul.f32 %v5663, %v5905
        %v5918 = vmul.f32 %v5674, %v5910
        %v5919 = vmul.f32 %v5675, %v5910
        %v5920 = vadd.f32 %v5912, %v5914
        %v5921 = vadd.f32 %v5920, %v5916
        %v5922 = vadd.f32 %v5921, %v5918
        %v5923 = vrot.slane %v5922, 4
        %v5924 = vadd.f32 %v5922, %v5923
        %v5925 = vrot.slane %v5924, 2
        %v5926 = vadd.f32 %v5924, %v5925
        %v5927 = vrot.slane %v5926, 1
        %v5928 = vadd.f32 %v5926, %v5927
        %v5929 = vadd.f32 %v5913, %v5915
        %v5930 = vadd.f32 %v5929, %v5917
        %v5931 = vadd.f32 %v5930, %v5919
        %v5932 = vrot.slane %v5931, 4
        %v5933 = vadd.f32 %v5931, %v5932
        %v5934 = vrot.slane %v5933, 2
        %v5935 = vadd.f32 %v5933, %v5934
        %v5936 = vrot.slane %v5935, 1
        %v5937 = vadd.f32 %v5935, %v5936
        %v5938 = vadd.f32 %v5890, %v5928
        %v5939 = vadd.f32 %v5891, %v5937
        %5941 = vset.pattern.permute.xlu0 0
        %5942 = vperm.xlu0 %5941, %v5698
        %v5943 = vpop.permute.xlu0 %5942
        %5946 = vset.pattern.permute.xlu0 0
        %5947 = vperm.xlu0 %5946, %v5699
        %v5948 = vpop.permute.xlu0 %5947
        %5951 = vset.pattern.permute.xlu0 0
        %5952 = vperm.xlu0 %5951, %v5700
        %v5953 = vpop.permute.xlu0 %5952
        %5956 = vset.pattern.permute.xlu0 0
        %5957 = vperm.xlu0 %5956, %v5701
        %v5958 = vpop.permute.xlu0 %5957
        %v5960 = vmul.f32 %v5640, %v5943
        %v5961 = vmul.f32 %v5641, %v5943
        %v5962 = vmul.f32 %v5652, %v5948
        %v5963 = vmul.f32 %v5653, %v5948
        %v5964 = vmul.f32 %v5664, %v5953
        %v5965 = vmul.f32 %v5665, %v5953
        %v5966 = vmul.f32 %v5676, %v5958
        %v5967 = vmul.f32 %v5677, %v5958
        %v5968 = vadd.f32 %v5960, %v5962
        %v5969 = vadd.f32 %v5968, %v5964
        %v5970 = vadd.f32 %v5969, %v5966
        %v5971 = vrot.slane %v5970, 4
        %v5972 = vadd.f32 %v5970, %v5971
        %v5973 = vrot.slane %v5972, 2
        %v5974 = vadd.f32 %v5972, %v5973
        %v5975 = vrot.slane %v5974, 1
        %v5976 = vadd.f32 %v5974, %v5975
        %v5977 = vadd.f32 %v5961, %v5963
        %v5978 = vadd.f32 %v5977, %v5965
        %v5979 = vadd.f32 %v5978, %v5967
        %v5980 = vrot.slane %v5979, 4
        %v5981 = vadd.f32 %v5979, %v5980
        %v5982 = vrot.slane %v5981, 2
        %v5983 = vadd.f32 %v5981, %v5982
        %v5984 = vrot.slane %v5983, 1
        %v5985 = vadd.f32 %v5983, %v5984
        %v5986 = vadd.f32 %v5938, %v5976
        %v5987 = vadd.f32 %v5939, %v5985
        %5989 = vset.pattern.permute.xlu0 0
        %5990 = vperm.xlu0 %5989, %v683
        %v5991 = vpop.permute.xlu0 %5990
        %v5993 = vadd.f32 %v5986, %v5991
        %v5994 = vadd.f32 %v5987, %v5991
        %v5997 = vcombine.low %v5993, %v5994
        %v5999 = vunpack.c.l.s4 1966171168
        %v6000 = vunpack.c.0.s8 %v5999
        %v6001 = vlaneseq
        %v6002 = vshrl.u32 %v6001, 7
        %v6003 = vsub.s32 %v6000, %v6002
        %v6004 = vrot.slane %v5997, %v6003
        %v6006 = vunpack.c.l.s4 1966171168
        %v6007 = vunpack.c.0.s8 %v6006
        %v6008 = vlaneseq
        %v6009 = vshrl.u32 %v6008, 7
        %v6010 = vsub.s32 %v6007, %v6009
        %v6011 = vrot.slane %v6004, %v6010
        %v6013 = vlaneseq
        %vm6014 = vcmp.ge.s32.totalorder %v6013, 0
        %vm6015 = vcmp.lt.s32.totalorder %v6013, 256
        %vm6016 = vmand %vm6014, %vm6015
        %6017 = vst.msk [vmem:[%s333] sm:$0x3] %vm6016, %v6011
        %s6018 = sand.u32 %s203, 1
        %s6019 = scalar_lea.sflag [#allocation4], %s6018
        %s6020 = sand.u32 %s203, 1
        %s6021 = smul.addr %s6020, 2
        %s6022 = scalar_lea.vmem [#allocation3], %s6021
        // Predicated region
        $region76: #{tpu_custom_call.1} parent=70 // pred_check
          %p6023 = pneg %p213
        $region77: #{tpu_custom_call.1} parent=70 // pred_check_branch
          %6025 = sbr.rel (%p6023) target = $region79
        $region78: #{tpu_custom_call.1} parent=70 // pred_region
          %s6026 = smul.u32 2, %s22
          %s6028 = ssub.s32 32, 32
          %6029 = vsyncadd %s6019, %s6028
          %s6030 = smul.addr %s6026, 16
          %s6031 = scalar_lea.hbm %s8, %s6030
          %s6033 = sshll.u32 %s6022, 4
          %s6034 = int_to_ptr.vmem [resolvable:$true] %s6033
          %6036 = dma.vmem_to_hbm [thread:$0]  %s6034, 32, %s6031, %s6019
        $region79: #{tpu_custom_call.1} parent=70 // pred_fallthru
          _
      $region71: #{tpu_custom_call.1} parent=5 // pred_fallthru
        _
      %p6037 = scmp.le.s32.totalorder 2, %s17
      // Predicated region
      $region80: #{tpu_custom_call.1} parent=5 // pred_check
        %p6038 = pneg %p6037
      $region81: #{tpu_custom_call.1} parent=5 // pred_check_branch
        %6040 = sbr.rel (%p6038) target = $region83
      $region82: #{tpu_custom_call.1} parent=5 // pred_region
        %s6041 = ssub.s32 %s17, 2
        // Predicated region
        $region84: #{tpu_custom_call.1} parent=82 // pred_check
          %p6042 = pneg %p219
        $region85: #{tpu_custom_call.1} parent=82 // pred_check_branch
          %6044 = sbr.rel (%p6042) target = $region87
        $region86: #{tpu_custom_call.1} parent=82 // pred_region
          %s6045 = sand.u32 %s204, 1
          %s6046 = scalar_lea.sflag [#allocation4], %s6045
          %s6047 = sand.u32 %s204, 1
          %s6048 = smul.addr %s6047, 2
          %s6049 = scalar_lea.vmem [#allocation3], %s6048
          %6050 = dma.done %s6046, 32
        $region87: #{tpu_custom_call.1} parent=82 // pred_fallthru
          _
      $region83: #{tpu_custom_call.1} parent=5 // pred_fallthru
        _
    $region6: #{tpu_custom_call.1} parent=1 // loop_footer
      %s21 = sadd.s32 1, %s17
    $region7: #{tpu_custom_call.1} parent=1 // loop_footer_branch
      %16 = sbr.rel target = $region3
    $region8: #{tpu_custom_call.1} parent=1 // loop_exit
      _
    %6051 = vsyncpa [#allocation4], 1
    %s6052 = scalar_lea.sflag [#allocation4], 1
    %6053 = vsyncpa %s6052, 1

</llo_original>
